<compile_context>
chip_gen: v5e
topology: v5e:2x2
jax: 0.10.0
libtpu: 0.0.40
codegen_flags: <defaults>
</compile_context>

<pallas_src>
import functools

import jax
import jax.numpy as jnp
import numpy as np
from jax.experimental import pallas as pl
from jax.experimental.pallas import tpu as pltpu


def _round_up(x, m):
    return (x + m - 1) // m * m


def _vmem_limit_bytes():
    # ~3/4 of this generation's VMEM, capped (v5e/v6e 128 MiB -> 96 MiB,
    # v7x 64 MiB -> 48 MiB).  Falls back to the v7x-safe value.
    try:
        cap = int(pltpu.get_tpu_info().vmem_capacity_bytes)
    except Exception:
        cap = 64 * 1024 * 1024
    return min(cap * 3 // 4, 100 * 1024 * 1024)


_VMEM_LIMIT = _vmem_limit_bytes()
_SLAB_CIN_MAX = 128   # im2col slab only for Cin < this; wider layers use 9 matmuls


# ----------------------------- Pallas kernels ------------------------------

def conv_bn_stats_kernel(x_ref, xhp_ref, xhn_ref, w_ref, b_ref, s_ref, t_ref,
                         y_ref, ts_ref, m2_ref, *scratch,
                         apply_input_bn_relu, use_slab, compute_dtype):
    """Fused [input BN+ReLU] -> 3x3 SAME conv (bf16 MXU, f32 acc) -> partial stats.

    One grid step (b, t) processes a TH-row horizontal stripe of image b.

    x_ref  : (1, TH, W, Cin)  current stripe of the previous activation
    xhp_ref: (1, 1, W, Cin)   row just above the stripe   (valid for t > 0)
    xhn_ref: (1, 1, W, Cin)   row just below the stripe   (valid for t < HT-1)
    w_ref  : (9*Cin, Cout)    conv weight, (dy, dx, ci) row-major, compute dtype
    b_ref  : (1, Cout)        conv bias (f32)
    s_ref/t_ref : (1, Cin)    folded BN scale/shift applied to the INPUT act.
    y_ref  : (1, TH, W, Cout) raw conv output stripe (pre-BN), compute dtype
    ts_ref : (1, 1, 1, Cout)  per-stripe channel sum of y
    m2_ref : (1, 1, 1, Cout)  per-stripe channel sum of squared deviations
    scratch: xp (TH+2, WP, Cin) zero-halo stripe; [slab (TH*W, 9*Cin)] if used
    """
    xp_ref = scratch[0]
    slab_ref = scratch[1] if use_slab else None

    _, TH, W, Cin = x_ref.shape
    Cout = y_ref.shape[3]
    ti = pl.program_id(1)
    n_t = pl.num_programs(1)
    f32 = jnp.float32

    def prep(rows):                       # rows: (r, W, Cin) raw previous act.
        rows = rows.astype(f32)
        if apply_input_bn_relu:           # previous layer's BN + ReLU, fused
            rows = jnp.maximum(rows * s_ref[...].reshape(1, 1, Cin)
                               + t_ref[...].reshape(1, 1, Cin), 0.0)
        return rows.astype(compute_dtype)

    # Zero-halo columns (image left/right edge).  Rows 0 / TH+1 are either the
    # neighbouring stripe's edge rows or zero at the true image top/bottom.
    zcol = jnp.zeros((TH + 2, 1, Cin), compute_dtype)
    zrow = jnp.zeros((1, W, Cin), compute_dtype)
    xp_ref[:, 0:1, :] = zcol
    xp_ref[:, W + 1:W + 2, :] = zcol

    xp_ref[1:TH + 1, 1:W + 1, :] = prep(x_ref[0])

    @pl.when(ti > 0)
    def _():
        xp_ref[0:1, 1:W + 1, :] = prep(xhp_ref[0])

    @pl.when(ti == 0)
    def _():
        xp_ref[0:1, 1:W + 1, :] = zrow

    @pl.when(ti < n_t - 1)
    def _():
        xp_ref[TH + 1:TH + 2, 1:W + 1, :] = prep(xhn_ref[0])

    @pl.when(ti == n_t - 1)
    def _():
        xp_ref[TH + 1:TH + 2, 1:W + 1, :] = zrow

    taps = [(dy, dx) for dy in range(3) for dx in range(3)]
    if use_slab:
        # Small-Cin layers: pack one (TH*W, 9*Cin) slab -> single MXU matmul.
        for k, (dy, dx) in enumerate(taps):
            slab_ref[:, k * Cin:(k + 1) * Cin] = (
                xp_ref[dy:dy + TH, dx:dx + W, :].reshape(TH * W, Cin))
        acc = jnp.dot(slab_ref[...], w_ref[...], preferred_element_type=f32)
    else:
        # Wide-Cin layers: 9 accumulating K=Cin matmuls straight off the halo
        # scratch — no (TH*W, 9*Cin) slab in VMEM, no 9x repack store traffic.
        acc = jnp.zeros((TH * W, Cout), f32)
        for k, (dy, dx) in enumerate(taps):
            win = xp_ref[dy:dy + TH, dx:dx + W, :].reshape(TH * W, Cin)
            acc = acc + jnp.dot(win, w_ref[k * Cin:(k + 1) * Cin, :],
                                preferred_element_type=f32)

    acc = acc + b_ref[...].astype(f32)            # conv bias (f32)
    yq = acc.astype(y_ref.dtype)                  # bf16 HBM storage of y
    y_ref[...] = yq.reshape(1, TH, W, Cout)

    # Per-stripe BN statistics of the *stored* activation: sum + mean-centred
    # M2, so the wrapper can do a Chan/Welford combine (no E[x^2]-E[x]^2).
    yf = yq.astype(f32)
    ts = jnp.sum(yf, axis=0, keepdims=True)       # (1, Cout)
    mu = ts * (1.0 / (TH * W))
    m2 = jnp.sum((yf - mu) * (yf - mu), axis=0, keepdims=True)
    ts_ref[...] = ts.reshape(1, 1, 1, Cout)
    m2_ref[...] = m2.reshape(1, 1, 1, Cout)


def bn_relu_kernel(y_ref, s_ref, t_ref, o_ref):
    """Final-layer BatchNorm (folded affine) + ReLU on a lane-dense 2-D slab."""
    y = y_ref[...].astype(jnp.float32)
    o_ref[...] = jnp.maximum(y * s_ref[...] + t_ref[...], 0.0)


# ------------------------------- wrappers -----------------------------------

def _estimate_conv_vmem(th, W, Cin, Cout, use_slab, x_bytes):
    wp = _round_up(W + 2, 8)
    est = 2 * th * W * Cin * x_bytes          # input stripe (double-buffered)
    est += 4 * W * Cin * x_bytes              # two halo rows (double-buffered)
    est += 2 * th * W * Cout * 2              # bf16 output stripe (double-buffered)
    est += (th + 2) * wp * Cin * 2            # halo scratch
    if use_slab:
        est += th * W * 9 * Cin * 2           # im2col slab
    est += 2 * 9 * Cin * Cout * 2             # weights (double-buffered)
    return est


def _choose_tile_h(H, W, Cin, Cout, use_slab, x_bytes):
    budget = int(_VMEM_LIMIT * 0.7)           # pipeline / regalloc headroom
    for th in range(H, 0, -1):                # biggest stripe that fits VMEM
        if H % th == 0 and _estimate_conv_vmem(
                th, W, Cin, Cout, use_slab, x_bytes) <= budget:
            return th
    return 1


def conv_bn_stats(x_nhwc, w_flat, bias, in_scale, in_shift, *,
                  apply_input_bn_relu, tile_h, use_slab, compute_dtype):
    N, H, W, Cin = x_nhwc.shape
    Cout = w_flat.shape[1]
    if tile_h is None:
        tile_h = _choose_tile_h(H, W, Cin, Cout, use_slab,
                                jnp.dtype(x_nhwc.dtype).itemsize)
    assert H % tile_h == 0, "tile_h must divide H"
    TH, HT = tile_h, H // tile_h
    WP = _round_up(W + 2, 8)                  # sublane-aligned halo scratch

    kernel = functools.partial(conv_bn_stats_kernel,
                               apply_input_bn_relu=apply_input_bn_relu,
                               use_slab=use_slab, compute_dtype=compute_dtype)
    scratch = [pltpu.VMEM((TH + 2, WP, Cin), compute_dtype)]
    if use_slab:
        scratch.append(pltpu.VMEM((TH * W, 9 * Cin), compute_dtype))

    y, ts, m2 = pl.pallas_call(
        kernel,
        out_shape=(jax.ShapeDtypeStruct((N, H, W, Cout), compute_dtype),
                   jax.ShapeDtypeStruct((N, HT, 1, Cout), jnp.float32),
                   jax.ShapeDtypeStruct((N, HT, 1, Cout), jnp.float32)),
        grid=(N, HT),
        in_specs=[
            pl.BlockSpec((1, TH, W, Cin), lambda b, t: (b, t, 0, 0)),
            # 1-row halos above / below the stripe (clamped at image edges; the
            # clamped row is ignored in-kernel and replaced by the zero pad).
            pl.BlockSpec((1, 1, W, Cin),
                         lambda b, t: (b, jnp.maximum(t * TH - 1, 0), 0, 0)),
            pl.BlockSpec((1, 1, W, Cin),
                         lambda b, t: (b, jnp.minimum(t * TH + TH, H - 1), 0, 0)),
            pl.BlockSpec((9 * Cin, Cout), lambda b, t: (0, 0)),   # grid-resident
            pl.BlockSpec((1, Cout), lambda b, t: (0, 0)),
            pl.BlockSpec((1, Cin), lambda b, t: (0, 0)),
            pl.BlockSpec((1, Cin), lambda b, t: (0, 0)),
        ],
        out_specs=(
            pl.BlockSpec((1, TH, W, Cout), lambda b, t: (b, t, 0, 0)),
            pl.BlockSpec((1, 1, 1, Cout), lambda b, t: (b, t, 0, 0)),
            pl.BlockSpec((1, 1, 1, Cout), lambda b, t: (b, t, 0, 0)),
        ),
        scratch_shapes=scratch,
        compiler_params=pltpu.CompilerParams(
            dimension_semantics=("parallel", "parallel"),
            vmem_limit_bytes=_VMEM_LIMIT),
    )(x_nhwc, x_nhwc, x_nhwc, w_flat, bias, in_scale, in_shift)

    # Chan / Welford combination of the per-stripe (sum, M2) partials.
    n_tile = float(TH * W)
    total = float(N * H * W)
    ts2 = ts.reshape(-1, Cout)
    m22 = m2.reshape(-1, Cout)
    mean = jnp.sum(ts2, axis=0) / total
    tile_mean = ts2 / n_tile
    m2_tot = jnp.sum(m22, axis=0) + n_tile * jnp.sum((tile_mean - mean) ** 2,
                                                     axis=0)
    var = m2_tot / total                      # biased variance (train-mode BN)
    return y, mean, var


def bn_fold(mean, var, gamma, beta, eps):
    inv_std = jax.lax.rsqrt(var + eps)
    scale = (gamma * inv_std).astype(jnp.float32)
    shift = (beta - mean * gamma * inv_std).astype(jnp.float32)
    return scale.reshape(1, -1), shift.reshape(1, -1)


def bn_relu(y_nhwc, scale, shift):
    N, H, W, C = y_nhwc.shape
    total = N * H * W * C
    if 128 % C == 0 and total % 128 == 0:
        # Lane-dense repack: each 128-lane row holds 128//C pixels x C channels,
        # so stores are full vregs even for small Cout (no masked vst).
        L, rep = 128, 128 // C
        y2d = y_nhwc.reshape(total // 128, 128)
        s = jnp.tile(scale.reshape(-1), rep).reshape(1, L)
        t = jnp.tile(shift.reshape(-1), rep).reshape(1, L)
    else:
        L = C
        y2d = y_nhwc.reshape(N * H * W, C)
        s, t = scale.reshape(1, C), shift.reshape(1, C)
    R = y2d.shape[0]
    TR = R if R <= 2048 else 2048
    out2d = pl.pallas_call(
        bn_relu_kernel,
        out_shape=jax.ShapeDtypeStruct((R, L), jnp.float32),
        grid=(pl.cdiv(R, TR),),
        in_specs=[pl.BlockSpec((TR, L), lambda r: (r, 0)),
                  pl.BlockSpec((1, L), lambda r: (0, 0)),
                  pl.BlockSpec((1, L), lambda r: (0, 0))],
        out_specs=pl.BlockSpec((TR, L), lambda r: (r, 0)),
        compiler_params=pltpu.CompilerParams(
            dimension_semantics=("parallel",),
            vmem_limit_bytes=_VMEM_LIMIT),
    )(y2d, s, t)
    return out2d.reshape(N, H, W, C)


@functools.partial(jax.jit,
                   static_argnames=("tile_h", "slab_cin_max", "compute_dtype"))
def double_conv(x_nchw, params, eps=1e-5, *, tile_h=None,
                slab_cin_max=_SLAB_CIN_MAX, compute_dtype=jnp.bfloat16):
    """_DoubleConv forward.  NCHW in, NCHW out (f32).

    params: [(w_hwio(3,3,ci,co), bias(co,), gamma(co,), beta(co,))] * 2.
    compute_dtype: MXU-input / intermediate-activation storage dtype (bf16 by
    default); accumulation and BatchNorm statistics are always f32.
    """
    x = jnp.transpose(x_nchw, (0, 2, 3, 1)).astype(jnp.float32)   # -> NHWC
    (w1, b1, g1, be1), (w2, b2, g2, be2) = params
    cin1, cout1 = w1.shape[2], w1.shape[3]
    cout2 = w2.shape[3]
    w1f = w1.reshape(9 * cin1, cout1).astype(compute_dtype)       # (dy,dx,ci) rows
    w2f = w2.reshape(9 * cout1, cout2).astype(compute_dtype)

    # Layer 1: conv + fused per-stripe batch stats (input used as-is).
    ones = jnp.ones((1, cin1), jnp.float32)
    zeros = jnp.zeros((1, cin1), jnp.float32)
    y1, m1, v1 = conv_bn_stats(
        x, w1f, b1.reshape(1, -1).astype(jnp.float32), ones, zeros,
        apply_input_bn_relu=False, tile_h=tile_h,
        use_slab=cin1 < slab_cin_max, compute_dtype=compute_dtype)
    s1, t1 = bn_fold(m1, v1, g1, be1, eps)

    # Layer 2: BN1+ReLU fused into conv2's input load, + fused stats.
    y2, m2, v2 = conv_bn_stats(
        y1, w2f, b2.reshape(1, -1).astype(jnp.float32), s1, t1,
        apply_input_bn_relu=True, tile_h=tile_h,
        use_slab=cout1 < slab_cin_max, compute_dtype=compute_dtype)
    s2, t2 = bn_fold(m2, v2, g2, be2, eps)

    # Final BN+ReLU needs full-batch stats of y2 -> one lane-dense elementwise
    # pass.  (If this block fed another conv, s2/t2 would instead be folded
    # into that conv's input load exactly like layer 2 above.)
    out = bn_relu(y2, s2, t2)
    return jnp.transpose(out, (0, 3, 1, 2))                       # -> NCHW


# ------------------------- reference (pure JAX) ------------------------------

def double_conv_ref(x_nchw, params, eps=1e-5, compute_dtype=jnp.float32):
    """Pure-JAX reference.  compute_dtype mirrors the kernel's quantization
    points (conv inputs and HBM storage of the intermediate activations)."""
    x = jnp.transpose(x_nchw, (0, 2, 3, 1)).astype(jnp.float32)
    for (w, b, gamma, beta) in params:
        y = jax.lax.conv_general_dilated(
            x.astype(compute_dtype), w.astype(compute_dtype),
            window_strides=(1, 1), padding="SAME",
            dimension_numbers=("NHWC", "HWIO", "NHWC"),
            preferred_element_type=jnp.float32) + b
        y = y.astype(compute_dtype).astype(jnp.float32)   # storage of y
        mean = jnp.mean(y, axis=(0, 1, 2))
        var = jnp.mean((y - mean) ** 2, axis=(0, 1, 2))
        x = jnp.maximum((y - mean) * jax.lax.rsqrt(var + eps) * gamma + beta,
                        0.0)
    return jnp.transpose(x, (0, 3, 1, 2))


# --------------------------------- main --------------------------------------

if __name__ == "__main__":
    N, Cin, Cout, H, W = 2, 4, 8, 16, 16
    key = jax.random.PRNGKey(0)
    kx, kw1, kb1, kw2, kb2 = jax.random.split(key, 5)
    x = jax.random.normal(kx, (N, Cin, H, W), dtype=jnp.float32)   # NCHW input

    # Conv2d-style init (weights stored HWIO); BN gamma=1, beta=0 (PyTorch default).
    def conv_init(kw, kb, cin, cout):
        bound = 1.0 / np.sqrt(cin * 9)
        w = jax.random.uniform(kw, (3, 3, cin, cout), jnp.float32, -bound, bound)
        b = jax.random.uniform(kb, (cout,), jnp.float32, -bound, bound)
        return w, b

    w1, b1 = conv_init(kw1, kb1, Cin, Cout)
    w2, b2 = conv_init(kw2, kb2, Cout, Cout)
    params = [
        (w1, b1, jnp.ones((Cout,), jnp.float32), jnp.zeros((Cout,), jnp.float32)),
        (w2, b2, jnp.ones((Cout,), jnp.float32), jnp.zeros((Cout,), jnp.float32)),
    ]

    ref32 = jax.block_until_ready(
        double_conv_ref(x, params, compute_dtype=jnp.float32))
    ref16 = jax.block_until_ready(
        double_conv_ref(x, params, compute_dtype=jnp.bfloat16))

    # (a) f32 compute, im2col-slab path, auto stripe size: exact check.
    out_a = jax.block_until_ready(double_conv(x, params, compute_dtype=jnp.float32))
    assert out_a.shape == (N, Cout, H, W)
    np.testing.assert_allclose(np.asarray(out_a), np.asarray(ref32),
                               rtol=1e-4, atol=1e-4)

    # (b) f32 compute with forced H-tiling (4-row stripes + halo rows) and the
    #     no-slab 9-matmul path: exact check of the tiled/halo code paths.
    out_b = jax.block_until_ready(
        double_conv(x, params, compute_dtype=jnp.float32,
                    tile_h=4, slab_cin_max=0))
    np.testing.assert_allclose(np.asarray(out_b), np.asarray(ref32),
                               rtol=1e-4, atol=1e-4)

    # (c) default bf16 MXU inputs / bf16 intermediate storage (production
    #     config): compare against a reference with matching quantization
    #     points, and loosely against the pure-f32 PyTorch-semantics reference.
    out_c = jax.block_until_ready(double_conv(x, params))
    np.testing.assert_allclose(np.asarray(out_c), np.asarray(ref16),
                               rtol=2.5e-2, atol=2.5e-2)
    np.testing.assert_allclose(np.asarray(out_c), np.asarray(ref32),
                               rtol=6e-2, atol=6e-2)

    print("KERNEL_OK")
</pallas_src>

<mosaic_0001>
module attributes {stable_mosaic.version = 11 : i64} {
  func.func @conv_bn_stats_kernel(%arg0: i32, %arg1: i32, %arg2: memref<1x16x16x4xf32, #tpu.memory_space<vmem>>, %arg3: memref<1x1x16x4xf32, #tpu.memory_space<vmem>>, %arg4: memref<1x1x16x4xf32, #tpu.memory_space<vmem>>, %arg5: memref<36x8xf32, #tpu.memory_space<vmem>>, %arg6: memref<1x8xf32, #tpu.memory_space<vmem>>, %arg7: memref<1x4xf32, #tpu.memory_space<vmem>>, %arg8: memref<1x4xf32, #tpu.memory_space<vmem>>, %arg9: memref<1x16x16x8xf32, #tpu.memory_space<vmem>>, %arg10: memref<1x1x1x8xf32, #tpu.memory_space<vmem>>, %arg11: memref<1x1x1x8xf32, #tpu.memory_space<vmem>>, %arg12: memref<18x24x4xf32, #tpu.memory_space<vmem>>, %arg13: memref<256x36xf32, #tpu.memory_space<vmem>>) attributes {dimension_semantics = [#tpu.dimension_semantics<parallel>, #tpu.dimension_semantics<parallel>], iteration_bounds = array<i64: 2, 1>, scalar_prefetch = 0 : i64, scratch_operands = 2 : i64, tpu.core_type = #tpu.core_type<tc>, window_params = [{transform_indices = @transform_0, window_bounds = array<i64: 1, 16, 16, 4>}, {transform_indices = @transform_1, window_bounds = array<i64: 1, 1, 16, 4>}, {transform_indices = @transform_2, window_bounds = array<i64: 1, 1, 16, 4>}, {pipeline_mode = #tpu.pipeline_mode<synchronous>, transform_indices = @transform_3, window_bounds = array<i64: 36, 8>}, {pipeline_mode = #tpu.pipeline_mode<synchronous>, transform_indices = @transform_4, window_bounds = array<i64: 1, 8>}, {pipeline_mode = #tpu.pipeline_mode<synchronous>, transform_indices = @transform_5, window_bounds = array<i64: 1, 4>}, {pipeline_mode = #tpu.pipeline_mode<synchronous>, transform_indices = @transform_6, window_bounds = array<i64: 1, 4>}, {transform_indices = @transform_7, window_bounds = array<i64: 1, 16, 16, 8>}, {transform_indices = @transform_8, window_bounds = array<i64: 1, 1, 1, 8>}, {transform_indices = @transform_9, window_bounds = array<i64: 1, 1, 1, 8>}]} {
    %cst = arith.constant 0.000000e+00 : f32
    %0 = vector.broadcast %cst : f32 to vector<18x1x4xf32>
    %cst_0 = arith.constant 0.000000e+00 : f32
    %1 = vector.broadcast %cst_0 : f32 to vector<1x16x4xf32>
    %c0 = arith.constant 0 : index
    %c0_1 = arith.constant 0 : index
    %c0_2 = arith.constant 0 : index
    %2 = vector.load %arg12[%c0, %c0_1, %c0_2] : memref<18x24x4xf32, #tpu.memory_space<vmem>>, vector<18x1x4xf32>
    tpu.vector_store %arg12[%c0, %c0_1, %c0_2], %0 {strides = array<i32>} : memref<18x24x4xf32, #tpu.memory_space<vmem>>, vector<18x1x4xf32>,
    %c0_3 = arith.constant 0 : index
    %c17 = arith.constant 17 : index
    %c0_4 = arith.constant 0 : index
    %3 = vector.load %arg12[%c0_3, %c17, %c0_4] : memref<18x24x4xf32, #tpu.memory_space<vmem>>, vector<18x1x4xf32>
    tpu.vector_store %arg12[%c0_3, %c17, %c0_4], %0 {strides = array<i32>} : memref<18x24x4xf32, #tpu.memory_space<vmem>>, vector<18x1x4xf32>,
    %c0_5 = arith.constant 0 : index
    %c0_6 = arith.constant 0 : index
    %c0_7 = arith.constant 0 : index
    %c0_8 = arith.constant 0 : index
    %4 = vector.load %arg2[%c0_5, %c0_6, %c0_7, %c0_8] : memref<1x16x16x4xf32, #tpu.memory_space<vmem>>, vector<1x16x16x4xf32>
    %5 = vector.shape_cast %4 : vector<1x16x16x4xf32> to vector<16x16x4xf32>
    %c1 = arith.constant 1 : index
    %c1_9 = arith.constant 1 : index
    %c0_10 = arith.constant 0 : index
    %6 = vector.load %arg12[%c1, %c1_9, %c0_10] : memref<18x24x4xf32, #tpu.memory_space<vmem>>, vector<16x16x4xf32>
    tpu.vector_store %arg12[%c1, %c1_9, %c0_10], %5 {strides = array<i32>} : memref<18x24x4xf32, #tpu.memory_space<vmem>>, vector<16x16x4xf32>,
    %c0_i32 = arith.constant 0 : i32
    %7 = arith.cmpi sgt, %arg1, %c0_i32 : i32
    %8 = arith.extui %7 : i1 to i32
    %c0_i32_11 = arith.constant 0 : i32
    %9 = arith.cmpi ne, %8, %c0_i32_11 : i32
    scf.if %9 {
      %c0_76 = arith.constant 0 : index
      %c0_77 = arith.constant 0 : index
      %c0_78 = arith.constant 0 : index
      %c0_79 = arith.constant 0 : index
      %69 = vector.load %arg3[%c0_76, %c0_77, %c0_78, %c0_79] : memref<1x1x16x4xf32, #tpu.memory_space<vmem>>, vector<1x1x16x4xf32>
      %70 = vector.shape_cast %69 : vector<1x1x16x4xf32> to vector<1x16x4xf32>
      %c0_80 = arith.constant 0 : index
      %c1_81 = arith.constant 1 : index
      %c0_82 = arith.constant 0 : index
      %71 = vector.load %arg12[%c0_80, %c1_81, %c0_82] : memref<18x24x4xf32, #tpu.memory_space<vmem>>, vector<1x16x4xf32>
      tpu.vector_store %arg12[%c0_80, %c1_81, %c0_82], %70 {strides = array<i32>} : memref<18x24x4xf32, #tpu.memory_space<vmem>>, vector<1x16x4xf32>,
    } else {
    }
    %c0_i32_12 = arith.constant 0 : i32
    %10 = arith.cmpi eq, %arg1, %c0_i32_12 : i32
    %11 = arith.extui %10 : i1 to i32
    %c0_i32_13 = arith.constant 0 : i32
    %12 = arith.cmpi ne, %11, %c0_i32_13 : i32
    scf.if %12 {
      %c0_76 = arith.constant 0 : index
      %c1_77 = arith.constant 1 : index
      %c0_78 = arith.constant 0 : index
      %69 = vector.load %arg12[%c0_76, %c1_77, %c0_78] : memref<18x24x4xf32, #tpu.memory_space<vmem>>, vector<1x16x4xf32>
      tpu.vector_store %arg12[%c0_76, %c1_77, %c0_78], %1 {strides = array<i32>} : memref<18x24x4xf32, #tpu.memory_space<vmem>>, vector<1x16x4xf32>,
    } else {
    }
    %c0_i32_14 = arith.constant 0 : i32
    %13 = arith.cmpi slt, %arg1, %c0_i32_14 : i32
    %14 = arith.extui %13 : i1 to i32
    %c0_i32_15 = arith.constant 0 : i32
    %15 = arith.cmpi ne, %14, %c0_i32_15 : i32
    scf.if %15 {
      %c0_76 = arith.constant 0 : index
      %c0_77 = arith.constant 0 : index
      %c0_78 = arith.constant 0 : index
      %c0_79 = arith.constant 0 : index
      %69 = vector.load %arg4[%c0_76, %c0_77, %c0_78, %c0_79] : memref<1x1x16x4xf32, #tpu.memory_space<vmem>>, vector<1x1x16x4xf32>
      %70 = vector.shape_cast %69 : vector<1x1x16x4xf32> to vector<1x16x4xf32>
      %c17_80 = arith.constant 17 : index
      %c1_81 = arith.constant 1 : index
      %c0_82 = arith.constant 0 : index
      %71 = vector.load %arg12[%c17_80, %c1_81, %c0_82] : memref<18x24x4xf32, #tpu.memory_space<vmem>>, vector<1x16x4xf32>
      tpu.vector_store %arg12[%c17_80, %c1_81, %c0_82], %70 {strides = array<i32>} : memref<18x24x4xf32, #tpu.memory_space<vmem>>, vector<1x16x4xf32>,
    } else {
    }
    %c0_i32_16 = arith.constant 0 : i32
    %16 = arith.cmpi eq, %arg1, %c0_i32_16 : i32
    %17 = arith.extui %16 : i1 to i32
    %c0_i32_17 = arith.constant 0 : i32
    %18 = arith.cmpi ne, %17, %c0_i32_17 : i32
    scf.if %18 {
      %c17_76 = arith.constant 17 : index
      %c1_77 = arith.constant 1 : index
      %c0_78 = arith.constant 0 : index
      %69 = vector.load %arg12[%c17_76, %c1_77, %c0_78] : memref<18x24x4xf32, #tpu.memory_space<vmem>>, vector<1x16x4xf32>
      tpu.vector_store %arg12[%c17_76, %c1_77, %c0_78], %1 {strides = array<i32>} : memref<18x24x4xf32, #tpu.memory_space<vmem>>, vector<1x16x4xf32>,
    } else {
    }
    %c0_18 = arith.constant 0 : index
    %c0_19 = arith.constant 0 : index
    %c0_20 = arith.constant 0 : index
    %19 = vector.load %arg12[%c0_18, %c0_19, %c0_20] : memref<18x24x4xf32, #tpu.memory_space<vmem>>, vector<16x16x4xf32>
    %20 = vector.shape_cast %19 : vector<16x16x4xf32> to vector<256x4xf32>
    %c0_21 = arith.constant 0 : index
    %c0_22 = arith.constant 0 : index
    %21 = vector.load %arg13[%c0_21, %c0_22] : memref<256x36xf32, #tpu.memory_space<vmem>>, vector<256x4xf32>
    tpu.vector_store %arg13[%c0_21, %c0_22], %20 {strides = array<i32>} : memref<256x36xf32, #tpu.memory_space<vmem>>, vector<256x4xf32>,
    %c0_23 = arith.constant 0 : index
    %c1_24 = arith.constant 1 : index
    %c0_25 = arith.constant 0 : index
    %22 = vector.load %arg12[%c0_23, %c1_24, %c0_25] : memref<18x24x4xf32, #tpu.memory_space<vmem>>, vector<16x16x4xf32>
    %23 = vector.shape_cast %22 : vector<16x16x4xf32> to vector<256x4xf32>
    %c0_26 = arith.constant 0 : index
    %c4 = arith.constant 4 : index
    %24 = vector.load %arg13[%c0_26, %c4] : memref<256x36xf32, #tpu.memory_space<vmem>>, vector<256x4xf32>
    tpu.vector_store %arg13[%c0_26, %c4], %23 {strides = array<i32>} : memref<256x36xf32, #tpu.memory_space<vmem>>, vector<256x4xf32>,
    %c0_27 = arith.constant 0 : index
    %c2 = arith.constant 2 : index
    %c0_28 = arith.constant 0 : index
    %25 = vector.load %arg12[%c0_27, %c2, %c0_28] : memref<18x24x4xf32, #tpu.memory_space<vmem>>, vector<16x16x4xf32>
    %26 = vector.shape_cast %25 : vector<16x16x4xf32> to vector<256x4xf32>
    %c0_29 = arith.constant 0 : index
    %c8 = arith.constant 8 : index
    %27 = vector.load %arg13[%c0_29, %c8] : memref<256x36xf32, #tpu.memory_space<vmem>>, vector<256x4xf32>
    tpu.vector_store %arg13[%c0_29, %c8], %26 {strides = array<i32>} : memref<256x36xf32, #tpu.memory_space<vmem>>, vector<256x4xf32>,
    %c1_30 = arith.constant 1 : index
    %c0_31 = arith.constant 0 : index
    %c0_32 = arith.constant 0 : index
    %28 = vector.load %arg12[%c1_30, %c0_31, %c0_32] : memref<18x24x4xf32, #tpu.memory_space<vmem>>, vector<16x16x4xf32>
    %29 = vector.shape_cast %28 : vector<16x16x4xf32> to vector<256x4xf32>
    %c0_33 = arith.constant 0 : index
    %c12 = arith.constant 12 : index
    %30 = vector.load %arg13[%c0_33, %c12] : memref<256x36xf32, #tpu.memory_space<vmem>>, vector<256x4xf32>
    tpu.vector_store %arg13[%c0_33, %c12], %29 {strides = array<i32>} : memref<256x36xf32, #tpu.memory_space<vmem>>, vector<256x4xf32>,
    %c1_34 = arith.constant 1 : index
    %c1_35 = arith.constant 1 : index
    %c0_36 = arith.constant 0 : index
    %31 = vector.load %arg12[%c1_34, %c1_35, %c0_36] : memref<18x24x4xf32, #tpu.memory_space<vmem>>, vector<16x16x4xf32>
    %32 = vector.shape_cast %31 : vector<16x16x4xf32> to vector<256x4xf32>
    %c0_37 = arith.constant 0 : index
    %c16 = arith.constant 16 : index
    %33 = vector.load %arg13[%c0_37, %c16] : memref<256x36xf32, #tpu.memory_space<vmem>>, vector<256x4xf32>
    tpu.vector_store %arg13[%c0_37, %c16], %32 {strides = array<i32>} : memref<256x36xf32, #tpu.memory_space<vmem>>, vector<256x4xf32>,
    %c1_38 = arith.constant 1 : index
    %c2_39 = arith.constant 2 : index
    %c0_40 = arith.constant 0 : index
    %34 = vector.load %arg12[%c1_38, %c2_39, %c0_40] : memref<18x24x4xf32, #tpu.memory_space<vmem>>, vector<16x16x4xf32>
    %35 = vector.shape_cast %34 : vector<16x16x4xf32> to vector<256x4xf32>
    %c0_41 = arith.constant 0 : index
    %c20 = arith.constant 20 : index
    %36 = vector.load %arg13[%c0_41, %c20] : memref<256x36xf32, #tpu.memory_space<vmem>>, vector<256x4xf32>
    tpu.vector_store %arg13[%c0_41, %c20], %35 {strides = array<i32>} : memref<256x36xf32, #tpu.memory_space<vmem>>, vector<256x4xf32>,
    %c2_42 = arith.constant 2 : index
    %c0_43 = arith.constant 0 : index
    %c0_44 = arith.constant 0 : index
    %37 = vector.load %arg12[%c2_42, %c0_43, %c0_44] : memref<18x24x4xf32, #tpu.memory_space<vmem>>, vector<16x16x4xf32>
    %38 = vector.shape_cast %37 : vector<16x16x4xf32> to vector<256x4xf32>
    %c0_45 = arith.constant 0 : index
    %c24 = arith.constant 24 : index
    %39 = vector.load %arg13[%c0_45, %c24] : memref<256x36xf32, #tpu.memory_space<vmem>>, vector<256x4xf32>
    tpu.vector_store %arg13[%c0_45, %c24], %38 {strides = array<i32>} : memref<256x36xf32, #tpu.memory_space<vmem>>, vector<256x4xf32>,
    %c2_46 = arith.constant 2 : index
    %c1_47 = arith.constant 1 : index
    %c0_48 = arith.constant 0 : index
    %40 = vector.load %arg12[%c2_46, %c1_47, %c0_48] : memref<18x24x4xf32, #tpu.memory_space<vmem>>, vector<16x16x4xf32>
    %41 = vector.shape_cast %40 : vector<16x16x4xf32> to vector<256x4xf32>
    %c0_49 = arith.constant 0 : index
    %c28 = arith.constant 28 : index
    %42 = vector.load %arg13[%c0_49, %c28] : memref<256x36xf32, #tpu.memory_space<vmem>>, vector<256x4xf32>
    tpu.vector_store %arg13[%c0_49, %c28], %41 {strides = array<i32>} : memref<256x36xf32, #tpu.memory_space<vmem>>, vector<256x4xf32>,
    %c2_50 = arith.constant 2 : index
    %c2_51 = arith.constant 2 : index
    %c0_52 = arith.constant 0 : index
    %43 = vector.load %arg12[%c2_50, %c2_51, %c0_52] : memref<18x24x4xf32, #tpu.memory_space<vmem>>, vector<16x16x4xf32>
    %44 = vector.shape_cast %43 : vector<16x16x4xf32> to vector<256x4xf32>
    %c0_53 = arith.constant 0 : index
    %c32 = arith.constant 32 : index
    %45 = vector.load %arg13[%c0_53, %c32] : memref<256x36xf32, #tpu.memory_space<vmem>>, vector<256x4xf32>
    tpu.vector_store %arg13[%c0_53, %c32], %44 {strides = array<i32>} : memref<256x36xf32, #tpu.memory_space<vmem>>, vector<256x4xf32>,
    %c0_54 = arith.constant 0 : index
    %c0_55 = arith.constant 0 : index
    %46 = vector.load %arg13[%c0_54, %c0_55] : memref<256x36xf32, #tpu.memory_space<vmem>>, vector<256x36xf32>
    %c0_56 = arith.constant 0 : index
    %c0_57 = arith.constant 0 : index
    %47 = vector.load %arg5[%c0_56, %c0_57] : memref<36x8xf32, #tpu.memory_space<vmem>>, vector<36x8xf32>
    %cst_58 = arith.constant dense<0.000000e+00> : vector<256x8xf32>
    %48 = tpu.matmul %46, %47, %cst_58 {dimension_numbers = #tpu.dot_dimension_numbers<[1], [0], [0], [1], [0, 0, 1, 1], [], []>} : vector<256x36xf32>, vector<36x8xf32>, vector<256x8xf32> -> vector<256x8xf32>
    %c0_59 = arith.constant 0 : index
    %c0_60 = arith.constant 0 : index
    %49 = vector.load %arg6[%c0_59, %c0_60] : memref<1x8xf32, #tpu.memory_space<vmem>>, vector<1x8xf32>
    %50 = vector.broadcast %49 : vector<1x8xf32> to vector<256x8xf32>
    %51 = arith.addf %48, %50 : vector<256x8xf32>
    %52 = vector.shape_cast %51 : vector<256x8xf32> to vector<1x16x16x8xf32>
    %c0_61 = arith.constant 0 : index
    %c0_62 = arith.constant 0 : index
    %c0_63 = arith.constant 0 : index
    %c0_64 = arith.constant 0 : index
    %53 = vector.load %arg9[%c0_61, %c0_62, %c0_63, %c0_64] : memref<1x16x16x8xf32, #tpu.memory_space<vmem>>, vector<1x16x16x8xf32>
    tpu.vector_store %arg9[%c0_61, %c0_62, %c0_63, %c0_64], %52 {strides = array<i32>} : memref<1x16x16x8xf32, #tpu.memory_space<vmem>>, vector<1x16x16x8xf32>,
    %cst_65 = arith.constant dense<0.000000e+00> : vector<8xf32>
    %54 = vector.multi_reduction <add>, %51, %cst_65 [0] : vector<256x8xf32> to vector<8xf32>
    %55 = vector.shape_cast %54 : vector<8xf32> to vector<1x8xf32>
    %cst_66 = arith.constant 3.906250e-03 : f32
    %56 = vector.broadcast %cst_66 : f32 to vector<1x8xf32>
    %57 = arith.mulf %55, %56 : vector<1x8xf32>
    %58 = vector.broadcast %57 : vector<1x8xf32> to vector<256x8xf32>
    %59 = arith.subf %51, %58 : vector<256x8xf32>
    %60 = vector.broadcast %57 : vector<1x8xf32> to vector<256x8xf32>
    %61 = arith.subf %51, %60 : vector<256x8xf32>
    %62 = arith.mulf %59, %61 : vector<256x8xf32>
    %cst_67 = arith.constant dense<0.000000e+00> : vector<8xf32>
    %63 = vector.multi_reduction <add>, %62, %cst_67 [0] : vector<256x8xf32> to vector<8xf32>
    %64 = vector.shape_cast %63 : vector<8xf32> to vector<1x8xf32>
    %65 = vector.shape_cast %55 : vector<1x8xf32> to vector<1x1x1x8xf32>
    %c0_68 = arith.constant 0 : index
    %c0_69 = arith.constant 0 : index
    %c0_70 = arith.constant 0 : index
    %c0_71 = arith.constant 0 : index
    %66 = vector.load %arg10[%c0_68, %c0_69, %c0_70, %c0_71] : memref<1x1x1x8xf32, #tpu.memory_space<vmem>>, vector<1x1x1x8xf32>
    tpu.vector_store %arg10[%c0_68, %c0_69, %c0_70, %c0_71], %65 {strides = array<i32>} : memref<1x1x1x8xf32, #tpu.memory_space<vmem>>, vector<1x1x1x8xf32>,
    %67 = vector.shape_cast %64 : vector<1x8xf32> to vector<1x1x1x8xf32>
    %c0_72 = arith.constant 0 : index
    %c0_73 = arith.constant 0 : index
    %c0_74 = arith.constant 0 : index
    %c0_75 = arith.constant 0 : index
    %68 = vector.load %arg11[%c0_72, %c0_73, %c0_74, %c0_75] : memref<1x1x1x8xf32, #tpu.memory_space<vmem>>, vector<1x1x1x8xf32>
    tpu.vector_store %arg11[%c0_72, %c0_73, %c0_74, %c0_75], %67 {strides = array<i32>} : memref<1x1x1x8xf32, #tpu.memory_space<vmem>>, vector<1x1x1x8xf32>,
    return
  }
  func.func @transform_0(%arg0: i32, %arg1: i32) -> (i32, i32, i32, i32) {
    %c0_i32 = arith.constant 0 : i32
    %c0_i32_0 = arith.constant 0 : i32
    %c0_i32_1 = arith.constant 0 : i32
    return %arg0, %arg1, %c0_i32, %c0_i32_0 : i32, i32, i32, i32
  }
  func.func @transform_1(%arg0: i32, %arg1: i32) -> (i32, i32, i32, i32) {
    %c16_i32 = arith.constant 16 : i32
    %0 = arith.muli %arg1, %c16_i32 : i32
    %c1_i32 = arith.constant 1 : i32
    %1 = arith.subi %0, %c1_i32 : i32
    %c0_i32 = arith.constant 0 : i32
    %2 = arith.maxsi %1, %c0_i32 : i32
    %c0_i32_0 = arith.constant 0 : i32
    %c0_i32_1 = arith.constant 0 : i32
    %c0_i32_2 = arith.constant 0 : i32
    return %arg0, %2, %c0_i32_0, %c0_i32_1 : i32, i32, i32, i32
  }
  func.func @transform_2(%arg0: i32, %arg1: i32) -> (i32, i32, i32, i32) {
    %c16_i32 = arith.constant 16 : i32
    %0 = arith.muli %arg1, %c16_i32 : i32
    %c16_i32_0 = arith.constant 16 : i32
    %1 = arith.addi %0, %c16_i32_0 : i32
    %c15_i32 = arith.constant 15 : i32
    %2 = arith.minsi %1, %c15_i32 : i32
    %c0_i32 = arith.constant 0 : i32
    %c0_i32_1 = arith.constant 0 : i32
    %c0_i32_2 = arith.constant 0 : i32
    return %arg0, %2, %c0_i32, %c0_i32_1 : i32, i32, i32, i32
  }
  func.func @transform_3(%arg0: i32, %arg1: i32) -> (i32, i32) {
    %c0_i32 = arith.constant 0 : i32
    %c0_i32_0 = arith.constant 0 : i32
    %c0_i32_1 = arith.constant 0 : i32
    return %c0_i32, %c0_i32_0 : i32, i32
  }
  func.func @transform_4(%arg0: i32, %arg1: i32) -> (i32, i32) {
    %c0_i32 = arith.constant 0 : i32
    %c0_i32_0 = arith.constant 0 : i32
    %c0_i32_1 = arith.constant 0 : i32
    return %c0_i32, %c0_i32_0 : i32, i32
  }
  func.func @transform_5(%arg0: i32, %arg1: i32) -> (i32, i32) {
    %c0_i32 = arith.constant 0 : i32
    %c0_i32_0 = arith.constant 0 : i32
    %c0_i32_1 = arith.constant 0 : i32
    return %c0_i32, %c0_i32_0 : i32, i32
  }
  func.func @transform_6(%arg0: i32, %arg1: i32) -> (i32, i32) {
    %c0_i32 = arith.constant 0 : i32
    %c0_i32_0 = arith.constant 0 : i32
    %c0_i32_1 = arith.constant 0 : i32
    return %c0_i32, %c0_i32_0 : i32, i32
  }
  func.func @transform_7(%arg0: i32, %arg1: i32) -> (i32, i32, i32, i32) {
    %c0_i32 = arith.constant 0 : i32
    %c0_i32_0 = arith.constant 0 : i32
    %c0_i32_1 = arith.constant 0 : i32
    return %arg0, %arg1, %c0_i32, %c0_i32_0 : i32, i32, i32, i32
  }
  func.func @transform_8(%arg0: i32, %arg1: i32) -> (i32, i32, i32, i32) {
    %c0_i32 = arith.constant 0 : i32
    %c0_i32_0 = arith.constant 0 : i32
    %c0_i32_1 = arith.constant 0 : i32
    return %arg0, %arg1, %c0_i32, %c0_i32_0 : i32, i32, i32, i32
  }
  func.func @transform_9(%arg0: i32, %arg1: i32) -> (i32, i32, i32, i32) {
    %c0_i32 = arith.constant 0 : i32
    %c0_i32_0 = arith.constant 0 : i32
    %c0_i32_1 = arith.constant 0 : i32
    return %arg0, %arg1, %c0_i32, %c0_i32_0 : i32, i32, i32, i32
  }
}

module attributes {stable_mosaic.version = 11 : i64} {
  func.func @conv_bn_stats_kernel(%arg0: i32, %arg1: i32, %arg2: memref<1x16x16x8xf32, #tpu.memory_space<vmem>>, %arg3: memref<1x1x16x8xf32, #tpu.memory_space<vmem>>, %arg4: memref<1x1x16x8xf32, #tpu.memory_space<vmem>>, %arg5: memref<72x8xf32, #tpu.memory_space<vmem>>, %arg6: memref<1x8xf32, #tpu.memory_space<vmem>>, %arg7: memref<1x8xf32, #tpu.memory_space<vmem>>, %arg8: memref<1x8xf32, #tpu.memory_space<vmem>>, %arg9: memref<1x16x16x8xf32, #tpu.memory_space<vmem>>, %arg10: memref<1x1x1x8xf32, #tpu.memory_space<vmem>>, %arg11: memref<1x1x1x8xf32, #tpu.memory_space<vmem>>, %arg12: memref<18x24x8xf32, #tpu.memory_space<vmem>>, %arg13: memref<256x72xf32, #tpu.memory_space<vmem>>) attributes {dimension_semantics = [#tpu.dimension_semantics<parallel>, #tpu.dimension_semantics<parallel>], iteration_bounds = array<i64: 2, 1>, scalar_prefetch = 0 : i64, scratch_operands = 2 : i64, tpu.core_type = #tpu.core_type<tc>, window_params = [{transform_indices = @transform_0, window_bounds = array<i64: 1, 16, 16, 8>}, {transform_indices = @transform_1, window_bounds = array<i64: 1, 1, 16, 8>}, {transform_indices = @transform_2, window_bounds = array<i64: 1, 1, 16, 8>}, {pipeline_mode = #tpu.pipeline_mode<synchronous>, transform_indices = @transform_3, window_bounds = array<i64: 72, 8>}, {pipeline_mode = #tpu.pipeline_mode<synchronous>, transform_indices = @transform_4, window_bounds = array<i64: 1, 8>}, {pipeline_mode = #tpu.pipeline_mode<synchronous>, transform_indices = @transform_5, window_bounds = array<i64: 1, 8>}, {pipeline_mode = #tpu.pipeline_mode<synchronous>, transform_indices = @transform_6, window_bounds = array<i64: 1, 8>}, {transform_indices = @transform_7, window_bounds = array<i64: 1, 16, 16, 8>}, {transform_indices = @transform_8, window_bounds = array<i64: 1, 1, 1, 8>}, {transform_indices = @transform_9, window_bounds = array<i64: 1, 1, 1, 8>}]} {
    %cst = arith.constant 0.000000e+00 : f32
    %0 = vector.broadcast %cst : f32 to vector<18x1x8xf32>
    %cst_0 = arith.constant 0.000000e+00 : f32
    %1 = vector.broadcast %cst_0 : f32 to vector<1x16x8xf32>
    %c0 = arith.constant 0 : index
    %c0_1 = arith.constant 0 : index
    %c0_2 = arith.constant 0 : index
    %2 = vector.load %arg12[%c0, %c0_1, %c0_2] : memref<18x24x8xf32, #tpu.memory_space<vmem>>, vector<18x1x8xf32>
    tpu.vector_store %arg12[%c0, %c0_1, %c0_2], %0 {strides = array<i32>} : memref<18x24x8xf32, #tpu.memory_space<vmem>>, vector<18x1x8xf32>,
    %c0_3 = arith.constant 0 : index
    %c17 = arith.constant 17 : index
    %c0_4 = arith.constant 0 : index
    %3 = vector.load %arg12[%c0_3, %c17, %c0_4] : memref<18x24x8xf32, #tpu.memory_space<vmem>>, vector<18x1x8xf32>
    tpu.vector_store %arg12[%c0_3, %c17, %c0_4], %0 {strides = array<i32>} : memref<18x24x8xf32, #tpu.memory_space<vmem>>, vector<18x1x8xf32>,
    %c0_5 = arith.constant 0 : index
    %c0_6 = arith.constant 0 : index
    %c0_7 = arith.constant 0 : index
    %c0_8 = arith.constant 0 : index
    %4 = vector.load %arg2[%c0_5, %c0_6, %c0_7, %c0_8] : memref<1x16x16x8xf32, #tpu.memory_space<vmem>>, vector<1x16x16x8xf32>
    %5 = vector.shape_cast %4 : vector<1x16x16x8xf32> to vector<16x16x8xf32>
    %c0_9 = arith.constant 0 : index
    %c0_10 = arith.constant 0 : index
    %6 = vector.load %arg7[%c0_9, %c0_10] : memref<1x8xf32, #tpu.memory_space<vmem>>, vector<1x8xf32>
    %7 = vector.shape_cast %6 : vector<1x8xf32> to vector<1x1x8xf32>
    %8 = vector.broadcast %7 : vector<1x1x8xf32> to vector<16x16x8xf32>
    %9 = arith.mulf %5, %8 : vector<16x16x8xf32>
    %c0_11 = arith.constant 0 : index
    %c0_12 = arith.constant 0 : index
    %10 = vector.load %arg8[%c0_11, %c0_12] : memref<1x8xf32, #tpu.memory_space<vmem>>, vector<1x8xf32>
    %11 = vector.shape_cast %10 : vector<1x8xf32> to vector<1x1x8xf32>
    %12 = vector.broadcast %11 : vector<1x1x8xf32> to vector<16x16x8xf32>
    %13 = arith.addf %9, %12 : vector<16x16x8xf32>
    %cst_13 = arith.constant 0.000000e+00 : f32
    %14 = vector.broadcast %cst_13 : f32 to vector<16x16x8xf32>
    %15 = arith.maximumf %13, %14 : vector<16x16x8xf32>
    %c1 = arith.constant 1 : index
    %c1_14 = arith.constant 1 : index
    %c0_15 = arith.constant 0 : index
    %16 = vector.load %arg12[%c1, %c1_14, %c0_15] : memref<18x24x8xf32, #tpu.memory_space<vmem>>, vector<16x16x8xf32>
    tpu.vector_store %arg12[%c1, %c1_14, %c0_15], %15 {strides = array<i32>} : memref<18x24x8xf32, #tpu.memory_space<vmem>>, vector<16x16x8xf32>,
    %c0_i32 = arith.constant 0 : i32
    %17 = arith.cmpi sgt, %arg1, %c0_i32 : i32
    %18 = arith.extui %17 : i1 to i32
    %c0_i32_16 = arith.constant 0 : i32
    %19 = arith.cmpi ne, %18, %c0_i32_16 : i32
    scf.if %19 {
      %c0_81 = arith.constant 0 : index
      %c0_82 = arith.constant 0 : index
      %c0_83 = arith.constant 0 : index
      %c0_84 = arith.constant 0 : index
      %79 = vector.load %arg3[%c0_81, %c0_82, %c0_83, %c0_84] : memref<1x1x16x8xf32, #tpu.memory_space<vmem>>, vector<1x1x16x8xf32>
      %80 = vector.shape_cast %79 : vector<1x1x16x8xf32> to vector<1x16x8xf32>
      %c0_85 = arith.constant 0 : index
      %c0_86 = arith.constant 0 : index
      %81 = vector.load %arg7[%c0_85, %c0_86] : memref<1x8xf32, #tpu.memory_space<vmem>>, vector<1x8xf32>
      %82 = vector.shape_cast %81 : vector<1x8xf32> to vector<1x1x8xf32>
      %83 = vector.broadcast %82 : vector<1x1x8xf32> to vector<1x16x8xf32>
      %84 = arith.mulf %80, %83 : vector<1x16x8xf32>
      %c0_87 = arith.constant 0 : index
      %c0_88 = arith.constant 0 : index
      %85 = vector.load %arg8[%c0_87, %c0_88] : memref<1x8xf32, #tpu.memory_space<vmem>>, vector<1x8xf32>
      %86 = vector.shape_cast %85 : vector<1x8xf32> to vector<1x1x8xf32>
      %87 = vector.broadcast %86 : vector<1x1x8xf32> to vector<1x16x8xf32>
      %88 = arith.addf %84, %87 : vector<1x16x8xf32>
      %cst_89 = arith.constant 0.000000e+00 : f32
      %89 = vector.broadcast %cst_89 : f32 to vector<1x16x8xf32>
      %90 = arith.maximumf %88, %89 : vector<1x16x8xf32>
      %c0_90 = arith.constant 0 : index
      %c1_91 = arith.constant 1 : index
      %c0_92 = arith.constant 0 : index
      %91 = vector.load %arg12[%c0_90, %c1_91, %c0_92] : memref<18x24x8xf32, #tpu.memory_space<vmem>>, vector<1x16x8xf32>
      tpu.vector_store %arg12[%c0_90, %c1_91, %c0_92], %90 {strides = array<i32>} : memref<18x24x8xf32, #tpu.memory_space<vmem>>, vector<1x16x8xf32>,
    } else {
    }
    %c0_i32_17 = arith.constant 0 : i32
    %20 = arith.cmpi eq, %arg1, %c0_i32_17 : i32
    %21 = arith.extui %20 : i1 to i32
    %c0_i32_18 = arith.constant 0 : i32
    %22 = arith.cmpi ne, %21, %c0_i32_18 : i32
    scf.if %22 {
      %c0_81 = arith.constant 0 : index
      %c1_82 = arith.constant 1 : index
      %c0_83 = arith.constant 0 : index
      %79 = vector.load %arg12[%c0_81, %c1_82, %c0_83] : memref<18x24x8xf32, #tpu.memory_space<vmem>>, vector<1x16x8xf32>
      tpu.vector_store %arg12[%c0_81, %c1_82, %c0_83], %1 {strides = array<i32>} : memref<18x24x8xf32, #tpu.memory_space<vmem>>, vector<1x16x8xf32>,
    } else {
    }
    %c0_i32_19 = arith.constant 0 : i32
    %23 = arith.cmpi slt, %arg1, %c0_i32_19 : i32
    %24 = arith.extui %23 : i1 to i32
    %c0_i32_20 = arith.constant 0 : i32
    %25 = arith.cmpi ne, %24, %c0_i32_20 : i32
    scf.if %25 {
      %c0_81 = arith.constant 0 : index
      %c0_82 = arith.constant 0 : index
      %c0_83 = arith.constant 0 : index
      %c0_84 = arith.constant 0 : index
      %79 = vector.load %arg4[%c0_81, %c0_82, %c0_83, %c0_84] : memref<1x1x16x8xf32, #tpu.memory_space<vmem>>, vector<1x1x16x8xf32>
      %80 = vector.shape_cast %79 : vector<1x1x16x8xf32> to vector<1x16x8xf32>
      %c0_85 = arith.constant 0 : index
      %c0_86 = arith.constant 0 : index
      %81 = vector.load %arg7[%c0_85, %c0_86] : memref<1x8xf32, #tpu.memory_space<vmem>>, vector<1x8xf32>
      %82 = vector.shape_cast %81 : vector<1x8xf32> to vector<1x1x8xf32>
      %83 = vector.broadcast %82 : vector<1x1x8xf32> to vector<1x16x8xf32>
      %84 = arith.mulf %80, %83 : vector<1x16x8xf32>
      %c0_87 = arith.constant 0 : index
      %c0_88 = arith.constant 0 : index
      %85 = vector.load %arg8[%c0_87, %c0_88] : memref<1x8xf32, #tpu.memory_space<vmem>>, vector<1x8xf32>
      %86 = vector.shape_cast %85 : vector<1x8xf32> to vector<1x1x8xf32>
      %87 = vector.broadcast %86 : vector<1x1x8xf32> to vector<1x16x8xf32>
      %88 = arith.addf %84, %87 : vector<1x16x8xf32>
      %cst_89 = arith.constant 0.000000e+00 : f32
      %89 = vector.broadcast %cst_89 : f32 to vector<1x16x8xf32>
      %90 = arith.maximumf %88, %89 : vector<1x16x8xf32>
      %c17_90 = arith.constant 17 : index
      %c1_91 = arith.constant 1 : index
      %c0_92 = arith.constant 0 : index
      %91 = vector.load %arg12[%c17_90, %c1_91, %c0_92] : memref<18x24x8xf32, #tpu.memory_space<vmem>>, vector<1x16x8xf32>
      tpu.vector_store %arg12[%c17_90, %c1_91, %c0_92], %90 {strides = array<i32>} : memref<18x24x8xf32, #tpu.memory_space<vmem>>, vector<1x16x8xf32>,
    } else {
    }
    %c0_i32_21 = arith.constant 0 : i32
    %26 = arith.cmpi eq, %arg1, %c0_i32_21 : i32
    %27 = arith.extui %26 : i1 to i32
    %c0_i32_22 = arith.constant 0 : i32
    %28 = arith.cmpi ne, %27, %c0_i32_22 : i32
    scf.if %28 {
      %c17_81 = arith.constant 17 : index
      %c1_82 = arith.constant 1 : index
      %c0_83 = arith.constant 0 : index
      %79 = vector.load %arg12[%c17_81, %c1_82, %c0_83] : memref<18x24x8xf32, #tpu.memory_space<vmem>>, vector<1x16x8xf32>
      tpu.vector_store %arg12[%c17_81, %c1_82, %c0_83], %1 {strides = array<i32>} : memref<18x24x8xf32, #tpu.memory_space<vmem>>, vector<1x16x8xf32>,
    } else {
    }
    %c0_23 = arith.constant 0 : index
    %c0_24 = arith.constant 0 : index
    %c0_25 = arith.constant 0 : index
    %29 = vector.load %arg12[%c0_23, %c0_24, %c0_25] : memref<18x24x8xf32, #tpu.memory_space<vmem>>, vector<16x16x8xf32>
    %30 = vector.shape_cast %29 : vector<16x16x8xf32> to vector<256x8xf32>
    %c0_26 = arith.constant 0 : index
    %c0_27 = arith.constant 0 : index
    %31 = vector.load %arg13[%c0_26, %c0_27] : memref<256x72xf32, #tpu.memory_space<vmem>>, vector<256x8xf32>
    tpu.vector_store %arg13[%c0_26, %c0_27], %30 {strides = array<i32>} : memref<256x72xf32, #tpu.memory_space<vmem>>, vector<256x8xf32>,
    %c0_28 = arith.constant 0 : index
    %c1_29 = arith.constant 1 : index
    %c0_30 = arith.constant 0 : index
    %32 = vector.load %arg12[%c0_28, %c1_29, %c0_30] : memref<18x24x8xf32, #tpu.memory_space<vmem>>, vector<16x16x8xf32>
    %33 = vector.shape_cast %32 : vector<16x16x8xf32> to vector<256x8xf32>
    %c0_31 = arith.constant 0 : index
    %c8 = arith.constant 8 : index
    %34 = vector.load %arg13[%c0_31, %c8] : memref<256x72xf32, #tpu.memory_space<vmem>>, vector<256x8xf32>
    tpu.vector_store %arg13[%c0_31, %c8], %33 {strides = array<i32>} : memref<256x72xf32, #tpu.memory_space<vmem>>, vector<256x8xf32>,
    %c0_32 = arith.constant 0 : index
    %c2 = arith.constant 2 : index
    %c0_33 = arith.constant 0 : index
    %35 = vector.load %arg12[%c0_32, %c2, %c0_33] : memref<18x24x8xf32, #tpu.memory_space<vmem>>, vector<16x16x8xf32>
    %36 = vector.shape_cast %35 : vector<16x16x8xf32> to vector<256x8xf32>
    %c0_34 = arith.constant 0 : index
    %c16 = arith.constant 16 : index
    %37 = vector.load %arg13[%c0_34, %c16] : memref<256x72xf32, #tpu.memory_space<vmem>>, vector<256x8xf32>
    tpu.vector_store %arg13[%c0_34, %c16], %36 {strides = array<i32>} : memref<256x72xf32, #tpu.memory_space<vmem>>, vector<256x8xf32>,
    %c1_35 = arith.constant 1 : index
    %c0_36 = arith.constant 0 : index
    %c0_37 = arith.constant 0 : index
    %38 = vector.load %arg12[%c1_35, %c0_36, %c0_37] : memref<18x24x8xf32, #tpu.memory_space<vmem>>, vector<16x16x8xf32>
    %39 = vector.shape_cast %38 : vector<16x16x8xf32> to vector<256x8xf32>
    %c0_38 = arith.constant 0 : index
    %c24 = arith.constant 24 : index
    %40 = vector.load %arg13[%c0_38, %c24] : memref<256x72xf32, #tpu.memory_space<vmem>>, vector<256x8xf32>
    tpu.vector_store %arg13[%c0_38, %c24], %39 {strides = array<i32>} : memref<256x72xf32, #tpu.memory_space<vmem>>, vector<256x8xf32>,
    %c1_39 = arith.constant 1 : index
    %c1_40 = arith.constant 1 : index
    %c0_41 = arith.constant 0 : index
    %41 = vector.load %arg12[%c1_39, %c1_40, %c0_41] : memref<18x24x8xf32, #tpu.memory_space<vmem>>, vector<16x16x8xf32>
    %42 = vector.shape_cast %41 : vector<16x16x8xf32> to vector<256x8xf32>
    %c0_42 = arith.constant 0 : index
    %c32 = arith.constant 32 : index
    %43 = vector.load %arg13[%c0_42, %c32] : memref<256x72xf32, #tpu.memory_space<vmem>>, vector<256x8xf32>
    tpu.vector_store %arg13[%c0_42, %c32], %42 {strides = array<i32>} : memref<256x72xf32, #tpu.memory_space<vmem>>, vector<256x8xf32>,
    %c1_43 = arith.constant 1 : index
    %c2_44 = arith.constant 2 : index
    %c0_45 = arith.constant 0 : index
    %44 = vector.load %arg12[%c1_43, %c2_44, %c0_45] : memref<18x24x8xf32, #tpu.memory_space<vmem>>, vector<16x16x8xf32>
    %45 = vector.shape_cast %44 : vector<16x16x8xf32> to vector<256x8xf32>
    %c0_46 = arith.constant 0 : index
    %c40 = arith.constant 40 : index
    %46 = vector.load %arg13[%c0_46, %c40] : memref<256x72xf32, #tpu.memory_space<vmem>>, vector<256x8xf32>
    tpu.vector_store %arg13[%c0_46, %c40], %45 {strides = array<i32>} : memref<256x72xf32, #tpu.memory_space<vmem>>, vector<256x8xf32>,
    %c2_47 = arith.constant 2 : index
    %c0_48 = arith.constant 0 : index
    %c0_49 = arith.constant 0 : index
    %47 = vector.load %arg12[%c2_47, %c0_48, %c0_49] : memref<18x24x8xf32, #tpu.memory_space<vmem>>, vector<16x16x8xf32>
    %48 = vector.shape_cast %47 : vector<16x16x8xf32> to vector<256x8xf32>
    %c0_50 = arith.constant 0 : index
    %c48 = arith.constant 48 : index
    %49 = vector.load %arg13[%c0_50, %c48] : memref<256x72xf32, #tpu.memory_space<vmem>>, vector<256x8xf32>
    tpu.vector_store %arg13[%c0_50, %c48], %48 {strides = array<i32>} : memref<256x72xf32, #tpu.memory_space<vmem>>, vector<256x8xf32>,
    %c2_51 = arith.constant 2 : index
    %c1_52 = arith.constant 1 : index
    %c0_53 = arith.constant 0 : index
    %50 = vector.load %arg12[%c2_51, %c1_52, %c0_53] : memref<18x24x8xf32, #tpu.memory_space<vmem>>, vector<16x16x8xf32>
    %51 = vector.shape_cast %50 : vector<16x16x8xf32> to vector<256x8xf32>
    %c0_54 = arith.constant 0 : index
    %c56 = arith.constant 56 : index
    %52 = vector.load %arg13[%c0_54, %c56] : memref<256x72xf32, #tpu.memory_space<vmem>>, vector<256x8xf32>
    tpu.vector_store %arg13[%c0_54, %c56], %51 {strides = array<i32>} : memref<256x72xf32, #tpu.memory_space<vmem>>, vector<256x8xf32>,
    %c2_55 = arith.constant 2 : index
    %c2_56 = arith.constant 2 : index
    %c0_57 = arith.constant 0 : index
    %53 = vector.load %arg12[%c2_55, %c2_56, %c0_57] : memref<18x24x8xf32, #tpu.memory_space<vmem>>, vector<16x16x8xf32>
    %54 = vector.shape_cast %53 : vector<16x16x8xf32> to vector<256x8xf32>
    %c0_58 = arith.constant 0 : index
    %c64 = arith.constant 64 : index
    %55 = vector.load %arg13[%c0_58, %c64] : memref<256x72xf32, #tpu.memory_space<vmem>>, vector<256x8xf32>
    tpu.vector_store %arg13[%c0_58, %c64], %54 {strides = array<i32>} : memref<256x72xf32, #tpu.memory_space<vmem>>, vector<256x8xf32>,
    %c0_59 = arith.constant 0 : index
    %c0_60 = arith.constant 0 : index
    %56 = vector.load %arg13[%c0_59, %c0_60] : memref<256x72xf32, #tpu.memory_space<vmem>>, vector<256x72xf32>
    %c0_61 = arith.constant 0 : index
    %c0_62 = arith.constant 0 : index
    %57 = vector.load %arg5[%c0_61, %c0_62] : memref<72x8xf32, #tpu.memory_space<vmem>>, vector<72x8xf32>
    %cst_63 = arith.constant dense<0.000000e+00> : vector<256x8xf32>
    %58 = tpu.matmul %56, %57, %cst_63 {dimension_numbers = #tpu.dot_dimension_numbers<[1], [0], [0], [1], [0, 0, 1, 1], [], []>} : vector<256x72xf32>, vector<72x8xf32>, vector<256x8xf32> -> vector<256x8xf32>
    %c0_64 = arith.constant 0 : index
    %c0_65 = arith.constant 0 : index
    %59 = vector.load %arg6[%c0_64, %c0_65] : memref<1x8xf32, #tpu.memory_space<vmem>>, vector<1x8xf32>
    %60 = vector.broadcast %59 : vector<1x8xf32> to vector<256x8xf32>
    %61 = arith.addf %58, %60 : vector<256x8xf32>
    %62 = vector.shape_cast %61 : vector<256x8xf32> to vector<1x16x16x8xf32>
    %c0_66 = arith.constant 0 : index
    %c0_67 = arith.constant 0 : index
    %c0_68 = arith.constant 0 : index
    %c0_69 = arith.constant 0 : index
    %63 = vector.load %arg9[%c0_66, %c0_67, %c0_68, %c0_69] : memref<1x16x16x8xf32, #tpu.memory_space<vmem>>, vector<1x16x16x8xf32>
    tpu.vector_store %arg9[%c0_66, %c0_67, %c0_68, %c0_69], %62 {strides = array<i32>} : memref<1x16x16x8xf32, #tpu.memory_space<vmem>>, vector<1x16x16x8xf32>,
    %cst_70 = arith.constant dense<0.000000e+00> : vector<8xf32>
    %64 = vector.multi_reduction <add>, %61, %cst_70 [0] : vector<256x8xf32> to vector<8xf32>
    %65 = vector.shape_cast %64 : vector<8xf32> to vector<1x8xf32>
    %cst_71 = arith.constant 3.906250e-03 : f32
    %66 = vector.broadcast %cst_71 : f32 to vector<1x8xf32>
    %67 = arith.mulf %65, %66 : vector<1x8xf32>
    %68 = vector.broadcast %67 : vector<1x8xf32> to vector<256x8xf32>
    %69 = arith.subf %61, %68 : vector<256x8xf32>
    %70 = vector.broadcast %67 : vector<1x8xf32> to vector<256x8xf32>
    %71 = arith.subf %61, %70 : vector<256x8xf32>
    %72 = arith.mulf %69, %71 : vector<256x8xf32>
    %cst_72 = arith.constant dense<0.000000e+00> : vector<8xf32>
    %73 = vector.multi_reduction <add>, %72, %cst_72 [0] : vector<256x8xf32> to vector<8xf32>
    %74 = vector.shape_cast %73 : vector<8xf32> to vector<1x8xf32>
    %75 = vector.shape_cast %65 : vector<1x8xf32> to vector<1x1x1x8xf32>
    %c0_73 = arith.constant 0 : index
    %c0_74 = arith.constant 0 : index
    %c0_75 = arith.constant 0 : index
    %c0_76 = arith.constant 0 : index
    %76 = vector.load %arg10[%c0_73, %c0_74, %c0_75, %c0_76] : memref<1x1x1x8xf32, #tpu.memory_space<vmem>>, vector<1x1x1x8xf32>
    tpu.vector_store %arg10[%c0_73, %c0_74, %c0_75, %c0_76], %75 {strides = array<i32>} : memref<1x1x1x8xf32, #tpu.memory_space<vmem>>, vector<1x1x1x8xf32>,
    %77 = vector.shape_cast %74 : vector<1x8xf32> to vector<1x1x1x8xf32>
    %c0_77 = arith.constant 0 : index
    %c0_78 = arith.constant 0 : index
    %c0_79 = arith.constant 0 : index
    %c0_80 = arith.constant 0 : index
    %78 = vector.load %arg11[%c0_77, %c0_78, %c0_79, %c0_80] : memref<1x1x1x8xf32, #tpu.memory_space<vmem>>, vector<1x1x1x8xf32>
    tpu.vector_store %arg11[%c0_77, %c0_78, %c0_79, %c0_80], %77 {strides = array<i32>} : memref<1x1x1x8xf32, #tpu.memory_space<vmem>>, vector<1x1x1x8xf32>,
    return
  }
  func.func @transform_0(%arg0: i32, %arg1: i32) -> (i32, i32, i32, i32) {
    %c0_i32 = arith.constant 0 : i32
    %c0_i32_0 = arith.constant 0 : i32
    %c0_i32_1 = arith.constant 0 : i32
    return %arg0, %arg1, %c0_i32, %c0_i32_0 : i32, i32, i32, i32
  }
  func.func @transform_1(%arg0: i32, %arg1: i32) -> (i32, i32, i32, i32) {
    %c16_i32 = arith.constant 16 : i32
    %0 = arith.muli %arg1, %c16_i32 : i32
    %c1_i32 = arith.constant 1 : i32
    %1 = arith.subi %0, %c1_i32 : i32
    %c0_i32 = arith.constant 0 : i32
    %2 = arith.maxsi %1, %c0_i32 : i32
    %c0_i32_0 = arith.constant 0 : i32
    %c0_i32_1 = arith.constant 0 : i32
    %c0_i32_2 = arith.constant 0 : i32
    return %arg0, %2, %c0_i32_0, %c0_i32_1 : i32, i32, i32, i32
  }
  func.func @transform_2(%arg0: i32, %arg1: i32) -> (i32, i32, i32, i32) {
    %c16_i32 = arith.constant 16 : i32
    %0 = arith.muli %arg1, %c16_i32 : i32
    %c16_i32_0 = arith.constant 16 : i32
    %1 = arith.addi %0, %c16_i32_0 : i32
    %c15_i32 = arith.constant 15 : i32
    %2 = arith.minsi %1, %c15_i32 : i32
    %c0_i32 = arith.constant 0 : i32
    %c0_i32_1 = arith.constant 0 : i32
    %c0_i32_2 = arith.constant 0 : i32
    return %arg0, %2, %c0_i32, %c0_i32_1 : i32, i32, i32, i32
  }
  func.func @transform_3(%arg0: i32, %arg1: i32) -> (i32, i32) {
    %c0_i32 = arith.constant 0 : i32
    %c0_i32_0 = arith.constant 0 : i32
    %c0_i32_1 = arith.constant 0 : i32
    return %c0_i32, %c0_i32_0 : i32, i32
  }
  func.func @transform_4(%arg0: i32, %arg1: i32) -> (i32, i32) {
    %c0_i32 = arith.constant 0 : i32
    %c0_i32_0 = arith.constant 0 : i32
    %c0_i32_1 = arith.constant 0 : i32
    return %c0_i32, %c0_i32_0 : i32, i32
  }
  func.func @transform_5(%arg0: i32, %arg1: i32) -> (i32, i32) {
    %c0_i32 = arith.constant 0 : i32
    %c0_i32_0 = arith.constant 0 : i32
    %c0_i32_1 = arith.constant 0 : i32
    return %c0_i32, %c0_i32_0 : i32, i32
  }
  func.func @transform_6(%arg0: i32, %arg1: i32) -> (i32, i32) {
    %c0_i32 = arith.constant 0 : i32
    %c0_i32_0 = arith.constant 0 : i32
    %c0_i32_1 = arith.constant 0 : i32
    return %c0_i32, %c0_i32_0 : i32, i32
  }
  func.func @transform_7(%arg0: i32, %arg1: i32) -> (i32, i32, i32, i32) {
    %c0_i32 = arith.constant 0 : i32
    %c0_i32_0 = arith.constant 0 : i32
    %c0_i32_1 = arith.constant 0 : i32
    return %arg0, %arg1, %c0_i32, %c0_i32_0 : i32, i32, i32, i32
  }
  func.func @transform_8(%arg0: i32, %arg1: i32) -> (i32, i32, i32, i32) {
    %c0_i32 = arith.constant 0 : i32
    %c0_i32_0 = arith.constant 0 : i32
    %c0_i32_1 = arith.constant 0 : i32
    return %arg0, %arg1, %c0_i32, %c0_i32_0 : i32, i32, i32, i32
  }
  func.func @transform_9(%arg0: i32, %arg1: i32) -> (i32, i32, i32, i32) {
    %c0_i32 = arith.constant 0 : i32
    %c0_i32_0 = arith.constant 0 : i32
    %c0_i32_1 = arith.constant 0 : i32
    return %arg0, %arg1, %c0_i32, %c0_i32_0 : i32, i32, i32, i32
  }
}

module attributes {stable_mosaic.version = 11 : i64} {
  func.func @bn_relu_kernel(%arg0: i32, %arg1: memref<32x128xf32, #tpu.memory_space<vmem>>, %arg2: memref<1x128xf32, #tpu.memory_space<vmem>>, %arg3: memref<1x128xf32, #tpu.memory_space<vmem>>, %arg4: memref<32x128xf32, #tpu.memory_space<vmem>>) attributes {dimension_semantics = [#tpu.dimension_semantics<parallel>], iteration_bounds = array<i64: 1>, scalar_prefetch = 0 : i64, scratch_operands = 0 : i64, tpu.core_type = #tpu.core_type<tc>, window_params = [{transform_indices = @transform_0, window_bounds = array<i64: 32, 128>}, {pipeline_mode = #tpu.pipeline_mode<synchronous>, transform_indices = @transform_1, window_bounds = array<i64: 1, 128>}, {pipeline_mode = #tpu.pipeline_mode<synchronous>, transform_indices = @transform_2, window_bounds = array<i64: 1, 128>}, {transform_indices = @transform_3, window_bounds = array<i64: 32, 128>}]} {
    %c0 = arith.constant 0 : index
    %c0_0 = arith.constant 0 : index
    %0 = vector.load %arg1[%c0, %c0_0] : memref<32x128xf32, #tpu.memory_space<vmem>>, vector<32x128xf32>
    %c0_1 = arith.constant 0 : index
    %c0_2 = arith.constant 0 : index
    %1 = vector.load %arg2[%c0_1, %c0_2] : memref<1x128xf32, #tpu.memory_space<vmem>>, vector<1x128xf32>
    %2 = vector.broadcast %1 : vector<1x128xf32> to vector<32x128xf32>
    %3 = arith.mulf %0, %2 : vector<32x128xf32>
    %c0_3 = arith.constant 0 : index
    %c0_4 = arith.constant 0 : index
    %4 = vector.load %arg3[%c0_3, %c0_4] : memref<1x128xf32, #tpu.memory_space<vmem>>, vector<1x128xf32>
    %5 = vector.broadcast %4 : vector<1x128xf32> to vector<32x128xf32>
    %6 = arith.addf %3, %5 : vector<32x128xf32>
    %cst = arith.constant 0.000000e+00 : f32
    %7 = vector.broadcast %cst : f32 to vector<32x128xf32>
    %8 = arith.maximumf %6, %7 : vector<32x128xf32>
    %c0_5 = arith.constant 0 : index
    %c0_6 = arith.constant 0 : index
    %9 = vector.load %arg4[%c0_5, %c0_6] : memref<32x128xf32, #tpu.memory_space<vmem>>, vector<32x128xf32>
    tpu.vector_store %arg4[%c0_5, %c0_6], %8 {strides = array<i32>} : memref<32x128xf32, #tpu.memory_space<vmem>>, vector<32x128xf32>,
    return
  }
  func.func @transform_0(%arg0: i32) -> (i32, i32) {
    %c0_i32 = arith.constant 0 : i32
    %c0_i32_0 = arith.constant 0 : i32
    return %arg0, %c0_i32 : i32, i32
  }
  func.func @transform_1(%arg0: i32) -> (i32, i32) {
    %c0_i32 = arith.constant 0 : i32
    %c0_i32_0 = arith.constant 0 : i32
    %c0_i32_1 = arith.constant 0 : i32
    return %c0_i32, %c0_i32_0 : i32, i32
  }
  func.func @transform_2(%arg0: i32) -> (i32, i32) {
    %c0_i32 = arith.constant 0 : i32
    %c0_i32_0 = arith.constant 0 : i32
    %c0_i32_1 = arith.constant 0 : i32
    return %c0_i32, %c0_i32_0 : i32, i32
  }
  func.func @transform_3(%arg0: i32) -> (i32, i32) {
    %c0_i32 = arith.constant 0 : i32
    %c0_i32_0 = arith.constant 0 : i32
    return %arg0, %c0_i32 : i32, i32
  }
}

</mosaic_0001>

<llo_original>
// kernel: tile.14
$region0: #{tile.14}
  #allocation0 [shape = 's32[1]{0}', space=sflag, size = 0x4, scoped, tag = 'scoped memory for tile.14']
  %s0 = inlined_call_operand.vmem [shape: f32[8], index: 0, kind: input, shape index: {}]
  %s1 = inlined_call_operand.vmem [shape: f32[16,8], index: 1, kind: output, shape index: {}]
  // Predicated region
  $region2: #{tile.14} parent=0 // pred_check
    _
  $region3: #{tile.14} parent=0 // pred_check_branch
    %3 = sbr.rel (0) target = $region5
  $region4: #{tile.14} parent=0 // pred_region
    _
  $region5: #{tile.14} parent=0 // pred_fallthru
    _
  %v4 = vld [vmem:[%s0] ss:$0 sm:$0xff]
  %5 = vst [vmem:[%s1] sm:$0xff] %v4
  %s6 = scalar_lea.vmem %s1, 8
  %7 = vst [vmem:[%s6] sm:$0xff] %v4

// kernel: tile.15
$region0: #{tile.15}
  %s0 = inlined_call_operand.vmem [shape: f32[16,8], index: 0, kind: input, shape index: {}]
  %s1 = inlined_call_operand.vmem [shape: f32[1,128], index: 1, kind: output, shape index: {}]
  $region1: #{tile.15} parent=0
    #allocation0 [shape = 'u8[4096]{0}', space=vmem, size = 0x1000, scoped, tag = 'scoped mem for output reshape']
    %v2 = vld [vmem:[%s0] sm:$0x1]
    %vm3 = vcmask 64512
    %4 = vst.msk [vmem:[#allocation0] sm:$0x1] %vm3, %v2
    %s5 = scalar_lea.vmem %s0, 15
    %v6 = vld [vmem:[%s5] sm:$0x1]
    %7 = vrot.lane.b32.xlu0 %v6, 120
    %v8 = vpop.permute.xlu0 %7
    %vm9 = vcmask 1048512
    %10 = vst.msk [vmem:[#allocation0] sm:$0x1] %vm9, %v8
    %s11 = scalar_lea.vmem %s0, 14
    %v12 = vld [vmem:[%s11] sm:$0x1]
    %13 = vrot.lane.b32.xlu0 %v12, 112
    %v14 = vpop.permute.xlu0 %13
    %vm15 = vcmask 982912
    %16 = vst.msk [vmem:[#allocation0] sm:$0x1] %vm15, %v14
    %s17 = scalar_lea.vmem %s0, 13
    %v18 = vld [vmem:[%s17] sm:$0x1]
    %19 = vrot.lane.b32.xlu0 %v18, 104
    %v20 = vpop.permute.xlu0 %19
    %vm21 = vcmask 917312
    %22 = vst.msk [vmem:[#allocation0] sm:$0x1] %vm21, %v20
    %s23 = scalar_lea.vmem %s0, 12
    %v24 = vld [vmem:[%s23] sm:$0x1]
    %25 = vrot.lane.b32.xlu0 %v24, 96
    %v26 = vpop.permute.xlu0 %25
    %vm27 = vcmask 851712
    %28 = vst.msk [vmem:[#allocation0] sm:$0x1] %vm27, %v26
    %s29 = scalar_lea.vmem %s0, 11
    %v30 = vld [vmem:[%s29] sm:$0x1]
    %31 = vrot.lane.b32.xlu0 %v30, 88
    %v32 = vpop.permute.xlu0 %31
    %vm33 = vcmask 786112
    %34 = vst.msk [vmem:[#allocation0] sm:$0x1] %vm33, %v32
    %s35 = scalar_lea.vmem %s0, 10
    %v36 = vld [vmem:[%s35] sm:$0x1]
    %37 = vrot.lane.b32.xlu0 %v36, 80
    %v38 = vpop.permute.xlu0 %37
    %vm39 = vcmask 720512
    %40 = vst.msk [vmem:[#allocation0] sm:$0x1] %vm39, %v38
    %s41 = scalar_lea.vmem %s0, 9
    %v42 = vld [vmem:[%s41] sm:$0x1]
    %43 = vrot.lane.b32.xlu0 %v42, 72
    %v44 = vpop.permute.xlu0 %43
    %vm45 = vcmask 654912
    %46 = vst.msk [vmem:[#allocation0] sm:$0x1] %vm45, %v44
    %s47 = scalar_lea.vmem %s0, 8
    %v48 = vld [vmem:[%s47] sm:$0x1]
    %49 = vrot.lane.b32.xlu0 %v48, 64
    %v50 = vpop.permute.xlu0 %49
    %vm51 = vcmask 589312
    %52 = vst.msk [vmem:[#allocation0] sm:$0x1] %vm51, %v50
    %s53 = scalar_lea.vmem %s0, 7
    %v54 = vld [vmem:[%s53] sm:$0x1]
    %55 = vrot.lane.b32.xlu0 %v54, 56
    %v56 = vpop.permute.xlu0 %55
    %vm57 = vcmask 523712
    %58 = vst.msk [vmem:[#allocation0] sm:$0x1] %vm57, %v56
    %s59 = scalar_lea.vmem %s0, 6
    %v60 = vld [vmem:[%s59] sm:$0x1]
    %61 = vrot.lane.b32.xlu0 %v60, 48
    %v62 = vpop.permute.xlu0 %61
    %vm63 = vcmask 458112
    %64 = vst.msk [vmem:[#allocation0] sm:$0x1] %vm63, %v62
    %s65 = scalar_lea.vmem %s0, 5
    %v66 = vld [vmem:[%s65] sm:$0x1]
    %67 = vrot.lane.b32.xlu0 %v66, 40
    %v68 = vpop.permute.xlu0 %67
    %vm69 = vcmask 392512
    %70 = vst.msk [vmem:[#allocation0] sm:$0x1] %vm69, %v68
    %s71 = scalar_lea.vmem %s0, 4
    %v72 = vld [vmem:[%s71] sm:$0x1]
    %73 = vrot.lane.b32.xlu0 %v72, 32
    %v74 = vpop.permute.xlu0 %73
    %vm75 = vcmask 326912
    %76 = vst.msk [vmem:[#allocation0] sm:$0x1] %vm75, %v74
    %s77 = scalar_lea.vmem %s0, 3
    %v78 = vld [vmem:[%s77] sm:$0x1]
    %79 = vrot.lane.b32.xlu0 %v78, 24
    %v80 = vpop.permute.xlu0 %79
    %vm81 = vcmask 261312
    %82 = vst.msk [vmem:[#allocation0] sm:$0x1] %vm81, %v80
    %s83 = scalar_lea.vmem %s0, 2
    %v84 = vld [vmem:[%s83] sm:$0x1]
    %85 = vrot.lane.b32.xlu0 %v84, 16
    %v86 = vpop.permute.xlu0 %85
    %vm87 = vcmask 195712
    %88 = vst.msk [vmem:[#allocation0] sm:$0x1] %vm87, %v86
    %s89 = scalar_lea.vmem %s0, 1
    %v90 = vld [vmem:[%s89] sm:$0x1]
    %91 = vrot.lane.b32.xlu0 %v90, 8
    %v92 = vpop.permute.xlu0 %91
    %vm93 = vcmask 130112
    %94 = vst.msk [vmem:[#allocation0] sm:$0x1] %vm93, %v92
    %s96 = ssub.s32 2, 1
    %v97 = vld [vmem:[#allocation0] sm:%s96]
    %s99 = ssub.s32 2, 1
    %100 = vst [vmem:[%s1] sm:%s99] %v97

// kernel: double_conv.5
$region0: #{double_conv.5}
  #allocation0 [shape = 'u32[]', space=smem, size = 0x4, offset = 0x4, fixed_abs, tag = 'smem constant byte address 0x4 - core index']
  #allocation1 [shape = 'u32[72,128]{1,0:T(1,128)}', space=vmem, size = 0x9000, scoped, tag = 'internal scratch']
  %s0 = inlined_call_operand.vmem [shape: f32[32,128], index: 0, kind: input, shape index: {}]
  %s1 = inlined_call_operand.vmem [shape: f32[1,128], index: 1, kind: input, shape index: {}]
  %s2 = inlined_call_operand.vmem [shape: f32[1,128], index: 2, kind: input, shape index: {}]
  %s3 = inlined_call_operand.vmem [shape: f32[32,128], index: 3, kind: output, shape index: {}]
  %s4 = sld [smem:[#allocation0]]
  $region22: #{double_conv.5} parent=0
    _
  %s6 = ssub.s32 1, %s4
  %s7 = scalar_select 0, %s6, %s4
  // Predicated region
  $region2: #{double_conv.5} parent=0 // pred_check
    _
  $region3: #{double_conv.5} parent=0 // pred_check_branch
    %9 = sbr.rel (0) target = $region5
  $region4: #{double_conv.5} parent=0 // pred_region
    _
  $region5: #{double_conv.5} parent=0 // pred_fallthru
    _
  // Predicated region
  $region6: #{double_conv.5} parent=0 // pred_check
    _
  $region7: #{double_conv.5} parent=0 // pred_check_branch
    %11 = sbr.rel (0) target = $region9
  $region8: #{double_conv.5} parent=0 // pred_region
    _
  $region9: #{double_conv.5} parent=0 // pred_fallthru
    _
  // Predicated region
  $region10: #{double_conv.5} parent=0 // pred_check
    _
  $region11: #{double_conv.5} parent=0 // pred_check_branch
    %13 = sbr.rel (0) target = $region13
  $region12: #{double_conv.5} parent=0 // pred_region
    _
  $region13: #{double_conv.5} parent=0 // pred_fallthru
    _
  %v14 = vld [vmem:[%s0] sm:$0xff]
  %v15 = vld [vmem:[%s0 + $0x8] sm:$0xff]
  %v16 = vld [vmem:[%s0 + $0x10] sm:$0xff]
  %v17 = vld [vmem:[%s0 + $0x18] sm:$0xff]
  %v18 = vld [vmem:[%s1] sm:$0x1]
  %v20 = vperm.slane %v18, 0
  %v22 = vmul.f32 %v14, %v20
  %v23 = vmul.f32 %v15, %v20
  %v24 = vmul.f32 %v16, %v20
  %v25 = vmul.f32 %v17, %v20
  %v26 = vld [vmem:[%s2] sm:$0x1]
  %v28 = vperm.slane %v26, 0
  %v30 = vadd.f32 %v22, %v28
  %v31 = vadd.f32 %v23, %v28
  %v32 = vadd.f32 %v24, %v28
  %v33 = vadd.f32 %v25, %v28
  %v34 = vmax.f32 %v30, 0.0
  %v35 = vmax.f32 %v31, 0.0
  %v36 = vmax.f32 %v32, 0.0
  %v37 = vmax.f32 %v33, 0.0
  %38 = vst [vmem:[%s3] sm:$0xff] %v34
  %39 = vst [vmem:[%s3 + $0x8] sm:$0xff] %v35
  %40 = vst [vmem:[%s3 + $0x10] sm:$0xff] %v36
  %41 = vst [vmem:[%s3 + $0x18] sm:$0xff] %v37
  // Predicated region
  $region14: #{double_conv.5} parent=0 // pred_check
    _
  $region15: #{double_conv.5} parent=0 // pred_check_branch
    %43 = sbr.rel (0) target = $region17
  $region16: #{double_conv.5} parent=0 // pred_region
    _
  $region17: #{double_conv.5} parent=0 // pred_fallthru
    _
  // Predicated region
  $region18: #{double_conv.5} parent=0 // pred_check
    _
  $region19: #{double_conv.5} parent=0 // pred_check_branch
    %45 = sbr.rel (0) target = $region21
  $region20: #{double_conv.5} parent=0 // pred_region
    _
  $region21: #{double_conv.5} parent=0 // pred_fallthru
    _

// kernel: double_conv.3
$region0: #{double_conv.3}
  #allocation0 [shape = 'u32[]', space=smem, size = 0x4, offset = 0x4, fixed_abs, tag = 'smem constant byte address 0x4 - core index']
  #allocation1 [shape = 'u32[72,128]{1,0:T(1,128)}', space=vmem, size = 0x9000, scoped, tag = 'internal scratch']
  #allocation2 [shape = 'f32[18,24,4]{2,1,0:T(8,128)}', space=vmem, size = 0x36000, scoped, tag = 'scratch operand']
  #allocation3 [shape = 'f32[256,36]{1,0:T(8,128)}', space=vmem, size = 0x20000, scoped, tag = 'scratch operand']
  %s0 = inlined_call_operand.vmem [shape: f32[2,16,16,4], index: 0, kind: input, shape index: {}, may-alias: {0,1,2}]
  %s1 = inlined_call_operand.vmem [shape: f32[2,16,16,4], index: 1, kind: input, shape index: {}, may-alias: {0,1,2}]
  %s2 = inlined_call_operand.vmem [shape: f32[2,16,16,4], index: 2, kind: input, shape index: {}, may-alias: {0,1,2}]
  %s3 = inlined_call_operand.vmem [shape: f32[36,8], index: 3, kind: input, shape index: {}]
  %s4 = inlined_call_operand.vmem [shape: f32[1,8], index: 4, kind: input, shape index: {}]
  %s5 = inlined_call_operand.vmem [shape: f32[1,4], index: 5, kind: input, shape index: {}]
  %s6 = inlined_call_operand.vmem [shape: f32[1,4], index: 6, kind: input, shape index: {}]
  %s7 = inlined_call_operand.vmem [shape: f32[2,16,16,8], index: 7, kind: output, shape index: {0}]
  %s8 = inlined_call_operand.vmem [shape: f32[2,1,1,8], index: 8, kind: output, shape index: {1}]
  %s9 = inlined_call_operand.vmem [shape: f32[2,1,1,8], index: 9, kind: output, shape index: {2}]
  %10 = xla_tuple %s7, %s8, %s9
  %s11 = sld [smem:[#allocation0]]
  $region93: #{double_conv.3} parent=0
    _
  %s13 = ssub.s32 1, %s11
  %s14 = scalar_select 0, %s13, %s11
  loop: start=0, step=1, limit=4
  $region2: #{double_conv.3} parent=0 // loop_pre_header
    _
  $region3: #{double_conv.3} parent=0 // loop_header
    %s16 = sphi 0, %s20
    %p17 = scmp.ge.s32.totalorder %s16, 4
    %s23 = sphi 0, %s35
    %s24 = sphi 0, %s31
    %s25 = sphi 0, %s23
    %s26 = sphi 0, %s24
    %s27 = sphi 0, %s25
    %s28 = sphi 0, %s26
    %s40 = sphi 0, %s42
    %s43 = sphi 0, %s40
    %s44 = sphi 0, %s43
    %s60 = sphi 0, %s44
    %s76 = sphi 0, %s78
    %s79 = sphi 0, %s76
    %s80 = sphi 0, %s79
    %s96 = sphi 0, %s80
    %s112 = sphi 0, %s114
    %s115 = sphi 0, %s112
    %s116 = sphi 0, %s115
    %s132 = sphi 0, %s116
    %s136 = sphi 0, %s136
    %s138 = sphi 0, %s136
    %s139 = sphi 0, %s138
    %s153 = sphi 0, %s139
    %s157 = sphi 0, %s157
    %s159 = sphi 0, %s157
    %s160 = sphi 0, %s159
    %s174 = sphi 0, %s160
    %s178 = sphi 0, %s178
    %s180 = sphi 0, %s178
    %s181 = sphi 0, %s180
    %s195 = sphi 0, %s181
    %s199 = sphi 0, %s199
    %s201 = sphi 0, %s199
    %s202 = sphi 0, %s201
    %s216 = sphi 0, %s202
    %s224 = sphi 0, %s226
    %s227 = sphi 0, %s224
    %s228 = sphi 0, %s227
    %s244 = sphi 0, %s228
    %s252 = sphi 0, %s254
    %s255 = sphi 0, %s252
    %s256 = sphi 0, %s255
    %s272 = sphi 0, %s256
    %s280 = sphi 0, %s282
    %s283 = sphi 0, %s280
    %s284 = sphi 0, %s283
    %s300 = sphi 0, %s284
  $region4: #{double_conv.3} parent=0 // loop_header_branch
    %19 = sbr.rel (%p17) target = $region8
  $region5: #{double_conv.3} parent=0 // loop_body
    %s21 = ssub.s32 %s16, 1
    %s22 = ssub.s32 %s16, 2
    %s29 = sadd.s32 1, %s24
    %p30 = scmp.ge.s32.totalorder %s29, 1
    %s31 = scalar_select %p30, 0, %s29
    %s32 = sadd.s32 1, %s23
    %s33 = scalar_select %p30, %s32, %s23
    %p34 = scmp.ge.s32.totalorder %s33, 2
    %s35 = scalar_select %p34, 0, %s33
    %s36 = ssub.s32 %s23, %s35
    %s37 = ssub.s32 %s24, %s31
    %s38 = sor.u32 %s36, %s37
    %p39 = scmp.eq.s32.totalorder %s38, 0
    %s41 = sadd.s32 %s40, 1
    %s42 = scalar_select %p39, %s40, %s41
    %p45 = pneg %p39
    %p46 = scmp.eq.s32.totalorder %s16, 1
    %p47 = por %p45, %p46
    %p48 = scmp.ne.s32.totalorder %s40, %s43
    %p49 = scmp.eq.s32.totalorder %s16, 0
    %p50 = por %p48, %p49
    %p51 = scmp.ne.s32.totalorder %s40, %s43
    %p52 = scmp.eq.s32.totalorder %s21, 1
    %p53 = por %p51, %p52
    %p54 = scmp.ne.s32.totalorder %s43, %s44
    %p55 = scmp.eq.s32.totalorder %s21, 0
    %p56 = por %p54, %p55
    %p57 = scmp.ne.s32.totalorder %s43, %s44
    %p58 = scmp.eq.s32.totalorder %s22, 1
    %p59 = por %p57, %p58
    %p61 = scmp.ne.s32.totalorder %s44, %s60
    %p62 = scmp.eq.s32.totalorder %s22, 0
    %p63 = por %p61, %p62
    %s64 = smul.u32 %s24, 16
    %s65 = ssub.s32 %s64, 1
    %p66 = scmp.gt.s32.totalorder %s65, 0
    %s67 = scalar_select %p66, %s65, 0
    %s68 = smul.u32 %s31, 16
    %s69 = ssub.s32 %s68, 1
    %p70 = scmp.gt.s32.totalorder %s69, 0
    %s71 = scalar_select %p70, %s69, 0
    %s72 = ssub.s32 %s23, %s35
    %s73 = ssub.s32 %s67, %s71
    %s74 = sor.u32 %s72, %s73
    %p75 = scmp.eq.s32.totalorder %s74, 0
    %s77 = sadd.s32 %s76, 1
    %s78 = scalar_select %p75, %s76, %s77
    %p81 = pneg %p75
    %p82 = scmp.eq.s32.totalorder %s16, 1
    %p83 = por %p81, %p82
    %p84 = scmp.ne.s32.totalorder %s76, %s79
    %p85 = scmp.eq.s32.totalorder %s16, 0
    %p86 = por %p84, %p85
    %p87 = scmp.ne.s32.totalorder %s76, %s79
    %p88 = scmp.eq.s32.totalorder %s21, 1
    %p89 = por %p87, %p88
    %p90 = scmp.ne.s32.totalorder %s79, %s80
    %p91 = scmp.eq.s32.totalorder %s21, 0
    %p92 = por %p90, %p91
    %p93 = scmp.ne.s32.totalorder %s79, %s80
    %p94 = scmp.eq.s32.totalorder %s22, 1
    %p95 = por %p93, %p94
    %p97 = scmp.ne.s32.totalorder %s80, %s96
    %p98 = scmp.eq.s32.totalorder %s22, 0
    %p99 = por %p97, %p98
    %s100 = smul.u32 %s24, 16
    %s101 = sadd.s32 %s100, 16
    %p102 = scmp.lt.s32.totalorder %s101, 15
    %s103 = scalar_select %p102, %s101, 15
    %s104 = smul.u32 %s31, 16
    %s105 = sadd.s32 %s104, 16
    %p106 = scmp.lt.s32.totalorder %s105, 15
    %s107 = scalar_select %p106, %s105, 15
    %s108 = ssub.s32 %s23, %s35
    %s109 = ssub.s32 %s103, %s107
    %s110 = sor.u32 %s108, %s109
    %p111 = scmp.eq.s32.totalorder %s110, 0
    %s113 = sadd.s32 %s112, 1
    %s114 = scalar_select %p111, %s112, %s113
    %p117 = pneg %p111
    %p118 = scmp.eq.s32.totalorder %s16, 1
    %p119 = por %p117, %p118
    %p120 = scmp.ne.s32.totalorder %s112, %s115
    %p121 = scmp.eq.s32.totalorder %s16, 0
    %p122 = por %p120, %p121
    %p123 = scmp.ne.s32.totalorder %s112, %s115
    %p124 = scmp.eq.s32.totalorder %s21, 1
    %p125 = por %p123, %p124
    %p126 = scmp.ne.s32.totalorder %s115, %s116
    %p127 = scmp.eq.s32.totalorder %s21, 0
    %p128 = por %p126, %p127
    %p129 = scmp.ne.s32.totalorder %s115, %s116
    %p130 = scmp.eq.s32.totalorder %s22, 1
    %p131 = por %p129, %p130
    %p133 = scmp.ne.s32.totalorder %s116, %s132
    %p134 = scmp.eq.s32.totalorder %s22, 0
    %p135 = por %p133, %p134
    %s137 = sadd.s32 %s136, 1
    %p140 = scmp.eq.s32.totalorder %s16, 1
    %p141 = scmp.ne.s32.totalorder %s136, %s138
    %p142 = scmp.eq.s32.totalorder %s16, 0
    %p143 = por %p141, %p142
    %p144 = scmp.ne.s32.totalorder %s136, %s138
    %p145 = scmp.eq.s32.totalorder %s21, 1
    %p146 = por %p144, %p145
    %p147 = scmp.ne.s32.totalorder %s138, %s139
    %p148 = scmp.eq.s32.totalorder %s21, 0
    %p149 = por %p147, %p148
    %p150 = scmp.ne.s32.totalorder %s138, %s139
    %p151 = scmp.eq.s32.totalorder %s22, 1
    %p152 = por %p150, %p151
    %p154 = scmp.ne.s32.totalorder %s139, %s153
    %p155 = scmp.eq.s32.totalorder %s22, 0
    %p156 = por %p154, %p155
    %s158 = sadd.s32 %s157, 1
    %p161 = scmp.eq.s32.totalorder %s16, 1
    %p162 = scmp.ne.s32.totalorder %s157, %s159
    %p163 = scmp.eq.s32.totalorder %s16, 0
    %p164 = por %p162, %p163
    %p165 = scmp.ne.s32.totalorder %s157, %s159
    %p166 = scmp.eq.s32.totalorder %s21, 1
    %p167 = por %p165, %p166
    %p168 = scmp.ne.s32.totalorder %s159, %s160
    %p169 = scmp.eq.s32.totalorder %s21, 0
    %p170 = por %p168, %p169
    %p171 = scmp.ne.s32.totalorder %s159, %s160
    %p172 = scmp.eq.s32.totalorder %s22, 1
    %p173 = por %p171, %p172
    %p175 = scmp.ne.s32.totalorder %s160, %s174
    %p176 = scmp.eq.s32.totalorder %s22, 0
    %p177 = por %p175, %p176
    %s179 = sadd.s32 %s178, 1
    %p182 = scmp.eq.s32.totalorder %s16, 1
    %p183 = scmp.ne.s32.totalorder %s178, %s180
    %p184 = scmp.eq.s32.totalorder %s16, 0
    %p185 = por %p183, %p184
    %p186 = scmp.ne.s32.totalorder %s178, %s180
    %p187 = scmp.eq.s32.totalorder %s21, 1
    %p188 = por %p186, %p187
    %p189 = scmp.ne.s32.totalorder %s180, %s181
    %p190 = scmp.eq.s32.totalorder %s21, 0
    %p191 = por %p189, %p190
    %p192 = scmp.ne.s32.totalorder %s180, %s181
    %p193 = scmp.eq.s32.totalorder %s22, 1
    %p194 = por %p192, %p193
    %p196 = scmp.ne.s32.totalorder %s181, %s195
    %p197 = scmp.eq.s32.totalorder %s22, 0
    %p198 = por %p196, %p197
    %s200 = sadd.s32 %s199, 1
    %p203 = scmp.eq.s32.totalorder %s16, 1
    %p204 = scmp.ne.s32.totalorder %s199, %s201
    %p205 = scmp.eq.s32.totalorder %s16, 0
    %p206 = por %p204, %p205
    %p207 = scmp.ne.s32.totalorder %s199, %s201
    %p208 = scmp.eq.s32.totalorder %s21, 1
    %p209 = por %p207, %p208
    %p210 = scmp.ne.s32.totalorder %s201, %s202
    %p211 = scmp.eq.s32.totalorder %s21, 0
    %p212 = por %p210, %p211
    %p213 = scmp.ne.s32.totalorder %s201, %s202
    %p214 = scmp.eq.s32.totalorder %s22, 1
    %p215 = por %p213, %p214
    %p217 = scmp.ne.s32.totalorder %s202, %s216
    %p218 = scmp.eq.s32.totalorder %s22, 0
    %p219 = por %p217, %p218
    %s220 = ssub.s32 %s23, %s35
    %s221 = ssub.s32 %s24, %s31
    %s222 = sor.u32 %s220, %s221
    %p223 = scmp.eq.s32.totalorder %s222, 0
    %s225 = sadd.s32 %s224, 1
    %s226 = scalar_select %p223, %s224, %s225
    %p229 = pneg %p223
    %p230 = scmp.eq.s32.totalorder %s16, 1
    %p231 = por %p229, %p230
    %p232 = scmp.ne.s32.totalorder %s224, %s227
    %p233 = scmp.eq.s32.totalorder %s16, 0
    %p234 = por %p232, %p233
    %p235 = scmp.ne.s32.totalorder %s224, %s227
    %p236 = scmp.eq.s32.totalorder %s21, 1
    %p237 = por %p235, %p236
    %p238 = scmp.ne.s32.totalorder %s227, %s228
    %p239 = scmp.eq.s32.totalorder %s21, 0
    %p240 = por %p238, %p239
    %p241 = scmp.ne.s32.totalorder %s227, %s228
    %p242 = scmp.eq.s32.totalorder %s22, 1
    %p243 = por %p241, %p242
    %p245 = scmp.ne.s32.totalorder %s228, %s244
    %p246 = scmp.eq.s32.totalorder %s22, 0
    %p247 = por %p245, %p246
    %s248 = ssub.s32 %s23, %s35
    %s249 = ssub.s32 %s24, %s31
    %s250 = sor.u32 %s248, %s249
    %p251 = scmp.eq.s32.totalorder %s250, 0
    %s253 = sadd.s32 %s252, 1
    %s254 = scalar_select %p251, %s252, %s253
    %p257 = pneg %p251
    %p258 = scmp.eq.s32.totalorder %s16, 1
    %p259 = por %p257, %p258
    %p260 = scmp.ne.s32.totalorder %s252, %s255
    %p261 = scmp.eq.s32.totalorder %s16, 0
    %p262 = por %p260, %p261
    %p263 = scmp.ne.s32.totalorder %s252, %s255
    %p264 = scmp.eq.s32.totalorder %s21, 1
    %p265 = por %p263, %p264
    %p266 = scmp.ne.s32.totalorder %s255, %s256
    %p267 = scmp.eq.s32.totalorder %s21, 0
    %p268 = por %p266, %p267
    %p269 = scmp.ne.s32.totalorder %s255, %s256
    %p270 = scmp.eq.s32.totalorder %s22, 1
    %p271 = por %p269, %p270
    %p273 = scmp.ne.s32.totalorder %s256, %s272
    %p274 = scmp.eq.s32.totalorder %s22, 0
    %p275 = por %p273, %p274
    %s276 = ssub.s32 %s23, %s35
    %s277 = ssub.s32 %s24, %s31
    %s278 = sor.u32 %s276, %s277
    %p279 = scmp.eq.s32.totalorder %s278, 0
    %s281 = sadd.s32 %s280, 1
    %s282 = scalar_select %p279, %s280, %s281
    %p285 = pneg %p279
    %p286 = scmp.eq.s32.totalorder %s16, 1
    %p287 = por %p285, %p286
    %p288 = scmp.ne.s32.totalorder %s280, %s283
    %p289 = scmp.eq.s32.totalorder %s16, 0
    %p290 = por %p288, %p289
    %p291 = scmp.ne.s32.totalorder %s280, %s283
    %p292 = scmp.eq.s32.totalorder %s21, 1
    %p293 = por %p291, %p292
    %p294 = scmp.ne.s32.totalorder %s283, %s284
    %p295 = scmp.eq.s32.totalorder %s21, 0
    %p296 = por %p294, %p295
    %p297 = scmp.ne.s32.totalorder %s283, %s284
    %p298 = scmp.eq.s32.totalorder %s22, 1
    %p299 = por %p297, %p298
    %p301 = scmp.ne.s32.totalorder %s284, %s300
    %p302 = scmp.eq.s32.totalorder %s22, 0
    %p303 = por %p301, %p302
    %p304 = scmp.le.s32.totalorder 1, %s16
    %p305 = scmp.lt.s32.totalorder %s16, 3
    %p306 = pnand %p304, %p305
    %p307 = pneg %p306
    // Predicated region
    $region9: #{double_conv.3} parent=5 // pred_check
      _
    $region10: #{double_conv.3} parent=5 // pred_check_branch
      %309 = sbr.rel (%p306) target = $region12
    $region11: #{double_conv.3} parent=5 // pred_region
      %s310 = ssub.s32 %s16, 1
      // Predicated region
      $region13: #{double_conv.3} parent=11 // pred_check
        %p311 = pneg %p149
      $region14: #{double_conv.3} parent=11 // pred_check_branch
        %313 = sbr.rel (%p311) target = $region16
      $region15: #{double_conv.3} parent=11 // pred_region
        _
      $region16: #{double_conv.3} parent=11 // pred_fallthru
        _
      // Predicated region
      $region17: #{double_conv.3} parent=11 // pred_check
        %p314 = pneg %p170
      $region18: #{double_conv.3} parent=11 // pred_check_branch
        %316 = sbr.rel (%p314) target = $region20
      $region19: #{double_conv.3} parent=11 // pred_region
        _
      $region20: #{double_conv.3} parent=11 // pred_fallthru
        _
      // Predicated region
      $region21: #{double_conv.3} parent=11 // pred_check
        %p317 = pneg %p191
      $region22: #{double_conv.3} parent=11 // pred_check_branch
        %319 = sbr.rel (%p317) target = $region24
      $region23: #{double_conv.3} parent=11 // pred_region
        _
      $region24: #{double_conv.3} parent=11 // pred_fallthru
        _
      // Predicated region
      $region25: #{double_conv.3} parent=11 // pred_check
        %p320 = pneg %p212
      $region26: #{double_conv.3} parent=11 // pred_check_branch
        %322 = sbr.rel (%p320) target = $region28
      $region27: #{double_conv.3} parent=11 // pred_region
        _
      $region28: #{double_conv.3} parent=11 // pred_fallthru
        _
    $region12: #{double_conv.3} parent=5 // pred_fallthru
      _
    %p323 = scmp.lt.s32.totalorder %s16, 2
    // Predicated region
    $region29: #{double_conv.3} parent=5 // pred_check
      %p324 = pneg %p323
    $region30: #{double_conv.3} parent=5 // pred_check_branch
      %326 = sbr.rel (%p324) target = $region32
    $region31: #{double_conv.3} parent=5 // pred_region
      // Predicated region
      $region33: #{double_conv.3} parent=31 // pred_check
        %p327 = pneg %p50
      $region34: #{double_conv.3} parent=31 // pred_check_branch
        %329 = sbr.rel (%p327) target = $region36
      $region35: #{double_conv.3} parent=31 // pred_region
        %s330 = smul.u32 16, %s24
        %p331 = scmp.lt.s32.totalorder %s23, 1
        %s332 = scalar_select %p331, %s23, 1
        %p333 = scmp.lt.s32.totalorder %s330, 15
        %s334 = scalar_select %p333, %s330, 15
        %s335 = smul.addr %s334, 2
        %s336 = smul.addr %s332, 32
        %s337 = sadd.s32 %s335, %s336
        %s338 = smul.addr %s337, 8
        %s339 = scalar_lea.vmem %s0, %s338
        %s340 = smul.u32 16, %s24
      $region36: #{double_conv.3} parent=31 // pred_fallthru
        _
      // Predicated region
      $region37: #{double_conv.3} parent=31 // pred_check
        %p341 = pneg %p86
      $region38: #{double_conv.3} parent=31 // pred_check_branch
        %343 = sbr.rel (%p341) target = $region40
      $region39: #{double_conv.3} parent=31 // pred_region
        %s344 = smul.u32 %s24, 16
        %s345 = ssub.s32 %s344, 1
        %p346 = scmp.gt.s32.totalorder %s345, 0
        %s347 = scalar_select %p346, %s345, 0
        %p348 = scmp.lt.s32.totalorder %s23, 1
        %s349 = scalar_select %p348, %s23, 1
        %p350 = scmp.lt.s32.totalorder %s347, 15
        %s351 = scalar_select %p350, %s347, 15
        %s352 = smul.addr %s351, 2
        %s353 = smul.addr %s349, 32
        %s354 = sadd.s32 %s352, %s353
        %s355 = smul.addr %s354, 8
        %s356 = scalar_lea.vmem %s1, %s355
        %s357 = smul.u32 %s24, 16
        %s358 = ssub.s32 %s357, 1
        %p359 = scmp.gt.s32.totalorder %s358, 0
        %s360 = scalar_select %p359, %s358, 0
      $region40: #{double_conv.3} parent=31 // pred_fallthru
        _
      // Predicated region
      $region41: #{double_conv.3} parent=31 // pred_check
        %p361 = pneg %p122
      $region42: #{double_conv.3} parent=31 // pred_check_branch
        %363 = sbr.rel (%p361) target = $region44
      $region43: #{double_conv.3} parent=31 // pred_region
        %s364 = smul.u32 %s24, 16
        %s365 = sadd.s32 %s364, 16
        %p366 = scmp.lt.s32.totalorder %s365, 15
        %s367 = scalar_select %p366, %s365, 15
        %p368 = scmp.lt.s32.totalorder %s23, 1
        %s369 = scalar_select %p368, %s23, 1
        %p370 = scmp.lt.s32.totalorder %s367, 15
        %s371 = scalar_select %p370, %s367, 15
        %s372 = smul.addr %s371, 2
        %s373 = smul.addr %s369, 32
        %s374 = sadd.s32 %s372, %s373
        %s375 = smul.addr %s374, 8
        %s376 = scalar_lea.vmem %s2, %s375
        %s377 = smul.u32 %s24, 16
        %s378 = sadd.s32 %s377, 16
        %p379 = scmp.lt.s32.totalorder %s378, 15
        %s380 = scalar_select %p379, %s378, 15
      $region44: #{double_conv.3} parent=31 // pred_fallthru
        _
    $region32: #{double_conv.3} parent=5 // pred_fallthru
      _
    %p381 = scmp.le.s32.totalorder 1, %s16
    %p382 = scmp.lt.s32.totalorder %s16, 3
    %p383 = pnand %p381, %p382
    %p384 = pneg %p383
    // Predicated region
    $region45: #{double_conv.3} parent=5 // pred_check
      _
    $region46: #{double_conv.3} parent=5 // pred_check_branch
      %386 = sbr.rel (%p383) target = $region48
    $region47: #{double_conv.3} parent=5 // pred_region
      %s387 = ssub.s32 %s16, 1
      %s388 = smul.u32 16, %s26
      %p389 = scmp.lt.s32.totalorder %s25, 1
      %s390 = scalar_select %p389, %s25, 1
      %p391 = scmp.lt.s32.totalorder %s388, 15
      %s392 = scalar_select %p391, %s388, 15
      %s393 = smul.addr %s392, 2
      %s394 = smul.addr %s390, 32
      %s395 = sadd.s32 %s393, %s394
      %s396 = smul.addr %s395, 8
      %s397 = scalar_lea.vmem %s0, %s396
      %p398 = pneg %p56
      %p399 = pneg %p53
      %s400 = smul.u32 %s26, 16
      %s401 = ssub.s32 %s400, 1
      %p402 = scmp.gt.s32.totalorder %s401, 0
      %s403 = scalar_select %p402, %s401, 0
      %p404 = scmp.lt.s32.totalorder %s25, 1
      %s405 = scalar_select %p404, %s25, 1
      %p406 = scmp.lt.s32.totalorder %s403, 15
      %s407 = scalar_select %p406, %s403, 15
      %s408 = smul.addr %s407, 2
      %s409 = smul.addr %s405, 32
      %s410 = sadd.s32 %s408, %s409
      %s411 = smul.addr %s410, 8
      %s412 = scalar_lea.vmem %s1, %s411
      %p413 = pneg %p92
      %p414 = pneg %p89
      %s415 = smul.u32 %s26, 16
      %s416 = sadd.s32 %s415, 16
      %p417 = scmp.lt.s32.totalorder %s416, 15
      %s418 = scalar_select %p417, %s416, 15
      %p419 = scmp.lt.s32.totalorder %s25, 1
      %s420 = scalar_select %p419, %s25, 1
      %p421 = scmp.lt.s32.totalorder %s418, 15
      %s422 = scalar_select %p421, %s418, 15
      %s423 = smul.addr %s422, 2
      %s424 = smul.addr %s420, 32
      %s425 = sadd.s32 %s423, %s424
      %s426 = smul.addr %s425, 8
      %s427 = scalar_lea.vmem %s2, %s426
      %p428 = pneg %p128
      %p429 = pneg %p125
      %p430 = pneg %p149
      %p431 = pneg %p146
      %p432 = pneg %p170
      %p433 = pneg %p167
      %p434 = pneg %p191
      %p435 = pneg %p188
      %p436 = pneg %p212
      %p437 = pneg %p209
      %p438 = pneg %p240
      %p439 = pneg %p237
      %s440 = smul.u32 16, %s26
      %p441 = scmp.lt.s32.totalorder %s25, 1
      %s442 = scalar_select %p441, %s25, 1
      %p443 = scmp.lt.s32.totalorder %s440, 15
      %s444 = scalar_select %p443, %s440, 15
      %s445 = smul.addr %s444, 2
      %s446 = smul.addr %s442, 32
      %s447 = sadd.s32 %s445, %s446
      %s448 = smul.addr %s447, 8
      %s449 = scalar_lea.vmem %s7, %s448
      %p450 = pneg %p268
      %p451 = pneg %p265
      %p452 = scmp.lt.s32.totalorder %s25, 1
      %s453 = scalar_select %p452, %s25, 1
      %p454 = scmp.lt.s32.totalorder %s26, 0
      %s455 = scalar_select %p454, %s26, 0
      %s456 = sadd.s32 %s455, %s453
      %s457 = scalar_lea.vmem %s8, %s456
      %p458 = pneg %p296
      %p459 = pneg %p293
      %p460 = scmp.lt.s32.totalorder %s25, 1
      %s461 = scalar_select %p460, %s25, 1
      %p462 = scmp.lt.s32.totalorder %s26, 0
      %s463 = scalar_select %p462, %s26, 0
      %s464 = sadd.s32 %s463, %s461
      %s465 = scalar_lea.vmem %s9, %s464
      %s466 = smul.u32 16, %s26
      %p467 = scmp.lt.s32.totalorder %s25, 1
      %s468 = scalar_select %p467, %s25, 1
      %p469 = scmp.lt.s32.totalorder %s466, 15
      %s470 = scalar_select %p469, %s466, 15
      %s471 = smul.addr %s470, 2
      %s472 = smul.addr %s468, 32
      %s473 = sadd.s32 %s471, %s472
      %s474 = smul.addr %s473, 8
      %s475 = scalar_lea.vmem %s0, %s474
      %s476 = smul.u32 16, %s26
      %s477 = smul.u32 %s26, 16
      %s478 = ssub.s32 %s477, 1
      %p479 = scmp.gt.s32.totalorder %s478, 0
      %s480 = scalar_select %p479, %s478, 0
      %p481 = scmp.lt.s32.totalorder %s25, 1
      %s482 = scalar_select %p481, %s25, 1
      %p483 = scmp.lt.s32.totalorder %s480, 15
      %s484 = scalar_select %p483, %s480, 15
      %s485 = smul.addr %s484, 2
      %s486 = smul.addr %s482, 32
      %s487 = sadd.s32 %s485, %s486
      %s488 = smul.addr %s487, 8
      %s489 = scalar_lea.vmem %s1, %s488
      %s490 = smul.u32 %s26, 16
      %s491 = ssub.s32 %s490, 1
      %p492 = scmp.gt.s32.totalorder %s491, 0
      %s493 = scalar_select %p492, %s491, 0
      %s494 = smul.u32 %s26, 16
      %s495 = sadd.s32 %s494, 16
      %p496 = scmp.lt.s32.totalorder %s495, 15
      %s497 = scalar_select %p496, %s495, 15
      %p498 = scmp.lt.s32.totalorder %s25, 1
      %s499 = scalar_select %p498, %s25, 1
      %p500 = scmp.lt.s32.totalorder %s497, 15
      %s501 = scalar_select %p500, %s497, 15
      %s502 = smul.addr %s501, 2
      %s503 = smul.addr %s499, 32
      %s504 = sadd.s32 %s502, %s503
      %s505 = smul.addr %s504, 8
      %s506 = scalar_lea.vmem %s2, %s505
      %s507 = smul.u32 %s26, 16
      %s508 = sadd.s32 %s507, 16
      %p509 = scmp.lt.s32.totalorder %s508, 15
      %s510 = scalar_select %p509, %s508, 15
      %s511 = smul.u32 16, %s26
      %p512 = scmp.lt.s32.totalorder %s25, 1
      %s513 = scalar_select %p512, %s25, 1
      %p514 = scmp.lt.s32.totalorder %s511, 15
      %s515 = scalar_select %p514, %s511, 15
      %s516 = smul.addr %s515, 2
      %s517 = smul.addr %s513, 32
      %s518 = sadd.s32 %s516, %s517
      %s519 = smul.addr %s518, 8
      %s520 = scalar_lea.vmem %s7, %s519
      %s521 = smul.u32 16, %s26
      %p522 = scmp.lt.s32.totalorder %s25, 1
      %s523 = scalar_select %p522, %s25, 1
      %p524 = scmp.lt.s32.totalorder %s26, 0
      %s525 = scalar_select %p524, %s26, 0
      %s526 = sadd.s32 %s525, %s523
      %s527 = scalar_lea.vmem %s8, %s526
      %p528 = scmp.lt.s32.totalorder %s25, 1
      %s529 = scalar_select %p528, %s25, 1
      %p530 = scmp.lt.s32.totalorder %s26, 0
      %s531 = scalar_select %p530, %s26, 0
      %s532 = sadd.s32 %s531, %s529
      %s533 = scalar_lea.vmem %s9, %s532
      %vm534 = vcmask 24576
      %535 = vst.msk [vmem:[#allocation2] sm:$0x1] %vm534, 0.0
      %536 = vst.msk [vmem:[#allocation2 + $0x18] sm:$0x1] %vm534, 0.0
      %537 = vst.msk [vmem:[#allocation2 + $0x30] sm:$0x1] %vm534, 0.0
      %538 = vst.msk [vmem:[#allocation2 + $0x48] sm:$0x1] %vm534, 0.0
      %539 = vst.msk [vmem:[#allocation2 + $0x60] sm:$0x1] %vm534, 0.0
      %540 = vst.msk [vmem:[#allocation2 + $0x78] sm:$0x1] %vm534, 0.0
      %541 = vst.msk [vmem:[#allocation2 + $0x90] sm:$0x1] %vm534, 0.0
      %542 = vst.msk [vmem:[#allocation2 + $0xa8] sm:$0x1] %vm534, 0.0
      %543 = vst.msk [vmem:[#allocation2 + $0xc0] sm:$0x1] %vm534, 0.0
      %544 = vst.msk [vmem:[#allocation2 + $0xd8] sm:$0x1] %vm534, 0.0
      %545 = vst.msk [vmem:[#allocation2 + $0xf0] sm:$0x1] %vm534, 0.0
      %546 = vst.msk [vmem:[#allocation2 + $0x108] sm:$0x1] %vm534, 0.0
      %547 = vst.msk [vmem:[#allocation2 + $0x120] sm:$0x1] %vm534, 0.0
      %548 = vst.msk [vmem:[#allocation2 + $0x138] sm:$0x1] %vm534, 0.0
      %549 = vst.msk [vmem:[#allocation2 + $0x150] sm:$0x1] %vm534, 0.0
      %550 = vst.msk [vmem:[#allocation2 + $0x168] sm:$0x1] %vm534, 0.0
      %551 = vst.msk [vmem:[#allocation2 + $0x180] sm:$0x1] %vm534, 0.0
      %552 = vst.msk [vmem:[#allocation2 + $0x198] sm:$0x1] %vm534, 0.0
      %553 = vst.msk [vmem:[#allocation2 + $0x11] sm:$0x1] %vm534, 0.0
      %554 = vst.msk [vmem:[#allocation2 + $0x29] sm:$0x1] %vm534, 0.0
      %555 = vst.msk [vmem:[#allocation2 + $0x41] sm:$0x1] %vm534, 0.0
      %556 = vst.msk [vmem:[#allocation2 + $0x59] sm:$0x1] %vm534, 0.0
      %557 = vst.msk [vmem:[#allocation2 + $0x71] sm:$0x1] %vm534, 0.0
      %558 = vst.msk [vmem:[#allocation2 + $0x89] sm:$0x1] %vm534, 0.0
      %559 = vst.msk [vmem:[#allocation2 + $0xa1] sm:$0x1] %vm534, 0.0
      %560 = vst.msk [vmem:[#allocation2 + $0xb9] sm:$0x1] %vm534, 0.0
      %561 = vst.msk [vmem:[#allocation2 + $0xd1] sm:$0x1] %vm534, 0.0
      %562 = vst.msk [vmem:[#allocation2 + $0xe9] sm:$0x1] %vm534, 0.0
      %563 = vst.msk [vmem:[#allocation2 + $0x101] sm:$0x1] %vm534, 0.0
      %564 = vst.msk [vmem:[#allocation2 + $0x119] sm:$0x1] %vm534, 0.0
      %565 = vst.msk [vmem:[#allocation2 + $0x131] sm:$0x1] %vm534, 0.0
      %566 = vst.msk [vmem:[#allocation2 + $0x149] sm:$0x1] %vm534, 0.0
      %567 = vst.msk [vmem:[#allocation2 + $0x161] sm:$0x1] %vm534, 0.0
      %568 = vst.msk [vmem:[#allocation2 + $0x179] sm:$0x1] %vm534, 0.0
      %569 = vst.msk [vmem:[#allocation2 + $0x191] sm:$0x1] %vm534, 0.0
      %570 = vst.msk [vmem:[#allocation2 + $0x1a9] sm:$0x1] %vm534, 0.0
      %v571 = vld [vmem:[%s475] sm:$0xff]
      %v572 = vld [vmem:[%s475 + $0x8] sm:$0xff]
      %v573 = vld [vmem:[%s475 + $0x10] sm:$0xff]
      %v574 = vld [vmem:[%s475 + $0x18] sm:$0xff]
      %v575 = vld [vmem:[%s475 + $0x20] sm:$0xff]
      %v576 = vld [vmem:[%s475 + $0x28] sm:$0xff]
      %v577 = vld [vmem:[%s475 + $0x30] sm:$0xff]
      %v578 = vld [vmem:[%s475 + $0x38] sm:$0xff]
      %v579 = vld [vmem:[%s475 + $0x40] sm:$0xff]
      %v580 = vld [vmem:[%s475 + $0x48] sm:$0xff]
      %v581 = vld [vmem:[%s475 + $0x50] sm:$0xff]
      %v582 = vld [vmem:[%s475 + $0x58] sm:$0xff]
      %v583 = vld [vmem:[%s475 + $0x60] sm:$0xff]
      %v584 = vld [vmem:[%s475 + $0x68] sm:$0xff]
      %v585 = vld [vmem:[%s475 + $0x70] sm:$0xff]
      %v586 = vld [vmem:[%s475 + $0x78] sm:$0xff]
      %v587 = vld [vmem:[%s475 + $0x80] sm:$0xff]
      %v588 = vld [vmem:[%s475 + $0x88] sm:$0xff]
      %v589 = vld [vmem:[%s475 + $0x90] sm:$0xff]
      %v590 = vld [vmem:[%s475 + $0x98] sm:$0xff]
      %v591 = vld [vmem:[%s475 + $0xa0] sm:$0xff]
      %v592 = vld [vmem:[%s475 + $0xa8] sm:$0xff]
      %v593 = vld [vmem:[%s475 + $0xb0] sm:$0xff]
      %v594 = vld [vmem:[%s475 + $0xb8] sm:$0xff]
      %v595 = vld [vmem:[%s475 + $0xc0] sm:$0xff]
      %v596 = vld [vmem:[%s475 + $0xc8] sm:$0xff]
      %v597 = vld [vmem:[%s475 + $0xd0] sm:$0xff]
      %v598 = vld [vmem:[%s475 + $0xd8] sm:$0xff]
      %v599 = vld [vmem:[%s475 + $0xe0] sm:$0xff]
      %v600 = vld [vmem:[%s475 + $0xe8] sm:$0xff]
      %v601 = vld [vmem:[%s475 + $0xf0] sm:$0xff]
      %v602 = vld [vmem:[%s475 + $0xf8] sm:$0xff]
      %s603 = scalar_lea.vmem [#allocation2], 24
      %vm604 = vcmask 31744
      %605 = vst.msk [vmem:[%s603 + $0x1] sm:$0xff] %vm604, %v571
      %606 = vst.msk [vmem:[%s603 + $0x9] sm:$0xff] %vm604, %v572
      %607 = vst.msk [vmem:[%s603 + $0x19] sm:$0xff] %vm604, %v573
      %608 = vst.msk [vmem:[%s603 + $0x21] sm:$0xff] %vm604, %v574
      %609 = vst.msk [vmem:[%s603 + $0x31] sm:$0xff] %vm604, %v575
      %610 = vst.msk [vmem:[%s603 + $0x39] sm:$0xff] %vm604, %v576
      %611 = vst.msk [vmem:[%s603 + $0x49] sm:$0xff] %vm604, %v577
      %612 = vst.msk [vmem:[%s603 + $0x51] sm:$0xff] %vm604, %v578
      %613 = vst.msk [vmem:[%s603 + $0x61] sm:$0xff] %vm604, %v579
      %614 = vst.msk [vmem:[%s603 + $0x69] sm:$0xff] %vm604, %v580
      %615 = vst.msk [vmem:[%s603 + $0x79] sm:$0xff] %vm604, %v581
      %616 = vst.msk [vmem:[%s603 + $0x81] sm:$0xff] %vm604, %v582
      %617 = vst.msk [vmem:[%s603 + $0x91] sm:$0xff] %vm604, %v583
      %618 = vst.msk [vmem:[%s603 + $0x99] sm:$0xff] %vm604, %v584
      %619 = vst.msk [vmem:[%s603 + $0xa9] sm:$0xff] %vm604, %v585
      %620 = vst.msk [vmem:[%s603 + $0xb1] sm:$0xff] %vm604, %v586
      %621 = vst.msk [vmem:[%s603 + $0xc1] sm:$0xff] %vm604, %v587
      %622 = vst.msk [vmem:[%s603 + $0xc9] sm:$0xff] %vm604, %v588
      %623 = vst.msk [vmem:[%s603 + $0xd9] sm:$0xff] %vm604, %v589
      %624 = vst.msk [vmem:[%s603 + $0xe1] sm:$0xff] %vm604, %v590
      %625 = vst.msk [vmem:[%s603 + $0xf1] sm:$0xff] %vm604, %v591
      %626 = vst.msk [vmem:[%s603 + $0xf9] sm:$0xff] %vm604, %v592
      %627 = vst.msk [vmem:[%s603 + $0x109] sm:$0xff] %vm604, %v593
      %628 = vst.msk [vmem:[%s603 + $0x111] sm:$0xff] %vm604, %v594
      %629 = vst.msk [vmem:[%s603 + $0x121] sm:$0xff] %vm604, %v595
      %630 = vst.msk [vmem:[%s603 + $0x129] sm:$0xff] %vm604, %v596
      %631 = vst.msk [vmem:[%s603 + $0x139] sm:$0xff] %vm604, %v597
      %632 = vst.msk [vmem:[%s603 + $0x141] sm:$0xff] %vm604, %v598
      %633 = vst.msk [vmem:[%s603 + $0x151] sm:$0xff] %vm604, %v599
      %634 = vst.msk [vmem:[%s603 + $0x159] sm:$0xff] %vm604, %v600
      %635 = vst.msk [vmem:[%s603 + $0x169] sm:$0xff] %vm604, %v601
      %636 = vst.msk [vmem:[%s603 + $0x171] sm:$0xff] %vm604, %v602
      %p637 = scmp.gt.s32.totalorder %s26, 0
      // Predicated region
      $region49: #{double_conv.3} parent=47 // pred_check
        %p638 = pneg %p637
      $region50: #{double_conv.3} parent=47 // pred_check_branch
        %640 = sbr.rel (%p638) target = $region52
      $region51: #{double_conv.3} parent=47 // pred_region
        %v641 = vld [vmem:[%s489] sm:$0xff]
        %v642 = vld [vmem:[%s489 + $0x8] sm:$0xff]
        %643 = vst.msk [vmem:[#allocation2 + $0x1] sm:$0xff] %vm604, %v641
        %644 = vst.msk [vmem:[#allocation2 + $0x9] sm:$0xff] %vm604, %v642
      $region52: #{double_conv.3} parent=47 // pred_fallthru
        _
      %p645 = scmp.eq.s32.totalorder %s26, 0
      // Predicated region
      $region53: #{double_conv.3} parent=47 // pred_check
        %p646 = pneg %p645
      $region54: #{double_conv.3} parent=47 // pred_check_branch
        %648 = sbr.rel (%p646) target = $region56
      $region55: #{double_conv.3} parent=47 // pred_region
        %649 = vst.msk [vmem:[#allocation2 + $0x1] sm:$0xff] %vm604, 0.0
        %650 = vst.msk [vmem:[#allocation2 + $0x9] sm:$0xff] %vm604, 0.0
      $region56: #{double_conv.3} parent=47 // pred_fallthru
        _
      %p651 = scmp.lt.s32.totalorder %s26, 0
      // Predicated region
      $region57: #{double_conv.3} parent=47 // pred_check
        %p652 = pneg %p651
      $region58: #{double_conv.3} parent=47 // pred_check_branch
        %654 = sbr.rel (%p652) target = $region60
      $region59: #{double_conv.3} parent=47 // pred_region
        %v655 = vld [vmem:[%s506] sm:$0xff]
        %v656 = vld [vmem:[%s506 + $0x8] sm:$0xff]
        %s657 = scalar_lea.vmem [#allocation2], 408
        %658 = vst.msk [vmem:[%s657 + $0x1] sm:$0xff] %vm604, %v655
        %659 = vst.msk [vmem:[%s657 + $0x9] sm:$0xff] %vm604, %v656
      $region60: #{double_conv.3} parent=47 // pred_fallthru
        _
      // Predicated region
      $region61: #{double_conv.3} parent=47 // pred_check
        %p660 = pneg %p645
      $region62: #{double_conv.3} parent=47 // pred_check_branch
        %662 = sbr.rel (%p660) target = $region64
      $region63: #{double_conv.3} parent=47 // pred_region
        %s663 = scalar_lea.vmem [#allocation2], 408
        %664 = vst.msk [vmem:[%s663 + $0x1] sm:$0xff] %vm604, 0.0
        %665 = vst.msk [vmem:[%s663 + $0x9] sm:$0xff] %vm604, 0.0
      $region64: #{double_conv.3} parent=47 // pred_fallthru
        _
      %v666 = vld [vmem:[#allocation2] sm:$0xff]
      %v667 = vld [vmem:[#allocation2 + $0x8] sm:$0xff]
      %v668 = vld [vmem:[#allocation2 + $0x18] sm:$0xff]
      %v669 = vld [vmem:[#allocation2 + $0x20] sm:$0xff]
      %v670 = vld [vmem:[#allocation2 + $0x30] sm:$0xff]
      %v671 = vld [vmem:[#allocation2 + $0x38] sm:$0xff]
      %v672 = vld [vmem:[#allocation2 + $0x48] sm:$0xff]
      %v673 = vld [vmem:[#allocation2 + $0x50] sm:$0xff]
      %v674 = vld [vmem:[#allocation2 + $0x60] sm:$0xff]
      %v675 = vld [vmem:[#allocation2 + $0x68] sm:$0xff]
      %v676 = vld [vmem:[#allocation2 + $0x78] sm:$0xff]
      %v677 = vld [vmem:[#allocation2 + $0x80] sm:$0xff]
      %v678 = vld [vmem:[#allocation2 + $0x90] sm:$0xff]
      %v679 = vld [vmem:[#allocation2 + $0x98] sm:$0xff]
      %v680 = vld [vmem:[#allocation2 + $0xa8] sm:$0xff]
      %v681 = vld [vmem:[#allocation2 + $0xb0] sm:$0xff]
      %v682 = vld [vmem:[#allocation2 + $0xc0] sm:$0xff]
      %v683 = vld [vmem:[#allocation2 + $0xc8] sm:$0xff]
      %v684 = vld [vmem:[#allocation2 + $0xd8] sm:$0xff]
      %v685 = vld [vmem:[#allocation2 + $0xe0] sm:$0xff]
      %v686 = vld [vmem:[#allocation2 + $0xf0] sm:$0xff]
      %v687 = vld [vmem:[#allocation2 + $0xf8] sm:$0xff]
      %v688 = vld [vmem:[#allocation2 + $0x108] sm:$0xff]
      %v689 = vld [vmem:[#allocation2 + $0x110] sm:$0xff]
      %v690 = vld [vmem:[#allocation2 + $0x120] sm:$0xff]
      %v691 = vld [vmem:[#allocation2 + $0x128] sm:$0xff]
      %v692 = vld [vmem:[#allocation2 + $0x138] sm:$0xff]
      %v693 = vld [vmem:[#allocation2 + $0x140] sm:$0xff]
      %v694 = vld [vmem:[#allocation2 + $0x150] sm:$0xff]
      %v695 = vld [vmem:[#allocation2 + $0x158] sm:$0xff]
      %v696 = vld [vmem:[#allocation2 + $0x168] sm:$0xff]
      %v697 = vld [vmem:[#allocation2 + $0x170] sm:$0xff]
      %698 = vst.msk [vmem:[#allocation3] sm:$0xff] %vm604, %v666
      %699 = vst.msk [vmem:[#allocation3 + $0x8] sm:$0xff] %vm604, %v667
      %700 = vst.msk [vmem:[#allocation3 + $0x10] sm:$0xff] %vm604, %v668
      %701 = vst.msk [vmem:[#allocation3 + $0x18] sm:$0xff] %vm604, %v669
      %702 = vst.msk [vmem:[#allocation3 + $0x20] sm:$0xff] %vm604, %v670
      %703 = vst.msk [vmem:[#allocation3 + $0x28] sm:$0xff] %vm604, %v671
      %704 = vst.msk [vmem:[#allocation3 + $0x30] sm:$0xff] %vm604, %v672
      %705 = vst.msk [vmem:[#allocation3 + $0x38] sm:$0xff] %vm604, %v673
      %706 = vst.msk [vmem:[#allocation3 + $0x40] sm:$0xff] %vm604, %v674
      %707 = vst.msk [vmem:[#allocation3 + $0x48] sm:$0xff] %vm604, %v675
      %708 = vst.msk [vmem:[#allocation3 + $0x50] sm:$0xff] %vm604, %v676
      %709 = vst.msk [vmem:[#allocation3 + $0x58] sm:$0xff] %vm604, %v677
      %710 = vst.msk [vmem:[#allocation3 + $0x60] sm:$0xff] %vm604, %v678
      %711 = vst.msk [vmem:[#allocation3 + $0x68] sm:$0xff] %vm604, %v679
      %712 = vst.msk [vmem:[#allocation3 + $0x70] sm:$0xff] %vm604, %v680
      %713 = vst.msk [vmem:[#allocation3 + $0x78] sm:$0xff] %vm604, %v681
      %714 = vst.msk [vmem:[#allocation3 + $0x80] sm:$0xff] %vm604, %v682
      %715 = vst.msk [vmem:[#allocation3 + $0x88] sm:$0xff] %vm604, %v683
      %716 = vst.msk [vmem:[#allocation3 + $0x90] sm:$0xff] %vm604, %v684
      %717 = vst.msk [vmem:[#allocation3 + $0x98] sm:$0xff] %vm604, %v685
      %718 = vst.msk [vmem:[#allocation3 + $0xa0] sm:$0xff] %vm604, %v686
      %719 = vst.msk [vmem:[#allocation3 + $0xa8] sm:$0xff] %vm604, %v687
      %720 = vst.msk [vmem:[#allocation3 + $0xb0] sm:$0xff] %vm604, %v688
      %721 = vst.msk [vmem:[#allocation3 + $0xb8] sm:$0xff] %vm604, %v689
      %722 = vst.msk [vmem:[#allocation3 + $0xc0] sm:$0xff] %vm604, %v690
      %723 = vst.msk [vmem:[#allocation3 + $0xc8] sm:$0xff] %vm604, %v691
      %724 = vst.msk [vmem:[#allocation3 + $0xd0] sm:$0xff] %vm604, %v692
      %725 = vst.msk [vmem:[#allocation3 + $0xd8] sm:$0xff] %vm604, %v693
      %726 = vst.msk [vmem:[#allocation3 + $0xe0] sm:$0xff] %vm604, %v694
      %727 = vst.msk [vmem:[#allocation3 + $0xe8] sm:$0xff] %vm604, %v695
      %728 = vst.msk [vmem:[#allocation3 + $0xf0] sm:$0xff] %vm604, %v696
      %729 = vst.msk [vmem:[#allocation3 + $0xf8] sm:$0xff] %vm604, %v697
      %v730 = vld [vmem:[#allocation2 + $0x1] sm:$0xff]
      %v731 = vld [vmem:[#allocation2 + $0x9] sm:$0xff]
      %v732 = vld [vmem:[#allocation2 + $0x19] sm:$0xff]
      %v733 = vld [vmem:[#allocation2 + $0x21] sm:$0xff]
      %v734 = vld [vmem:[#allocation2 + $0x31] sm:$0xff]
      %v735 = vld [vmem:[#allocation2 + $0x39] sm:$0xff]
      %v736 = vld [vmem:[#allocation2 + $0x49] sm:$0xff]
      %v737 = vld [vmem:[#allocation2 + $0x51] sm:$0xff]
      %v738 = vld [vmem:[#allocation2 + $0x61] sm:$0xff]
      %v739 = vld [vmem:[#allocation2 + $0x69] sm:$0xff]
      %v740 = vld [vmem:[#allocation2 + $0x79] sm:$0xff]
      %v741 = vld [vmem:[#allocation2 + $0x81] sm:$0xff]
      %v742 = vld [vmem:[#allocation2 + $0x91] sm:$0xff]
      %v743 = vld [vmem:[#allocation2 + $0x99] sm:$0xff]
      %v744 = vld [vmem:[#allocation2 + $0xa9] sm:$0xff]
      %v745 = vld [vmem:[#allocation2 + $0xb1] sm:$0xff]
      %v746 = vld [vmem:[#allocation2 + $0xc1] sm:$0xff]
      %v747 = vld [vmem:[#allocation2 + $0xc9] sm:$0xff]
      %v748 = vld [vmem:[#allocation2 + $0xd9] sm:$0xff]
      %v749 = vld [vmem:[#allocation2 + $0xe1] sm:$0xff]
      %v750 = vld [vmem:[#allocation2 + $0xf1] sm:$0xff]
      %v751 = vld [vmem:[#allocation2 + $0xf9] sm:$0xff]
      %v752 = vld [vmem:[#allocation2 + $0x109] sm:$0xff]
      %v753 = vld [vmem:[#allocation2 + $0x111] sm:$0xff]
      %v754 = vld [vmem:[#allocation2 + $0x121] sm:$0xff]
      %v755 = vld [vmem:[#allocation2 + $0x129] sm:$0xff]
      %v756 = vld [vmem:[#allocation2 + $0x139] sm:$0xff]
      %v757 = vld [vmem:[#allocation2 + $0x141] sm:$0xff]
      %v758 = vld [vmem:[#allocation2 + $0x151] sm:$0xff]
      %v759 = vld [vmem:[#allocation2 + $0x159] sm:$0xff]
      %v760 = vld [vmem:[#allocation2 + $0x169] sm:$0xff]
      %v761 = vld [vmem:[#allocation2 + $0x171] sm:$0xff]
      %794 = vrot.lane.b32.xlu0 %v730, 4
      %v795 = vpop.permute.xlu0 %794
      %796 = vrot.lane.b32.xlu0 %v731, 4
      %v797 = vpop.permute.xlu0 %796
      %798 = vrot.lane.b32.xlu0 %v732, 4
      %v799 = vpop.permute.xlu0 %798
      %800 = vrot.lane.b32.xlu0 %v733, 4
      %v801 = vpop.permute.xlu0 %800
      %802 = vrot.lane.b32.xlu0 %v734, 4
      %v803 = vpop.permute.xlu0 %802
      %804 = vrot.lane.b32.xlu0 %v735, 4
      %v805 = vpop.permute.xlu0 %804
      %806 = vrot.lane.b32.xlu0 %v736, 4
      %v807 = vpop.permute.xlu0 %806
      %808 = vrot.lane.b32.xlu0 %v737, 4
      %v809 = vpop.permute.xlu0 %808
      %810 = vrot.lane.b32.xlu0 %v738, 4
      %v811 = vpop.permute.xlu0 %810
      %812 = vrot.lane.b32.xlu0 %v739, 4
      %v813 = vpop.permute.xlu0 %812
      %814 = vrot.lane.b32.xlu0 %v740, 4
      %v815 = vpop.permute.xlu0 %814
      %816 = vrot.lane.b32.xlu0 %v741, 4
      %v817 = vpop.permute.xlu0 %816
      %818 = vrot.lane.b32.xlu0 %v742, 4
      %v819 = vpop.permute.xlu0 %818
      %820 = vrot.lane.b32.xlu0 %v743, 4
      %v821 = vpop.permute.xlu0 %820
      %822 = vrot.lane.b32.xlu0 %v744, 4
      %v823 = vpop.permute.xlu0 %822
      %824 = vrot.lane.b32.xlu0 %v745, 4
      %v825 = vpop.permute.xlu0 %824
      %826 = vrot.lane.b32.xlu0 %v746, 4
      %v827 = vpop.permute.xlu0 %826
      %828 = vrot.lane.b32.xlu0 %v747, 4
      %v829 = vpop.permute.xlu0 %828
      %830 = vrot.lane.b32.xlu0 %v748, 4
      %v831 = vpop.permute.xlu0 %830
      %832 = vrot.lane.b32.xlu0 %v749, 4
      %v833 = vpop.permute.xlu0 %832
      %834 = vrot.lane.b32.xlu0 %v750, 4
      %v835 = vpop.permute.xlu0 %834
      %836 = vrot.lane.b32.xlu0 %v751, 4
      %v837 = vpop.permute.xlu0 %836
      %838 = vrot.lane.b32.xlu0 %v752, 4
      %v839 = vpop.permute.xlu0 %838
      %840 = vrot.lane.b32.xlu0 %v753, 4
      %v841 = vpop.permute.xlu0 %840
      %842 = vrot.lane.b32.xlu0 %v754, 4
      %v843 = vpop.permute.xlu0 %842
      %844 = vrot.lane.b32.xlu0 %v755, 4
      %v845 = vpop.permute.xlu0 %844
      %846 = vrot.lane.b32.xlu0 %v756, 4
      %v847 = vpop.permute.xlu0 %846
      %848 = vrot.lane.b32.xlu0 %v757, 4
      %v849 = vpop.permute.xlu0 %848
      %850 = vrot.lane.b32.xlu0 %v758, 4
      %v851 = vpop.permute.xlu0 %850
      %852 = vrot.lane.b32.xlu0 %v759, 4
      %v853 = vpop.permute.xlu0 %852
      %854 = vrot.lane.b32.xlu0 %v760, 4
      %v855 = vpop.permute.xlu0 %854
      %856 = vrot.lane.b32.xlu0 %v761, 4
      %v857 = vpop.permute.xlu0 %856
      %vm890 = vcmask 64544
      %891 = vst.msk [vmem:[#allocation3] sm:$0xff] %vm890, %v795
      %892 = vst.msk [vmem:[#allocation3 + $0x8] sm:$0xff] %vm890, %v797
      %893 = vst.msk [vmem:[#allocation3 + $0x10] sm:$0xff] %vm890, %v799
      %894 = vst.msk [vmem:[#allocation3 + $0x18] sm:$0xff] %vm890, %v801
      %895 = vst.msk [vmem:[#allocation3 + $0x20] sm:$0xff] %vm890, %v803
      %896 = vst.msk [vmem:[#allocation3 + $0x28] sm:$0xff] %vm890, %v805
      %897 = vst.msk [vmem:[#allocation3 + $0x30] sm:$0xff] %vm890, %v807
      %898 = vst.msk [vmem:[#allocation3 + $0x38] sm:$0xff] %vm890, %v809
      %899 = vst.msk [vmem:[#allocation3 + $0x40] sm:$0xff] %vm890, %v811
      %900 = vst.msk [vmem:[#allocation3 + $0x48] sm:$0xff] %vm890, %v813
      %901 = vst.msk [vmem:[#allocation3 + $0x50] sm:$0xff] %vm890, %v815
      %902 = vst.msk [vmem:[#allocation3 + $0x58] sm:$0xff] %vm890, %v817
      %903 = vst.msk [vmem:[#allocation3 + $0x60] sm:$0xff] %vm890, %v819
      %904 = vst.msk [vmem:[#allocation3 + $0x68] sm:$0xff] %vm890, %v821
      %905 = vst.msk [vmem:[#allocation3 + $0x70] sm:$0xff] %vm890, %v823
      %906 = vst.msk [vmem:[#allocation3 + $0x78] sm:$0xff] %vm890, %v825
      %907 = vst.msk [vmem:[#allocation3 + $0x80] sm:$0xff] %vm890, %v827
      %908 = vst.msk [vmem:[#allocation3 + $0x88] sm:$0xff] %vm890, %v829
      %909 = vst.msk [vmem:[#allocation3 + $0x90] sm:$0xff] %vm890, %v831
      %910 = vst.msk [vmem:[#allocation3 + $0x98] sm:$0xff] %vm890, %v833
      %911 = vst.msk [vmem:[#allocation3 + $0xa0] sm:$0xff] %vm890, %v835
      %912 = vst.msk [vmem:[#allocation3 + $0xa8] sm:$0xff] %vm890, %v837
      %913 = vst.msk [vmem:[#allocation3 + $0xb0] sm:$0xff] %vm890, %v839
      %914 = vst.msk [vmem:[#allocation3 + $0xb8] sm:$0xff] %vm890, %v841
      %915 = vst.msk [vmem:[#allocation3 + $0xc0] sm:$0xff] %vm890, %v843
      %916 = vst.msk [vmem:[#allocation3 + $0xc8] sm:$0xff] %vm890, %v845
      %917 = vst.msk [vmem:[#allocation3 + $0xd0] sm:$0xff] %vm890, %v847
      %918 = vst.msk [vmem:[#allocation3 + $0xd8] sm:$0xff] %vm890, %v849
      %919 = vst.msk [vmem:[#allocation3 + $0xe0] sm:$0xff] %vm890, %v851
      %920 = vst.msk [vmem:[#allocation3 + $0xe8] sm:$0xff] %vm890, %v853
      %921 = vst.msk [vmem:[#allocation3 + $0xf0] sm:$0xff] %vm890, %v855
      %922 = vst.msk [vmem:[#allocation3 + $0xf8] sm:$0xff] %vm890, %v857
      %v923 = vld [vmem:[#allocation2 + $0x2] sm:$0xff]
      %v924 = vld [vmem:[#allocation2 + $0xa] sm:$0xff]
      %v925 = vld [vmem:[#allocation2 + $0x1a] sm:$0xff]
      %v926 = vld [vmem:[#allocation2 + $0x22] sm:$0xff]
      %v927 = vld [vmem:[#allocation2 + $0x32] sm:$0xff]
      %v928 = vld [vmem:[#allocation2 + $0x3a] sm:$0xff]
      %v929 = vld [vmem:[#allocation2 + $0x4a] sm:$0xff]
      %v930 = vld [vmem:[#allocation2 + $0x52] sm:$0xff]
      %v931 = vld [vmem:[#allocation2 + $0x62] sm:$0xff]
      %v932 = vld [vmem:[#allocation2 + $0x6a] sm:$0xff]
      %v933 = vld [vmem:[#allocation2 + $0x7a] sm:$0xff]
      %v934 = vld [vmem:[#allocation2 + $0x82] sm:$0xff]
      %v935 = vld [vmem:[#allocation2 + $0x92] sm:$0xff]
      %v936 = vld [vmem:[#allocation2 + $0x9a] sm:$0xff]
      %v937 = vld [vmem:[#allocation2 + $0xaa] sm:$0xff]
      %v938 = vld [vmem:[#allocation2 + $0xb2] sm:$0xff]
      %v939 = vld [vmem:[#allocation2 + $0xc2] sm:$0xff]
      %v940 = vld [vmem:[#allocation2 + $0xca] sm:$0xff]
      %v941 = vld [vmem:[#allocation2 + $0xda] sm:$0xff]
      %v942 = vld [vmem:[#allocation2 + $0xe2] sm:$0xff]
      %v943 = vld [vmem:[#allocation2 + $0xf2] sm:$0xff]
      %v944 = vld [vmem:[#allocation2 + $0xfa] sm:$0xff]
      %v945 = vld [vmem:[#allocation2 + $0x10a] sm:$0xff]
      %v946 = vld [vmem:[#allocation2 + $0x112] sm:$0xff]
      %v947 = vld [vmem:[#allocation2 + $0x122] sm:$0xff]
      %v948 = vld [vmem:[#allocation2 + $0x12a] sm:$0xff]
      %v949 = vld [vmem:[#allocation2 + $0x13a] sm:$0xff]
      %v950 = vld [vmem:[#allocation2 + $0x142] sm:$0xff]
      %v951 = vld [vmem:[#allocation2 + $0x152] sm:$0xff]
      %v952 = vld [vmem:[#allocation2 + $0x15a] sm:$0xff]
      %v953 = vld [vmem:[#allocation2 + $0x16a] sm:$0xff]
      %v954 = vld [vmem:[#allocation2 + $0x172] sm:$0xff]
      %987 = vrot.lane.b32.xlu0 %v923, 8
      %v988 = vpop.permute.xlu0 %987
      %989 = vrot.lane.b32.xlu0 %v924, 8
      %v990 = vpop.permute.xlu0 %989
      %991 = vrot.lane.b32.xlu0 %v925, 8
      %v992 = vpop.permute.xlu0 %991
      %993 = vrot.lane.b32.xlu0 %v926, 8
      %v994 = vpop.permute.xlu0 %993
      %995 = vrot.lane.b32.xlu0 %v927, 8
      %v996 = vpop.permute.xlu0 %995
      %997 = vrot.lane.b32.xlu0 %v928, 8
      %v998 = vpop.permute.xlu0 %997
      %999 = vrot.lane.b32.xlu0 %v929, 8
      %v1000 = vpop.permute.xlu0 %999
      %1001 = vrot.lane.b32.xlu0 %v930, 8
      %v1002 = vpop.permute.xlu0 %1001
      %1003 = vrot.lane.b32.xlu0 %v931, 8
      %v1004 = vpop.permute.xlu0 %1003
      %1005 = vrot.lane.b32.xlu0 %v932, 8
      %v1006 = vpop.permute.xlu0 %1005
      %1007 = vrot.lane.b32.xlu0 %v933, 8
      %v1008 = vpop.permute.xlu0 %1007
      %1009 = vrot.lane.b32.xlu0 %v934, 8
      %v1010 = vpop.permute.xlu0 %1009
      %1011 = vrot.lane.b32.xlu0 %v935, 8
      %v1012 = vpop.permute.xlu0 %1011
      %1013 = vrot.lane.b32.xlu0 %v936, 8
      %v1014 = vpop.permute.xlu0 %1013
      %1015 = vrot.lane.b32.xlu0 %v937, 8
      %v1016 = vpop.permute.xlu0 %1015
      %1017 = vrot.lane.b32.xlu0 %v938, 8
      %v1018 = vpop.permute.xlu0 %1017
      %1019 = vrot.lane.b32.xlu0 %v939, 8
      %v1020 = vpop.permute.xlu0 %1019
      %1021 = vrot.lane.b32.xlu0 %v940, 8
      %v1022 = vpop.permute.xlu0 %1021
      %1023 = vrot.lane.b32.xlu0 %v941, 8
      %v1024 = vpop.permute.xlu0 %1023
      %1025 = vrot.lane.b32.xlu0 %v942, 8
      %v1026 = vpop.permute.xlu0 %1025
      %1027 = vrot.lane.b32.xlu0 %v943, 8
      %v1028 = vpop.permute.xlu0 %1027
      %1029 = vrot.lane.b32.xlu0 %v944, 8
      %v1030 = vpop.permute.xlu0 %1029
      %1031 = vrot.lane.b32.xlu0 %v945, 8
      %v1032 = vpop.permute.xlu0 %1031
      %1033 = vrot.lane.b32.xlu0 %v946, 8
      %v1034 = vpop.permute.xlu0 %1033
      %1035 = vrot.lane.b32.xlu0 %v947, 8
      %v1036 = vpop.permute.xlu0 %1035
      %1037 = vrot.lane.b32.xlu0 %v948, 8
      %v1038 = vpop.permute.xlu0 %1037
      %1039 = vrot.lane.b32.xlu0 %v949, 8
      %v1040 = vpop.permute.xlu0 %1039
      %1041 = vrot.lane.b32.xlu0 %v950, 8
      %v1042 = vpop.permute.xlu0 %1041
      %1043 = vrot.lane.b32.xlu0 %v951, 8
      %v1044 = vpop.permute.xlu0 %1043
      %1045 = vrot.lane.b32.xlu0 %v952, 8
      %v1046 = vpop.permute.xlu0 %1045
      %1047 = vrot.lane.b32.xlu0 %v953, 8
      %v1048 = vpop.permute.xlu0 %1047
      %1049 = vrot.lane.b32.xlu0 %v954, 8
      %v1050 = vpop.permute.xlu0 %1049
      %vm1083 = vcmask 97344
      %1084 = vst.msk [vmem:[#allocation3] sm:$0xff] %vm1083, %v988
      %1085 = vst.msk [vmem:[#allocation3 + $0x8] sm:$0xff] %vm1083, %v990
      %1086 = vst.msk [vmem:[#allocation3 + $0x10] sm:$0xff] %vm1083, %v992
      %1087 = vst.msk [vmem:[#allocation3 + $0x18] sm:$0xff] %vm1083, %v994
      %1088 = vst.msk [vmem:[#allocation3 + $0x20] sm:$0xff] %vm1083, %v996
      %1089 = vst.msk [vmem:[#allocation3 + $0x28] sm:$0xff] %vm1083, %v998
      %1090 = vst.msk [vmem:[#allocation3 + $0x30] sm:$0xff] %vm1083, %v1000
      %1091 = vst.msk [vmem:[#allocation3 + $0x38] sm:$0xff] %vm1083, %v1002
      %1092 = vst.msk [vmem:[#allocation3 + $0x40] sm:$0xff] %vm1083, %v1004
      %1093 = vst.msk [vmem:[#allocation3 + $0x48] sm:$0xff] %vm1083, %v1006
      %1094 = vst.msk [vmem:[#allocation3 + $0x50] sm:$0xff] %vm1083, %v1008
      %1095 = vst.msk [vmem:[#allocation3 + $0x58] sm:$0xff] %vm1083, %v1010
      %1096 = vst.msk [vmem:[#allocation3 + $0x60] sm:$0xff] %vm1083, %v1012
      %1097 = vst.msk [vmem:[#allocation3 + $0x68] sm:$0xff] %vm1083, %v1014
      %1098 = vst.msk [vmem:[#allocation3 + $0x70] sm:$0xff] %vm1083, %v1016
      %1099 = vst.msk [vmem:[#allocation3 + $0x78] sm:$0xff] %vm1083, %v1018
      %1100 = vst.msk [vmem:[#allocation3 + $0x80] sm:$0xff] %vm1083, %v1020
      %1101 = vst.msk [vmem:[#allocation3 + $0x88] sm:$0xff] %vm1083, %v1022
      %1102 = vst.msk [vmem:[#allocation3 + $0x90] sm:$0xff] %vm1083, %v1024
      %1103 = vst.msk [vmem:[#allocation3 + $0x98] sm:$0xff] %vm1083, %v1026
      %1104 = vst.msk [vmem:[#allocation3 + $0xa0] sm:$0xff] %vm1083, %v1028
      %1105 = vst.msk [vmem:[#allocation3 + $0xa8] sm:$0xff] %vm1083, %v1030
      %1106 = vst.msk [vmem:[#allocation3 + $0xb0] sm:$0xff] %vm1083, %v1032
      %1107 = vst.msk [vmem:[#allocation3 + $0xb8] sm:$0xff] %vm1083, %v1034
      %1108 = vst.msk [vmem:[#allocation3 + $0xc0] sm:$0xff] %vm1083, %v1036
      %1109 = vst.msk [vmem:[#allocation3 + $0xc8] sm:$0xff] %vm1083, %v1038
      %1110 = vst.msk [vmem:[#allocation3 + $0xd0] sm:$0xff] %vm1083, %v1040
      %1111 = vst.msk [vmem:[#allocation3 + $0xd8] sm:$0xff] %vm1083, %v1042
      %1112 = vst.msk [vmem:[#allocation3 + $0xe0] sm:$0xff] %vm1083, %v1044
      %1113 = vst.msk [vmem:[#allocation3 + $0xe8] sm:$0xff] %vm1083, %v1046
      %1114 = vst.msk [vmem:[#allocation3 + $0xf0] sm:$0xff] %vm1083, %v1048
      %1115 = vst.msk [vmem:[#allocation3 + $0xf8] sm:$0xff] %vm1083, %v1050
      %v1116 = vld [vmem:[%s603] sm:$0xff]
      %v1117 = vld [vmem:[%s603 + $0x8] sm:$0xff]
      %v1118 = vld [vmem:[%s603 + $0x18] sm:$0xff]
      %v1119 = vld [vmem:[%s603 + $0x20] sm:$0xff]
      %v1120 = vld [vmem:[%s603 + $0x30] sm:$0xff]
      %v1121 = vld [vmem:[%s603 + $0x38] sm:$0xff]
      %v1122 = vld [vmem:[%s603 + $0x48] sm:$0xff]
      %v1123 = vld [vmem:[%s603 + $0x50] sm:$0xff]
      %v1124 = vld [vmem:[%s603 + $0x60] sm:$0xff]
      %v1125 = vld [vmem:[%s603 + $0x68] sm:$0xff]
      %v1126 = vld [vmem:[%s603 + $0x78] sm:$0xff]
      %v1127 = vld [vmem:[%s603 + $0x80] sm:$0xff]
      %v1128 = vld [vmem:[%s603 + $0x90] sm:$0xff]
      %v1129 = vld [vmem:[%s603 + $0x98] sm:$0xff]
      %v1130 = vld [vmem:[%s603 + $0xa8] sm:$0xff]
      %v1131 = vld [vmem:[%s603 + $0xb0] sm:$0xff]
      %v1132 = vld [vmem:[%s603 + $0xc0] sm:$0xff]
      %v1133 = vld [vmem:[%s603 + $0xc8] sm:$0xff]
      %v1134 = vld [vmem:[%s603 + $0xd8] sm:$0xff]
      %v1135 = vld [vmem:[%s603 + $0xe0] sm:$0xff]
      %v1136 = vld [vmem:[%s603 + $0xf0] sm:$0xff]
      %v1137 = vld [vmem:[%s603 + $0xf8] sm:$0xff]
      %v1138 = vld [vmem:[%s603 + $0x108] sm:$0xff]
      %v1139 = vld [vmem:[%s603 + $0x110] sm:$0xff]
      %v1140 = vld [vmem:[%s603 + $0x120] sm:$0xff]
      %v1141 = vld [vmem:[%s603 + $0x128] sm:$0xff]
      %v1142 = vld [vmem:[%s603 + $0x138] sm:$0xff]
      %v1143 = vld [vmem:[%s603 + $0x140] sm:$0xff]
      %v1144 = vld [vmem:[%s603 + $0x150] sm:$0xff]
      %v1145 = vld [vmem:[%s603 + $0x158] sm:$0xff]
      %v1146 = vld [vmem:[%s603 + $0x168] sm:$0xff]
      %v1147 = vld [vmem:[%s603 + $0x170] sm:$0xff]
      %1180 = vrot.lane.b32.xlu0 %v1116, 12
      %v1181 = vpop.permute.xlu0 %1180
      %1182 = vrot.lane.b32.xlu0 %v1117, 12
      %v1183 = vpop.permute.xlu0 %1182
      %1184 = vrot.lane.b32.xlu0 %v1118, 12
      %v1185 = vpop.permute.xlu0 %1184
      %1186 = vrot.lane.b32.xlu0 %v1119, 12
      %v1187 = vpop.permute.xlu0 %1186
      %1188 = vrot.lane.b32.xlu0 %v1120, 12
      %v1189 = vpop.permute.xlu0 %1188
      %1190 = vrot.lane.b32.xlu0 %v1121, 12
      %v1191 = vpop.permute.xlu0 %1190
      %1192 = vrot.lane.b32.xlu0 %v1122, 12
      %v1193 = vpop.permute.xlu0 %1192
      %1194 = vrot.lane.b32.xlu0 %v1123, 12
      %v1195 = vpop.permute.xlu0 %1194
      %1196 = vrot.lane.b32.xlu0 %v1124, 12
      %v1197 = vpop.permute.xlu0 %1196
      %1198 = vrot.lane.b32.xlu0 %v1125, 12
      %v1199 = vpop.permute.xlu0 %1198
      %1200 = vrot.lane.b32.xlu0 %v1126, 12
      %v1201 = vpop.permute.xlu0 %1200
      %1202 = vrot.lane.b32.xlu0 %v1127, 12
      %v1203 = vpop.permute.xlu0 %1202
      %1204 = vrot.lane.b32.xlu0 %v1128, 12
      %v1205 = vpop.permute.xlu0 %1204
      %1206 = vrot.lane.b32.xlu0 %v1129, 12
      %v1207 = vpop.permute.xlu0 %1206
      %1208 = vrot.lane.b32.xlu0 %v1130, 12
      %v1209 = vpop.permute.xlu0 %1208
      %1210 = vrot.lane.b32.xlu0 %v1131, 12
      %v1211 = vpop.permute.xlu0 %1210
      %1212 = vrot.lane.b32.xlu0 %v1132, 12
      %v1213 = vpop.permute.xlu0 %1212
      %1214 = vrot.lane.b32.xlu0 %v1133, 12
      %v1215 = vpop.permute.xlu0 %1214
      %1216 = vrot.lane.b32.xlu0 %v1134, 12
      %v1217 = vpop.permute.xlu0 %1216
      %1218 = vrot.lane.b32.xlu0 %v1135, 12
      %v1219 = vpop.permute.xlu0 %1218
      %1220 = vrot.lane.b32.xlu0 %v1136, 12
      %v1221 = vpop.permute.xlu0 %1220
      %1222 = vrot.lane.b32.xlu0 %v1137, 12
      %v1223 = vpop.permute.xlu0 %1222
      %1224 = vrot.lane.b32.xlu0 %v1138, 12
      %v1225 = vpop.permute.xlu0 %1224
      %1226 = vrot.lane.b32.xlu0 %v1139, 12
      %v1227 = vpop.permute.xlu0 %1226
      %1228 = vrot.lane.b32.xlu0 %v1140, 12
      %v1229 = vpop.permute.xlu0 %1228
      %1230 = vrot.lane.b32.xlu0 %v1141, 12
      %v1231 = vpop.permute.xlu0 %1230
      %1232 = vrot.lane.b32.xlu0 %v1142, 12
      %v1233 = vpop.permute.xlu0 %1232
      %1234 = vrot.lane.b32.xlu0 %v1143, 12
      %v1235 = vpop.permute.xlu0 %1234
      %1236 = vrot.lane.b32.xlu0 %v1144, 12
      %v1237 = vpop.permute.xlu0 %1236
      %1238 = vrot.lane.b32.xlu0 %v1145, 12
      %v1239 = vpop.permute.xlu0 %1238
      %1240 = vrot.lane.b32.xlu0 %v1146, 12
      %v1241 = vpop.permute.xlu0 %1240
      %1242 = vrot.lane.b32.xlu0 %v1147, 12
      %v1243 = vpop.permute.xlu0 %1242
      %vm1276 = vcmask 130144
      %1277 = vst.msk [vmem:[#allocation3] sm:$0xff] %vm1276, %v1181
      %1278 = vst.msk [vmem:[#allocation3 + $0x8] sm:$0xff] %vm1276, %v1183
      %1279 = vst.msk [vmem:[#allocation3 + $0x10] sm:$0xff] %vm1276, %v1185
      %1280 = vst.msk [vmem:[#allocation3 + $0x18] sm:$0xff] %vm1276, %v1187
      %1281 = vst.msk [vmem:[#allocation3 + $0x20] sm:$0xff] %vm1276, %v1189
      %1282 = vst.msk [vmem:[#allocation3 + $0x28] sm:$0xff] %vm1276, %v1191
      %1283 = vst.msk [vmem:[#allocation3 + $0x30] sm:$0xff] %vm1276, %v1193
      %1284 = vst.msk [vmem:[#allocation3 + $0x38] sm:$0xff] %vm1276, %v1195
      %1285 = vst.msk [vmem:[#allocation3 + $0x40] sm:$0xff] %vm1276, %v1197
      %1286 = vst.msk [vmem:[#allocation3 + $0x48] sm:$0xff] %vm1276, %v1199
      %1287 = vst.msk [vmem:[#allocation3 + $0x50] sm:$0xff] %vm1276, %v1201
      %1288 = vst.msk [vmem:[#allocation3 + $0x58] sm:$0xff] %vm1276, %v1203
      %1289 = vst.msk [vmem:[#allocation3 + $0x60] sm:$0xff] %vm1276, %v1205
      %1290 = vst.msk [vmem:[#allocation3 + $0x68] sm:$0xff] %vm1276, %v1207
      %1291 = vst.msk [vmem:[#allocation3 + $0x70] sm:$0xff] %vm1276, %v1209
      %1292 = vst.msk [vmem:[#allocation3 + $0x78] sm:$0xff] %vm1276, %v1211
      %1293 = vst.msk [vmem:[#allocation3 + $0x80] sm:$0xff] %vm1276, %v1213
      %1294 = vst.msk [vmem:[#allocation3 + $0x88] sm:$0xff] %vm1276, %v1215
      %1295 = vst.msk [vmem:[#allocation3 + $0x90] sm:$0xff] %vm1276, %v1217
      %1296 = vst.msk [vmem:[#allocation3 + $0x98] sm:$0xff] %vm1276, %v1219
      %1297 = vst.msk [vmem:[#allocation3 + $0xa0] sm:$0xff] %vm1276, %v1221
      %1298 = vst.msk [vmem:[#allocation3 + $0xa8] sm:$0xff] %vm1276, %v1223
      %1299 = vst.msk [vmem:[#allocation3 + $0xb0] sm:$0xff] %vm1276, %v1225
      %1300 = vst.msk [vmem:[#allocation3 + $0xb8] sm:$0xff] %vm1276, %v1227
      %1301 = vst.msk [vmem:[#allocation3 + $0xc0] sm:$0xff] %vm1276, %v1229
      %1302 = vst.msk [vmem:[#allocation3 + $0xc8] sm:$0xff] %vm1276, %v1231
      %1303 = vst.msk [vmem:[#allocation3 + $0xd0] sm:$0xff] %vm1276, %v1233
      %1304 = vst.msk [vmem:[#allocation3 + $0xd8] sm:$0xff] %vm1276, %v1235
      %1305 = vst.msk [vmem:[#allocation3 + $0xe0] sm:$0xff] %vm1276, %v1237
      %1306 = vst.msk [vmem:[#allocation3 + $0xe8] sm:$0xff] %vm1276, %v1239
      %1307 = vst.msk [vmem:[#allocation3 + $0xf0] sm:$0xff] %vm1276, %v1241
      %1308 = vst.msk [vmem:[#allocation3 + $0xf8] sm:$0xff] %vm1276, %v1243
      %v1309 = vld [vmem:[%s603 + $0x1] sm:$0xff]
      %v1310 = vld [vmem:[%s603 + $0x9] sm:$0xff]
      %v1311 = vld [vmem:[%s603 + $0x19] sm:$0xff]
      %v1312 = vld [vmem:[%s603 + $0x21] sm:$0xff]
      %v1313 = vld [vmem:[%s603 + $0x31] sm:$0xff]
      %v1314 = vld [vmem:[%s603 + $0x39] sm:$0xff]
      %v1315 = vld [vmem:[%s603 + $0x49] sm:$0xff]
      %v1316 = vld [vmem:[%s603 + $0x51] sm:$0xff]
      %v1317 = vld [vmem:[%s603 + $0x61] sm:$0xff]
      %v1318 = vld [vmem:[%s603 + $0x69] sm:$0xff]
      %v1319 = vld [vmem:[%s603 + $0x79] sm:$0xff]
      %v1320 = vld [vmem:[%s603 + $0x81] sm:$0xff]
      %v1321 = vld [vmem:[%s603 + $0x91] sm:$0xff]
      %v1322 = vld [vmem:[%s603 + $0x99] sm:$0xff]
      %v1323 = vld [vmem:[%s603 + $0xa9] sm:$0xff]
      %v1324 = vld [vmem:[%s603 + $0xb1] sm:$0xff]
      %v1325 = vld [vmem:[%s603 + $0xc1] sm:$0xff]
      %v1326 = vld [vmem:[%s603 + $0xc9] sm:$0xff]
      %v1327 = vld [vmem:[%s603 + $0xd9] sm:$0xff]
      %v1328 = vld [vmem:[%s603 + $0xe1] sm:$0xff]
      %v1329 = vld [vmem:[%s603 + $0xf1] sm:$0xff]
      %v1330 = vld [vmem:[%s603 + $0xf9] sm:$0xff]
      %v1331 = vld [vmem:[%s603 + $0x109] sm:$0xff]
      %v1332 = vld [vmem:[%s603 + $0x111] sm:$0xff]
      %v1333 = vld [vmem:[%s603 + $0x121] sm:$0xff]
      %v1334 = vld [vmem:[%s603 + $0x129] sm:$0xff]
      %v1335 = vld [vmem:[%s603 + $0x139] sm:$0xff]
      %v1336 = vld [vmem:[%s603 + $0x141] sm:$0xff]
      %v1337 = vld [vmem:[%s603 + $0x151] sm:$0xff]
      %v1338 = vld [vmem:[%s603 + $0x159] sm:$0xff]
      %v1339 = vld [vmem:[%s603 + $0x169] sm:$0xff]
      %v1340 = vld [vmem:[%s603 + $0x171] sm:$0xff]
      %1373 = vrot.lane.b32.xlu0 %v1309, 16
      %v1374 = vpop.permute.xlu0 %1373
      %1375 = vrot.lane.b32.xlu0 %v1310, 16
      %v1376 = vpop.permute.xlu0 %1375
      %1377 = vrot.lane.b32.xlu0 %v1311, 16
      %v1378 = vpop.permute.xlu0 %1377
      %1379 = vrot.lane.b32.xlu0 %v1312, 16
      %v1380 = vpop.permute.xlu0 %1379
      %1381 = vrot.lane.b32.xlu0 %v1313, 16
      %v1382 = vpop.permute.xlu0 %1381
      %1383 = vrot.lane.b32.xlu0 %v1314, 16
      %v1384 = vpop.permute.xlu0 %1383
      %1385 = vrot.lane.b32.xlu0 %v1315, 16
      %v1386 = vpop.permute.xlu0 %1385
      %1387 = vrot.lane.b32.xlu0 %v1316, 16
      %v1388 = vpop.permute.xlu0 %1387
      %1389 = vrot.lane.b32.xlu0 %v1317, 16
      %v1390 = vpop.permute.xlu0 %1389
      %1391 = vrot.lane.b32.xlu0 %v1318, 16
      %v1392 = vpop.permute.xlu0 %1391
      %1393 = vrot.lane.b32.xlu0 %v1319, 16
      %v1394 = vpop.permute.xlu0 %1393
      %1395 = vrot.lane.b32.xlu0 %v1320, 16
      %v1396 = vpop.permute.xlu0 %1395
      %1397 = vrot.lane.b32.xlu0 %v1321, 16
      %v1398 = vpop.permute.xlu0 %1397
      %1399 = vrot.lane.b32.xlu0 %v1322, 16
      %v1400 = vpop.permute.xlu0 %1399
      %1401 = vrot.lane.b32.xlu0 %v1323, 16
      %v1402 = vpop.permute.xlu0 %1401
      %1403 = vrot.lane.b32.xlu0 %v1324, 16
      %v1404 = vpop.permute.xlu0 %1403
      %1405 = vrot.lane.b32.xlu0 %v1325, 16
      %v1406 = vpop.permute.xlu0 %1405
      %1407 = vrot.lane.b32.xlu0 %v1326, 16
      %v1408 = vpop.permute.xlu0 %1407
      %1409 = vrot.lane.b32.xlu0 %v1327, 16
      %v1410 = vpop.permute.xlu0 %1409
      %1411 = vrot.lane.b32.xlu0 %v1328, 16
      %v1412 = vpop.permute.xlu0 %1411
      %1413 = vrot.lane.b32.xlu0 %v1329, 16
      %v1414 = vpop.permute.xlu0 %1413
      %1415 = vrot.lane.b32.xlu0 %v1330, 16
      %v1416 = vpop.permute.xlu0 %1415
      %1417 = vrot.lane.b32.xlu0 %v1331, 16
      %v1418 = vpop.permute.xlu0 %1417
      %1419 = vrot.lane.b32.xlu0 %v1332, 16
      %v1420 = vpop.permute.xlu0 %1419
      %1421 = vrot.lane.b32.xlu0 %v1333, 16
      %v1422 = vpop.permute.xlu0 %1421
      %1423 = vrot.lane.b32.xlu0 %v1334, 16
      %v1424 = vpop.permute.xlu0 %1423
      %1425 = vrot.lane.b32.xlu0 %v1335, 16
      %v1426 = vpop.permute.xlu0 %1425
      %1427 = vrot.lane.b32.xlu0 %v1336, 16
      %v1428 = vpop.permute.xlu0 %1427
      %1429 = vrot.lane.b32.xlu0 %v1337, 16
      %v1430 = vpop.permute.xlu0 %1429
      %1431 = vrot.lane.b32.xlu0 %v1338, 16
      %v1432 = vpop.permute.xlu0 %1431
      %1433 = vrot.lane.b32.xlu0 %v1339, 16
      %v1434 = vpop.permute.xlu0 %1433
      %1435 = vrot.lane.b32.xlu0 %v1340, 16
      %v1436 = vpop.permute.xlu0 %1435
      %vm1469 = vcmask 162944
      %1470 = vst.msk [vmem:[#allocation3] sm:$0xff] %vm1469, %v1374
      %1471 = vst.msk [vmem:[#allocation3 + $0x8] sm:$0xff] %vm1469, %v1376
      %1472 = vst.msk [vmem:[#allocation3 + $0x10] sm:$0xff] %vm1469, %v1378
      %1473 = vst.msk [vmem:[#allocation3 + $0x18] sm:$0xff] %vm1469, %v1380
      %1474 = vst.msk [vmem:[#allocation3 + $0x20] sm:$0xff] %vm1469, %v1382
      %1475 = vst.msk [vmem:[#allocation3 + $0x28] sm:$0xff] %vm1469, %v1384
      %1476 = vst.msk [vmem:[#allocation3 + $0x30] sm:$0xff] %vm1469, %v1386
      %1477 = vst.msk [vmem:[#allocation3 + $0x38] sm:$0xff] %vm1469, %v1388
      %1478 = vst.msk [vmem:[#allocation3 + $0x40] sm:$0xff] %vm1469, %v1390
      %1479 = vst.msk [vmem:[#allocation3 + $0x48] sm:$0xff] %vm1469, %v1392
      %1480 = vst.msk [vmem:[#allocation3 + $0x50] sm:$0xff] %vm1469, %v1394
      %1481 = vst.msk [vmem:[#allocation3 + $0x58] sm:$0xff] %vm1469, %v1396
      %1482 = vst.msk [vmem:[#allocation3 + $0x60] sm:$0xff] %vm1469, %v1398
      %1483 = vst.msk [vmem:[#allocation3 + $0x68] sm:$0xff] %vm1469, %v1400
      %1484 = vst.msk [vmem:[#allocation3 + $0x70] sm:$0xff] %vm1469, %v1402
      %1485 = vst.msk [vmem:[#allocation3 + $0x78] sm:$0xff] %vm1469, %v1404
      %1486 = vst.msk [vmem:[#allocation3 + $0x80] sm:$0xff] %vm1469, %v1406
      %1487 = vst.msk [vmem:[#allocation3 + $0x88] sm:$0xff] %vm1469, %v1408
      %1488 = vst.msk [vmem:[#allocation3 + $0x90] sm:$0xff] %vm1469, %v1410
      %1489 = vst.msk [vmem:[#allocation3 + $0x98] sm:$0xff] %vm1469, %v1412
      %1490 = vst.msk [vmem:[#allocation3 + $0xa0] sm:$0xff] %vm1469, %v1414
      %1491 = vst.msk [vmem:[#allocation3 + $0xa8] sm:$0xff] %vm1469, %v1416
      %1492 = vst.msk [vmem:[#allocation3 + $0xb0] sm:$0xff] %vm1469, %v1418
      %1493 = vst.msk [vmem:[#allocation3 + $0xb8] sm:$0xff] %vm1469, %v1420
      %1494 = vst.msk [vmem:[#allocation3 + $0xc0] sm:$0xff] %vm1469, %v1422
      %1495 = vst.msk [vmem:[#allocation3 + $0xc8] sm:$0xff] %vm1469, %v1424
      %1496 = vst.msk [vmem:[#allocation3 + $0xd0] sm:$0xff] %vm1469, %v1426
      %1497 = vst.msk [vmem:[#allocation3 + $0xd8] sm:$0xff] %vm1469, %v1428
      %1498 = vst.msk [vmem:[#allocation3 + $0xe0] sm:$0xff] %vm1469, %v1430
      %1499 = vst.msk [vmem:[#allocation3 + $0xe8] sm:$0xff] %vm1469, %v1432
      %1500 = vst.msk [vmem:[#allocation3 + $0xf0] sm:$0xff] %vm1469, %v1434
      %1501 = vst.msk [vmem:[#allocation3 + $0xf8] sm:$0xff] %vm1469, %v1436
      %v1502 = vld [vmem:[%s603 + $0x2] sm:$0xff]
      %v1503 = vld [vmem:[%s603 + $0xa] sm:$0xff]
      %v1504 = vld [vmem:[%s603 + $0x1a] sm:$0xff]
      %v1505 = vld [vmem:[%s603 + $0x22] sm:$0xff]
      %v1506 = vld [vmem:[%s603 + $0x32] sm:$0xff]
      %v1507 = vld [vmem:[%s603 + $0x3a] sm:$0xff]
      %v1508 = vld [vmem:[%s603 + $0x4a] sm:$0xff]
      %v1509 = vld [vmem:[%s603 + $0x52] sm:$0xff]
      %v1510 = vld [vmem:[%s603 + $0x62] sm:$0xff]
      %v1511 = vld [vmem:[%s603 + $0x6a] sm:$0xff]
      %v1512 = vld [vmem:[%s603 + $0x7a] sm:$0xff]
      %v1513 = vld [vmem:[%s603 + $0x82] sm:$0xff]
      %v1514 = vld [vmem:[%s603 + $0x92] sm:$0xff]
      %v1515 = vld [vmem:[%s603 + $0x9a] sm:$0xff]
      %v1516 = vld [vmem:[%s603 + $0xaa] sm:$0xff]
      %v1517 = vld [vmem:[%s603 + $0xb2] sm:$0xff]
      %v1518 = vld [vmem:[%s603 + $0xc2] sm:$0xff]
      %v1519 = vld [vmem:[%s603 + $0xca] sm:$0xff]
      %v1520 = vld [vmem:[%s603 + $0xda] sm:$0xff]
      %v1521 = vld [vmem:[%s603 + $0xe2] sm:$0xff]
      %v1522 = vld [vmem:[%s603 + $0xf2] sm:$0xff]
      %v1523 = vld [vmem:[%s603 + $0xfa] sm:$0xff]
      %v1524 = vld [vmem:[%s603 + $0x10a] sm:$0xff]
      %v1525 = vld [vmem:[%s603 + $0x112] sm:$0xff]
      %v1526 = vld [vmem:[%s603 + $0x122] sm:$0xff]
      %v1527 = vld [vmem:[%s603 + $0x12a] sm:$0xff]
      %v1528 = vld [vmem:[%s603 + $0x13a] sm:$0xff]
      %v1529 = vld [vmem:[%s603 + $0x142] sm:$0xff]
      %v1530 = vld [vmem:[%s603 + $0x152] sm:$0xff]
      %v1531 = vld [vmem:[%s603 + $0x15a] sm:$0xff]
      %v1532 = vld [vmem:[%s603 + $0x16a] sm:$0xff]
      %v1533 = vld [vmem:[%s603 + $0x172] sm:$0xff]
      %1566 = vrot.lane.b32.xlu0 %v1502, 20
      %v1567 = vpop.permute.xlu0 %1566
      %1568 = vrot.lane.b32.xlu0 %v1503, 20
      %v1569 = vpop.permute.xlu0 %1568
      %1570 = vrot.lane.b32.xlu0 %v1504, 20
      %v1571 = vpop.permute.xlu0 %1570
      %1572 = vrot.lane.b32.xlu0 %v1505, 20
      %v1573 = vpop.permute.xlu0 %1572
      %1574 = vrot.lane.b32.xlu0 %v1506, 20
      %v1575 = vpop.permute.xlu0 %1574
      %1576 = vrot.lane.b32.xlu0 %v1507, 20
      %v1577 = vpop.permute.xlu0 %1576
      %1578 = vrot.lane.b32.xlu0 %v1508, 20
      %v1579 = vpop.permute.xlu0 %1578
      %1580 = vrot.lane.b32.xlu0 %v1509, 20
      %v1581 = vpop.permute.xlu0 %1580
      %1582 = vrot.lane.b32.xlu0 %v1510, 20
      %v1583 = vpop.permute.xlu0 %1582
      %1584 = vrot.lane.b32.xlu0 %v1511, 20
      %v1585 = vpop.permute.xlu0 %1584
      %1586 = vrot.lane.b32.xlu0 %v1512, 20
      %v1587 = vpop.permute.xlu0 %1586
      %1588 = vrot.lane.b32.xlu0 %v1513, 20
      %v1589 = vpop.permute.xlu0 %1588
      %1590 = vrot.lane.b32.xlu0 %v1514, 20
      %v1591 = vpop.permute.xlu0 %1590
      %1592 = vrot.lane.b32.xlu0 %v1515, 20
      %v1593 = vpop.permute.xlu0 %1592
      %1594 = vrot.lane.b32.xlu0 %v1516, 20
      %v1595 = vpop.permute.xlu0 %1594
      %1596 = vrot.lane.b32.xlu0 %v1517, 20
      %v1597 = vpop.permute.xlu0 %1596
      %1598 = vrot.lane.b32.xlu0 %v1518, 20
      %v1599 = vpop.permute.xlu0 %1598
      %1600 = vrot.lane.b32.xlu0 %v1519, 20
      %v1601 = vpop.permute.xlu0 %1600
      %1602 = vrot.lane.b32.xlu0 %v1520, 20
      %v1603 = vpop.permute.xlu0 %1602
      %1604 = vrot.lane.b32.xlu0 %v1521, 20
      %v1605 = vpop.permute.xlu0 %1604
      %1606 = vrot.lane.b32.xlu0 %v1522, 20
      %v1607 = vpop.permute.xlu0 %1606
      %1608 = vrot.lane.b32.xlu0 %v1523, 20
      %v1609 = vpop.permute.xlu0 %1608
      %1610 = vrot.lane.b32.xlu0 %v1524, 20
      %v1611 = vpop.permute.xlu0 %1610
      %1612 = vrot.lane.b32.xlu0 %v1525, 20
      %v1613 = vpop.permute.xlu0 %1612
      %1614 = vrot.lane.b32.xlu0 %v1526, 20
      %v1615 = vpop.permute.xlu0 %1614
      %1616 = vrot.lane.b32.xlu0 %v1527, 20
      %v1617 = vpop.permute.xlu0 %1616
      %1618 = vrot.lane.b32.xlu0 %v1528, 20
      %v1619 = vpop.permute.xlu0 %1618
      %1620 = vrot.lane.b32.xlu0 %v1529, 20
      %v1621 = vpop.permute.xlu0 %1620
      %1622 = vrot.lane.b32.xlu0 %v1530, 20
      %v1623 = vpop.permute.xlu0 %1622
      %1624 = vrot.lane.b32.xlu0 %v1531, 20
      %v1625 = vpop.permute.xlu0 %1624
      %1626 = vrot.lane.b32.xlu0 %v1532, 20
      %v1627 = vpop.permute.xlu0 %1626
      %1628 = vrot.lane.b32.xlu0 %v1533, 20
      %v1629 = vpop.permute.xlu0 %1628
      %vm1662 = vcmask 195744
      %1663 = vst.msk [vmem:[#allocation3] sm:$0xff] %vm1662, %v1567
      %1664 = vst.msk [vmem:[#allocation3 + $0x8] sm:$0xff] %vm1662, %v1569
      %1665 = vst.msk [vmem:[#allocation3 + $0x10] sm:$0xff] %vm1662, %v1571
      %1666 = vst.msk [vmem:[#allocation3 + $0x18] sm:$0xff] %vm1662, %v1573
      %1667 = vst.msk [vmem:[#allocation3 + $0x20] sm:$0xff] %vm1662, %v1575
      %1668 = vst.msk [vmem:[#allocation3 + $0x28] sm:$0xff] %vm1662, %v1577
      %1669 = vst.msk [vmem:[#allocation3 + $0x30] sm:$0xff] %vm1662, %v1579
      %1670 = vst.msk [vmem:[#allocation3 + $0x38] sm:$0xff] %vm1662, %v1581
      %1671 = vst.msk [vmem:[#allocation3 + $0x40] sm:$0xff] %vm1662, %v1583
      %1672 = vst.msk [vmem:[#allocation3 + $0x48] sm:$0xff] %vm1662, %v1585
      %1673 = vst.msk [vmem:[#allocation3 + $0x50] sm:$0xff] %vm1662, %v1587
      %1674 = vst.msk [vmem:[#allocation3 + $0x58] sm:$0xff] %vm1662, %v1589
      %1675 = vst.msk [vmem:[#allocation3 + $0x60] sm:$0xff] %vm1662, %v1591
      %1676 = vst.msk [vmem:[#allocation3 + $0x68] sm:$0xff] %vm1662, %v1593
      %1677 = vst.msk [vmem:[#allocation3 + $0x70] sm:$0xff] %vm1662, %v1595
      %1678 = vst.msk [vmem:[#allocation3 + $0x78] sm:$0xff] %vm1662, %v1597
      %1679 = vst.msk [vmem:[#allocation3 + $0x80] sm:$0xff] %vm1662, %v1599
      %1680 = vst.msk [vmem:[#allocation3 + $0x88] sm:$0xff] %vm1662, %v1601
      %1681 = vst.msk [vmem:[#allocation3 + $0x90] sm:$0xff] %vm1662, %v1603
      %1682 = vst.msk [vmem:[#allocation3 + $0x98] sm:$0xff] %vm1662, %v1605
      %1683 = vst.msk [vmem:[#allocation3 + $0xa0] sm:$0xff] %vm1662, %v1607
      %1684 = vst.msk [vmem:[#allocation3 + $0xa8] sm:$0xff] %vm1662, %v1609
      %1685 = vst.msk [vmem:[#allocation3 + $0xb0] sm:$0xff] %vm1662, %v1611
      %1686 = vst.msk [vmem:[#allocation3 + $0xb8] sm:$0xff] %vm1662, %v1613
      %1687 = vst.msk [vmem:[#allocation3 + $0xc0] sm:$0xff] %vm1662, %v1615
      %1688 = vst.msk [vmem:[#allocation3 + $0xc8] sm:$0xff] %vm1662, %v1617
      %1689 = vst.msk [vmem:[#allocation3 + $0xd0] sm:$0xff] %vm1662, %v1619
      %1690 = vst.msk [vmem:[#allocation3 + $0xd8] sm:$0xff] %vm1662, %v1621
      %1691 = vst.msk [vmem:[#allocation3 + $0xe0] sm:$0xff] %vm1662, %v1623
      %1692 = vst.msk [vmem:[#allocation3 + $0xe8] sm:$0xff] %vm1662, %v1625
      %1693 = vst.msk [vmem:[#allocation3 + $0xf0] sm:$0xff] %vm1662, %v1627
      %1694 = vst.msk [vmem:[#allocation3 + $0xf8] sm:$0xff] %vm1662, %v1629
      %s1695 = scalar_lea.vmem [#allocation2], 48
      %v1696 = vld [vmem:[%s1695] sm:$0xff]
      %v1697 = vld [vmem:[%s1695 + $0x8] sm:$0xff]
      %v1698 = vld [vmem:[%s1695 + $0x18] sm:$0xff]
      %v1699 = vld [vmem:[%s1695 + $0x20] sm:$0xff]
      %v1700 = vld [vmem:[%s1695 + $0x30] sm:$0xff]
      %v1701 = vld [vmem:[%s1695 + $0x38] sm:$0xff]
      %v1702 = vld [vmem:[%s1695 + $0x48] sm:$0xff]
      %v1703 = vld [vmem:[%s1695 + $0x50] sm:$0xff]
      %v1704 = vld [vmem:[%s1695 + $0x60] sm:$0xff]
      %v1705 = vld [vmem:[%s1695 + $0x68] sm:$0xff]
      %v1706 = vld [vmem:[%s1695 + $0x78] sm:$0xff]
      %v1707 = vld [vmem:[%s1695 + $0x80] sm:$0xff]
      %v1708 = vld [vmem:[%s1695 + $0x90] sm:$0xff]
      %v1709 = vld [vmem:[%s1695 + $0x98] sm:$0xff]
      %v1710 = vld [vmem:[%s1695 + $0xa8] sm:$0xff]
      %v1711 = vld [vmem:[%s1695 + $0xb0] sm:$0xff]
      %v1712 = vld [vmem:[%s1695 + $0xc0] sm:$0xff]
      %v1713 = vld [vmem:[%s1695 + $0xc8] sm:$0xff]
      %v1714 = vld [vmem:[%s1695 + $0xd8] sm:$0xff]
      %v1715 = vld [vmem:[%s1695 + $0xe0] sm:$0xff]
      %v1716 = vld [vmem:[%s1695 + $0xf0] sm:$0xff]
      %v1717 = vld [vmem:[%s1695 + $0xf8] sm:$0xff]
      %v1718 = vld [vmem:[%s1695 + $0x108] sm:$0xff]
      %v1719 = vld [vmem:[%s1695 + $0x110] sm:$0xff]
      %v1720 = vld [vmem:[%s1695 + $0x120] sm:$0xff]
      %v1721 = vld [vmem:[%s1695 + $0x128] sm:$0xff]
      %v1722 = vld [vmem:[%s1695 + $0x138] sm:$0xff]
      %v1723 = vld [vmem:[%s1695 + $0x140] sm:$0xff]
      %v1724 = vld [vmem:[%s1695 + $0x150] sm:$0xff]
      %v1725 = vld [vmem:[%s1695 + $0x158] sm:$0xff]
      %v1726 = vld [vmem:[%s1695 + $0x168] sm:$0xff]
      %v1727 = vld [vmem:[%s1695 + $0x170] sm:$0xff]
      %1760 = vrot.lane.b32.xlu0 %v1696, 24
      %v1761 = vpop.permute.xlu0 %1760
      %1762 = vrot.lane.b32.xlu0 %v1697, 24
      %v1763 = vpop.permute.xlu0 %1762
      %1764 = vrot.lane.b32.xlu0 %v1698, 24
      %v1765 = vpop.permute.xlu0 %1764
      %1766 = vrot.lane.b32.xlu0 %v1699, 24
      %v1767 = vpop.permute.xlu0 %1766
      %1768 = vrot.lane.b32.xlu0 %v1700, 24
      %v1769 = vpop.permute.xlu0 %1768
      %1770 = vrot.lane.b32.xlu0 %v1701, 24
      %v1771 = vpop.permute.xlu0 %1770
      %1772 = vrot.lane.b32.xlu0 %v1702, 24
      %v1773 = vpop.permute.xlu0 %1772
      %1774 = vrot.lane.b32.xlu0 %v1703, 24
      %v1775 = vpop.permute.xlu0 %1774
      %1776 = vrot.lane.b32.xlu0 %v1704, 24
      %v1777 = vpop.permute.xlu0 %1776
      %1778 = vrot.lane.b32.xlu0 %v1705, 24
      %v1779 = vpop.permute.xlu0 %1778
      %1780 = vrot.lane.b32.xlu0 %v1706, 24
      %v1781 = vpop.permute.xlu0 %1780
      %1782 = vrot.lane.b32.xlu0 %v1707, 24
      %v1783 = vpop.permute.xlu0 %1782
      %1784 = vrot.lane.b32.xlu0 %v1708, 24
      %v1785 = vpop.permute.xlu0 %1784
      %1786 = vrot.lane.b32.xlu0 %v1709, 24
      %v1787 = vpop.permute.xlu0 %1786
      %1788 = vrot.lane.b32.xlu0 %v1710, 24
      %v1789 = vpop.permute.xlu0 %1788
      %1790 = vrot.lane.b32.xlu0 %v1711, 24
      %v1791 = vpop.permute.xlu0 %1790
      %1792 = vrot.lane.b32.xlu0 %v1712, 24
      %v1793 = vpop.permute.xlu0 %1792
      %1794 = vrot.lane.b32.xlu0 %v1713, 24
      %v1795 = vpop.permute.xlu0 %1794
      %1796 = vrot.lane.b32.xlu0 %v1714, 24
      %v1797 = vpop.permute.xlu0 %1796
      %1798 = vrot.lane.b32.xlu0 %v1715, 24
      %v1799 = vpop.permute.xlu0 %1798
      %1800 = vrot.lane.b32.xlu0 %v1716, 24
      %v1801 = vpop.permute.xlu0 %1800
      %1802 = vrot.lane.b32.xlu0 %v1717, 24
      %v1803 = vpop.permute.xlu0 %1802
      %1804 = vrot.lane.b32.xlu0 %v1718, 24
      %v1805 = vpop.permute.xlu0 %1804
      %1806 = vrot.lane.b32.xlu0 %v1719, 24
      %v1807 = vpop.permute.xlu0 %1806
      %1808 = vrot.lane.b32.xlu0 %v1720, 24
      %v1809 = vpop.permute.xlu0 %1808
      %1810 = vrot.lane.b32.xlu0 %v1721, 24
      %v1811 = vpop.permute.xlu0 %1810
      %1812 = vrot.lane.b32.xlu0 %v1722, 24
      %v1813 = vpop.permute.xlu0 %1812
      %1814 = vrot.lane.b32.xlu0 %v1723, 24
      %v1815 = vpop.permute.xlu0 %1814
      %1816 = vrot.lane.b32.xlu0 %v1724, 24
      %v1817 = vpop.permute.xlu0 %1816
      %1818 = vrot.lane.b32.xlu0 %v1725, 24
      %v1819 = vpop.permute.xlu0 %1818
      %1820 = vrot.lane.b32.xlu0 %v1726, 24
      %v1821 = vpop.permute.xlu0 %1820
      %1822 = vrot.lane.b32.xlu0 %v1727, 24
      %v1823 = vpop.permute.xlu0 %1822
      %vm1856 = vcmask 228544
      %1857 = vst.msk [vmem:[#allocation3] sm:$0xff] %vm1856, %v1761
      %1858 = vst.msk [vmem:[#allocation3 + $0x8] sm:$0xff] %vm1856, %v1763
      %1859 = vst.msk [vmem:[#allocation3 + $0x10] sm:$0xff] %vm1856, %v1765
      %1860 = vst.msk [vmem:[#allocation3 + $0x18] sm:$0xff] %vm1856, %v1767
      %1861 = vst.msk [vmem:[#allocation3 + $0x20] sm:$0xff] %vm1856, %v1769
      %1862 = vst.msk [vmem:[#allocation3 + $0x28] sm:$0xff] %vm1856, %v1771
      %1863 = vst.msk [vmem:[#allocation3 + $0x30] sm:$0xff] %vm1856, %v1773
      %1864 = vst.msk [vmem:[#allocation3 + $0x38] sm:$0xff] %vm1856, %v1775
      %1865 = vst.msk [vmem:[#allocation3 + $0x40] sm:$0xff] %vm1856, %v1777
      %1866 = vst.msk [vmem:[#allocation3 + $0x48] sm:$0xff] %vm1856, %v1779
      %1867 = vst.msk [vmem:[#allocation3 + $0x50] sm:$0xff] %vm1856, %v1781
      %1868 = vst.msk [vmem:[#allocation3 + $0x58] sm:$0xff] %vm1856, %v1783
      %1869 = vst.msk [vmem:[#allocation3 + $0x60] sm:$0xff] %vm1856, %v1785
      %1870 = vst.msk [vmem:[#allocation3 + $0x68] sm:$0xff] %vm1856, %v1787
      %1871 = vst.msk [vmem:[#allocation3 + $0x70] sm:$0xff] %vm1856, %v1789
      %1872 = vst.msk [vmem:[#allocation3 + $0x78] sm:$0xff] %vm1856, %v1791
      %1873 = vst.msk [vmem:[#allocation3 + $0x80] sm:$0xff] %vm1856, %v1793
      %1874 = vst.msk [vmem:[#allocation3 + $0x88] sm:$0xff] %vm1856, %v1795
      %1875 = vst.msk [vmem:[#allocation3 + $0x90] sm:$0xff] %vm1856, %v1797
      %1876 = vst.msk [vmem:[#allocation3 + $0x98] sm:$0xff] %vm1856, %v1799
      %1877 = vst.msk [vmem:[#allocation3 + $0xa0] sm:$0xff] %vm1856, %v1801
      %1878 = vst.msk [vmem:[#allocation3 + $0xa8] sm:$0xff] %vm1856, %v1803
      %1879 = vst.msk [vmem:[#allocation3 + $0xb0] sm:$0xff] %vm1856, %v1805
      %1880 = vst.msk [vmem:[#allocation3 + $0xb8] sm:$0xff] %vm1856, %v1807
      %1881 = vst.msk [vmem:[#allocation3 + $0xc0] sm:$0xff] %vm1856, %v1809
      %1882 = vst.msk [vmem:[#allocation3 + $0xc8] sm:$0xff] %vm1856, %v1811
      %1883 = vst.msk [vmem:[#allocation3 + $0xd0] sm:$0xff] %vm1856, %v1813
      %1884 = vst.msk [vmem:[#allocation3 + $0xd8] sm:$0xff] %vm1856, %v1815
      %1885 = vst.msk [vmem:[#allocation3 + $0xe0] sm:$0xff] %vm1856, %v1817
      %1886 = vst.msk [vmem:[#allocation3 + $0xe8] sm:$0xff] %vm1856, %v1819
      %1887 = vst.msk [vmem:[#allocation3 + $0xf0] sm:$0xff] %vm1856, %v1821
      %1888 = vst.msk [vmem:[#allocation3 + $0xf8] sm:$0xff] %vm1856, %v1823
      %v1889 = vld [vmem:[%s1695 + $0x1] sm:$0xff]
      %v1890 = vld [vmem:[%s1695 + $0x9] sm:$0xff]
      %v1891 = vld [vmem:[%s1695 + $0x19] sm:$0xff]
      %v1892 = vld [vmem:[%s1695 + $0x21] sm:$0xff]
      %v1893 = vld [vmem:[%s1695 + $0x31] sm:$0xff]
      %v1894 = vld [vmem:[%s1695 + $0x39] sm:$0xff]
      %v1895 = vld [vmem:[%s1695 + $0x49] sm:$0xff]
      %v1896 = vld [vmem:[%s1695 + $0x51] sm:$0xff]
      %v1897 = vld [vmem:[%s1695 + $0x61] sm:$0xff]
      %v1898 = vld [vmem:[%s1695 + $0x69] sm:$0xff]
      %v1899 = vld [vmem:[%s1695 + $0x79] sm:$0xff]
      %v1900 = vld [vmem:[%s1695 + $0x81] sm:$0xff]
      %v1901 = vld [vmem:[%s1695 + $0x91] sm:$0xff]
      %v1902 = vld [vmem:[%s1695 + $0x99] sm:$0xff]
      %v1903 = vld [vmem:[%s1695 + $0xa9] sm:$0xff]
      %v1904 = vld [vmem:[%s1695 + $0xb1] sm:$0xff]
      %v1905 = vld [vmem:[%s1695 + $0xc1] sm:$0xff]
      %v1906 = vld [vmem:[%s1695 + $0xc9] sm:$0xff]
      %v1907 = vld [vmem:[%s1695 + $0xd9] sm:$0xff]
      %v1908 = vld [vmem:[%s1695 + $0xe1] sm:$0xff]
      %v1909 = vld [vmem:[%s1695 + $0xf1] sm:$0xff]
      %v1910 = vld [vmem:[%s1695 + $0xf9] sm:$0xff]
      %v1911 = vld [vmem:[%s1695 + $0x109] sm:$0xff]
      %v1912 = vld [vmem:[%s1695 + $0x111] sm:$0xff]
      %v1913 = vld [vmem:[%s1695 + $0x121] sm:$0xff]
      %v1914 = vld [vmem:[%s1695 + $0x129] sm:$0xff]
      %v1915 = vld [vmem:[%s1695 + $0x139] sm:$0xff]
      %v1916 = vld [vmem:[%s1695 + $0x141] sm:$0xff]
      %v1917 = vld [vmem:[%s1695 + $0x151] sm:$0xff]
      %v1918 = vld [vmem:[%s1695 + $0x159] sm:$0xff]
      %v1919 = vld [vmem:[%s1695 + $0x169] sm:$0xff]
      %v1920 = vld [vmem:[%s1695 + $0x171] sm:$0xff]
      %1953 = vrot.lane.b32.xlu0 %v1889, 28
      %v1954 = vpop.permute.xlu0 %1953
      %1955 = vrot.lane.b32.xlu0 %v1890, 28
      %v1956 = vpop.permute.xlu0 %1955
      %1957 = vrot.lane.b32.xlu0 %v1891, 28
      %v1958 = vpop.permute.xlu0 %1957
      %1959 = vrot.lane.b32.xlu0 %v1892, 28
      %v1960 = vpop.permute.xlu0 %1959
      %1961 = vrot.lane.b32.xlu0 %v1893, 28
      %v1962 = vpop.permute.xlu0 %1961
      %1963 = vrot.lane.b32.xlu0 %v1894, 28
      %v1964 = vpop.permute.xlu0 %1963
      %1965 = vrot.lane.b32.xlu0 %v1895, 28
      %v1966 = vpop.permute.xlu0 %1965
      %1967 = vrot.lane.b32.xlu0 %v1896, 28
      %v1968 = vpop.permute.xlu0 %1967
      %1969 = vrot.lane.b32.xlu0 %v1897, 28
      %v1970 = vpop.permute.xlu0 %1969
      %1971 = vrot.lane.b32.xlu0 %v1898, 28
      %v1972 = vpop.permute.xlu0 %1971
      %1973 = vrot.lane.b32.xlu0 %v1899, 28
      %v1974 = vpop.permute.xlu0 %1973
      %1975 = vrot.lane.b32.xlu0 %v1900, 28
      %v1976 = vpop.permute.xlu0 %1975
      %1977 = vrot.lane.b32.xlu0 %v1901, 28
      %v1978 = vpop.permute.xlu0 %1977
      %1979 = vrot.lane.b32.xlu0 %v1902, 28
      %v1980 = vpop.permute.xlu0 %1979
      %1981 = vrot.lane.b32.xlu0 %v1903, 28
      %v1982 = vpop.permute.xlu0 %1981
      %1983 = vrot.lane.b32.xlu0 %v1904, 28
      %v1984 = vpop.permute.xlu0 %1983
      %1985 = vrot.lane.b32.xlu0 %v1905, 28
      %v1986 = vpop.permute.xlu0 %1985
      %1987 = vrot.lane.b32.xlu0 %v1906, 28
      %v1988 = vpop.permute.xlu0 %1987
      %1989 = vrot.lane.b32.xlu0 %v1907, 28
      %v1990 = vpop.permute.xlu0 %1989
      %1991 = vrot.lane.b32.xlu0 %v1908, 28
      %v1992 = vpop.permute.xlu0 %1991
      %1993 = vrot.lane.b32.xlu0 %v1909, 28
      %v1994 = vpop.permute.xlu0 %1993
      %1995 = vrot.lane.b32.xlu0 %v1910, 28
      %v1996 = vpop.permute.xlu0 %1995
      %1997 = vrot.lane.b32.xlu0 %v1911, 28
      %v1998 = vpop.permute.xlu0 %1997
      %1999 = vrot.lane.b32.xlu0 %v1912, 28
      %v2000 = vpop.permute.xlu0 %1999
      %2001 = vrot.lane.b32.xlu0 %v1913, 28
      %v2002 = vpop.permute.xlu0 %2001
      %2003 = vrot.lane.b32.xlu0 %v1914, 28
      %v2004 = vpop.permute.xlu0 %2003
      %2005 = vrot.lane.b32.xlu0 %v1915, 28
      %v2006 = vpop.permute.xlu0 %2005
      %2007 = vrot.lane.b32.xlu0 %v1916, 28
      %v2008 = vpop.permute.xlu0 %2007
      %2009 = vrot.lane.b32.xlu0 %v1917, 28
      %v2010 = vpop.permute.xlu0 %2009
      %2011 = vrot.lane.b32.xlu0 %v1918, 28
      %v2012 = vpop.permute.xlu0 %2011
      %2013 = vrot.lane.b32.xlu0 %v1919, 28
      %v2014 = vpop.permute.xlu0 %2013
      %2015 = vrot.lane.b32.xlu0 %v1920, 28
      %v2016 = vpop.permute.xlu0 %2015
      %vm2049 = vcmask 261344
      %2050 = vst.msk [vmem:[#allocation3] sm:$0xff] %vm2049, %v1954
      %2051 = vst.msk [vmem:[#allocation3 + $0x8] sm:$0xff] %vm2049, %v1956
      %2052 = vst.msk [vmem:[#allocation3 + $0x10] sm:$0xff] %vm2049, %v1958
      %2053 = vst.msk [vmem:[#allocation3 + $0x18] sm:$0xff] %vm2049, %v1960
      %2054 = vst.msk [vmem:[#allocation3 + $0x20] sm:$0xff] %vm2049, %v1962
      %2055 = vst.msk [vmem:[#allocation3 + $0x28] sm:$0xff] %vm2049, %v1964
      %2056 = vst.msk [vmem:[#allocation3 + $0x30] sm:$0xff] %vm2049, %v1966
      %2057 = vst.msk [vmem:[#allocation3 + $0x38] sm:$0xff] %vm2049, %v1968
      %2058 = vst.msk [vmem:[#allocation3 + $0x40] sm:$0xff] %vm2049, %v1970
      %2059 = vst.msk [vmem:[#allocation3 + $0x48] sm:$0xff] %vm2049, %v1972
      %2060 = vst.msk [vmem:[#allocation3 + $0x50] sm:$0xff] %vm2049, %v1974
      %2061 = vst.msk [vmem:[#allocation3 + $0x58] sm:$0xff] %vm2049, %v1976
      %2062 = vst.msk [vmem:[#allocation3 + $0x60] sm:$0xff] %vm2049, %v1978
      %2063 = vst.msk [vmem:[#allocation3 + $0x68] sm:$0xff] %vm2049, %v1980
      %2064 = vst.msk [vmem:[#allocation3 + $0x70] sm:$0xff] %vm2049, %v1982
      %2065 = vst.msk [vmem:[#allocation3 + $0x78] sm:$0xff] %vm2049, %v1984
      %2066 = vst.msk [vmem:[#allocation3 + $0x80] sm:$0xff] %vm2049, %v1986
      %2067 = vst.msk [vmem:[#allocation3 + $0x88] sm:$0xff] %vm2049, %v1988
      %2068 = vst.msk [vmem:[#allocation3 + $0x90] sm:$0xff] %vm2049, %v1990
      %2069 = vst.msk [vmem:[#allocation3 + $0x98] sm:$0xff] %vm2049, %v1992
      %2070 = vst.msk [vmem:[#allocation3 + $0xa0] sm:$0xff] %vm2049, %v1994
      %2071 = vst.msk [vmem:[#allocation3 + $0xa8] sm:$0xff] %vm2049, %v1996
      %2072 = vst.msk [vmem:[#allocation3 + $0xb0] sm:$0xff] %vm2049, %v1998
      %2073 = vst.msk [vmem:[#allocation3 + $0xb8] sm:$0xff] %vm2049, %v2000
      %2074 = vst.msk [vmem:[#allocation3 + $0xc0] sm:$0xff] %vm2049, %v2002
      %2075 = vst.msk [vmem:[#allocation3 + $0xc8] sm:$0xff] %vm2049, %v2004
      %2076 = vst.msk [vmem:[#allocation3 + $0xd0] sm:$0xff] %vm2049, %v2006
      %2077 = vst.msk [vmem:[#allocation3 + $0xd8] sm:$0xff] %vm2049, %v2008
      %2078 = vst.msk [vmem:[#allocation3 + $0xe0] sm:$0xff] %vm2049, %v2010
      %2079 = vst.msk [vmem:[#allocation3 + $0xe8] sm:$0xff] %vm2049, %v2012
      %2080 = vst.msk [vmem:[#allocation3 + $0xf0] sm:$0xff] %vm2049, %v2014
      %2081 = vst.msk [vmem:[#allocation3 + $0xf8] sm:$0xff] %vm2049, %v2016
      %v2082 = vld [vmem:[%s1695 + $0x2] sm:$0xff]
      %v2083 = vld [vmem:[%s1695 + $0xa] sm:$0xff]
      %v2084 = vld [vmem:[%s1695 + $0x1a] sm:$0xff]
      %v2085 = vld [vmem:[%s1695 + $0x22] sm:$0xff]
      %v2086 = vld [vmem:[%s1695 + $0x32] sm:$0xff]
      %v2087 = vld [vmem:[%s1695 + $0x3a] sm:$0xff]
      %v2088 = vld [vmem:[%s1695 + $0x4a] sm:$0xff]
      %v2089 = vld [vmem:[%s1695 + $0x52] sm:$0xff]
      %v2090 = vld [vmem:[%s1695 + $0x62] sm:$0xff]
      %v2091 = vld [vmem:[%s1695 + $0x6a] sm:$0xff]
      %v2092 = vld [vmem:[%s1695 + $0x7a] sm:$0xff]
      %v2093 = vld [vmem:[%s1695 + $0x82] sm:$0xff]
      %v2094 = vld [vmem:[%s1695 + $0x92] sm:$0xff]
      %v2095 = vld [vmem:[%s1695 + $0x9a] sm:$0xff]
      %v2096 = vld [vmem:[%s1695 + $0xaa] sm:$0xff]
      %v2097 = vld [vmem:[%s1695 + $0xb2] sm:$0xff]
      %v2098 = vld [vmem:[%s1695 + $0xc2] sm:$0xff]
      %v2099 = vld [vmem:[%s1695 + $0xca] sm:$0xff]
      %v2100 = vld [vmem:[%s1695 + $0xda] sm:$0xff]
      %v2101 = vld [vmem:[%s1695 + $0xe2] sm:$0xff]
      %v2102 = vld [vmem:[%s1695 + $0xf2] sm:$0xff]
      %v2103 = vld [vmem:[%s1695 + $0xfa] sm:$0xff]
      %v2104 = vld [vmem:[%s1695 + $0x10a] sm:$0xff]
      %v2105 = vld [vmem:[%s1695 + $0x112] sm:$0xff]
      %v2106 = vld [vmem:[%s1695 + $0x122] sm:$0xff]
      %v2107 = vld [vmem:[%s1695 + $0x12a] sm:$0xff]
      %v2108 = vld [vmem:[%s1695 + $0x13a] sm:$0xff]
      %v2109 = vld [vmem:[%s1695 + $0x142] sm:$0xff]
      %v2110 = vld [vmem:[%s1695 + $0x152] sm:$0xff]
      %v2111 = vld [vmem:[%s1695 + $0x15a] sm:$0xff]
      %v2112 = vld [vmem:[%s1695 + $0x16a] sm:$0xff]
      %v2113 = vld [vmem:[%s1695 + $0x172] sm:$0xff]
      %2146 = vrot.lane.b32.xlu0 %v2082, 32
      %v2147 = vpop.permute.xlu0 %2146
      %2148 = vrot.lane.b32.xlu0 %v2083, 32
      %v2149 = vpop.permute.xlu0 %2148
      %2150 = vrot.lane.b32.xlu0 %v2084, 32
      %v2151 = vpop.permute.xlu0 %2150
      %2152 = vrot.lane.b32.xlu0 %v2085, 32
      %v2153 = vpop.permute.xlu0 %2152
      %2154 = vrot.lane.b32.xlu0 %v2086, 32
      %v2155 = vpop.permute.xlu0 %2154
      %2156 = vrot.lane.b32.xlu0 %v2087, 32
      %v2157 = vpop.permute.xlu0 %2156
      %2158 = vrot.lane.b32.xlu0 %v2088, 32
      %v2159 = vpop.permute.xlu0 %2158
      %2160 = vrot.lane.b32.xlu0 %v2089, 32
      %v2161 = vpop.permute.xlu0 %2160
      %2162 = vrot.lane.b32.xlu0 %v2090, 32
      %v2163 = vpop.permute.xlu0 %2162
      %2164 = vrot.lane.b32.xlu0 %v2091, 32
      %v2165 = vpop.permute.xlu0 %2164
      %2166 = vrot.lane.b32.xlu0 %v2092, 32
      %v2167 = vpop.permute.xlu0 %2166
      %2168 = vrot.lane.b32.xlu0 %v2093, 32
      %v2169 = vpop.permute.xlu0 %2168
      %2170 = vrot.lane.b32.xlu0 %v2094, 32
      %v2171 = vpop.permute.xlu0 %2170
      %2172 = vrot.lane.b32.xlu0 %v2095, 32
      %v2173 = vpop.permute.xlu0 %2172
      %2174 = vrot.lane.b32.xlu0 %v2096, 32
      %v2175 = vpop.permute.xlu0 %2174
      %2176 = vrot.lane.b32.xlu0 %v2097, 32
      %v2177 = vpop.permute.xlu0 %2176
      %2178 = vrot.lane.b32.xlu0 %v2098, 32
      %v2179 = vpop.permute.xlu0 %2178
      %2180 = vrot.lane.b32.xlu0 %v2099, 32
      %v2181 = vpop.permute.xlu0 %2180
      %2182 = vrot.lane.b32.xlu0 %v2100, 32
      %v2183 = vpop.permute.xlu0 %2182
      %2184 = vrot.lane.b32.xlu0 %v2101, 32
      %v2185 = vpop.permute.xlu0 %2184
      %2186 = vrot.lane.b32.xlu0 %v2102, 32
      %v2187 = vpop.permute.xlu0 %2186
      %2188 = vrot.lane.b32.xlu0 %v2103, 32
      %v2189 = vpop.permute.xlu0 %2188
      %2190 = vrot.lane.b32.xlu0 %v2104, 32
      %v2191 = vpop.permute.xlu0 %2190
      %2192 = vrot.lane.b32.xlu0 %v2105, 32
      %v2193 = vpop.permute.xlu0 %2192
      %2194 = vrot.lane.b32.xlu0 %v2106, 32
      %v2195 = vpop.permute.xlu0 %2194
      %2196 = vrot.lane.b32.xlu0 %v2107, 32
      %v2197 = vpop.permute.xlu0 %2196
      %2198 = vrot.lane.b32.xlu0 %v2108, 32
      %v2199 = vpop.permute.xlu0 %2198
      %2200 = vrot.lane.b32.xlu0 %v2109, 32
      %v2201 = vpop.permute.xlu0 %2200
      %2202 = vrot.lane.b32.xlu0 %v2110, 32
      %v2203 = vpop.permute.xlu0 %2202
      %2204 = vrot.lane.b32.xlu0 %v2111, 32
      %v2205 = vpop.permute.xlu0 %2204
      %2206 = vrot.lane.b32.xlu0 %v2112, 32
      %v2207 = vpop.permute.xlu0 %2206
      %2208 = vrot.lane.b32.xlu0 %v2113, 32
      %v2209 = vpop.permute.xlu0 %2208
      %vm2242 = vcmask 294144
      %2243 = vst.msk [vmem:[#allocation3] sm:$0xff] %vm2242, %v2147
      %2244 = vst.msk [vmem:[#allocation3 + $0x8] sm:$0xff] %vm2242, %v2149
      %2245 = vst.msk [vmem:[#allocation3 + $0x10] sm:$0xff] %vm2242, %v2151
      %2246 = vst.msk [vmem:[#allocation3 + $0x18] sm:$0xff] %vm2242, %v2153
      %2247 = vst.msk [vmem:[#allocation3 + $0x20] sm:$0xff] %vm2242, %v2155
      %2248 = vst.msk [vmem:[#allocation3 + $0x28] sm:$0xff] %vm2242, %v2157
      %2249 = vst.msk [vmem:[#allocation3 + $0x30] sm:$0xff] %vm2242, %v2159
      %2250 = vst.msk [vmem:[#allocation3 + $0x38] sm:$0xff] %vm2242, %v2161
      %2251 = vst.msk [vmem:[#allocation3 + $0x40] sm:$0xff] %vm2242, %v2163
      %2252 = vst.msk [vmem:[#allocation3 + $0x48] sm:$0xff] %vm2242, %v2165
      %2253 = vst.msk [vmem:[#allocation3 + $0x50] sm:$0xff] %vm2242, %v2167
      %2254 = vst.msk [vmem:[#allocation3 + $0x58] sm:$0xff] %vm2242, %v2169
      %2255 = vst.msk [vmem:[#allocation3 + $0x60] sm:$0xff] %vm2242, %v2171
      %2256 = vst.msk [vmem:[#allocation3 + $0x68] sm:$0xff] %vm2242, %v2173
      %2257 = vst.msk [vmem:[#allocation3 + $0x70] sm:$0xff] %vm2242, %v2175
      %2258 = vst.msk [vmem:[#allocation3 + $0x78] sm:$0xff] %vm2242, %v2177
      %2259 = vst.msk [vmem:[#allocation3 + $0x80] sm:$0xff] %vm2242, %v2179
      %2260 = vst.msk [vmem:[#allocation3 + $0x88] sm:$0xff] %vm2242, %v2181
      %2261 = vst.msk [vmem:[#allocation3 + $0x90] sm:$0xff] %vm2242, %v2183
      %2262 = vst.msk [vmem:[#allocation3 + $0x98] sm:$0xff] %vm2242, %v2185
      %2263 = vst.msk [vmem:[#allocation3 + $0xa0] sm:$0xff] %vm2242, %v2187
      %2264 = vst.msk [vmem:[#allocation3 + $0xa8] sm:$0xff] %vm2242, %v2189
      %2265 = vst.msk [vmem:[#allocation3 + $0xb0] sm:$0xff] %vm2242, %v2191
      %2266 = vst.msk [vmem:[#allocation3 + $0xb8] sm:$0xff] %vm2242, %v2193
      %2267 = vst.msk [vmem:[#allocation3 + $0xc0] sm:$0xff] %vm2242, %v2195
      %2268 = vst.msk [vmem:[#allocation3 + $0xc8] sm:$0xff] %vm2242, %v2197
      %2269 = vst.msk [vmem:[#allocation3 + $0xd0] sm:$0xff] %vm2242, %v2199
      %2270 = vst.msk [vmem:[#allocation3 + $0xd8] sm:$0xff] %vm2242, %v2201
      %2271 = vst.msk [vmem:[#allocation3 + $0xe0] sm:$0xff] %vm2242, %v2203
      %2272 = vst.msk [vmem:[#allocation3 + $0xe8] sm:$0xff] %vm2242, %v2205
      %2273 = vst.msk [vmem:[#allocation3 + $0xf0] sm:$0xff] %vm2242, %v2207
      %2274 = vst.msk [vmem:[#allocation3 + $0xf8] sm:$0xff] %vm2242, %v2209
      %v2275 = vld [vmem:[#allocation3] sm:$0xff]
      %v2276 = vld [vmem:[#allocation3 + $0x8] sm:$0xff]
      %v2277 = vld [vmem:[#allocation3 + $0x10] sm:$0xff]
      %v2278 = vld [vmem:[#allocation3 + $0x18] sm:$0xff]
      %v2279 = vld [vmem:[#allocation3 + $0x20] sm:$0xff]
      %v2280 = vld [vmem:[#allocation3 + $0x28] sm:$0xff]
      %v2281 = vld [vmem:[#allocation3 + $0x30] sm:$0xff]
      %v2282 = vld [vmem:[#allocation3 + $0x38] sm:$0xff]
      %v2283 = vld [vmem:[#allocation3 + $0x40] sm:$0xff]
      %v2284 = vld [vmem:[#allocation3 + $0x48] sm:$0xff]
      %v2285 = vld [vmem:[#allocation3 + $0x50] sm:$0xff]
      %v2286 = vld [vmem:[#allocation3 + $0x58] sm:$0xff]
      %v2287 = vld [vmem:[#allocation3 + $0x60] sm:$0xff]
      %v2288 = vld [vmem:[#allocation3 + $0x68] sm:$0xff]
      %v2289 = vld [vmem:[#allocation3 + $0x70] sm:$0xff]
      %v2290 = vld [vmem:[#allocation3 + $0x78] sm:$0xff]
      %v2291 = vld [vmem:[#allocation3 + $0x80] sm:$0xff]
      %v2292 = vld [vmem:[#allocation3 + $0x88] sm:$0xff]
      %v2293 = vld [vmem:[#allocation3 + $0x90] sm:$0xff]
      %v2294 = vld [vmem:[#allocation3 + $0x98] sm:$0xff]
      %v2295 = vld [vmem:[#allocation3 + $0xa0] sm:$0xff]
      %v2296 = vld [vmem:[#allocation3 + $0xa8] sm:$0xff]
      %v2297 = vld [vmem:[#allocation3 + $0xb0] sm:$0xff]
      %v2298 = vld [vmem:[#allocation3 + $0xb8] sm:$0xff]
      %v2299 = vld [vmem:[#allocation3 + $0xc0] sm:$0xff]
      %v2300 = vld [vmem:[#allocation3 + $0xc8] sm:$0xff]
      %v2301 = vld [vmem:[#allocation3 + $0xd0] sm:$0xff]
      %v2302 = vld [vmem:[#allocation3 + $0xd8] sm:$0xff]
      %v2303 = vld [vmem:[#allocation3 + $0xe0] sm:$0xff]
      %v2304 = vld [vmem:[#allocation3 + $0xe8] sm:$0xff]
      %v2305 = vld [vmem:[#allocation3 + $0xf0] sm:$0xff]
      %v2306 = vld [vmem:[#allocation3 + $0xf8] sm:$0xff]
      %v2307 = vld [vmem:[%s3] sm:$0xff]
      %v2308 = vld [vmem:[%s3 + $0x8] sm:$0xff]
      %v2309 = vld [vmem:[%s3 + $0x10] sm:$0xff]
      %v2310 = vld [vmem:[%s3 + $0x18] sm:$0xff]
      %v2311 = vld [vmem:[%s3 + $0x20] sm:$0xf]
      %v2312 = vld [vmem:[%s4] sm:$0x1]
      %v2314 = vperm.slane %v2312, 0
      %vm2316 = vcmask 293888
      %v2318 = vsel %vm2316, %v2275, 0
      %v2321 = vsel %vm2316, %v2276, 0
      %v2324 = vsel %vm2316, %v2277, 0
      %v2327 = vsel %vm2316, %v2278, 0
      %v2330 = vsel %vm2316, %v2279, 0
      %v2333 = vsel %vm2316, %v2280, 0
      %v2336 = vsel %vm2316, %v2281, 0
      %v2339 = vsel %vm2316, %v2282, 0
      %v2342 = vsel %vm2316, %v2283, 0
      %v2345 = vsel %vm2316, %v2284, 0
      %v2348 = vsel %vm2316, %v2285, 0
      %v2351 = vsel %vm2316, %v2286, 0
      %v2354 = vsel %vm2316, %v2287, 0
      %v2357 = vsel %vm2316, %v2288, 0
      %v2360 = vsel %vm2316, %v2289, 0
      %v2363 = vsel %vm2316, %v2290, 0
      %v2366 = vsel %vm2316, %v2291, 0
      %v2369 = vsel %vm2316, %v2292, 0
      %v2372 = vsel %vm2316, %v2293, 0
      %v2375 = vsel %vm2316, %v2294, 0
      %v2378 = vsel %vm2316, %v2295, 0
      %v2381 = vsel %vm2316, %v2296, 0
      %v2384 = vsel %vm2316, %v2297, 0
      %v2387 = vsel %vm2316, %v2298, 0
      %v2390 = vsel %vm2316, %v2299, 0
      %v2393 = vsel %vm2316, %v2300, 0
      %v2396 = vsel %vm2316, %v2301, 0
      %v2399 = vsel %vm2316, %v2302, 0
      %v2402 = vsel %vm2316, %v2303, 0
      %v2405 = vsel %vm2316, %v2304, 0
      %v2408 = vsel %vm2316, %v2305, 0
      %v2411 = vsel %vm2316, %v2306, 0
      %vm2413 = vcmask 1043456
      %v2415 = vsel %vm2413, %v2311, 0
      %2417 = vmatpush.msra.mxu0 0.0
      %2418 = vmatpush.msra.mxu0 0.0
      %2419 = vmatpush.msra.mxu0 0.0
      %2420 = vmatpush.msra.mxu0 0.0
      %2421 = vmatpush.msra.mxu0 0.0
      %2422 = vmatpush.msra.mxu0 0.0
      %2423 = vmatpush.msra.mxu0 0.0
      %2424 = vmatpush.msra.mxu0 0.0
      %2425 = vmatpush.msra.mxu0 0.0
      %2426 = vmatpush.msra.mxu0 0.0
      %2427 = vmatpush.msra.mxu0 0.0
      %2428 = vmatpush.msra.mxu0 %v2415
      %2429 = vmatpush.msra.mxu0 %v2310
      %2430 = vmatpush.msra.mxu0 %v2309
      %2431 = vmatpush.msra.mxu0 %v2308
      %2432 = vmatpush.msra.mxu0 %v2307
      %2433 = vmatmul.f32.gmra.mxu0 %v2318
      %v2434 = vpop.f32.mrf.mxu0
      %v2435 = vadd.f32 %v2314, %v2434
      %2436 = vmatmul.f32.gmra.mxu0 %v2321
      %v2437 = vpop.f32.mrf.mxu0
      %v2438 = vadd.f32 %v2314, %v2437
      %2439 = vmatmul.f32.gmra.mxu0 %v2324
      %v2440 = vpop.f32.mrf.mxu0
      %v2441 = vadd.f32 %v2314, %v2440
      %2442 = vmatmul.f32.gmra.mxu0 %v2327
      %v2443 = vpop.f32.mrf.mxu0
      %v2444 = vadd.f32 %v2314, %v2443
      %2445 = vmatmul.f32.gmra.mxu0 %v2330
      %v2446 = vpop.f32.mrf.mxu0
      %v2447 = vadd.f32 %v2314, %v2446
      %2448 = vmatmul.f32.gmra.mxu0 %v2333
      %v2449 = vpop.f32.mrf.mxu0
      %v2450 = vadd.f32 %v2314, %v2449
      %2451 = vmatmul.f32.gmra.mxu0 %v2336
      %v2452 = vpop.f32.mrf.mxu0
      %v2453 = vadd.f32 %v2314, %v2452
      %2454 = vmatmul.f32.gmra.mxu0 %v2339
      %v2455 = vpop.f32.mrf.mxu0
      %v2456 = vadd.f32 %v2314, %v2455
      %2457 = vmatmul.f32.gmra.mxu0 %v2342
      %v2458 = vpop.f32.mrf.mxu0
      %v2459 = vadd.f32 %v2314, %v2458
      %2460 = vmatmul.f32.gmra.mxu0 %v2345
      %v2461 = vpop.f32.mrf.mxu0
      %v2462 = vadd.f32 %v2314, %v2461
      %2463 = vmatmul.f32.gmra.mxu0 %v2348
      %v2464 = vpop.f32.mrf.mxu0
      %v2465 = vadd.f32 %v2314, %v2464
      %2466 = vmatmul.f32.gmra.mxu0 %v2351
      %v2467 = vpop.f32.mrf.mxu0
      %v2468 = vadd.f32 %v2314, %v2467
      %2469 = vmatmul.f32.gmra.mxu0 %v2354
      %v2470 = vpop.f32.mrf.mxu0
      %v2471 = vadd.f32 %v2314, %v2470
      %2472 = vmatmul.f32.gmra.mxu0 %v2357
      %v2473 = vpop.f32.mrf.mxu0
      %v2474 = vadd.f32 %v2314, %v2473
      %2475 = vmatmul.f32.gmra.mxu0 %v2360
      %v2476 = vpop.f32.mrf.mxu0
      %v2477 = vadd.f32 %v2314, %v2476
      %2478 = vmatmul.f32.gmra.mxu0 %v2363
      %v2479 = vpop.f32.mrf.mxu0
      %v2480 = vadd.f32 %v2314, %v2479
      %2481 = vmatmul.f32.gmra.mxu0 %v2366
      %v2482 = vpop.f32.mrf.mxu0
      %v2483 = vadd.f32 %v2314, %v2482
      %2484 = vmatmul.f32.gmra.mxu0 %v2369
      %v2485 = vpop.f32.mrf.mxu0
      %v2486 = vadd.f32 %v2314, %v2485
      %2487 = vmatmul.f32.gmra.mxu0 %v2372
      %v2488 = vpop.f32.mrf.mxu0
      %v2489 = vadd.f32 %v2314, %v2488
      %2490 = vmatmul.f32.gmra.mxu0 %v2375
      %v2491 = vpop.f32.mrf.mxu0
      %v2492 = vadd.f32 %v2314, %v2491
      %2493 = vmatmul.f32.gmra.mxu0 %v2378
      %v2494 = vpop.f32.mrf.mxu0
      %v2495 = vadd.f32 %v2314, %v2494
      %2496 = vmatmul.f32.gmra.mxu0 %v2381
      %v2497 = vpop.f32.mrf.mxu0
      %v2498 = vadd.f32 %v2314, %v2497
      %2499 = vmatmul.f32.gmra.mxu0 %v2384
      %v2500 = vpop.f32.mrf.mxu0
      %v2501 = vadd.f32 %v2314, %v2500
      %2502 = vmatmul.f32.gmra.mxu0 %v2387
      %v2503 = vpop.f32.mrf.mxu0
      %v2504 = vadd.f32 %v2314, %v2503
      %2505 = vmatmul.f32.gmra.mxu0 %v2390
      %v2506 = vpop.f32.mrf.mxu0
      %v2507 = vadd.f32 %v2314, %v2506
      %2508 = vmatmul.f32.gmra.mxu0 %v2393
      %v2509 = vpop.f32.mrf.mxu0
      %v2510 = vadd.f32 %v2314, %v2509
      %2511 = vmatmul.f32.gmra.mxu0 %v2396
      %v2512 = vpop.f32.mrf.mxu0
      %v2513 = vadd.f32 %v2314, %v2512
      %2514 = vmatmul.f32.gmra.mxu0 %v2399
      %v2515 = vpop.f32.mrf.mxu0
      %v2516 = vadd.f32 %v2314, %v2515
      %2517 = vmatmul.f32.gmra.mxu0 %v2402
      %v2518 = vpop.f32.mrf.mxu0
      %v2519 = vadd.f32 %v2314, %v2518
      %2520 = vmatmul.f32.gmra.mxu0 %v2405
      %v2521 = vpop.f32.mrf.mxu0
      %v2522 = vadd.f32 %v2314, %v2521
      %2523 = vmatmul.f32.gmra.mxu0 %v2408
      %v2524 = vpop.f32.mrf.mxu0
      %v2525 = vadd.f32 %v2314, %v2524
      %2526 = vmatmul.f32.gmra.mxu0 %v2411
      %v2527 = vpop.f32.mrf.mxu0
      %v2528 = vadd.f32 %v2314, %v2527
      %2529 = vdwg.mxu0
      %vm2530 = vcmask 64512
      %2531 = vst.msk [vmem:[%s520] sm:$0xff] %vm2530, %v2435
      %2532 = vst.msk [vmem:[%s520 + $0x8] sm:$0xff] %vm2530, %v2438
      %2533 = vst.msk [vmem:[%s520 + $0x10] sm:$0xff] %vm2530, %v2441
      %2534 = vst.msk [vmem:[%s520 + $0x18] sm:$0xff] %vm2530, %v2444
      %2535 = vst.msk [vmem:[%s520 + $0x20] sm:$0xff] %vm2530, %v2447
      %2536 = vst.msk [vmem:[%s520 + $0x28] sm:$0xff] %vm2530, %v2450
      %2537 = vst.msk [vmem:[%s520 + $0x30] sm:$0xff] %vm2530, %v2453
      %2538 = vst.msk [vmem:[%s520 + $0x38] sm:$0xff] %vm2530, %v2456
      %2539 = vst.msk [vmem:[%s520 + $0x40] sm:$0xff] %vm2530, %v2459
      %2540 = vst.msk [vmem:[%s520 + $0x48] sm:$0xff] %vm2530, %v2462
      %2541 = vst.msk [vmem:[%s520 + $0x50] sm:$0xff] %vm2530, %v2465
      %2542 = vst.msk [vmem:[%s520 + $0x58] sm:$0xff] %vm2530, %v2468
      %2543 = vst.msk [vmem:[%s520 + $0x60] sm:$0xff] %vm2530, %v2471
      %2544 = vst.msk [vmem:[%s520 + $0x68] sm:$0xff] %vm2530, %v2474
      %2545 = vst.msk [vmem:[%s520 + $0x70] sm:$0xff] %vm2530, %v2477
      %2546 = vst.msk [vmem:[%s520 + $0x78] sm:$0xff] %vm2530, %v2480
      %2547 = vst.msk [vmem:[%s520 + $0x80] sm:$0xff] %vm2530, %v2483
      %2548 = vst.msk [vmem:[%s520 + $0x88] sm:$0xff] %vm2530, %v2486
      %2549 = vst.msk [vmem:[%s520 + $0x90] sm:$0xff] %vm2530, %v2489
      %2550 = vst.msk [vmem:[%s520 + $0x98] sm:$0xff] %vm2530, %v2492
      %2551 = vst.msk [vmem:[%s520 + $0xa0] sm:$0xff] %vm2530, %v2495
      %2552 = vst.msk [vmem:[%s520 + $0xa8] sm:$0xff] %vm2530, %v2498
      %2553 = vst.msk [vmem:[%s520 + $0xb0] sm:$0xff] %vm2530, %v2501
      %2554 = vst.msk [vmem:[%s520 + $0xb8] sm:$0xff] %vm2530, %v2504
      %2555 = vst.msk [vmem:[%s520 + $0xc0] sm:$0xff] %vm2530, %v2507
      %2556 = vst.msk [vmem:[%s520 + $0xc8] sm:$0xff] %vm2530, %v2510
      %2557 = vst.msk [vmem:[%s520 + $0xd0] sm:$0xff] %vm2530, %v2513
      %2558 = vst.msk [vmem:[%s520 + $0xd8] sm:$0xff] %vm2530, %v2516
      %2559 = vst.msk [vmem:[%s520 + $0xe0] sm:$0xff] %vm2530, %v2519
      %2560 = vst.msk [vmem:[%s520 + $0xe8] sm:$0xff] %vm2530, %v2522
      %2561 = vst.msk [vmem:[%s520 + $0xf0] sm:$0xff] %vm2530, %v2525
      %2562 = vst.msk [vmem:[%s520 + $0xf8] sm:$0xff] %vm2530, %v2528
      %v2563 = vsel %vm2530, %v2435, 0.0
      %v2564 = vsel %vm2530, %v2438, 0.0
      %v2565 = vadd.f32 %v2563, %v2564
      %v2566 = vsel %vm2530, %v2441, 0.0
      %v2567 = vadd.f32 %v2565, %v2566
      %v2568 = vsel %vm2530, %v2444, 0.0
      %v2569 = vadd.f32 %v2567, %v2568
      %v2570 = vsel %vm2530, %v2447, 0.0
      %v2571 = vadd.f32 %v2569, %v2570
      %v2572 = vsel %vm2530, %v2450, 0.0
      %v2573 = vadd.f32 %v2571, %v2572
      %v2574 = vsel %vm2530, %v2453, 0.0
      %v2575 = vadd.f32 %v2573, %v2574
      %v2576 = vsel %vm2530, %v2456, 0.0
      %v2577 = vadd.f32 %v2575, %v2576
      %v2578 = vsel %vm2530, %v2459, 0.0
      %v2579 = vadd.f32 %v2577, %v2578
      %v2580 = vsel %vm2530, %v2462, 0.0
      %v2581 = vadd.f32 %v2579, %v2580
      %v2582 = vsel %vm2530, %v2465, 0.0
      %v2583 = vadd.f32 %v2581, %v2582
      %v2584 = vsel %vm2530, %v2468, 0.0
      %v2585 = vadd.f32 %v2583, %v2584
      %v2586 = vsel %vm2530, %v2471, 0.0
      %v2587 = vadd.f32 %v2585, %v2586
      %v2588 = vsel %vm2530, %v2474, 0.0
      %v2589 = vadd.f32 %v2587, %v2588
      %v2590 = vsel %vm2530, %v2477, 0.0
      %v2591 = vadd.f32 %v2589, %v2590
      %v2592 = vsel %vm2530, %v2480, 0.0
      %v2593 = vadd.f32 %v2591, %v2592
      %v2594 = vsel %vm2530, %v2483, 0.0
      %v2595 = vadd.f32 %v2593, %v2594
      %v2596 = vsel %vm2530, %v2486, 0.0
      %v2597 = vadd.f32 %v2595, %v2596
      %v2598 = vsel %vm2530, %v2489, 0.0
      %v2599 = vadd.f32 %v2597, %v2598
      %v2600 = vsel %vm2530, %v2492, 0.0
      %v2601 = vadd.f32 %v2599, %v2600
      %v2602 = vsel %vm2530, %v2495, 0.0
      %v2603 = vadd.f32 %v2601, %v2602
      %v2604 = vsel %vm2530, %v2498, 0.0
      %v2605 = vadd.f32 %v2603, %v2604
      %v2606 = vsel %vm2530, %v2501, 0.0
      %v2607 = vadd.f32 %v2605, %v2606
      %v2608 = vsel %vm2530, %v2504, 0.0
      %v2609 = vadd.f32 %v2607, %v2608
      %v2610 = vsel %vm2530, %v2507, 0.0
      %v2611 = vadd.f32 %v2609, %v2610
      %v2612 = vsel %vm2530, %v2510, 0.0
      %v2613 = vadd.f32 %v2611, %v2612
      %v2614 = vsel %vm2530, %v2513, 0.0
      %v2615 = vadd.f32 %v2613, %v2614
      %v2616 = vsel %vm2530, %v2516, 0.0
      %v2617 = vadd.f32 %v2615, %v2616
      %v2618 = vsel %vm2530, %v2519, 0.0
      %v2619 = vadd.f32 %v2617, %v2618
      %v2620 = vsel %vm2530, %v2522, 0.0
      %v2621 = vadd.f32 %v2619, %v2620
      %v2622 = vsel %vm2530, %v2525, 0.0
      %v2623 = vadd.f32 %v2621, %v2622
      %v2624 = vsel %vm2530, %v2528, 0.0
      %v2625 = vadd.f32 %v2623, %v2624
      %v2626 = vrot.slane %v2625, 4
      %v2627 = vadd.f32 %v2625, %v2626
      %v2628 = vrot.slane %v2627, 2
      %v2629 = vadd.f32 %v2627, %v2628
      %v2630 = vrot.slane %v2629, 1
      %v2631 = vadd.f32 %v2629, %v2630
      %v2632 = vmul.f32 %v2631, 0.00390625
      %v2633 = vsub.f32 %v2435, %v2632
      %v2634 = vsub.f32 %v2438, %v2632
      %v2635 = vsub.f32 %v2441, %v2632
      %v2636 = vsub.f32 %v2444, %v2632
      %v2637 = vsub.f32 %v2447, %v2632
      %v2638 = vsub.f32 %v2450, %v2632
      %v2639 = vsub.f32 %v2453, %v2632
      %v2640 = vsub.f32 %v2456, %v2632
      %v2641 = vsub.f32 %v2459, %v2632
      %v2642 = vsub.f32 %v2462, %v2632
      %v2643 = vsub.f32 %v2465, %v2632
      %v2644 = vsub.f32 %v2468, %v2632
      %v2645 = vsub.f32 %v2471, %v2632
      %v2646 = vsub.f32 %v2474, %v2632
      %v2647 = vsub.f32 %v2477, %v2632
      %v2648 = vsub.f32 %v2480, %v2632
      %v2649 = vsub.f32 %v2483, %v2632
      %v2650 = vsub.f32 %v2486, %v2632
      %v2651 = vsub.f32 %v2489, %v2632
      %v2652 = vsub.f32 %v2492, %v2632
      %v2653 = vsub.f32 %v2495, %v2632
      %v2654 = vsub.f32 %v2498, %v2632
      %v2655 = vsub.f32 %v2501, %v2632
      %v2656 = vsub.f32 %v2504, %v2632
      %v2657 = vsub.f32 %v2507, %v2632
      %v2658 = vsub.f32 %v2510, %v2632
      %v2659 = vsub.f32 %v2513, %v2632
      %v2660 = vsub.f32 %v2516, %v2632
      %v2661 = vsub.f32 %v2519, %v2632
      %v2662 = vsub.f32 %v2522, %v2632
      %v2663 = vsub.f32 %v2525, %v2632
      %v2664 = vsub.f32 %v2528, %v2632
      %v2665 = vmul.f32 %v2633, %v2633
      %v2666 = vmul.f32 %v2634, %v2634
      %v2667 = vmul.f32 %v2635, %v2635
      %v2668 = vmul.f32 %v2636, %v2636
      %v2669 = vmul.f32 %v2637, %v2637
      %v2670 = vmul.f32 %v2638, %v2638
      %v2671 = vmul.f32 %v2639, %v2639
      %v2672 = vmul.f32 %v2640, %v2640
      %v2673 = vmul.f32 %v2641, %v2641
      %v2674 = vmul.f32 %v2642, %v2642
      %v2675 = vmul.f32 %v2643, %v2643
      %v2676 = vmul.f32 %v2644, %v2644
      %v2677 = vmul.f32 %v2645, %v2645
      %v2678 = vmul.f32 %v2646, %v2646
      %v2679 = vmul.f32 %v2647, %v2647
      %v2680 = vmul.f32 %v2648, %v2648
      %v2681 = vmul.f32 %v2649, %v2649
      %v2682 = vmul.f32 %v2650, %v2650
      %v2683 = vmul.f32 %v2651, %v2651
      %v2684 = vmul.f32 %v2652, %v2652
      %v2685 = vmul.f32 %v2653, %v2653
      %v2686 = vmul.f32 %v2654, %v2654
      %v2687 = vmul.f32 %v2655, %v2655
      %v2688 = vmul.f32 %v2656, %v2656
      %v2689 = vmul.f32 %v2657, %v2657
      %v2690 = vmul.f32 %v2658, %v2658
      %v2691 = vmul.f32 %v2659, %v2659
      %v2692 = vmul.f32 %v2660, %v2660
      %v2693 = vmul.f32 %v2661, %v2661
      %v2694 = vmul.f32 %v2662, %v2662
      %v2695 = vmul.f32 %v2663, %v2663
      %v2696 = vmul.f32 %v2664, %v2664
      %v2697 = vsel %vm2530, %v2665, 0.0
      %v2698 = vsel %vm2530, %v2666, 0.0
      %v2699 = vadd.f32 %v2697, %v2698
      %v2700 = vsel %vm2530, %v2667, 0.0
      %v2701 = vadd.f32 %v2699, %v2700
      %v2702 = vsel %vm2530, %v2668, 0.0
      %v2703 = vadd.f32 %v2701, %v2702
      %v2704 = vsel %vm2530, %v2669, 0.0
      %v2705 = vadd.f32 %v2703, %v2704
      %v2706 = vsel %vm2530, %v2670, 0.0
      %v2707 = vadd.f32 %v2705, %v2706
      %v2708 = vsel %vm2530, %v2671, 0.0
      %v2709 = vadd.f32 %v2707, %v2708
      %v2710 = vsel %vm2530, %v2672, 0.0
      %v2711 = vadd.f32 %v2709, %v2710
      %v2712 = vsel %vm2530, %v2673, 0.0
      %v2713 = vadd.f32 %v2711, %v2712
      %v2714 = vsel %vm2530, %v2674, 0.0
      %v2715 = vadd.f32 %v2713, %v2714
      %v2716 = vsel %vm2530, %v2675, 0.0
      %v2717 = vadd.f32 %v2715, %v2716
      %v2718 = vsel %vm2530, %v2676, 0.0
      %v2719 = vadd.f32 %v2717, %v2718
      %v2720 = vsel %vm2530, %v2677, 0.0
      %v2721 = vadd.f32 %v2719, %v2720
      %v2722 = vsel %vm2530, %v2678, 0.0
      %v2723 = vadd.f32 %v2721, %v2722
      %v2724 = vsel %vm2530, %v2679, 0.0
      %v2725 = vadd.f32 %v2723, %v2724
      %v2726 = vsel %vm2530, %v2680, 0.0
      %v2727 = vadd.f32 %v2725, %v2726
      %v2728 = vsel %vm2530, %v2681, 0.0
      %v2729 = vadd.f32 %v2727, %v2728
      %v2730 = vsel %vm2530, %v2682, 0.0
      %v2731 = vadd.f32 %v2729, %v2730
      %v2732 = vsel %vm2530, %v2683, 0.0
      %v2733 = vadd.f32 %v2731, %v2732
      %v2734 = vsel %vm2530, %v2684, 0.0
      %v2735 = vadd.f32 %v2733, %v2734
      %v2736 = vsel %vm2530, %v2685, 0.0
      %v2737 = vadd.f32 %v2735, %v2736
      %v2738 = vsel %vm2530, %v2686, 0.0
      %v2739 = vadd.f32 %v2737, %v2738
      %v2740 = vsel %vm2530, %v2687, 0.0
      %v2741 = vadd.f32 %v2739, %v2740
      %v2742 = vsel %vm2530, %v2688, 0.0
      %v2743 = vadd.f32 %v2741, %v2742
      %v2744 = vsel %vm2530, %v2689, 0.0
      %v2745 = vadd.f32 %v2743, %v2744
      %v2746 = vsel %vm2530, %v2690, 0.0
      %v2747 = vadd.f32 %v2745, %v2746
      %v2748 = vsel %vm2530, %v2691, 0.0
      %v2749 = vadd.f32 %v2747, %v2748
      %v2750 = vsel %vm2530, %v2692, 0.0
      %v2751 = vadd.f32 %v2749, %v2750
      %v2752 = vsel %vm2530, %v2693, 0.0
      %v2753 = vadd.f32 %v2751, %v2752
      %v2754 = vsel %vm2530, %v2694, 0.0
      %v2755 = vadd.f32 %v2753, %v2754
      %v2756 = vsel %vm2530, %v2695, 0.0
      %v2757 = vadd.f32 %v2755, %v2756
      %v2758 = vsel %vm2530, %v2696, 0.0
      %v2759 = vadd.f32 %v2757, %v2758
      %v2760 = vrot.slane %v2759, 4
      %v2761 = vadd.f32 %v2759, %v2760
      %v2762 = vrot.slane %v2761, 2
      %v2763 = vadd.f32 %v2761, %v2762
      %v2764 = vrot.slane %v2763, 1
      %v2765 = vadd.f32 %v2763, %v2764
      %vm2766 = vcmask 57344
      %2767 = vst.msk [vmem:[%s527] sm:$0x1] %vm2766, %v2631
      %2768 = vst.msk [vmem:[%s533] sm:$0x1] %vm2766, %v2765
      %s2769 = smul.u32 16, %s26
      %p2770 = scmp.lt.s32.totalorder %s25, 1
      %s2771 = scalar_select %p2770, %s25, 1
      %p2772 = scmp.lt.s32.totalorder %s2769, 15
      %s2773 = scalar_select %p2772, %s2769, 15
      %s2774 = smul.addr %s2773, 2
      %s2775 = smul.addr %s2771, 32
      %s2776 = sadd.s32 %s2774, %s2775
      %s2777 = smul.addr %s2776, 8
      %s2778 = scalar_lea.vmem %s7, %s2777
      %p2779 = scmp.lt.s32.totalorder %s25, 1
      %s2780 = scalar_select %p2779, %s25, 1
      %p2781 = scmp.lt.s32.totalorder %s26, 0
      %s2782 = scalar_select %p2781, %s26, 0
      %s2783 = sadd.s32 %s2782, %s2780
      %s2784 = scalar_lea.vmem %s8, %s2783
      %p2785 = scmp.lt.s32.totalorder %s25, 1
      %s2786 = scalar_select %p2785, %s25, 1
      %p2787 = scmp.lt.s32.totalorder %s26, 0
      %s2788 = scalar_select %p2787, %s26, 0
      %s2789 = sadd.s32 %s2788, %s2786
      %s2790 = scalar_lea.vmem %s9, %s2789
      // Predicated region
      $region65: #{double_conv.3} parent=47 // pred_check
        %p2791 = pneg %p237
      $region66: #{double_conv.3} parent=47 // pred_check_branch
        %2793 = sbr.rel (%p2791) target = $region68
      $region67: #{double_conv.3} parent=47 // pred_region
        %s2794 = smul.u32 16, %s26
      $region68: #{double_conv.3} parent=47 // pred_fallthru
        _
      // Predicated region
      $region69: #{double_conv.3} parent=47 // pred_check
        %p2795 = pneg %p265
      $region70: #{double_conv.3} parent=47 // pred_check_branch
        %2797 = sbr.rel (%p2795) target = $region72
      $region71: #{double_conv.3} parent=47 // pred_region
        _
      $region72: #{double_conv.3} parent=47 // pred_fallthru
        _
      // Predicated region
      $region73: #{double_conv.3} parent=47 // pred_check
        %p2798 = pneg %p293
      $region74: #{double_conv.3} parent=47 // pred_check_branch
        %2800 = sbr.rel (%p2798) target = $region76
      $region75: #{double_conv.3} parent=47 // pred_region
        _
      $region76: #{double_conv.3} parent=47 // pred_fallthru
        _
    $region48: #{double_conv.3} parent=5 // pred_fallthru
      _
    %p2801 = scmp.le.s32.totalorder 2, %s16
    // Predicated region
    $region77: #{double_conv.3} parent=5 // pred_check
      %p2802 = pneg %p2801
    $region78: #{double_conv.3} parent=5 // pred_check_branch
      %2804 = sbr.rel (%p2802) target = $region80
    $region79: #{double_conv.3} parent=5 // pred_region
      %s2805 = ssub.s32 %s16, 2
      // Predicated region
      $region81: #{double_conv.3} parent=79 // pred_check
        %p2806 = pneg %p243
      $region82: #{double_conv.3} parent=79 // pred_check_branch
        %2808 = sbr.rel (%p2806) target = $region84
      $region83: #{double_conv.3} parent=79 // pred_region
        %s2809 = smul.u32 16, %s28
        %p2810 = scmp.lt.s32.totalorder %s27, 1
        %s2811 = scalar_select %p2810, %s27, 1
        %p2812 = scmp.lt.s32.totalorder %s2809, 15
        %s2813 = scalar_select %p2812, %s2809, 15
        %s2814 = smul.addr %s2813, 2
        %s2815 = smul.addr %s2811, 32
        %s2816 = sadd.s32 %s2814, %s2815
        %s2817 = smul.addr %s2816, 8
        %s2818 = scalar_lea.vmem %s7, %s2817
      $region84: #{double_conv.3} parent=79 // pred_fallthru
        _
      // Predicated region
      $region85: #{double_conv.3} parent=79 // pred_check
        %p2819 = pneg %p271
      $region86: #{double_conv.3} parent=79 // pred_check_branch
        %2821 = sbr.rel (%p2819) target = $region88
      $region87: #{double_conv.3} parent=79 // pred_region
        %p2822 = scmp.lt.s32.totalorder %s27, 1
        %s2823 = scalar_select %p2822, %s27, 1
        %p2824 = scmp.lt.s32.totalorder %s28, 0
        %s2825 = scalar_select %p2824, %s28, 0
        %s2826 = sadd.s32 %s2825, %s2823
        %s2827 = scalar_lea.vmem %s8, %s2826
      $region88: #{double_conv.3} parent=79 // pred_fallthru
        _
      // Predicated region
      $region89: #{double_conv.3} parent=79 // pred_check
        %p2828 = pneg %p299
      $region90: #{double_conv.3} parent=79 // pred_check_branch
        %2830 = sbr.rel (%p2828) target = $region92
      $region91: #{double_conv.3} parent=79 // pred_region
        %p2831 = scmp.lt.s32.totalorder %s27, 1
        %s2832 = scalar_select %p2831, %s27, 1
        %p2833 = scmp.lt.s32.totalorder %s28, 0
        %s2834 = scalar_select %p2833, %s28, 0
        %s2835 = sadd.s32 %s2834, %s2832
        %s2836 = scalar_lea.vmem %s9, %s2835
      $region92: #{double_conv.3} parent=79 // pred_fallthru
        _
    $region80: #{double_conv.3} parent=5 // pred_fallthru
      _
  $region6: #{double_conv.3} parent=0 // loop_footer
    %s20 = sadd.s32 1, %s16
  $region7: #{double_conv.3} parent=0 // loop_footer_branch
    %15 = sbr.rel target = $region3
  $region8: #{double_conv.3} parent=0 // loop_exit
    _

// kernel: double_conv.4
$region0: #{double_conv.4}
  #allocation0 [shape = 'u32[]', space=smem, size = 0x4, offset = 0x4, fixed_abs, tag = 'smem constant byte address 0x4 - core index']
  #allocation1 [shape = 'u32[72,128]{1,0:T(1,128)}', space=vmem, size = 0x9000, scoped, tag = 'internal scratch']
  #allocation2 [shape = 'f32[18,24,8]{2,1,0:T(8,128)}', space=vmem, size = 0x36000, scoped, tag = 'scratch operand']
  #allocation3 [shape = 'f32[256,72]{1,0:T(8,128)}', space=vmem, size = 0x20000, scoped, tag = 'scratch operand']
  %s0 = inlined_call_operand.vmem [shape: f32[2,16,16,8], index: 0, kind: input, shape index: {}, may-alias: {0,1,2}]
  %s1 = inlined_call_operand.vmem [shape: f32[2,16,16,8], index: 1, kind: input, shape index: {}, may-alias: {0,1,2}]
  %s2 = inlined_call_operand.vmem [shape: f32[2,16,16,8], index: 2, kind: input, shape index: {}, may-alias: {0,1,2}]
  %s3 = inlined_call_operand.vmem [shape: f32[72,8], index: 3, kind: input, shape index: {}]
  %s4 = inlined_call_operand.vmem [shape: f32[1,8], index: 4, kind: input, shape index: {}]
  %s5 = inlined_call_operand.vmem [shape: f32[1,8], index: 5, kind: input, shape index: {}]
  %s6 = inlined_call_operand.vmem [shape: f32[1,8], index: 6, kind: input, shape index: {}]
  %s7 = inlined_call_operand.vmem [shape: f32[2,16,16,8], index: 7, kind: output, shape index: {0}]
  %s8 = inlined_call_operand.vmem [shape: f32[2,1,1,8], index: 8, kind: output, shape index: {1}]
  %s9 = inlined_call_operand.vmem [shape: f32[2,1,1,8], index: 9, kind: output, shape index: {2}]
  %10 = xla_tuple %s7, %s8, %s9
  %s11 = sld [smem:[#allocation0]]
  $region93: #{double_conv.4} parent=0
    _
  %s13 = ssub.s32 1, %s11
  %s14 = scalar_select 0, %s13, %s11
  loop: start=0, step=1, limit=4
  $region2: #{double_conv.4} parent=0 // loop_pre_header
    _
  $region3: #{double_conv.4} parent=0 // loop_header
    %s16 = sphi 0, %s20
    %p17 = scmp.ge.s32.totalorder %s16, 4
    %s23 = sphi 0, %s35
    %s24 = sphi 0, %s31
    %s25 = sphi 0, %s23
    %s26 = sphi 0, %s24
    %s27 = sphi 0, %s25
    %s28 = sphi 0, %s26
    %s40 = sphi 0, %s42
    %s43 = sphi 0, %s40
    %s44 = sphi 0, %s43
    %s60 = sphi 0, %s44
    %s76 = sphi 0, %s78
    %s79 = sphi 0, %s76
    %s80 = sphi 0, %s79
    %s96 = sphi 0, %s80
    %s112 = sphi 0, %s114
    %s115 = sphi 0, %s112
    %s116 = sphi 0, %s115
    %s132 = sphi 0, %s116
    %s136 = sphi 0, %s136
    %s138 = sphi 0, %s136
    %s139 = sphi 0, %s138
    %s153 = sphi 0, %s139
    %s157 = sphi 0, %s157
    %s159 = sphi 0, %s157
    %s160 = sphi 0, %s159
    %s174 = sphi 0, %s160
    %s178 = sphi 0, %s178
    %s180 = sphi 0, %s178
    %s181 = sphi 0, %s180
    %s195 = sphi 0, %s181
    %s199 = sphi 0, %s199
    %s201 = sphi 0, %s199
    %s202 = sphi 0, %s201
    %s216 = sphi 0, %s202
    %s224 = sphi 0, %s226
    %s227 = sphi 0, %s224
    %s228 = sphi 0, %s227
    %s244 = sphi 0, %s228
    %s252 = sphi 0, %s254
    %s255 = sphi 0, %s252
    %s256 = sphi 0, %s255
    %s272 = sphi 0, %s256
    %s280 = sphi 0, %s282
    %s283 = sphi 0, %s280
    %s284 = sphi 0, %s283
    %s300 = sphi 0, %s284
  $region4: #{double_conv.4} parent=0 // loop_header_branch
    %19 = sbr.rel (%p17) target = $region8
  $region5: #{double_conv.4} parent=0 // loop_body
    %s21 = ssub.s32 %s16, 1
    %s22 = ssub.s32 %s16, 2
    %s29 = sadd.s32 1, %s24
    %p30 = scmp.ge.s32.totalorder %s29, 1
    %s31 = scalar_select %p30, 0, %s29
    %s32 = sadd.s32 1, %s23
    %s33 = scalar_select %p30, %s32, %s23
    %p34 = scmp.ge.s32.totalorder %s33, 2
    %s35 = scalar_select %p34, 0, %s33
    %s36 = ssub.s32 %s23, %s35
    %s37 = ssub.s32 %s24, %s31
    %s38 = sor.u32 %s36, %s37
    %p39 = scmp.eq.s32.totalorder %s38, 0
    %s41 = sadd.s32 %s40, 1
    %s42 = scalar_select %p39, %s40, %s41
    %p45 = pneg %p39
    %p46 = scmp.eq.s32.totalorder %s16, 1
    %p47 = por %p45, %p46
    %p48 = scmp.ne.s32.totalorder %s40, %s43
    %p49 = scmp.eq.s32.totalorder %s16, 0
    %p50 = por %p48, %p49
    %p51 = scmp.ne.s32.totalorder %s40, %s43
    %p52 = scmp.eq.s32.totalorder %s21, 1
    %p53 = por %p51, %p52
    %p54 = scmp.ne.s32.totalorder %s43, %s44
    %p55 = scmp.eq.s32.totalorder %s21, 0
    %p56 = por %p54, %p55
    %p57 = scmp.ne.s32.totalorder %s43, %s44
    %p58 = scmp.eq.s32.totalorder %s22, 1
    %p59 = por %p57, %p58
    %p61 = scmp.ne.s32.totalorder %s44, %s60
    %p62 = scmp.eq.s32.totalorder %s22, 0
    %p63 = por %p61, %p62
    %s64 = smul.u32 %s24, 16
    %s65 = ssub.s32 %s64, 1
    %p66 = scmp.gt.s32.totalorder %s65, 0
    %s67 = scalar_select %p66, %s65, 0
    %s68 = smul.u32 %s31, 16
    %s69 = ssub.s32 %s68, 1
    %p70 = scmp.gt.s32.totalorder %s69, 0
    %s71 = scalar_select %p70, %s69, 0
    %s72 = ssub.s32 %s23, %s35
    %s73 = ssub.s32 %s67, %s71
    %s74 = sor.u32 %s72, %s73
    %p75 = scmp.eq.s32.totalorder %s74, 0
    %s77 = sadd.s32 %s76, 1
    %s78 = scalar_select %p75, %s76, %s77
    %p81 = pneg %p75
    %p82 = scmp.eq.s32.totalorder %s16, 1
    %p83 = por %p81, %p82
    %p84 = scmp.ne.s32.totalorder %s76, %s79
    %p85 = scmp.eq.s32.totalorder %s16, 0
    %p86 = por %p84, %p85
    %p87 = scmp.ne.s32.totalorder %s76, %s79
    %p88 = scmp.eq.s32.totalorder %s21, 1
    %p89 = por %p87, %p88
    %p90 = scmp.ne.s32.totalorder %s79, %s80
    %p91 = scmp.eq.s32.totalorder %s21, 0
    %p92 = por %p90, %p91
    %p93 = scmp.ne.s32.totalorder %s79, %s80
    %p94 = scmp.eq.s32.totalorder %s22, 1
    %p95 = por %p93, %p94
    %p97 = scmp.ne.s32.totalorder %s80, %s96
    %p98 = scmp.eq.s32.totalorder %s22, 0
    %p99 = por %p97, %p98
    %s100 = smul.u32 %s24, 16
    %s101 = sadd.s32 %s100, 16
    %p102 = scmp.lt.s32.totalorder %s101, 15
    %s103 = scalar_select %p102, %s101, 15
    %s104 = smul.u32 %s31, 16
    %s105 = sadd.s32 %s104, 16
    %p106 = scmp.lt.s32.totalorder %s105, 15
    %s107 = scalar_select %p106, %s105, 15
    %s108 = ssub.s32 %s23, %s35
    %s109 = ssub.s32 %s103, %s107
    %s110 = sor.u32 %s108, %s109
    %p111 = scmp.eq.s32.totalorder %s110, 0
    %s113 = sadd.s32 %s112, 1
    %s114 = scalar_select %p111, %s112, %s113
    %p117 = pneg %p111
    %p118 = scmp.eq.s32.totalorder %s16, 1
    %p119 = por %p117, %p118
    %p120 = scmp.ne.s32.totalorder %s112, %s115
    %p121 = scmp.eq.s32.totalorder %s16, 0
    %p122 = por %p120, %p121
    %p123 = scmp.ne.s32.totalorder %s112, %s115
    %p124 = scmp.eq.s32.totalorder %s21, 1
    %p125 = por %p123, %p124
    %p126 = scmp.ne.s32.totalorder %s115, %s116
    %p127 = scmp.eq.s32.totalorder %s21, 0
    %p128 = por %p126, %p127
    %p129 = scmp.ne.s32.totalorder %s115, %s116
    %p130 = scmp.eq.s32.totalorder %s22, 1
    %p131 = por %p129, %p130
    %p133 = scmp.ne.s32.totalorder %s116, %s132
    %p134 = scmp.eq.s32.totalorder %s22, 0
    %p135 = por %p133, %p134
    %s137 = sadd.s32 %s136, 1
    %p140 = scmp.eq.s32.totalorder %s16, 1
    %p141 = scmp.ne.s32.totalorder %s136, %s138
    %p142 = scmp.eq.s32.totalorder %s16, 0
    %p143 = por %p141, %p142
    %p144 = scmp.ne.s32.totalorder %s136, %s138
    %p145 = scmp.eq.s32.totalorder %s21, 1
    %p146 = por %p144, %p145
    %p147 = scmp.ne.s32.totalorder %s138, %s139
    %p148 = scmp.eq.s32.totalorder %s21, 0
    %p149 = por %p147, %p148
    %p150 = scmp.ne.s32.totalorder %s138, %s139
    %p151 = scmp.eq.s32.totalorder %s22, 1
    %p152 = por %p150, %p151
    %p154 = scmp.ne.s32.totalorder %s139, %s153
    %p155 = scmp.eq.s32.totalorder %s22, 0
    %p156 = por %p154, %p155
    %s158 = sadd.s32 %s157, 1
    %p161 = scmp.eq.s32.totalorder %s16, 1
    %p162 = scmp.ne.s32.totalorder %s157, %s159
    %p163 = scmp.eq.s32.totalorder %s16, 0
    %p164 = por %p162, %p163
    %p165 = scmp.ne.s32.totalorder %s157, %s159
    %p166 = scmp.eq.s32.totalorder %s21, 1
    %p167 = por %p165, %p166
    %p168 = scmp.ne.s32.totalorder %s159, %s160
    %p169 = scmp.eq.s32.totalorder %s21, 0
    %p170 = por %p168, %p169
    %p171 = scmp.ne.s32.totalorder %s159, %s160
    %p172 = scmp.eq.s32.totalorder %s22, 1
    %p173 = por %p171, %p172
    %p175 = scmp.ne.s32.totalorder %s160, %s174
    %p176 = scmp.eq.s32.totalorder %s22, 0
    %p177 = por %p175, %p176
    %s179 = sadd.s32 %s178, 1
    %p182 = scmp.eq.s32.totalorder %s16, 1
    %p183 = scmp.ne.s32.totalorder %s178, %s180
    %p184 = scmp.eq.s32.totalorder %s16, 0
    %p185 = por %p183, %p184
    %p186 = scmp.ne.s32.totalorder %s178, %s180
    %p187 = scmp.eq.s32.totalorder %s21, 1
    %p188 = por %p186, %p187
    %p189 = scmp.ne.s32.totalorder %s180, %s181
    %p190 = scmp.eq.s32.totalorder %s21, 0
    %p191 = por %p189, %p190
    %p192 = scmp.ne.s32.totalorder %s180, %s181
    %p193 = scmp.eq.s32.totalorder %s22, 1
    %p194 = por %p192, %p193
    %p196 = scmp.ne.s32.totalorder %s181, %s195
    %p197 = scmp.eq.s32.totalorder %s22, 0
    %p198 = por %p196, %p197
    %s200 = sadd.s32 %s199, 1
    %p203 = scmp.eq.s32.totalorder %s16, 1
    %p204 = scmp.ne.s32.totalorder %s199, %s201
    %p205 = scmp.eq.s32.totalorder %s16, 0
    %p206 = por %p204, %p205
    %p207 = scmp.ne.s32.totalorder %s199, %s201
    %p208 = scmp.eq.s32.totalorder %s21, 1
    %p209 = por %p207, %p208
    %p210 = scmp.ne.s32.totalorder %s201, %s202
    %p211 = scmp.eq.s32.totalorder %s21, 0
    %p212 = por %p210, %p211
    %p213 = scmp.ne.s32.totalorder %s201, %s202
    %p214 = scmp.eq.s32.totalorder %s22, 1
    %p215 = por %p213, %p214
    %p217 = scmp.ne.s32.totalorder %s202, %s216
    %p218 = scmp.eq.s32.totalorder %s22, 0
    %p219 = por %p217, %p218
    %s220 = ssub.s32 %s23, %s35
    %s221 = ssub.s32 %s24, %s31
    %s222 = sor.u32 %s220, %s221
    %p223 = scmp.eq.s32.totalorder %s222, 0
    %s225 = sadd.s32 %s224, 1
    %s226 = scalar_select %p223, %s224, %s225
    %p229 = pneg %p223
    %p230 = scmp.eq.s32.totalorder %s16, 1
    %p231 = por %p229, %p230
    %p232 = scmp.ne.s32.totalorder %s224, %s227
    %p233 = scmp.eq.s32.totalorder %s16, 0
    %p234 = por %p232, %p233
    %p235 = scmp.ne.s32.totalorder %s224, %s227
    %p236 = scmp.eq.s32.totalorder %s21, 1
    %p237 = por %p235, %p236
    %p238 = scmp.ne.s32.totalorder %s227, %s228
    %p239 = scmp.eq.s32.totalorder %s21, 0
    %p240 = por %p238, %p239
    %p241 = scmp.ne.s32.totalorder %s227, %s228
    %p242 = scmp.eq.s32.totalorder %s22, 1
    %p243 = por %p241, %p242
    %p245 = scmp.ne.s32.totalorder %s228, %s244
    %p246 = scmp.eq.s32.totalorder %s22, 0
    %p247 = por %p245, %p246
    %s248 = ssub.s32 %s23, %s35
    %s249 = ssub.s32 %s24, %s31
    %s250 = sor.u32 %s248, %s249
    %p251 = scmp.eq.s32.totalorder %s250, 0
    %s253 = sadd.s32 %s252, 1
    %s254 = scalar_select %p251, %s252, %s253
    %p257 = pneg %p251
    %p258 = scmp.eq.s32.totalorder %s16, 1
    %p259 = por %p257, %p258
    %p260 = scmp.ne.s32.totalorder %s252, %s255
    %p261 = scmp.eq.s32.totalorder %s16, 0
    %p262 = por %p260, %p261
    %p263 = scmp.ne.s32.totalorder %s252, %s255
    %p264 = scmp.eq.s32.totalorder %s21, 1
    %p265 = por %p263, %p264
    %p266 = scmp.ne.s32.totalorder %s255, %s256
    %p267 = scmp.eq.s32.totalorder %s21, 0
    %p268 = por %p266, %p267
    %p269 = scmp.ne.s32.totalorder %s255, %s256
    %p270 = scmp.eq.s32.totalorder %s22, 1
    %p271 = por %p269, %p270
    %p273 = scmp.ne.s32.totalorder %s256, %s272
    %p274 = scmp.eq.s32.totalorder %s22, 0
    %p275 = por %p273, %p274
    %s276 = ssub.s32 %s23, %s35
    %s277 = ssub.s32 %s24, %s31
    %s278 = sor.u32 %s276, %s277
    %p279 = scmp.eq.s32.totalorder %s278, 0
    %s281 = sadd.s32 %s280, 1
    %s282 = scalar_select %p279, %s280, %s281
    %p285 = pneg %p279
    %p286 = scmp.eq.s32.totalorder %s16, 1
    %p287 = por %p285, %p286
    %p288 = scmp.ne.s32.totalorder %s280, %s283
    %p289 = scmp.eq.s32.totalorder %s16, 0
    %p290 = por %p288, %p289
    %p291 = scmp.ne.s32.totalorder %s280, %s283
    %p292 = scmp.eq.s32.totalorder %s21, 1
    %p293 = por %p291, %p292
    %p294 = scmp.ne.s32.totalorder %s283, %s284
    %p295 = scmp.eq.s32.totalorder %s21, 0
    %p296 = por %p294, %p295
    %p297 = scmp.ne.s32.totalorder %s283, %s284
    %p298 = scmp.eq.s32.totalorder %s22, 1
    %p299 = por %p297, %p298
    %p301 = scmp.ne.s32.totalorder %s284, %s300
    %p302 = scmp.eq.s32.totalorder %s22, 0
    %p303 = por %p301, %p302
    %p304 = scmp.le.s32.totalorder 1, %s16
    %p305 = scmp.lt.s32.totalorder %s16, 3
    %p306 = pnand %p304, %p305
    %p307 = pneg %p306
    // Predicated region
    $region9: #{double_conv.4} parent=5 // pred_check
      _
    $region10: #{double_conv.4} parent=5 // pred_check_branch
      %309 = sbr.rel (%p306) target = $region12
    $region11: #{double_conv.4} parent=5 // pred_region
      %s310 = ssub.s32 %s16, 1
      // Predicated region
      $region13: #{double_conv.4} parent=11 // pred_check
        %p311 = pneg %p149
      $region14: #{double_conv.4} parent=11 // pred_check_branch
        %313 = sbr.rel (%p311) target = $region16
      $region15: #{double_conv.4} parent=11 // pred_region
        _
      $region16: #{double_conv.4} parent=11 // pred_fallthru
        _
      // Predicated region
      $region17: #{double_conv.4} parent=11 // pred_check
        %p314 = pneg %p170
      $region18: #{double_conv.4} parent=11 // pred_check_branch
        %316 = sbr.rel (%p314) target = $region20
      $region19: #{double_conv.4} parent=11 // pred_region
        _
      $region20: #{double_conv.4} parent=11 // pred_fallthru
        _
      // Predicated region
      $region21: #{double_conv.4} parent=11 // pred_check
        %p317 = pneg %p191
      $region22: #{double_conv.4} parent=11 // pred_check_branch
        %319 = sbr.rel (%p317) target = $region24
      $region23: #{double_conv.4} parent=11 // pred_region
        _
      $region24: #{double_conv.4} parent=11 // pred_fallthru
        _
      // Predicated region
      $region25: #{double_conv.4} parent=11 // pred_check
        %p320 = pneg %p212
      $region26: #{double_conv.4} parent=11 // pred_check_branch
        %322 = sbr.rel (%p320) target = $region28
      $region27: #{double_conv.4} parent=11 // pred_region
        _
      $region28: #{double_conv.4} parent=11 // pred_fallthru
        _
    $region12: #{double_conv.4} parent=5 // pred_fallthru
      _
    %p323 = scmp.lt.s32.totalorder %s16, 2
    // Predicated region
    $region29: #{double_conv.4} parent=5 // pred_check
      %p324 = pneg %p323
    $region30: #{double_conv.4} parent=5 // pred_check_branch
      %326 = sbr.rel (%p324) target = $region32
    $region31: #{double_conv.4} parent=5 // pred_region
      // Predicated region
      $region33: #{double_conv.4} parent=31 // pred_check
        %p327 = pneg %p50
      $region34: #{double_conv.4} parent=31 // pred_check_branch
        %329 = sbr.rel (%p327) target = $region36
      $region35: #{double_conv.4} parent=31 // pred_region
        %s330 = smul.u32 16, %s24
        %p331 = scmp.lt.s32.totalorder %s23, 1
        %s332 = scalar_select %p331, %s23, 1
        %p333 = scmp.lt.s32.totalorder %s330, 15
        %s334 = scalar_select %p333, %s330, 15
        %s335 = smul.addr %s334, 2
        %s336 = smul.addr %s332, 32
        %s337 = sadd.s32 %s335, %s336
        %s338 = smul.addr %s337, 8
        %s339 = scalar_lea.vmem %s0, %s338
        %s340 = smul.u32 16, %s24
      $region36: #{double_conv.4} parent=31 // pred_fallthru
        _
      // Predicated region
      $region37: #{double_conv.4} parent=31 // pred_check
        %p341 = pneg %p86
      $region38: #{double_conv.4} parent=31 // pred_check_branch
        %343 = sbr.rel (%p341) target = $region40
      $region39: #{double_conv.4} parent=31 // pred_region
        %s344 = smul.u32 %s24, 16
        %s345 = ssub.s32 %s344, 1
        %p346 = scmp.gt.s32.totalorder %s345, 0
        %s347 = scalar_select %p346, %s345, 0
        %p348 = scmp.lt.s32.totalorder %s23, 1
        %s349 = scalar_select %p348, %s23, 1
        %p350 = scmp.lt.s32.totalorder %s347, 15
        %s351 = scalar_select %p350, %s347, 15
        %s352 = smul.addr %s351, 2
        %s353 = smul.addr %s349, 32
        %s354 = sadd.s32 %s352, %s353
        %s355 = smul.addr %s354, 8
        %s356 = scalar_lea.vmem %s1, %s355
        %s357 = smul.u32 %s24, 16
        %s358 = ssub.s32 %s357, 1
        %p359 = scmp.gt.s32.totalorder %s358, 0
        %s360 = scalar_select %p359, %s358, 0
      $region40: #{double_conv.4} parent=31 // pred_fallthru
        _
      // Predicated region
      $region41: #{double_conv.4} parent=31 // pred_check
        %p361 = pneg %p122
      $region42: #{double_conv.4} parent=31 // pred_check_branch
        %363 = sbr.rel (%p361) target = $region44
      $region43: #{double_conv.4} parent=31 // pred_region
        %s364 = smul.u32 %s24, 16
        %s365 = sadd.s32 %s364, 16
        %p366 = scmp.lt.s32.totalorder %s365, 15
        %s367 = scalar_select %p366, %s365, 15
        %p368 = scmp.lt.s32.totalorder %s23, 1
        %s369 = scalar_select %p368, %s23, 1
        %p370 = scmp.lt.s32.totalorder %s367, 15
        %s371 = scalar_select %p370, %s367, 15
        %s372 = smul.addr %s371, 2
        %s373 = smul.addr %s369, 32
        %s374 = sadd.s32 %s372, %s373
        %s375 = smul.addr %s374, 8
        %s376 = scalar_lea.vmem %s2, %s375
        %s377 = smul.u32 %s24, 16
        %s378 = sadd.s32 %s377, 16
        %p379 = scmp.lt.s32.totalorder %s378, 15
        %s380 = scalar_select %p379, %s378, 15
      $region44: #{double_conv.4} parent=31 // pred_fallthru
        _
    $region32: #{double_conv.4} parent=5 // pred_fallthru
      _
    %p381 = scmp.le.s32.totalorder 1, %s16
    %p382 = scmp.lt.s32.totalorder %s16, 3
    %p383 = pnand %p381, %p382
    %p384 = pneg %p383
    // Predicated region
    $region45: #{double_conv.4} parent=5 // pred_check
      _
    $region46: #{double_conv.4} parent=5 // pred_check_branch
      %386 = sbr.rel (%p383) target = $region48
    $region47: #{double_conv.4} parent=5 // pred_region
      %s387 = ssub.s32 %s16, 1
      %s388 = smul.u32 16, %s26
      %p389 = scmp.lt.s32.totalorder %s25, 1
      %s390 = scalar_select %p389, %s25, 1
      %p391 = scmp.lt.s32.totalorder %s388, 15
      %s392 = scalar_select %p391, %s388, 15
      %s393 = smul.addr %s392, 2
      %s394 = smul.addr %s390, 32
      %s395 = sadd.s32 %s393, %s394
      %s396 = smul.addr %s395, 8
      %s397 = scalar_lea.vmem %s0, %s396
      %p398 = pneg %p56
      %p399 = pneg %p53
      %s400 = smul.u32 %s26, 16
      %s401 = ssub.s32 %s400, 1
      %p402 = scmp.gt.s32.totalorder %s401, 0
      %s403 = scalar_select %p402, %s401, 0
      %p404 = scmp.lt.s32.totalorder %s25, 1
      %s405 = scalar_select %p404, %s25, 1
      %p406 = scmp.lt.s32.totalorder %s403, 15
      %s407 = scalar_select %p406, %s403, 15
      %s408 = smul.addr %s407, 2
      %s409 = smul.addr %s405, 32
      %s410 = sadd.s32 %s408, %s409
      %s411 = smul.addr %s410, 8
      %s412 = scalar_lea.vmem %s1, %s411
      %p413 = pneg %p92
      %p414 = pneg %p89
      %s415 = smul.u32 %s26, 16
      %s416 = sadd.s32 %s415, 16
      %p417 = scmp.lt.s32.totalorder %s416, 15
      %s418 = scalar_select %p417, %s416, 15
      %p419 = scmp.lt.s32.totalorder %s25, 1
      %s420 = scalar_select %p419, %s25, 1
      %p421 = scmp.lt.s32.totalorder %s418, 15
      %s422 = scalar_select %p421, %s418, 15
      %s423 = smul.addr %s422, 2
      %s424 = smul.addr %s420, 32
      %s425 = sadd.s32 %s423, %s424
      %s426 = smul.addr %s425, 8
      %s427 = scalar_lea.vmem %s2, %s426
      %p428 = pneg %p128
      %p429 = pneg %p125
      %p430 = pneg %p149
      %p431 = pneg %p146
      %p432 = pneg %p170
      %p433 = pneg %p167
      %p434 = pneg %p191
      %p435 = pneg %p188
      %p436 = pneg %p212
      %p437 = pneg %p209
      %p438 = pneg %p240
      %p439 = pneg %p237
      %s440 = smul.u32 16, %s26
      %p441 = scmp.lt.s32.totalorder %s25, 1
      %s442 = scalar_select %p441, %s25, 1
      %p443 = scmp.lt.s32.totalorder %s440, 15
      %s444 = scalar_select %p443, %s440, 15
      %s445 = smul.addr %s444, 2
      %s446 = smul.addr %s442, 32
      %s447 = sadd.s32 %s445, %s446
      %s448 = smul.addr %s447, 8
      %s449 = scalar_lea.vmem %s7, %s448
      %p450 = pneg %p268
      %p451 = pneg %p265
      %p452 = scmp.lt.s32.totalorder %s25, 1
      %s453 = scalar_select %p452, %s25, 1
      %p454 = scmp.lt.s32.totalorder %s26, 0
      %s455 = scalar_select %p454, %s26, 0
      %s456 = sadd.s32 %s455, %s453
      %s457 = scalar_lea.vmem %s8, %s456
      %p458 = pneg %p296
      %p459 = pneg %p293
      %p460 = scmp.lt.s32.totalorder %s25, 1
      %s461 = scalar_select %p460, %s25, 1
      %p462 = scmp.lt.s32.totalorder %s26, 0
      %s463 = scalar_select %p462, %s26, 0
      %s464 = sadd.s32 %s463, %s461
      %s465 = scalar_lea.vmem %s9, %s464
      %s466 = smul.u32 16, %s26
      %p467 = scmp.lt.s32.totalorder %s25, 1
      %s468 = scalar_select %p467, %s25, 1
      %p469 = scmp.lt.s32.totalorder %s466, 15
      %s470 = scalar_select %p469, %s466, 15
      %s471 = smul.addr %s470, 2
      %s472 = smul.addr %s468, 32
      %s473 = sadd.s32 %s471, %s472
      %s474 = smul.addr %s473, 8
      %s475 = scalar_lea.vmem %s0, %s474
      %s476 = smul.u32 16, %s26
      %s477 = smul.u32 %s26, 16
      %s478 = ssub.s32 %s477, 1
      %p479 = scmp.gt.s32.totalorder %s478, 0
      %s480 = scalar_select %p479, %s478, 0
      %p481 = scmp.lt.s32.totalorder %s25, 1
      %s482 = scalar_select %p481, %s25, 1
      %p483 = scmp.lt.s32.totalorder %s480, 15
      %s484 = scalar_select %p483, %s480, 15
      %s485 = smul.addr %s484, 2
      %s486 = smul.addr %s482, 32
      %s487 = sadd.s32 %s485, %s486
      %s488 = smul.addr %s487, 8
      %s489 = scalar_lea.vmem %s1, %s488
      %s490 = smul.u32 %s26, 16
      %s491 = ssub.s32 %s490, 1
      %p492 = scmp.gt.s32.totalorder %s491, 0
      %s493 = scalar_select %p492, %s491, 0
      %s494 = smul.u32 %s26, 16
      %s495 = sadd.s32 %s494, 16
      %p496 = scmp.lt.s32.totalorder %s495, 15
      %s497 = scalar_select %p496, %s495, 15
      %p498 = scmp.lt.s32.totalorder %s25, 1
      %s499 = scalar_select %p498, %s25, 1
      %p500 = scmp.lt.s32.totalorder %s497, 15
      %s501 = scalar_select %p500, %s497, 15
      %s502 = smul.addr %s501, 2
      %s503 = smul.addr %s499, 32
      %s504 = sadd.s32 %s502, %s503
      %s505 = smul.addr %s504, 8
      %s506 = scalar_lea.vmem %s2, %s505
      %s507 = smul.u32 %s26, 16
      %s508 = sadd.s32 %s507, 16
      %p509 = scmp.lt.s32.totalorder %s508, 15
      %s510 = scalar_select %p509, %s508, 15
      %s511 = smul.u32 16, %s26
      %p512 = scmp.lt.s32.totalorder %s25, 1
      %s513 = scalar_select %p512, %s25, 1
      %p514 = scmp.lt.s32.totalorder %s511, 15
      %s515 = scalar_select %p514, %s511, 15
      %s516 = smul.addr %s515, 2
      %s517 = smul.addr %s513, 32
      %s518 = sadd.s32 %s516, %s517
      %s519 = smul.addr %s518, 8
      %s520 = scalar_lea.vmem %s7, %s519
      %s521 = smul.u32 16, %s26
      %p522 = scmp.lt.s32.totalorder %s25, 1
      %s523 = scalar_select %p522, %s25, 1
      %p524 = scmp.lt.s32.totalorder %s26, 0
      %s525 = scalar_select %p524, %s26, 0
      %s526 = sadd.s32 %s525, %s523
      %s527 = scalar_lea.vmem %s8, %s526
      %p528 = scmp.lt.s32.totalorder %s25, 1
      %s529 = scalar_select %p528, %s25, 1
      %p530 = scmp.lt.s32.totalorder %s26, 0
      %s531 = scalar_select %p530, %s26, 0
      %s532 = sadd.s32 %s531, %s529
      %s533 = scalar_lea.vmem %s9, %s532
      %vm534 = vcmask 57344
      %535 = vst.msk [vmem:[#allocation2] sm:$0x1] %vm534, 0.0
      %536 = vst.msk [vmem:[#allocation2 + $0x18] sm:$0x1] %vm534, 0.0
      %537 = vst.msk [vmem:[#allocation2 + $0x30] sm:$0x1] %vm534, 0.0
      %538 = vst.msk [vmem:[#allocation2 + $0x48] sm:$0x1] %vm534, 0.0
      %539 = vst.msk [vmem:[#allocation2 + $0x60] sm:$0x1] %vm534, 0.0
      %540 = vst.msk [vmem:[#allocation2 + $0x78] sm:$0x1] %vm534, 0.0
      %541 = vst.msk [vmem:[#allocation2 + $0x90] sm:$0x1] %vm534, 0.0
      %542 = vst.msk [vmem:[#allocation2 + $0xa8] sm:$0x1] %vm534, 0.0
      %543 = vst.msk [vmem:[#allocation2 + $0xc0] sm:$0x1] %vm534, 0.0
      %544 = vst.msk [vmem:[#allocation2 + $0xd8] sm:$0x1] %vm534, 0.0
      %545 = vst.msk [vmem:[#allocation2 + $0xf0] sm:$0x1] %vm534, 0.0
      %546 = vst.msk [vmem:[#allocation2 + $0x108] sm:$0x1] %vm534, 0.0
      %547 = vst.msk [vmem:[#allocation2 + $0x120] sm:$0x1] %vm534, 0.0
      %548 = vst.msk [vmem:[#allocation2 + $0x138] sm:$0x1] %vm534, 0.0
      %549 = vst.msk [vmem:[#allocation2 + $0x150] sm:$0x1] %vm534, 0.0
      %550 = vst.msk [vmem:[#allocation2 + $0x168] sm:$0x1] %vm534, 0.0
      %551 = vst.msk [vmem:[#allocation2 + $0x180] sm:$0x1] %vm534, 0.0
      %552 = vst.msk [vmem:[#allocation2 + $0x198] sm:$0x1] %vm534, 0.0
      %553 = vst.msk [vmem:[#allocation2 + $0x11] sm:$0x1] %vm534, 0.0
      %554 = vst.msk [vmem:[#allocation2 + $0x29] sm:$0x1] %vm534, 0.0
      %555 = vst.msk [vmem:[#allocation2 + $0x41] sm:$0x1] %vm534, 0.0
      %556 = vst.msk [vmem:[#allocation2 + $0x59] sm:$0x1] %vm534, 0.0
      %557 = vst.msk [vmem:[#allocation2 + $0x71] sm:$0x1] %vm534, 0.0
      %558 = vst.msk [vmem:[#allocation2 + $0x89] sm:$0x1] %vm534, 0.0
      %559 = vst.msk [vmem:[#allocation2 + $0xa1] sm:$0x1] %vm534, 0.0
      %560 = vst.msk [vmem:[#allocation2 + $0xb9] sm:$0x1] %vm534, 0.0
      %561 = vst.msk [vmem:[#allocation2 + $0xd1] sm:$0x1] %vm534, 0.0
      %562 = vst.msk [vmem:[#allocation2 + $0xe9] sm:$0x1] %vm534, 0.0
      %563 = vst.msk [vmem:[#allocation2 + $0x101] sm:$0x1] %vm534, 0.0
      %564 = vst.msk [vmem:[#allocation2 + $0x119] sm:$0x1] %vm534, 0.0
      %565 = vst.msk [vmem:[#allocation2 + $0x131] sm:$0x1] %vm534, 0.0
      %566 = vst.msk [vmem:[#allocation2 + $0x149] sm:$0x1] %vm534, 0.0
      %567 = vst.msk [vmem:[#allocation2 + $0x161] sm:$0x1] %vm534, 0.0
      %568 = vst.msk [vmem:[#allocation2 + $0x179] sm:$0x1] %vm534, 0.0
      %569 = vst.msk [vmem:[#allocation2 + $0x191] sm:$0x1] %vm534, 0.0
      %570 = vst.msk [vmem:[#allocation2 + $0x1a9] sm:$0x1] %vm534, 0.0
      %v571 = vld [vmem:[%s475] sm:$0xff]
      %v572 = vld [vmem:[%s475 + $0x8] sm:$0xff]
      %v573 = vld [vmem:[%s475 + $0x10] sm:$0xff]
      %v574 = vld [vmem:[%s475 + $0x18] sm:$0xff]
      %v575 = vld [vmem:[%s475 + $0x20] sm:$0xff]
      %v576 = vld [vmem:[%s475 + $0x28] sm:$0xff]
      %v577 = vld [vmem:[%s475 + $0x30] sm:$0xff]
      %v578 = vld [vmem:[%s475 + $0x38] sm:$0xff]
      %v579 = vld [vmem:[%s475 + $0x40] sm:$0xff]
      %v580 = vld [vmem:[%s475 + $0x48] sm:$0xff]
      %v581 = vld [vmem:[%s475 + $0x50] sm:$0xff]
      %v582 = vld [vmem:[%s475 + $0x58] sm:$0xff]
      %v583 = vld [vmem:[%s475 + $0x60] sm:$0xff]
      %v584 = vld [vmem:[%s475 + $0x68] sm:$0xff]
      %v585 = vld [vmem:[%s475 + $0x70] sm:$0xff]
      %v586 = vld [vmem:[%s475 + $0x78] sm:$0xff]
      %v587 = vld [vmem:[%s475 + $0x80] sm:$0xff]
      %v588 = vld [vmem:[%s475 + $0x88] sm:$0xff]
      %v589 = vld [vmem:[%s475 + $0x90] sm:$0xff]
      %v590 = vld [vmem:[%s475 + $0x98] sm:$0xff]
      %v591 = vld [vmem:[%s475 + $0xa0] sm:$0xff]
      %v592 = vld [vmem:[%s475 + $0xa8] sm:$0xff]
      %v593 = vld [vmem:[%s475 + $0xb0] sm:$0xff]
      %v594 = vld [vmem:[%s475 + $0xb8] sm:$0xff]
      %v595 = vld [vmem:[%s475 + $0xc0] sm:$0xff]
      %v596 = vld [vmem:[%s475 + $0xc8] sm:$0xff]
      %v597 = vld [vmem:[%s475 + $0xd0] sm:$0xff]
      %v598 = vld [vmem:[%s475 + $0xd8] sm:$0xff]
      %v599 = vld [vmem:[%s475 + $0xe0] sm:$0xff]
      %v600 = vld [vmem:[%s475 + $0xe8] sm:$0xff]
      %v601 = vld [vmem:[%s475 + $0xf0] sm:$0xff]
      %v602 = vld [vmem:[%s475 + $0xf8] sm:$0xff]
      %v603 = vld [vmem:[%s5] sm:$0x1]
      %v605 = vperm.slane %v603, 0
      %v607 = vmul.f32 %v571, %v605
      %v608 = vmul.f32 %v572, %v605
      %v609 = vmul.f32 %v573, %v605
      %v610 = vmul.f32 %v574, %v605
      %v611 = vmul.f32 %v575, %v605
      %v612 = vmul.f32 %v576, %v605
      %v613 = vmul.f32 %v577, %v605
      %v614 = vmul.f32 %v578, %v605
      %v615 = vmul.f32 %v579, %v605
      %v616 = vmul.f32 %v580, %v605
      %v617 = vmul.f32 %v581, %v605
      %v618 = vmul.f32 %v582, %v605
      %v619 = vmul.f32 %v583, %v605
      %v620 = vmul.f32 %v584, %v605
      %v621 = vmul.f32 %v585, %v605
      %v622 = vmul.f32 %v586, %v605
      %v623 = vmul.f32 %v587, %v605
      %v624 = vmul.f32 %v588, %v605
      %v625 = vmul.f32 %v589, %v605
      %v626 = vmul.f32 %v590, %v605
      %v627 = vmul.f32 %v591, %v605
      %v628 = vmul.f32 %v592, %v605
      %v629 = vmul.f32 %v593, %v605
      %v630 = vmul.f32 %v594, %v605
      %v631 = vmul.f32 %v595, %v605
      %v632 = vmul.f32 %v596, %v605
      %v633 = vmul.f32 %v597, %v605
      %v634 = vmul.f32 %v598, %v605
      %v635 = vmul.f32 %v599, %v605
      %v636 = vmul.f32 %v600, %v605
      %v637 = vmul.f32 %v601, %v605
      %v638 = vmul.f32 %v602, %v605
      %v639 = vld [vmem:[%s6] sm:$0x1]
      %v641 = vperm.slane %v639, 0
      %v643 = vadd.f32 %v607, %v641
      %v644 = vadd.f32 %v608, %v641
      %v645 = vadd.f32 %v609, %v641
      %v646 = vadd.f32 %v610, %v641
      %v647 = vadd.f32 %v611, %v641
      %v648 = vadd.f32 %v612, %v641
      %v649 = vadd.f32 %v613, %v641
      %v650 = vadd.f32 %v614, %v641
      %v651 = vadd.f32 %v615, %v641
      %v652 = vadd.f32 %v616, %v641
      %v653 = vadd.f32 %v617, %v641
      %v654 = vadd.f32 %v618, %v641
      %v655 = vadd.f32 %v619, %v641
      %v656 = vadd.f32 %v620, %v641
      %v657 = vadd.f32 %v621, %v641
      %v658 = vadd.f32 %v622, %v641
      %v659 = vadd.f32 %v623, %v641
      %v660 = vadd.f32 %v624, %v641
      %v661 = vadd.f32 %v625, %v641
      %v662 = vadd.f32 %v626, %v641
      %v663 = vadd.f32 %v627, %v641
      %v664 = vadd.f32 %v628, %v641
      %v665 = vadd.f32 %v629, %v641
      %v666 = vadd.f32 %v630, %v641
      %v667 = vadd.f32 %v631, %v641
      %v668 = vadd.f32 %v632, %v641
      %v669 = vadd.f32 %v633, %v641
      %v670 = vadd.f32 %v634, %v641
      %v671 = vadd.f32 %v635, %v641
      %v672 = vadd.f32 %v636, %v641
      %v673 = vadd.f32 %v637, %v641
      %v674 = vadd.f32 %v638, %v641
      %v675 = vmax.f32 %v643, 0.0
      %v676 = vmax.f32 %v644, 0.0
      %v677 = vmax.f32 %v645, 0.0
      %v678 = vmax.f32 %v646, 0.0
      %v679 = vmax.f32 %v647, 0.0
      %v680 = vmax.f32 %v648, 0.0
      %v681 = vmax.f32 %v649, 0.0
      %v682 = vmax.f32 %v650, 0.0
      %v683 = vmax.f32 %v651, 0.0
      %v684 = vmax.f32 %v652, 0.0
      %v685 = vmax.f32 %v653, 0.0
      %v686 = vmax.f32 %v654, 0.0
      %v687 = vmax.f32 %v655, 0.0
      %v688 = vmax.f32 %v656, 0.0
      %v689 = vmax.f32 %v657, 0.0
      %v690 = vmax.f32 %v658, 0.0
      %v691 = vmax.f32 %v659, 0.0
      %v692 = vmax.f32 %v660, 0.0
      %v693 = vmax.f32 %v661, 0.0
      %v694 = vmax.f32 %v662, 0.0
      %v695 = vmax.f32 %v663, 0.0
      %v696 = vmax.f32 %v664, 0.0
      %v697 = vmax.f32 %v665, 0.0
      %v698 = vmax.f32 %v666, 0.0
      %v699 = vmax.f32 %v667, 0.0
      %v700 = vmax.f32 %v668, 0.0
      %v701 = vmax.f32 %v669, 0.0
      %v702 = vmax.f32 %v670, 0.0
      %v703 = vmax.f32 %v671, 0.0
      %v704 = vmax.f32 %v672, 0.0
      %v705 = vmax.f32 %v673, 0.0
      %v706 = vmax.f32 %v674, 0.0
      %s707 = scalar_lea.vmem [#allocation2], 24
      %vm708 = vcmask 64512
      %709 = vst.msk [vmem:[%s707 + $0x1] sm:$0xff] %vm708, %v675
      %710 = vst.msk [vmem:[%s707 + $0x9] sm:$0xff] %vm708, %v676
      %711 = vst.msk [vmem:[%s707 + $0x19] sm:$0xff] %vm708, %v677
      %712 = vst.msk [vmem:[%s707 + $0x21] sm:$0xff] %vm708, %v678
      %713 = vst.msk [vmem:[%s707 + $0x31] sm:$0xff] %vm708, %v679
      %714 = vst.msk [vmem:[%s707 + $0x39] sm:$0xff] %vm708, %v680
      %715 = vst.msk [vmem:[%s707 + $0x49] sm:$0xff] %vm708, %v681
      %716 = vst.msk [vmem:[%s707 + $0x51] sm:$0xff] %vm708, %v682
      %717 = vst.msk [vmem:[%s707 + $0x61] sm:$0xff] %vm708, %v683
      %718 = vst.msk [vmem:[%s707 + $0x69] sm:$0xff] %vm708, %v684
      %719 = vst.msk [vmem:[%s707 + $0x79] sm:$0xff] %vm708, %v685
      %720 = vst.msk [vmem:[%s707 + $0x81] sm:$0xff] %vm708, %v686
      %721 = vst.msk [vmem:[%s707 + $0x91] sm:$0xff] %vm708, %v687
      %722 = vst.msk [vmem:[%s707 + $0x99] sm:$0xff] %vm708, %v688
      %723 = vst.msk [vmem:[%s707 + $0xa9] sm:$0xff] %vm708, %v689
      %724 = vst.msk [vmem:[%s707 + $0xb1] sm:$0xff] %vm708, %v690
      %725 = vst.msk [vmem:[%s707 + $0xc1] sm:$0xff] %vm708, %v691
      %726 = vst.msk [vmem:[%s707 + $0xc9] sm:$0xff] %vm708, %v692
      %727 = vst.msk [vmem:[%s707 + $0xd9] sm:$0xff] %vm708, %v693
      %728 = vst.msk [vmem:[%s707 + $0xe1] sm:$0xff] %vm708, %v694
      %729 = vst.msk [vmem:[%s707 + $0xf1] sm:$0xff] %vm708, %v695
      %730 = vst.msk [vmem:[%s707 + $0xf9] sm:$0xff] %vm708, %v696
      %731 = vst.msk [vmem:[%s707 + $0x109] sm:$0xff] %vm708, %v697
      %732 = vst.msk [vmem:[%s707 + $0x111] sm:$0xff] %vm708, %v698
      %733 = vst.msk [vmem:[%s707 + $0x121] sm:$0xff] %vm708, %v699
      %734 = vst.msk [vmem:[%s707 + $0x129] sm:$0xff] %vm708, %v700
      %735 = vst.msk [vmem:[%s707 + $0x139] sm:$0xff] %vm708, %v701
      %736 = vst.msk [vmem:[%s707 + $0x141] sm:$0xff] %vm708, %v702
      %737 = vst.msk [vmem:[%s707 + $0x151] sm:$0xff] %vm708, %v703
      %738 = vst.msk [vmem:[%s707 + $0x159] sm:$0xff] %vm708, %v704
      %739 = vst.msk [vmem:[%s707 + $0x169] sm:$0xff] %vm708, %v705
      %740 = vst.msk [vmem:[%s707 + $0x171] sm:$0xff] %vm708, %v706
      %p741 = scmp.gt.s32.totalorder %s26, 0
      // Predicated region
      $region49: #{double_conv.4} parent=47 // pred_check
        %p742 = pneg %p741
      $region50: #{double_conv.4} parent=47 // pred_check_branch
        %744 = sbr.rel (%p742) target = $region52
      $region51: #{double_conv.4} parent=47 // pred_region
        %v745 = vld [vmem:[%s489] sm:$0xff]
        %v746 = vld [vmem:[%s489 + $0x8] sm:$0xff]
        %v747 = vld [vmem:[%s5] sm:$0x1]
        %v749 = vperm.slane %v747, 0
        %v751 = vmul.f32 %v745, %v749
        %v752 = vmul.f32 %v746, %v749
        %v753 = vld [vmem:[%s6] sm:$0x1]
        %v755 = vperm.slane %v753, 0
        %v757 = vadd.f32 %v751, %v755
        %v758 = vadd.f32 %v752, %v755
        %v759 = vmax.f32 %v757, 0.0
        %v760 = vmax.f32 %v758, 0.0
        %761 = vst.msk [vmem:[#allocation2 + $0x1] sm:$0xff] %vm708, %v759
        %762 = vst.msk [vmem:[#allocation2 + $0x9] sm:$0xff] %vm708, %v760
      $region52: #{double_conv.4} parent=47 // pred_fallthru
        _
      %p763 = scmp.eq.s32.totalorder %s26, 0
      // Predicated region
      $region53: #{double_conv.4} parent=47 // pred_check
        %p764 = pneg %p763
      $region54: #{double_conv.4} parent=47 // pred_check_branch
        %766 = sbr.rel (%p764) target = $region56
      $region55: #{double_conv.4} parent=47 // pred_region
        %767 = vst.msk [vmem:[#allocation2 + $0x1] sm:$0xff] %vm708, 0.0
        %768 = vst.msk [vmem:[#allocation2 + $0x9] sm:$0xff] %vm708, 0.0
      $region56: #{double_conv.4} parent=47 // pred_fallthru
        _
      %p769 = scmp.lt.s32.totalorder %s26, 0
      // Predicated region
      $region57: #{double_conv.4} parent=47 // pred_check
        %p770 = pneg %p769
      $region58: #{double_conv.4} parent=47 // pred_check_branch
        %772 = sbr.rel (%p770) target = $region60
      $region59: #{double_conv.4} parent=47 // pred_region
        %v773 = vld [vmem:[%s506] sm:$0xff]
        %v774 = vld [vmem:[%s506 + $0x8] sm:$0xff]
        %v775 = vld [vmem:[%s5] sm:$0x1]
        %v777 = vperm.slane %v775, 0
        %v779 = vmul.f32 %v773, %v777
        %v780 = vmul.f32 %v774, %v777
        %v781 = vld [vmem:[%s6] sm:$0x1]
        %v783 = vperm.slane %v781, 0
        %v785 = vadd.f32 %v779, %v783
        %v786 = vadd.f32 %v780, %v783
        %v787 = vmax.f32 %v785, 0.0
        %v788 = vmax.f32 %v786, 0.0
        %s789 = scalar_lea.vmem [#allocation2], 408
        %790 = vst.msk [vmem:[%s789 + $0x1] sm:$0xff] %vm708, %v787
        %791 = vst.msk [vmem:[%s789 + $0x9] sm:$0xff] %vm708, %v788
      $region60: #{double_conv.4} parent=47 // pred_fallthru
        _
      // Predicated region
      $region61: #{double_conv.4} parent=47 // pred_check
        %p792 = pneg %p763
      $region62: #{double_conv.4} parent=47 // pred_check_branch
        %794 = sbr.rel (%p792) target = $region64
      $region63: #{double_conv.4} parent=47 // pred_region
        %s795 = scalar_lea.vmem [#allocation2], 408
        %796 = vst.msk [vmem:[%s795 + $0x1] sm:$0xff] %vm708, 0.0
        %797 = vst.msk [vmem:[%s795 + $0x9] sm:$0xff] %vm708, 0.0
      $region64: #{double_conv.4} parent=47 // pred_fallthru
        _
      %v798 = vld [vmem:[#allocation2] sm:$0xff]
      %v799 = vld [vmem:[#allocation2 + $0x8] sm:$0xff]
      %v800 = vld [vmem:[#allocation2 + $0x18] sm:$0xff]
      %v801 = vld [vmem:[#allocation2 + $0x20] sm:$0xff]
      %v802 = vld [vmem:[#allocation2 + $0x30] sm:$0xff]
      %v803 = vld [vmem:[#allocation2 + $0x38] sm:$0xff]
      %v804 = vld [vmem:[#allocation2 + $0x48] sm:$0xff]
      %v805 = vld [vmem:[#allocation2 + $0x50] sm:$0xff]
      %v806 = vld [vmem:[#allocation2 + $0x60] sm:$0xff]
      %v807 = vld [vmem:[#allocation2 + $0x68] sm:$0xff]
      %v808 = vld [vmem:[#allocation2 + $0x78] sm:$0xff]
      %v809 = vld [vmem:[#allocation2 + $0x80] sm:$0xff]
      %v810 = vld [vmem:[#allocation2 + $0x90] sm:$0xff]
      %v811 = vld [vmem:[#allocation2 + $0x98] sm:$0xff]
      %v812 = vld [vmem:[#allocation2 + $0xa8] sm:$0xff]
      %v813 = vld [vmem:[#allocation2 + $0xb0] sm:$0xff]
      %v814 = vld [vmem:[#allocation2 + $0xc0] sm:$0xff]
      %v815 = vld [vmem:[#allocation2 + $0xc8] sm:$0xff]
      %v816 = vld [vmem:[#allocation2 + $0xd8] sm:$0xff]
      %v817 = vld [vmem:[#allocation2 + $0xe0] sm:$0xff]
      %v818 = vld [vmem:[#allocation2 + $0xf0] sm:$0xff]
      %v819 = vld [vmem:[#allocation2 + $0xf8] sm:$0xff]
      %v820 = vld [vmem:[#allocation2 + $0x108] sm:$0xff]
      %v821 = vld [vmem:[#allocation2 + $0x110] sm:$0xff]
      %v822 = vld [vmem:[#allocation2 + $0x120] sm:$0xff]
      %v823 = vld [vmem:[#allocation2 + $0x128] sm:$0xff]
      %v824 = vld [vmem:[#allocation2 + $0x138] sm:$0xff]
      %v825 = vld [vmem:[#allocation2 + $0x140] sm:$0xff]
      %v826 = vld [vmem:[#allocation2 + $0x150] sm:$0xff]
      %v827 = vld [vmem:[#allocation2 + $0x158] sm:$0xff]
      %v828 = vld [vmem:[#allocation2 + $0x168] sm:$0xff]
      %v829 = vld [vmem:[#allocation2 + $0x170] sm:$0xff]
      %830 = vst.msk [vmem:[#allocation3] sm:$0xff] %vm708, %v798
      %831 = vst.msk [vmem:[#allocation3 + $0x8] sm:$0xff] %vm708, %v799
      %832 = vst.msk [vmem:[#allocation3 + $0x10] sm:$0xff] %vm708, %v800
      %833 = vst.msk [vmem:[#allocation3 + $0x18] sm:$0xff] %vm708, %v801
      %834 = vst.msk [vmem:[#allocation3 + $0x20] sm:$0xff] %vm708, %v802
      %835 = vst.msk [vmem:[#allocation3 + $0x28] sm:$0xff] %vm708, %v803
      %836 = vst.msk [vmem:[#allocation3 + $0x30] sm:$0xff] %vm708, %v804
      %837 = vst.msk [vmem:[#allocation3 + $0x38] sm:$0xff] %vm708, %v805
      %838 = vst.msk [vmem:[#allocation3 + $0x40] sm:$0xff] %vm708, %v806
      %839 = vst.msk [vmem:[#allocation3 + $0x48] sm:$0xff] %vm708, %v807
      %840 = vst.msk [vmem:[#allocation3 + $0x50] sm:$0xff] %vm708, %v808
      %841 = vst.msk [vmem:[#allocation3 + $0x58] sm:$0xff] %vm708, %v809
      %842 = vst.msk [vmem:[#allocation3 + $0x60] sm:$0xff] %vm708, %v810
      %843 = vst.msk [vmem:[#allocation3 + $0x68] sm:$0xff] %vm708, %v811
      %844 = vst.msk [vmem:[#allocation3 + $0x70] sm:$0xff] %vm708, %v812
      %845 = vst.msk [vmem:[#allocation3 + $0x78] sm:$0xff] %vm708, %v813
      %846 = vst.msk [vmem:[#allocation3 + $0x80] sm:$0xff] %vm708, %v814
      %847 = vst.msk [vmem:[#allocation3 + $0x88] sm:$0xff] %vm708, %v815
      %848 = vst.msk [vmem:[#allocation3 + $0x90] sm:$0xff] %vm708, %v816
      %849 = vst.msk [vmem:[#allocation3 + $0x98] sm:$0xff] %vm708, %v817
      %850 = vst.msk [vmem:[#allocation3 + $0xa0] sm:$0xff] %vm708, %v818
      %851 = vst.msk [vmem:[#allocation3 + $0xa8] sm:$0xff] %vm708, %v819
      %852 = vst.msk [vmem:[#allocation3 + $0xb0] sm:$0xff] %vm708, %v820
      %853 = vst.msk [vmem:[#allocation3 + $0xb8] sm:$0xff] %vm708, %v821
      %854 = vst.msk [vmem:[#allocation3 + $0xc0] sm:$0xff] %vm708, %v822
      %855 = vst.msk [vmem:[#allocation3 + $0xc8] sm:$0xff] %vm708, %v823
      %856 = vst.msk [vmem:[#allocation3 + $0xd0] sm:$0xff] %vm708, %v824
      %857 = vst.msk [vmem:[#allocation3 + $0xd8] sm:$0xff] %vm708, %v825
      %858 = vst.msk [vmem:[#allocation3 + $0xe0] sm:$0xff] %vm708, %v826
      %859 = vst.msk [vmem:[#allocation3 + $0xe8] sm:$0xff] %vm708, %v827
      %860 = vst.msk [vmem:[#allocation3 + $0xf0] sm:$0xff] %vm708, %v828
      %861 = vst.msk [vmem:[#allocation3 + $0xf8] sm:$0xff] %vm708, %v829
      %v862 = vld [vmem:[#allocation2 + $0x1] sm:$0xff]
      %v863 = vld [vmem:[#allocation2 + $0x9] sm:$0xff]
      %v864 = vld [vmem:[#allocation2 + $0x19] sm:$0xff]
      %v865 = vld [vmem:[#allocation2 + $0x21] sm:$0xff]
      %v866 = vld [vmem:[#allocation2 + $0x31] sm:$0xff]
      %v867 = vld [vmem:[#allocation2 + $0x39] sm:$0xff]
      %v868 = vld [vmem:[#allocation2 + $0x49] sm:$0xff]
      %v869 = vld [vmem:[#allocation2 + $0x51] sm:$0xff]
      %v870 = vld [vmem:[#allocation2 + $0x61] sm:$0xff]
      %v871 = vld [vmem:[#allocation2 + $0x69] sm:$0xff]
      %v872 = vld [vmem:[#allocation2 + $0x79] sm:$0xff]
      %v873 = vld [vmem:[#allocation2 + $0x81] sm:$0xff]
      %v874 = vld [vmem:[#allocation2 + $0x91] sm:$0xff]
      %v875 = vld [vmem:[#allocation2 + $0x99] sm:$0xff]
      %v876 = vld [vmem:[#allocation2 + $0xa9] sm:$0xff]
      %v877 = vld [vmem:[#allocation2 + $0xb1] sm:$0xff]
      %v878 = vld [vmem:[#allocation2 + $0xc1] sm:$0xff]
      %v879 = vld [vmem:[#allocation2 + $0xc9] sm:$0xff]
      %v880 = vld [vmem:[#allocation2 + $0xd9] sm:$0xff]
      %v881 = vld [vmem:[#allocation2 + $0xe1] sm:$0xff]
      %v882 = vld [vmem:[#allocation2 + $0xf1] sm:$0xff]
      %v883 = vld [vmem:[#allocation2 + $0xf9] sm:$0xff]
      %v884 = vld [vmem:[#allocation2 + $0x109] sm:$0xff]
      %v885 = vld [vmem:[#allocation2 + $0x111] sm:$0xff]
      %v886 = vld [vmem:[#allocation2 + $0x121] sm:$0xff]
      %v887 = vld [vmem:[#allocation2 + $0x129] sm:$0xff]
      %v888 = vld [vmem:[#allocation2 + $0x139] sm:$0xff]
      %v889 = vld [vmem:[#allocation2 + $0x141] sm:$0xff]
      %v890 = vld [vmem:[#allocation2 + $0x151] sm:$0xff]
      %v891 = vld [vmem:[#allocation2 + $0x159] sm:$0xff]
      %v892 = vld [vmem:[#allocation2 + $0x169] sm:$0xff]
      %v893 = vld [vmem:[#allocation2 + $0x171] sm:$0xff]
      %926 = vrot.lane.b32.xlu0 %v862, 8
      %v927 = vpop.permute.xlu0 %926
      %928 = vrot.lane.b32.xlu0 %v863, 8
      %v929 = vpop.permute.xlu0 %928
      %930 = vrot.lane.b32.xlu0 %v864, 8
      %v931 = vpop.permute.xlu0 %930
      %932 = vrot.lane.b32.xlu0 %v865, 8
      %v933 = vpop.permute.xlu0 %932
      %934 = vrot.lane.b32.xlu0 %v866, 8
      %v935 = vpop.permute.xlu0 %934
      %936 = vrot.lane.b32.xlu0 %v867, 8
      %v937 = vpop.permute.xlu0 %936
      %938 = vrot.lane.b32.xlu0 %v868, 8
      %v939 = vpop.permute.xlu0 %938
      %940 = vrot.lane.b32.xlu0 %v869, 8
      %v941 = vpop.permute.xlu0 %940
      %942 = vrot.lane.b32.xlu0 %v870, 8
      %v943 = vpop.permute.xlu0 %942
      %944 = vrot.lane.b32.xlu0 %v871, 8
      %v945 = vpop.permute.xlu0 %944
      %946 = vrot.lane.b32.xlu0 %v872, 8
      %v947 = vpop.permute.xlu0 %946
      %948 = vrot.lane.b32.xlu0 %v873, 8
      %v949 = vpop.permute.xlu0 %948
      %950 = vrot.lane.b32.xlu0 %v874, 8
      %v951 = vpop.permute.xlu0 %950
      %952 = vrot.lane.b32.xlu0 %v875, 8
      %v953 = vpop.permute.xlu0 %952
      %954 = vrot.lane.b32.xlu0 %v876, 8
      %v955 = vpop.permute.xlu0 %954
      %956 = vrot.lane.b32.xlu0 %v877, 8
      %v957 = vpop.permute.xlu0 %956
      %958 = vrot.lane.b32.xlu0 %v878, 8
      %v959 = vpop.permute.xlu0 %958
      %960 = vrot.lane.b32.xlu0 %v879, 8
      %v961 = vpop.permute.xlu0 %960
      %962 = vrot.lane.b32.xlu0 %v880, 8
      %v963 = vpop.permute.xlu0 %962
      %964 = vrot.lane.b32.xlu0 %v881, 8
      %v965 = vpop.permute.xlu0 %964
      %966 = vrot.lane.b32.xlu0 %v882, 8
      %v967 = vpop.permute.xlu0 %966
      %968 = vrot.lane.b32.xlu0 %v883, 8
      %v969 = vpop.permute.xlu0 %968
      %970 = vrot.lane.b32.xlu0 %v884, 8
      %v971 = vpop.permute.xlu0 %970
      %972 = vrot.lane.b32.xlu0 %v885, 8
      %v973 = vpop.permute.xlu0 %972
      %974 = vrot.lane.b32.xlu0 %v886, 8
      %v975 = vpop.permute.xlu0 %974
      %976 = vrot.lane.b32.xlu0 %v887, 8
      %v977 = vpop.permute.xlu0 %976
      %978 = vrot.lane.b32.xlu0 %v888, 8
      %v979 = vpop.permute.xlu0 %978
      %980 = vrot.lane.b32.xlu0 %v889, 8
      %v981 = vpop.permute.xlu0 %980
      %982 = vrot.lane.b32.xlu0 %v890, 8
      %v983 = vpop.permute.xlu0 %982
      %984 = vrot.lane.b32.xlu0 %v891, 8
      %v985 = vpop.permute.xlu0 %984
      %986 = vrot.lane.b32.xlu0 %v892, 8
      %v987 = vpop.permute.xlu0 %986
      %988 = vrot.lane.b32.xlu0 %v893, 8
      %v989 = vpop.permute.xlu0 %988
      %vm1022 = vcmask 130112
      %1023 = vst.msk [vmem:[#allocation3] sm:$0xff] %vm1022, %v927
      %1024 = vst.msk [vmem:[#allocation3 + $0x8] sm:$0xff] %vm1022, %v929
      %1025 = vst.msk [vmem:[#allocation3 + $0x10] sm:$0xff] %vm1022, %v931
      %1026 = vst.msk [vmem:[#allocation3 + $0x18] sm:$0xff] %vm1022, %v933
      %1027 = vst.msk [vmem:[#allocation3 + $0x20] sm:$0xff] %vm1022, %v935
      %1028 = vst.msk [vmem:[#allocation3 + $0x28] sm:$0xff] %vm1022, %v937
      %1029 = vst.msk [vmem:[#allocation3 + $0x30] sm:$0xff] %vm1022, %v939
      %1030 = vst.msk [vmem:[#allocation3 + $0x38] sm:$0xff] %vm1022, %v941
      %1031 = vst.msk [vmem:[#allocation3 + $0x40] sm:$0xff] %vm1022, %v943
      %1032 = vst.msk [vmem:[#allocation3 + $0x48] sm:$0xff] %vm1022, %v945
      %1033 = vst.msk [vmem:[#allocation3 + $0x50] sm:$0xff] %vm1022, %v947
      %1034 = vst.msk [vmem:[#allocation3 + $0x58] sm:$0xff] %vm1022, %v949
      %1035 = vst.msk [vmem:[#allocation3 + $0x60] sm:$0xff] %vm1022, %v951
      %1036 = vst.msk [vmem:[#allocation3 + $0x68] sm:$0xff] %vm1022, %v953
      %1037 = vst.msk [vmem:[#allocation3 + $0x70] sm:$0xff] %vm1022, %v955
      %1038 = vst.msk [vmem:[#allocation3 + $0x78] sm:$0xff] %vm1022, %v957
      %1039 = vst.msk [vmem:[#allocation3 + $0x80] sm:$0xff] %vm1022, %v959
      %1040 = vst.msk [vmem:[#allocation3 + $0x88] sm:$0xff] %vm1022, %v961
      %1041 = vst.msk [vmem:[#allocation3 + $0x90] sm:$0xff] %vm1022, %v963
      %1042 = vst.msk [vmem:[#allocation3 + $0x98] sm:$0xff] %vm1022, %v965
      %1043 = vst.msk [vmem:[#allocation3 + $0xa0] sm:$0xff] %vm1022, %v967
      %1044 = vst.msk [vmem:[#allocation3 + $0xa8] sm:$0xff] %vm1022, %v969
      %1045 = vst.msk [vmem:[#allocation3 + $0xb0] sm:$0xff] %vm1022, %v971
      %1046 = vst.msk [vmem:[#allocation3 + $0xb8] sm:$0xff] %vm1022, %v973
      %1047 = vst.msk [vmem:[#allocation3 + $0xc0] sm:$0xff] %vm1022, %v975
      %1048 = vst.msk [vmem:[#allocation3 + $0xc8] sm:$0xff] %vm1022, %v977
      %1049 = vst.msk [vmem:[#allocation3 + $0xd0] sm:$0xff] %vm1022, %v979
      %1050 = vst.msk [vmem:[#allocation3 + $0xd8] sm:$0xff] %vm1022, %v981
      %1051 = vst.msk [vmem:[#allocation3 + $0xe0] sm:$0xff] %vm1022, %v983
      %1052 = vst.msk [vmem:[#allocation3 + $0xe8] sm:$0xff] %vm1022, %v985
      %1053 = vst.msk [vmem:[#allocation3 + $0xf0] sm:$0xff] %vm1022, %v987
      %1054 = vst.msk [vmem:[#allocation3 + $0xf8] sm:$0xff] %vm1022, %v989
      %v1055 = vld [vmem:[#allocation2 + $0x2] sm:$0xff]
      %v1056 = vld [vmem:[#allocation2 + $0xa] sm:$0xff]
      %v1057 = vld [vmem:[#allocation2 + $0x1a] sm:$0xff]
      %v1058 = vld [vmem:[#allocation2 + $0x22] sm:$0xff]
      %v1059 = vld [vmem:[#allocation2 + $0x32] sm:$0xff]
      %v1060 = vld [vmem:[#allocation2 + $0x3a] sm:$0xff]
      %v1061 = vld [vmem:[#allocation2 + $0x4a] sm:$0xff]
      %v1062 = vld [vmem:[#allocation2 + $0x52] sm:$0xff]
      %v1063 = vld [vmem:[#allocation2 + $0x62] sm:$0xff]
      %v1064 = vld [vmem:[#allocation2 + $0x6a] sm:$0xff]
      %v1065 = vld [vmem:[#allocation2 + $0x7a] sm:$0xff]
      %v1066 = vld [vmem:[#allocation2 + $0x82] sm:$0xff]
      %v1067 = vld [vmem:[#allocation2 + $0x92] sm:$0xff]
      %v1068 = vld [vmem:[#allocation2 + $0x9a] sm:$0xff]
      %v1069 = vld [vmem:[#allocation2 + $0xaa] sm:$0xff]
      %v1070 = vld [vmem:[#allocation2 + $0xb2] sm:$0xff]
      %v1071 = vld [vmem:[#allocation2 + $0xc2] sm:$0xff]
      %v1072 = vld [vmem:[#allocation2 + $0xca] sm:$0xff]
      %v1073 = vld [vmem:[#allocation2 + $0xda] sm:$0xff]
      %v1074 = vld [vmem:[#allocation2 + $0xe2] sm:$0xff]
      %v1075 = vld [vmem:[#allocation2 + $0xf2] sm:$0xff]
      %v1076 = vld [vmem:[#allocation2 + $0xfa] sm:$0xff]
      %v1077 = vld [vmem:[#allocation2 + $0x10a] sm:$0xff]
      %v1078 = vld [vmem:[#allocation2 + $0x112] sm:$0xff]
      %v1079 = vld [vmem:[#allocation2 + $0x122] sm:$0xff]
      %v1080 = vld [vmem:[#allocation2 + $0x12a] sm:$0xff]
      %v1081 = vld [vmem:[#allocation2 + $0x13a] sm:$0xff]
      %v1082 = vld [vmem:[#allocation2 + $0x142] sm:$0xff]
      %v1083 = vld [vmem:[#allocation2 + $0x152] sm:$0xff]
      %v1084 = vld [vmem:[#allocation2 + $0x15a] sm:$0xff]
      %v1085 = vld [vmem:[#allocation2 + $0x16a] sm:$0xff]
      %v1086 = vld [vmem:[#allocation2 + $0x172] sm:$0xff]
      %1119 = vrot.lane.b32.xlu0 %v1055, 16
      %v1120 = vpop.permute.xlu0 %1119
      %1121 = vrot.lane.b32.xlu0 %v1056, 16
      %v1122 = vpop.permute.xlu0 %1121
      %1123 = vrot.lane.b32.xlu0 %v1057, 16
      %v1124 = vpop.permute.xlu0 %1123
      %1125 = vrot.lane.b32.xlu0 %v1058, 16
      %v1126 = vpop.permute.xlu0 %1125
      %1127 = vrot.lane.b32.xlu0 %v1059, 16
      %v1128 = vpop.permute.xlu0 %1127
      %1129 = vrot.lane.b32.xlu0 %v1060, 16
      %v1130 = vpop.permute.xlu0 %1129
      %1131 = vrot.lane.b32.xlu0 %v1061, 16
      %v1132 = vpop.permute.xlu0 %1131
      %1133 = vrot.lane.b32.xlu0 %v1062, 16
      %v1134 = vpop.permute.xlu0 %1133
      %1135 = vrot.lane.b32.xlu0 %v1063, 16
      %v1136 = vpop.permute.xlu0 %1135
      %1137 = vrot.lane.b32.xlu0 %v1064, 16
      %v1138 = vpop.permute.xlu0 %1137
      %1139 = vrot.lane.b32.xlu0 %v1065, 16
      %v1140 = vpop.permute.xlu0 %1139
      %1141 = vrot.lane.b32.xlu0 %v1066, 16
      %v1142 = vpop.permute.xlu0 %1141
      %1143 = vrot.lane.b32.xlu0 %v1067, 16
      %v1144 = vpop.permute.xlu0 %1143
      %1145 = vrot.lane.b32.xlu0 %v1068, 16
      %v1146 = vpop.permute.xlu0 %1145
      %1147 = vrot.lane.b32.xlu0 %v1069, 16
      %v1148 = vpop.permute.xlu0 %1147
      %1149 = vrot.lane.b32.xlu0 %v1070, 16
      %v1150 = vpop.permute.xlu0 %1149
      %1151 = vrot.lane.b32.xlu0 %v1071, 16
      %v1152 = vpop.permute.xlu0 %1151
      %1153 = vrot.lane.b32.xlu0 %v1072, 16
      %v1154 = vpop.permute.xlu0 %1153
      %1155 = vrot.lane.b32.xlu0 %v1073, 16
      %v1156 = vpop.permute.xlu0 %1155
      %1157 = vrot.lane.b32.xlu0 %v1074, 16
      %v1158 = vpop.permute.xlu0 %1157
      %1159 = vrot.lane.b32.xlu0 %v1075, 16
      %v1160 = vpop.permute.xlu0 %1159
      %1161 = vrot.lane.b32.xlu0 %v1076, 16
      %v1162 = vpop.permute.xlu0 %1161
      %1163 = vrot.lane.b32.xlu0 %v1077, 16
      %v1164 = vpop.permute.xlu0 %1163
      %1165 = vrot.lane.b32.xlu0 %v1078, 16
      %v1166 = vpop.permute.xlu0 %1165
      %1167 = vrot.lane.b32.xlu0 %v1079, 16
      %v1168 = vpop.permute.xlu0 %1167
      %1169 = vrot.lane.b32.xlu0 %v1080, 16
      %v1170 = vpop.permute.xlu0 %1169
      %1171 = vrot.lane.b32.xlu0 %v1081, 16
      %v1172 = vpop.permute.xlu0 %1171
      %1173 = vrot.lane.b32.xlu0 %v1082, 16
      %v1174 = vpop.permute.xlu0 %1173
      %1175 = vrot.lane.b32.xlu0 %v1083, 16
      %v1176 = vpop.permute.xlu0 %1175
      %1177 = vrot.lane.b32.xlu0 %v1084, 16
      %v1178 = vpop.permute.xlu0 %1177
      %1179 = vrot.lane.b32.xlu0 %v1085, 16
      %v1180 = vpop.permute.xlu0 %1179
      %1181 = vrot.lane.b32.xlu0 %v1086, 16
      %v1182 = vpop.permute.xlu0 %1181
      %vm1215 = vcmask 195712
      %1216 = vst.msk [vmem:[#allocation3] sm:$0xff] %vm1215, %v1120
      %1217 = vst.msk [vmem:[#allocation3 + $0x8] sm:$0xff] %vm1215, %v1122
      %1218 = vst.msk [vmem:[#allocation3 + $0x10] sm:$0xff] %vm1215, %v1124
      %1219 = vst.msk [vmem:[#allocation3 + $0x18] sm:$0xff] %vm1215, %v1126
      %1220 = vst.msk [vmem:[#allocation3 + $0x20] sm:$0xff] %vm1215, %v1128
      %1221 = vst.msk [vmem:[#allocation3 + $0x28] sm:$0xff] %vm1215, %v1130
      %1222 = vst.msk [vmem:[#allocation3 + $0x30] sm:$0xff] %vm1215, %v1132
      %1223 = vst.msk [vmem:[#allocation3 + $0x38] sm:$0xff] %vm1215, %v1134
      %1224 = vst.msk [vmem:[#allocation3 + $0x40] sm:$0xff] %vm1215, %v1136
      %1225 = vst.msk [vmem:[#allocation3 + $0x48] sm:$0xff] %vm1215, %v1138
      %1226 = vst.msk [vmem:[#allocation3 + $0x50] sm:$0xff] %vm1215, %v1140
      %1227 = vst.msk [vmem:[#allocation3 + $0x58] sm:$0xff] %vm1215, %v1142
      %1228 = vst.msk [vmem:[#allocation3 + $0x60] sm:$0xff] %vm1215, %v1144
      %1229 = vst.msk [vmem:[#allocation3 + $0x68] sm:$0xff] %vm1215, %v1146
      %1230 = vst.msk [vmem:[#allocation3 + $0x70] sm:$0xff] %vm1215, %v1148
      %1231 = vst.msk [vmem:[#allocation3 + $0x78] sm:$0xff] %vm1215, %v1150
      %1232 = vst.msk [vmem:[#allocation3 + $0x80] sm:$0xff] %vm1215, %v1152
      %1233 = vst.msk [vmem:[#allocation3 + $0x88] sm:$0xff] %vm1215, %v1154
      %1234 = vst.msk [vmem:[#allocation3 + $0x90] sm:$0xff] %vm1215, %v1156
      %1235 = vst.msk [vmem:[#allocation3 + $0x98] sm:$0xff] %vm1215, %v1158
      %1236 = vst.msk [vmem:[#allocation3 + $0xa0] sm:$0xff] %vm1215, %v1160
      %1237 = vst.msk [vmem:[#allocation3 + $0xa8] sm:$0xff] %vm1215, %v1162
      %1238 = vst.msk [vmem:[#allocation3 + $0xb0] sm:$0xff] %vm1215, %v1164
      %1239 = vst.msk [vmem:[#allocation3 + $0xb8] sm:$0xff] %vm1215, %v1166
      %1240 = vst.msk [vmem:[#allocation3 + $0xc0] sm:$0xff] %vm1215, %v1168
      %1241 = vst.msk [vmem:[#allocation3 + $0xc8] sm:$0xff] %vm1215, %v1170
      %1242 = vst.msk [vmem:[#allocation3 + $0xd0] sm:$0xff] %vm1215, %v1172
      %1243 = vst.msk [vmem:[#allocation3 + $0xd8] sm:$0xff] %vm1215, %v1174
      %1244 = vst.msk [vmem:[#allocation3 + $0xe0] sm:$0xff] %vm1215, %v1176
      %1245 = vst.msk [vmem:[#allocation3 + $0xe8] sm:$0xff] %vm1215, %v1178
      %1246 = vst.msk [vmem:[#allocation3 + $0xf0] sm:$0xff] %vm1215, %v1180
      %1247 = vst.msk [vmem:[#allocation3 + $0xf8] sm:$0xff] %vm1215, %v1182
      %v1248 = vld [vmem:[%s707] sm:$0xff]
      %v1249 = vld [vmem:[%s707 + $0x8] sm:$0xff]
      %v1250 = vld [vmem:[%s707 + $0x18] sm:$0xff]
      %v1251 = vld [vmem:[%s707 + $0x20] sm:$0xff]
      %v1252 = vld [vmem:[%s707 + $0x30] sm:$0xff]
      %v1253 = vld [vmem:[%s707 + $0x38] sm:$0xff]
      %v1254 = vld [vmem:[%s707 + $0x48] sm:$0xff]
      %v1255 = vld [vmem:[%s707 + $0x50] sm:$0xff]
      %v1256 = vld [vmem:[%s707 + $0x60] sm:$0xff]
      %v1257 = vld [vmem:[%s707 + $0x68] sm:$0xff]
      %v1258 = vld [vmem:[%s707 + $0x78] sm:$0xff]
      %v1259 = vld [vmem:[%s707 + $0x80] sm:$0xff]
      %v1260 = vld [vmem:[%s707 + $0x90] sm:$0xff]
      %v1261 = vld [vmem:[%s707 + $0x98] sm:$0xff]
      %v1262 = vld [vmem:[%s707 + $0xa8] sm:$0xff]
      %v1263 = vld [vmem:[%s707 + $0xb0] sm:$0xff]
      %v1264 = vld [vmem:[%s707 + $0xc0] sm:$0xff]
      %v1265 = vld [vmem:[%s707 + $0xc8] sm:$0xff]
      %v1266 = vld [vmem:[%s707 + $0xd8] sm:$0xff]
      %v1267 = vld [vmem:[%s707 + $0xe0] sm:$0xff]
      %v1268 = vld [vmem:[%s707 + $0xf0] sm:$0xff]
      %v1269 = vld [vmem:[%s707 + $0xf8] sm:$0xff]
      %v1270 = vld [vmem:[%s707 + $0x108] sm:$0xff]
      %v1271 = vld [vmem:[%s707 + $0x110] sm:$0xff]
      %v1272 = vld [vmem:[%s707 + $0x120] sm:$0xff]
      %v1273 = vld [vmem:[%s707 + $0x128] sm:$0xff]
      %v1274 = vld [vmem:[%s707 + $0x138] sm:$0xff]
      %v1275 = vld [vmem:[%s707 + $0x140] sm:$0xff]
      %v1276 = vld [vmem:[%s707 + $0x150] sm:$0xff]
      %v1277 = vld [vmem:[%s707 + $0x158] sm:$0xff]
      %v1278 = vld [vmem:[%s707 + $0x168] sm:$0xff]
      %v1279 = vld [vmem:[%s707 + $0x170] sm:$0xff]
      %1312 = vrot.lane.b32.xlu0 %v1248, 24
      %v1313 = vpop.permute.xlu0 %1312
      %1314 = vrot.lane.b32.xlu0 %v1249, 24
      %v1315 = vpop.permute.xlu0 %1314
      %1316 = vrot.lane.b32.xlu0 %v1250, 24
      %v1317 = vpop.permute.xlu0 %1316
      %1318 = vrot.lane.b32.xlu0 %v1251, 24
      %v1319 = vpop.permute.xlu0 %1318
      %1320 = vrot.lane.b32.xlu0 %v1252, 24
      %v1321 = vpop.permute.xlu0 %1320
      %1322 = vrot.lane.b32.xlu0 %v1253, 24
      %v1323 = vpop.permute.xlu0 %1322
      %1324 = vrot.lane.b32.xlu0 %v1254, 24
      %v1325 = vpop.permute.xlu0 %1324
      %1326 = vrot.lane.b32.xlu0 %v1255, 24
      %v1327 = vpop.permute.xlu0 %1326
      %1328 = vrot.lane.b32.xlu0 %v1256, 24
      %v1329 = vpop.permute.xlu0 %1328
      %1330 = vrot.lane.b32.xlu0 %v1257, 24
      %v1331 = vpop.permute.xlu0 %1330
      %1332 = vrot.lane.b32.xlu0 %v1258, 24
      %v1333 = vpop.permute.xlu0 %1332
      %1334 = vrot.lane.b32.xlu0 %v1259, 24
      %v1335 = vpop.permute.xlu0 %1334
      %1336 = vrot.lane.b32.xlu0 %v1260, 24
      %v1337 = vpop.permute.xlu0 %1336
      %1338 = vrot.lane.b32.xlu0 %v1261, 24
      %v1339 = vpop.permute.xlu0 %1338
      %1340 = vrot.lane.b32.xlu0 %v1262, 24
      %v1341 = vpop.permute.xlu0 %1340
      %1342 = vrot.lane.b32.xlu0 %v1263, 24
      %v1343 = vpop.permute.xlu0 %1342
      %1344 = vrot.lane.b32.xlu0 %v1264, 24
      %v1345 = vpop.permute.xlu0 %1344
      %1346 = vrot.lane.b32.xlu0 %v1265, 24
      %v1347 = vpop.permute.xlu0 %1346
      %1348 = vrot.lane.b32.xlu0 %v1266, 24
      %v1349 = vpop.permute.xlu0 %1348
      %1350 = vrot.lane.b32.xlu0 %v1267, 24
      %v1351 = vpop.permute.xlu0 %1350
      %1352 = vrot.lane.b32.xlu0 %v1268, 24
      %v1353 = vpop.permute.xlu0 %1352
      %1354 = vrot.lane.b32.xlu0 %v1269, 24
      %v1355 = vpop.permute.xlu0 %1354
      %1356 = vrot.lane.b32.xlu0 %v1270, 24
      %v1357 = vpop.permute.xlu0 %1356
      %1358 = vrot.lane.b32.xlu0 %v1271, 24
      %v1359 = vpop.permute.xlu0 %1358
      %1360 = vrot.lane.b32.xlu0 %v1272, 24
      %v1361 = vpop.permute.xlu0 %1360
      %1362 = vrot.lane.b32.xlu0 %v1273, 24
      %v1363 = vpop.permute.xlu0 %1362
      %1364 = vrot.lane.b32.xlu0 %v1274, 24
      %v1365 = vpop.permute.xlu0 %1364
      %1366 = vrot.lane.b32.xlu0 %v1275, 24
      %v1367 = vpop.permute.xlu0 %1366
      %1368 = vrot.lane.b32.xlu0 %v1276, 24
      %v1369 = vpop.permute.xlu0 %1368
      %1370 = vrot.lane.b32.xlu0 %v1277, 24
      %v1371 = vpop.permute.xlu0 %1370
      %1372 = vrot.lane.b32.xlu0 %v1278, 24
      %v1373 = vpop.permute.xlu0 %1372
      %1374 = vrot.lane.b32.xlu0 %v1279, 24
      %v1375 = vpop.permute.xlu0 %1374
      %vm1408 = vcmask 261312
      %1409 = vst.msk [vmem:[#allocation3] sm:$0xff] %vm1408, %v1313
      %1410 = vst.msk [vmem:[#allocation3 + $0x8] sm:$0xff] %vm1408, %v1315
      %1411 = vst.msk [vmem:[#allocation3 + $0x10] sm:$0xff] %vm1408, %v1317
      %1412 = vst.msk [vmem:[#allocation3 + $0x18] sm:$0xff] %vm1408, %v1319
      %1413 = vst.msk [vmem:[#allocation3 + $0x20] sm:$0xff] %vm1408, %v1321
      %1414 = vst.msk [vmem:[#allocation3 + $0x28] sm:$0xff] %vm1408, %v1323
      %1415 = vst.msk [vmem:[#allocation3 + $0x30] sm:$0xff] %vm1408, %v1325
      %1416 = vst.msk [vmem:[#allocation3 + $0x38] sm:$0xff] %vm1408, %v1327
      %1417 = vst.msk [vmem:[#allocation3 + $0x40] sm:$0xff] %vm1408, %v1329
      %1418 = vst.msk [vmem:[#allocation3 + $0x48] sm:$0xff] %vm1408, %v1331
      %1419 = vst.msk [vmem:[#allocation3 + $0x50] sm:$0xff] %vm1408, %v1333
      %1420 = vst.msk [vmem:[#allocation3 + $0x58] sm:$0xff] %vm1408, %v1335
      %1421 = vst.msk [vmem:[#allocation3 + $0x60] sm:$0xff] %vm1408, %v1337
      %1422 = vst.msk [vmem:[#allocation3 + $0x68] sm:$0xff] %vm1408, %v1339
      %1423 = vst.msk [vmem:[#allocation3 + $0x70] sm:$0xff] %vm1408, %v1341
      %1424 = vst.msk [vmem:[#allocation3 + $0x78] sm:$0xff] %vm1408, %v1343
      %1425 = vst.msk [vmem:[#allocation3 + $0x80] sm:$0xff] %vm1408, %v1345
      %1426 = vst.msk [vmem:[#allocation3 + $0x88] sm:$0xff] %vm1408, %v1347
      %1427 = vst.msk [vmem:[#allocation3 + $0x90] sm:$0xff] %vm1408, %v1349
      %1428 = vst.msk [vmem:[#allocation3 + $0x98] sm:$0xff] %vm1408, %v1351
      %1429 = vst.msk [vmem:[#allocation3 + $0xa0] sm:$0xff] %vm1408, %v1353
      %1430 = vst.msk [vmem:[#allocation3 + $0xa8] sm:$0xff] %vm1408, %v1355
      %1431 = vst.msk [vmem:[#allocation3 + $0xb0] sm:$0xff] %vm1408, %v1357
      %1432 = vst.msk [vmem:[#allocation3 + $0xb8] sm:$0xff] %vm1408, %v1359
      %1433 = vst.msk [vmem:[#allocation3 + $0xc0] sm:$0xff] %vm1408, %v1361
      %1434 = vst.msk [vmem:[#allocation3 + $0xc8] sm:$0xff] %vm1408, %v1363
      %1435 = vst.msk [vmem:[#allocation3 + $0xd0] sm:$0xff] %vm1408, %v1365
      %1436 = vst.msk [vmem:[#allocation3 + $0xd8] sm:$0xff] %vm1408, %v1367
      %1437 = vst.msk [vmem:[#allocation3 + $0xe0] sm:$0xff] %vm1408, %v1369
      %1438 = vst.msk [vmem:[#allocation3 + $0xe8] sm:$0xff] %vm1408, %v1371
      %1439 = vst.msk [vmem:[#allocation3 + $0xf0] sm:$0xff] %vm1408, %v1373
      %1440 = vst.msk [vmem:[#allocation3 + $0xf8] sm:$0xff] %vm1408, %v1375
      %v1441 = vld [vmem:[%s707 + $0x1] sm:$0xff]
      %v1442 = vld [vmem:[%s707 + $0x9] sm:$0xff]
      %v1443 = vld [vmem:[%s707 + $0x19] sm:$0xff]
      %v1444 = vld [vmem:[%s707 + $0x21] sm:$0xff]
      %v1445 = vld [vmem:[%s707 + $0x31] sm:$0xff]
      %v1446 = vld [vmem:[%s707 + $0x39] sm:$0xff]
      %v1447 = vld [vmem:[%s707 + $0x49] sm:$0xff]
      %v1448 = vld [vmem:[%s707 + $0x51] sm:$0xff]
      %v1449 = vld [vmem:[%s707 + $0x61] sm:$0xff]
      %v1450 = vld [vmem:[%s707 + $0x69] sm:$0xff]
      %v1451 = vld [vmem:[%s707 + $0x79] sm:$0xff]
      %v1452 = vld [vmem:[%s707 + $0x81] sm:$0xff]
      %v1453 = vld [vmem:[%s707 + $0x91] sm:$0xff]
      %v1454 = vld [vmem:[%s707 + $0x99] sm:$0xff]
      %v1455 = vld [vmem:[%s707 + $0xa9] sm:$0xff]
      %v1456 = vld [vmem:[%s707 + $0xb1] sm:$0xff]
      %v1457 = vld [vmem:[%s707 + $0xc1] sm:$0xff]
      %v1458 = vld [vmem:[%s707 + $0xc9] sm:$0xff]
      %v1459 = vld [vmem:[%s707 + $0xd9] sm:$0xff]
      %v1460 = vld [vmem:[%s707 + $0xe1] sm:$0xff]
      %v1461 = vld [vmem:[%s707 + $0xf1] sm:$0xff]
      %v1462 = vld [vmem:[%s707 + $0xf9] sm:$0xff]
      %v1463 = vld [vmem:[%s707 + $0x109] sm:$0xff]
      %v1464 = vld [vmem:[%s707 + $0x111] sm:$0xff]
      %v1465 = vld [vmem:[%s707 + $0x121] sm:$0xff]
      %v1466 = vld [vmem:[%s707 + $0x129] sm:$0xff]
      %v1467 = vld [vmem:[%s707 + $0x139] sm:$0xff]
      %v1468 = vld [vmem:[%s707 + $0x141] sm:$0xff]
      %v1469 = vld [vmem:[%s707 + $0x151] sm:$0xff]
      %v1470 = vld [vmem:[%s707 + $0x159] sm:$0xff]
      %v1471 = vld [vmem:[%s707 + $0x169] sm:$0xff]
      %v1472 = vld [vmem:[%s707 + $0x171] sm:$0xff]
      %1505 = vrot.lane.b32.xlu0 %v1441, 32
      %v1506 = vpop.permute.xlu0 %1505
      %1507 = vrot.lane.b32.xlu0 %v1442, 32
      %v1508 = vpop.permute.xlu0 %1507
      %1509 = vrot.lane.b32.xlu0 %v1443, 32
      %v1510 = vpop.permute.xlu0 %1509
      %1511 = vrot.lane.b32.xlu0 %v1444, 32
      %v1512 = vpop.permute.xlu0 %1511
      %1513 = vrot.lane.b32.xlu0 %v1445, 32
      %v1514 = vpop.permute.xlu0 %1513
      %1515 = vrot.lane.b32.xlu0 %v1446, 32
      %v1516 = vpop.permute.xlu0 %1515
      %1517 = vrot.lane.b32.xlu0 %v1447, 32
      %v1518 = vpop.permute.xlu0 %1517
      %1519 = vrot.lane.b32.xlu0 %v1448, 32
      %v1520 = vpop.permute.xlu0 %1519
      %1521 = vrot.lane.b32.xlu0 %v1449, 32
      %v1522 = vpop.permute.xlu0 %1521
      %1523 = vrot.lane.b32.xlu0 %v1450, 32
      %v1524 = vpop.permute.xlu0 %1523
      %1525 = vrot.lane.b32.xlu0 %v1451, 32
      %v1526 = vpop.permute.xlu0 %1525
      %1527 = vrot.lane.b32.xlu0 %v1452, 32
      %v1528 = vpop.permute.xlu0 %1527
      %1529 = vrot.lane.b32.xlu0 %v1453, 32
      %v1530 = vpop.permute.xlu0 %1529
      %1531 = vrot.lane.b32.xlu0 %v1454, 32
      %v1532 = vpop.permute.xlu0 %1531
      %1533 = vrot.lane.b32.xlu0 %v1455, 32
      %v1534 = vpop.permute.xlu0 %1533
      %1535 = vrot.lane.b32.xlu0 %v1456, 32
      %v1536 = vpop.permute.xlu0 %1535
      %1537 = vrot.lane.b32.xlu0 %v1457, 32
      %v1538 = vpop.permute.xlu0 %1537
      %1539 = vrot.lane.b32.xlu0 %v1458, 32
      %v1540 = vpop.permute.xlu0 %1539
      %1541 = vrot.lane.b32.xlu0 %v1459, 32
      %v1542 = vpop.permute.xlu0 %1541
      %1543 = vrot.lane.b32.xlu0 %v1460, 32
      %v1544 = vpop.permute.xlu0 %1543
      %1545 = vrot.lane.b32.xlu0 %v1461, 32
      %v1546 = vpop.permute.xlu0 %1545
      %1547 = vrot.lane.b32.xlu0 %v1462, 32
      %v1548 = vpop.permute.xlu0 %1547
      %1549 = vrot.lane.b32.xlu0 %v1463, 32
      %v1550 = vpop.permute.xlu0 %1549
      %1551 = vrot.lane.b32.xlu0 %v1464, 32
      %v1552 = vpop.permute.xlu0 %1551
      %1553 = vrot.lane.b32.xlu0 %v1465, 32
      %v1554 = vpop.permute.xlu0 %1553
      %1555 = vrot.lane.b32.xlu0 %v1466, 32
      %v1556 = vpop.permute.xlu0 %1555
      %1557 = vrot.lane.b32.xlu0 %v1467, 32
      %v1558 = vpop.permute.xlu0 %1557
      %1559 = vrot.lane.b32.xlu0 %v1468, 32
      %v1560 = vpop.permute.xlu0 %1559
      %1561 = vrot.lane.b32.xlu0 %v1469, 32
      %v1562 = vpop.permute.xlu0 %1561
      %1563 = vrot.lane.b32.xlu0 %v1470, 32
      %v1564 = vpop.permute.xlu0 %1563
      %1565 = vrot.lane.b32.xlu0 %v1471, 32
      %v1566 = vpop.permute.xlu0 %1565
      %1567 = vrot.lane.b32.xlu0 %v1472, 32
      %v1568 = vpop.permute.xlu0 %1567
      %vm1601 = vcmask 326912
      %1602 = vst.msk [vmem:[#allocation3] sm:$0xff] %vm1601, %v1506
      %1603 = vst.msk [vmem:[#allocation3 + $0x8] sm:$0xff] %vm1601, %v1508
      %1604 = vst.msk [vmem:[#allocation3 + $0x10] sm:$0xff] %vm1601, %v1510
      %1605 = vst.msk [vmem:[#allocation3 + $0x18] sm:$0xff] %vm1601, %v1512
      %1606 = vst.msk [vmem:[#allocation3 + $0x20] sm:$0xff] %vm1601, %v1514
      %1607 = vst.msk [vmem:[#allocation3 + $0x28] sm:$0xff] %vm1601, %v1516
      %1608 = vst.msk [vmem:[#allocation3 + $0x30] sm:$0xff] %vm1601, %v1518
      %1609 = vst.msk [vmem:[#allocation3 + $0x38] sm:$0xff] %vm1601, %v1520
      %1610 = vst.msk [vmem:[#allocation3 + $0x40] sm:$0xff] %vm1601, %v1522
      %1611 = vst.msk [vmem:[#allocation3 + $0x48] sm:$0xff] %vm1601, %v1524
      %1612 = vst.msk [vmem:[#allocation3 + $0x50] sm:$0xff] %vm1601, %v1526
      %1613 = vst.msk [vmem:[#allocation3 + $0x58] sm:$0xff] %vm1601, %v1528
      %1614 = vst.msk [vmem:[#allocation3 + $0x60] sm:$0xff] %vm1601, %v1530
      %1615 = vst.msk [vmem:[#allocation3 + $0x68] sm:$0xff] %vm1601, %v1532
      %1616 = vst.msk [vmem:[#allocation3 + $0x70] sm:$0xff] %vm1601, %v1534
      %1617 = vst.msk [vmem:[#allocation3 + $0x78] sm:$0xff] %vm1601, %v1536
      %1618 = vst.msk [vmem:[#allocation3 + $0x80] sm:$0xff] %vm1601, %v1538
      %1619 = vst.msk [vmem:[#allocation3 + $0x88] sm:$0xff] %vm1601, %v1540
      %1620 = vst.msk [vmem:[#allocation3 + $0x90] sm:$0xff] %vm1601, %v1542
      %1621 = vst.msk [vmem:[#allocation3 + $0x98] sm:$0xff] %vm1601, %v1544
      %1622 = vst.msk [vmem:[#allocation3 + $0xa0] sm:$0xff] %vm1601, %v1546
      %1623 = vst.msk [vmem:[#allocation3 + $0xa8] sm:$0xff] %vm1601, %v1548
      %1624 = vst.msk [vmem:[#allocation3 + $0xb0] sm:$0xff] %vm1601, %v1550
      %1625 = vst.msk [vmem:[#allocation3 + $0xb8] sm:$0xff] %vm1601, %v1552
      %1626 = vst.msk [vmem:[#allocation3 + $0xc0] sm:$0xff] %vm1601, %v1554
      %1627 = vst.msk [vmem:[#allocation3 + $0xc8] sm:$0xff] %vm1601, %v1556
      %1628 = vst.msk [vmem:[#allocation3 + $0xd0] sm:$0xff] %vm1601, %v1558
      %1629 = vst.msk [vmem:[#allocation3 + $0xd8] sm:$0xff] %vm1601, %v1560
      %1630 = vst.msk [vmem:[#allocation3 + $0xe0] sm:$0xff] %vm1601, %v1562
      %1631 = vst.msk [vmem:[#allocation3 + $0xe8] sm:$0xff] %vm1601, %v1564
      %1632 = vst.msk [vmem:[#allocation3 + $0xf0] sm:$0xff] %vm1601, %v1566
      %1633 = vst.msk [vmem:[#allocation3 + $0xf8] sm:$0xff] %vm1601, %v1568
      %v1634 = vld [vmem:[%s707 + $0x2] sm:$0xff]
      %v1635 = vld [vmem:[%s707 + $0xa] sm:$0xff]
      %v1636 = vld [vmem:[%s707 + $0x1a] sm:$0xff]
      %v1637 = vld [vmem:[%s707 + $0x22] sm:$0xff]
      %v1638 = vld [vmem:[%s707 + $0x32] sm:$0xff]
      %v1639 = vld [vmem:[%s707 + $0x3a] sm:$0xff]
      %v1640 = vld [vmem:[%s707 + $0x4a] sm:$0xff]
      %v1641 = vld [vmem:[%s707 + $0x52] sm:$0xff]
      %v1642 = vld [vmem:[%s707 + $0x62] sm:$0xff]
      %v1643 = vld [vmem:[%s707 + $0x6a] sm:$0xff]
      %v1644 = vld [vmem:[%s707 + $0x7a] sm:$0xff]
      %v1645 = vld [vmem:[%s707 + $0x82] sm:$0xff]
      %v1646 = vld [vmem:[%s707 + $0x92] sm:$0xff]
      %v1647 = vld [vmem:[%s707 + $0x9a] sm:$0xff]
      %v1648 = vld [vmem:[%s707 + $0xaa] sm:$0xff]
      %v1649 = vld [vmem:[%s707 + $0xb2] sm:$0xff]
      %v1650 = vld [vmem:[%s707 + $0xc2] sm:$0xff]
      %v1651 = vld [vmem:[%s707 + $0xca] sm:$0xff]
      %v1652 = vld [vmem:[%s707 + $0xda] sm:$0xff]
      %v1653 = vld [vmem:[%s707 + $0xe2] sm:$0xff]
      %v1654 = vld [vmem:[%s707 + $0xf2] sm:$0xff]
      %v1655 = vld [vmem:[%s707 + $0xfa] sm:$0xff]
      %v1656 = vld [vmem:[%s707 + $0x10a] sm:$0xff]
      %v1657 = vld [vmem:[%s707 + $0x112] sm:$0xff]
      %v1658 = vld [vmem:[%s707 + $0x122] sm:$0xff]
      %v1659 = vld [vmem:[%s707 + $0x12a] sm:$0xff]
      %v1660 = vld [vmem:[%s707 + $0x13a] sm:$0xff]
      %v1661 = vld [vmem:[%s707 + $0x142] sm:$0xff]
      %v1662 = vld [vmem:[%s707 + $0x152] sm:$0xff]
      %v1663 = vld [vmem:[%s707 + $0x15a] sm:$0xff]
      %v1664 = vld [vmem:[%s707 + $0x16a] sm:$0xff]
      %v1665 = vld [vmem:[%s707 + $0x172] sm:$0xff]
      %1698 = vrot.lane.b32.xlu0 %v1634, 40
      %v1699 = vpop.permute.xlu0 %1698
      %1700 = vrot.lane.b32.xlu0 %v1635, 40
      %v1701 = vpop.permute.xlu0 %1700
      %1702 = vrot.lane.b32.xlu0 %v1636, 40
      %v1703 = vpop.permute.xlu0 %1702
      %1704 = vrot.lane.b32.xlu0 %v1637, 40
      %v1705 = vpop.permute.xlu0 %1704
      %1706 = vrot.lane.b32.xlu0 %v1638, 40
      %v1707 = vpop.permute.xlu0 %1706
      %1708 = vrot.lane.b32.xlu0 %v1639, 40
      %v1709 = vpop.permute.xlu0 %1708
      %1710 = vrot.lane.b32.xlu0 %v1640, 40
      %v1711 = vpop.permute.xlu0 %1710
      %1712 = vrot.lane.b32.xlu0 %v1641, 40
      %v1713 = vpop.permute.xlu0 %1712
      %1714 = vrot.lane.b32.xlu0 %v1642, 40
      %v1715 = vpop.permute.xlu0 %1714
      %1716 = vrot.lane.b32.xlu0 %v1643, 40
      %v1717 = vpop.permute.xlu0 %1716
      %1718 = vrot.lane.b32.xlu0 %v1644, 40
      %v1719 = vpop.permute.xlu0 %1718
      %1720 = vrot.lane.b32.xlu0 %v1645, 40
      %v1721 = vpop.permute.xlu0 %1720
      %1722 = vrot.lane.b32.xlu0 %v1646, 40
      %v1723 = vpop.permute.xlu0 %1722
      %1724 = vrot.lane.b32.xlu0 %v1647, 40
      %v1725 = vpop.permute.xlu0 %1724
      %1726 = vrot.lane.b32.xlu0 %v1648, 40
      %v1727 = vpop.permute.xlu0 %1726
      %1728 = vrot.lane.b32.xlu0 %v1649, 40
      %v1729 = vpop.permute.xlu0 %1728
      %1730 = vrot.lane.b32.xlu0 %v1650, 40
      %v1731 = vpop.permute.xlu0 %1730
      %1732 = vrot.lane.b32.xlu0 %v1651, 40
      %v1733 = vpop.permute.xlu0 %1732
      %1734 = vrot.lane.b32.xlu0 %v1652, 40
      %v1735 = vpop.permute.xlu0 %1734
      %1736 = vrot.lane.b32.xlu0 %v1653, 40
      %v1737 = vpop.permute.xlu0 %1736
      %1738 = vrot.lane.b32.xlu0 %v1654, 40
      %v1739 = vpop.permute.xlu0 %1738
      %1740 = vrot.lane.b32.xlu0 %v1655, 40
      %v1741 = vpop.permute.xlu0 %1740
      %1742 = vrot.lane.b32.xlu0 %v1656, 40
      %v1743 = vpop.permute.xlu0 %1742
      %1744 = vrot.lane.b32.xlu0 %v1657, 40
      %v1745 = vpop.permute.xlu0 %1744
      %1746 = vrot.lane.b32.xlu0 %v1658, 40
      %v1747 = vpop.permute.xlu0 %1746
      %1748 = vrot.lane.b32.xlu0 %v1659, 40
      %v1749 = vpop.permute.xlu0 %1748
      %1750 = vrot.lane.b32.xlu0 %v1660, 40
      %v1751 = vpop.permute.xlu0 %1750
      %1752 = vrot.lane.b32.xlu0 %v1661, 40
      %v1753 = vpop.permute.xlu0 %1752
      %1754 = vrot.lane.b32.xlu0 %v1662, 40
      %v1755 = vpop.permute.xlu0 %1754
      %1756 = vrot.lane.b32.xlu0 %v1663, 40
      %v1757 = vpop.permute.xlu0 %1756
      %1758 = vrot.lane.b32.xlu0 %v1664, 40
      %v1759 = vpop.permute.xlu0 %1758
      %1760 = vrot.lane.b32.xlu0 %v1665, 40
      %v1761 = vpop.permute.xlu0 %1760
      %vm1794 = vcmask 392512
      %1795 = vst.msk [vmem:[#allocation3] sm:$0xff] %vm1794, %v1699
      %1796 = vst.msk [vmem:[#allocation3 + $0x8] sm:$0xff] %vm1794, %v1701
      %1797 = vst.msk [vmem:[#allocation3 + $0x10] sm:$0xff] %vm1794, %v1703
      %1798 = vst.msk [vmem:[#allocation3 + $0x18] sm:$0xff] %vm1794, %v1705
      %1799 = vst.msk [vmem:[#allocation3 + $0x20] sm:$0xff] %vm1794, %v1707
      %1800 = vst.msk [vmem:[#allocation3 + $0x28] sm:$0xff] %vm1794, %v1709
      %1801 = vst.msk [vmem:[#allocation3 + $0x30] sm:$0xff] %vm1794, %v1711
      %1802 = vst.msk [vmem:[#allocation3 + $0x38] sm:$0xff] %vm1794, %v1713
      %1803 = vst.msk [vmem:[#allocation3 + $0x40] sm:$0xff] %vm1794, %v1715
      %1804 = vst.msk [vmem:[#allocation3 + $0x48] sm:$0xff] %vm1794, %v1717
      %1805 = vst.msk [vmem:[#allocation3 + $0x50] sm:$0xff] %vm1794, %v1719
      %1806 = vst.msk [vmem:[#allocation3 + $0x58] sm:$0xff] %vm1794, %v1721
      %1807 = vst.msk [vmem:[#allocation3 + $0x60] sm:$0xff] %vm1794, %v1723
      %1808 = vst.msk [vmem:[#allocation3 + $0x68] sm:$0xff] %vm1794, %v1725
      %1809 = vst.msk [vmem:[#allocation3 + $0x70] sm:$0xff] %vm1794, %v1727
      %1810 = vst.msk [vmem:[#allocation3 + $0x78] sm:$0xff] %vm1794, %v1729
      %1811 = vst.msk [vmem:[#allocation3 + $0x80] sm:$0xff] %vm1794, %v1731
      %1812 = vst.msk [vmem:[#allocation3 + $0x88] sm:$0xff] %vm1794, %v1733
      %1813 = vst.msk [vmem:[#allocation3 + $0x90] sm:$0xff] %vm1794, %v1735
      %1814 = vst.msk [vmem:[#allocation3 + $0x98] sm:$0xff] %vm1794, %v1737
      %1815 = vst.msk [vmem:[#allocation3 + $0xa0] sm:$0xff] %vm1794, %v1739
      %1816 = vst.msk [vmem:[#allocation3 + $0xa8] sm:$0xff] %vm1794, %v1741
      %1817 = vst.msk [vmem:[#allocation3 + $0xb0] sm:$0xff] %vm1794, %v1743
      %1818 = vst.msk [vmem:[#allocation3 + $0xb8] sm:$0xff] %vm1794, %v1745
      %1819 = vst.msk [vmem:[#allocation3 + $0xc0] sm:$0xff] %vm1794, %v1747
      %1820 = vst.msk [vmem:[#allocation3 + $0xc8] sm:$0xff] %vm1794, %v1749
      %1821 = vst.msk [vmem:[#allocation3 + $0xd0] sm:$0xff] %vm1794, %v1751
      %1822 = vst.msk [vmem:[#allocation3 + $0xd8] sm:$0xff] %vm1794, %v1753
      %1823 = vst.msk [vmem:[#allocation3 + $0xe0] sm:$0xff] %vm1794, %v1755
      %1824 = vst.msk [vmem:[#allocation3 + $0xe8] sm:$0xff] %vm1794, %v1757
      %1825 = vst.msk [vmem:[#allocation3 + $0xf0] sm:$0xff] %vm1794, %v1759
      %1826 = vst.msk [vmem:[#allocation3 + $0xf8] sm:$0xff] %vm1794, %v1761
      %s1827 = scalar_lea.vmem [#allocation2], 48
      %v1828 = vld [vmem:[%s1827] sm:$0xff]
      %v1829 = vld [vmem:[%s1827 + $0x8] sm:$0xff]
      %v1830 = vld [vmem:[%s1827 + $0x18] sm:$0xff]
      %v1831 = vld [vmem:[%s1827 + $0x20] sm:$0xff]
      %v1832 = vld [vmem:[%s1827 + $0x30] sm:$0xff]
      %v1833 = vld [vmem:[%s1827 + $0x38] sm:$0xff]
      %v1834 = vld [vmem:[%s1827 + $0x48] sm:$0xff]
      %v1835 = vld [vmem:[%s1827 + $0x50] sm:$0xff]
      %v1836 = vld [vmem:[%s1827 + $0x60] sm:$0xff]
      %v1837 = vld [vmem:[%s1827 + $0x68] sm:$0xff]
      %v1838 = vld [vmem:[%s1827 + $0x78] sm:$0xff]
      %v1839 = vld [vmem:[%s1827 + $0x80] sm:$0xff]
      %v1840 = vld [vmem:[%s1827 + $0x90] sm:$0xff]
      %v1841 = vld [vmem:[%s1827 + $0x98] sm:$0xff]
      %v1842 = vld [vmem:[%s1827 + $0xa8] sm:$0xff]
      %v1843 = vld [vmem:[%s1827 + $0xb0] sm:$0xff]
      %v1844 = vld [vmem:[%s1827 + $0xc0] sm:$0xff]
      %v1845 = vld [vmem:[%s1827 + $0xc8] sm:$0xff]
      %v1846 = vld [vmem:[%s1827 + $0xd8] sm:$0xff]
      %v1847 = vld [vmem:[%s1827 + $0xe0] sm:$0xff]
      %v1848 = vld [vmem:[%s1827 + $0xf0] sm:$0xff]
      %v1849 = vld [vmem:[%s1827 + $0xf8] sm:$0xff]
      %v1850 = vld [vmem:[%s1827 + $0x108] sm:$0xff]
      %v1851 = vld [vmem:[%s1827 + $0x110] sm:$0xff]
      %v1852 = vld [vmem:[%s1827 + $0x120] sm:$0xff]
      %v1853 = vld [vmem:[%s1827 + $0x128] sm:$0xff]
      %v1854 = vld [vmem:[%s1827 + $0x138] sm:$0xff]
      %v1855 = vld [vmem:[%s1827 + $0x140] sm:$0xff]
      %v1856 = vld [vmem:[%s1827 + $0x150] sm:$0xff]
      %v1857 = vld [vmem:[%s1827 + $0x158] sm:$0xff]
      %v1858 = vld [vmem:[%s1827 + $0x168] sm:$0xff]
      %v1859 = vld [vmem:[%s1827 + $0x170] sm:$0xff]
      %1892 = vrot.lane.b32.xlu0 %v1828, 48
      %v1893 = vpop.permute.xlu0 %1892
      %1894 = vrot.lane.b32.xlu0 %v1829, 48
      %v1895 = vpop.permute.xlu0 %1894
      %1896 = vrot.lane.b32.xlu0 %v1830, 48
      %v1897 = vpop.permute.xlu0 %1896
      %1898 = vrot.lane.b32.xlu0 %v1831, 48
      %v1899 = vpop.permute.xlu0 %1898
      %1900 = vrot.lane.b32.xlu0 %v1832, 48
      %v1901 = vpop.permute.xlu0 %1900
      %1902 = vrot.lane.b32.xlu0 %v1833, 48
      %v1903 = vpop.permute.xlu0 %1902
      %1904 = vrot.lane.b32.xlu0 %v1834, 48
      %v1905 = vpop.permute.xlu0 %1904
      %1906 = vrot.lane.b32.xlu0 %v1835, 48
      %v1907 = vpop.permute.xlu0 %1906
      %1908 = vrot.lane.b32.xlu0 %v1836, 48
      %v1909 = vpop.permute.xlu0 %1908
      %1910 = vrot.lane.b32.xlu0 %v1837, 48
      %v1911 = vpop.permute.xlu0 %1910
      %1912 = vrot.lane.b32.xlu0 %v1838, 48
      %v1913 = vpop.permute.xlu0 %1912
      %1914 = vrot.lane.b32.xlu0 %v1839, 48
      %v1915 = vpop.permute.xlu0 %1914
      %1916 = vrot.lane.b32.xlu0 %v1840, 48
      %v1917 = vpop.permute.xlu0 %1916
      %1918 = vrot.lane.b32.xlu0 %v1841, 48
      %v1919 = vpop.permute.xlu0 %1918
      %1920 = vrot.lane.b32.xlu0 %v1842, 48
      %v1921 = vpop.permute.xlu0 %1920
      %1922 = vrot.lane.b32.xlu0 %v1843, 48
      %v1923 = vpop.permute.xlu0 %1922
      %1924 = vrot.lane.b32.xlu0 %v1844, 48
      %v1925 = vpop.permute.xlu0 %1924
      %1926 = vrot.lane.b32.xlu0 %v1845, 48
      %v1927 = vpop.permute.xlu0 %1926
      %1928 = vrot.lane.b32.xlu0 %v1846, 48
      %v1929 = vpop.permute.xlu0 %1928
      %1930 = vrot.lane.b32.xlu0 %v1847, 48
      %v1931 = vpop.permute.xlu0 %1930
      %1932 = vrot.lane.b32.xlu0 %v1848, 48
      %v1933 = vpop.permute.xlu0 %1932
      %1934 = vrot.lane.b32.xlu0 %v1849, 48
      %v1935 = vpop.permute.xlu0 %1934
      %1936 = vrot.lane.b32.xlu0 %v1850, 48
      %v1937 = vpop.permute.xlu0 %1936
      %1938 = vrot.lane.b32.xlu0 %v1851, 48
      %v1939 = vpop.permute.xlu0 %1938
      %1940 = vrot.lane.b32.xlu0 %v1852, 48
      %v1941 = vpop.permute.xlu0 %1940
      %1942 = vrot.lane.b32.xlu0 %v1853, 48
      %v1943 = vpop.permute.xlu0 %1942
      %1944 = vrot.lane.b32.xlu0 %v1854, 48
      %v1945 = vpop.permute.xlu0 %1944
      %1946 = vrot.lane.b32.xlu0 %v1855, 48
      %v1947 = vpop.permute.xlu0 %1946
      %1948 = vrot.lane.b32.xlu0 %v1856, 48
      %v1949 = vpop.permute.xlu0 %1948
      %1950 = vrot.lane.b32.xlu0 %v1857, 48
      %v1951 = vpop.permute.xlu0 %1950
      %1952 = vrot.lane.b32.xlu0 %v1858, 48
      %v1953 = vpop.permute.xlu0 %1952
      %1954 = vrot.lane.b32.xlu0 %v1859, 48
      %v1955 = vpop.permute.xlu0 %1954
      %vm1988 = vcmask 458112
      %1989 = vst.msk [vmem:[#allocation3] sm:$0xff] %vm1988, %v1893
      %1990 = vst.msk [vmem:[#allocation3 + $0x8] sm:$0xff] %vm1988, %v1895
      %1991 = vst.msk [vmem:[#allocation3 + $0x10] sm:$0xff] %vm1988, %v1897
      %1992 = vst.msk [vmem:[#allocation3 + $0x18] sm:$0xff] %vm1988, %v1899
      %1993 = vst.msk [vmem:[#allocation3 + $0x20] sm:$0xff] %vm1988, %v1901
      %1994 = vst.msk [vmem:[#allocation3 + $0x28] sm:$0xff] %vm1988, %v1903
      %1995 = vst.msk [vmem:[#allocation3 + $0x30] sm:$0xff] %vm1988, %v1905
      %1996 = vst.msk [vmem:[#allocation3 + $0x38] sm:$0xff] %vm1988, %v1907
      %1997 = vst.msk [vmem:[#allocation3 + $0x40] sm:$0xff] %vm1988, %v1909
      %1998 = vst.msk [vmem:[#allocation3 + $0x48] sm:$0xff] %vm1988, %v1911
      %1999 = vst.msk [vmem:[#allocation3 + $0x50] sm:$0xff] %vm1988, %v1913
      %2000 = vst.msk [vmem:[#allocation3 + $0x58] sm:$0xff] %vm1988, %v1915
      %2001 = vst.msk [vmem:[#allocation3 + $0x60] sm:$0xff] %vm1988, %v1917
      %2002 = vst.msk [vmem:[#allocation3 + $0x68] sm:$0xff] %vm1988, %v1919
      %2003 = vst.msk [vmem:[#allocation3 + $0x70] sm:$0xff] %vm1988, %v1921
      %2004 = vst.msk [vmem:[#allocation3 + $0x78] sm:$0xff] %vm1988, %v1923
      %2005 = vst.msk [vmem:[#allocation3 + $0x80] sm:$0xff] %vm1988, %v1925
      %2006 = vst.msk [vmem:[#allocation3 + $0x88] sm:$0xff] %vm1988, %v1927
      %2007 = vst.msk [vmem:[#allocation3 + $0x90] sm:$0xff] %vm1988, %v1929
      %2008 = vst.msk [vmem:[#allocation3 + $0x98] sm:$0xff] %vm1988, %v1931
      %2009 = vst.msk [vmem:[#allocation3 + $0xa0] sm:$0xff] %vm1988, %v1933
      %2010 = vst.msk [vmem:[#allocation3 + $0xa8] sm:$0xff] %vm1988, %v1935
      %2011 = vst.msk [vmem:[#allocation3 + $0xb0] sm:$0xff] %vm1988, %v1937
      %2012 = vst.msk [vmem:[#allocation3 + $0xb8] sm:$0xff] %vm1988, %v1939
      %2013 = vst.msk [vmem:[#allocation3 + $0xc0] sm:$0xff] %vm1988, %v1941
      %2014 = vst.msk [vmem:[#allocation3 + $0xc8] sm:$0xff] %vm1988, %v1943
      %2015 = vst.msk [vmem:[#allocation3 + $0xd0] sm:$0xff] %vm1988, %v1945
      %2016 = vst.msk [vmem:[#allocation3 + $0xd8] sm:$0xff] %vm1988, %v1947
      %2017 = vst.msk [vmem:[#allocation3 + $0xe0] sm:$0xff] %vm1988, %v1949
      %2018 = vst.msk [vmem:[#allocation3 + $0xe8] sm:$0xff] %vm1988, %v1951
      %2019 = vst.msk [vmem:[#allocation3 + $0xf0] sm:$0xff] %vm1988, %v1953
      %2020 = vst.msk [vmem:[#allocation3 + $0xf8] sm:$0xff] %vm1988, %v1955
      %v2021 = vld [vmem:[%s1827 + $0x1] sm:$0xff]
      %v2022 = vld [vmem:[%s1827 + $0x9] sm:$0xff]
      %v2023 = vld [vmem:[%s1827 + $0x19] sm:$0xff]
      %v2024 = vld [vmem:[%s1827 + $0x21] sm:$0xff]
      %v2025 = vld [vmem:[%s1827 + $0x31] sm:$0xff]
      %v2026 = vld [vmem:[%s1827 + $0x39] sm:$0xff]
      %v2027 = vld [vmem:[%s1827 + $0x49] sm:$0xff]
      %v2028 = vld [vmem:[%s1827 + $0x51] sm:$0xff]
      %v2029 = vld [vmem:[%s1827 + $0x61] sm:$0xff]
      %v2030 = vld [vmem:[%s1827 + $0x69] sm:$0xff]
      %v2031 = vld [vmem:[%s1827 + $0x79] sm:$0xff]
      %v2032 = vld [vmem:[%s1827 + $0x81] sm:$0xff]
      %v2033 = vld [vmem:[%s1827 + $0x91] sm:$0xff]
      %v2034 = vld [vmem:[%s1827 + $0x99] sm:$0xff]
      %v2035 = vld [vmem:[%s1827 + $0xa9] sm:$0xff]
      %v2036 = vld [vmem:[%s1827 + $0xb1] sm:$0xff]
      %v2037 = vld [vmem:[%s1827 + $0xc1] sm:$0xff]
      %v2038 = vld [vmem:[%s1827 + $0xc9] sm:$0xff]
      %v2039 = vld [vmem:[%s1827 + $0xd9] sm:$0xff]
      %v2040 = vld [vmem:[%s1827 + $0xe1] sm:$0xff]
      %v2041 = vld [vmem:[%s1827 + $0xf1] sm:$0xff]
      %v2042 = vld [vmem:[%s1827 + $0xf9] sm:$0xff]
      %v2043 = vld [vmem:[%s1827 + $0x109] sm:$0xff]
      %v2044 = vld [vmem:[%s1827 + $0x111] sm:$0xff]
      %v2045 = vld [vmem:[%s1827 + $0x121] sm:$0xff]
      %v2046 = vld [vmem:[%s1827 + $0x129] sm:$0xff]
      %v2047 = vld [vmem:[%s1827 + $0x139] sm:$0xff]
      %v2048 = vld [vmem:[%s1827 + $0x141] sm:$0xff]
      %v2049 = vld [vmem:[%s1827 + $0x151] sm:$0xff]
      %v2050 = vld [vmem:[%s1827 + $0x159] sm:$0xff]
      %v2051 = vld [vmem:[%s1827 + $0x169] sm:$0xff]
      %v2052 = vld [vmem:[%s1827 + $0x171] sm:$0xff]
      %2085 = vrot.lane.b32.xlu0 %v2021, 56
      %v2086 = vpop.permute.xlu0 %2085
      %2087 = vrot.lane.b32.xlu0 %v2022, 56
      %v2088 = vpop.permute.xlu0 %2087
      %2089 = vrot.lane.b32.xlu0 %v2023, 56
      %v2090 = vpop.permute.xlu0 %2089
      %2091 = vrot.lane.b32.xlu0 %v2024, 56
      %v2092 = vpop.permute.xlu0 %2091
      %2093 = vrot.lane.b32.xlu0 %v2025, 56
      %v2094 = vpop.permute.xlu0 %2093
      %2095 = vrot.lane.b32.xlu0 %v2026, 56
      %v2096 = vpop.permute.xlu0 %2095
      %2097 = vrot.lane.b32.xlu0 %v2027, 56
      %v2098 = vpop.permute.xlu0 %2097
      %2099 = vrot.lane.b32.xlu0 %v2028, 56
      %v2100 = vpop.permute.xlu0 %2099
      %2101 = vrot.lane.b32.xlu0 %v2029, 56
      %v2102 = vpop.permute.xlu0 %2101
      %2103 = vrot.lane.b32.xlu0 %v2030, 56
      %v2104 = vpop.permute.xlu0 %2103
      %2105 = vrot.lane.b32.xlu0 %v2031, 56
      %v2106 = vpop.permute.xlu0 %2105
      %2107 = vrot.lane.b32.xlu0 %v2032, 56
      %v2108 = vpop.permute.xlu0 %2107
      %2109 = vrot.lane.b32.xlu0 %v2033, 56
      %v2110 = vpop.permute.xlu0 %2109
      %2111 = vrot.lane.b32.xlu0 %v2034, 56
      %v2112 = vpop.permute.xlu0 %2111
      %2113 = vrot.lane.b32.xlu0 %v2035, 56
      %v2114 = vpop.permute.xlu0 %2113
      %2115 = vrot.lane.b32.xlu0 %v2036, 56
      %v2116 = vpop.permute.xlu0 %2115
      %2117 = vrot.lane.b32.xlu0 %v2037, 56
      %v2118 = vpop.permute.xlu0 %2117
      %2119 = vrot.lane.b32.xlu0 %v2038, 56
      %v2120 = vpop.permute.xlu0 %2119
      %2121 = vrot.lane.b32.xlu0 %v2039, 56
      %v2122 = vpop.permute.xlu0 %2121
      %2123 = vrot.lane.b32.xlu0 %v2040, 56
      %v2124 = vpop.permute.xlu0 %2123
      %2125 = vrot.lane.b32.xlu0 %v2041, 56
      %v2126 = vpop.permute.xlu0 %2125
      %2127 = vrot.lane.b32.xlu0 %v2042, 56
      %v2128 = vpop.permute.xlu0 %2127
      %2129 = vrot.lane.b32.xlu0 %v2043, 56
      %v2130 = vpop.permute.xlu0 %2129
      %2131 = vrot.lane.b32.xlu0 %v2044, 56
      %v2132 = vpop.permute.xlu0 %2131
      %2133 = vrot.lane.b32.xlu0 %v2045, 56
      %v2134 = vpop.permute.xlu0 %2133
      %2135 = vrot.lane.b32.xlu0 %v2046, 56
      %v2136 = vpop.permute.xlu0 %2135
      %2137 = vrot.lane.b32.xlu0 %v2047, 56
      %v2138 = vpop.permute.xlu0 %2137
      %2139 = vrot.lane.b32.xlu0 %v2048, 56
      %v2140 = vpop.permute.xlu0 %2139
      %2141 = vrot.lane.b32.xlu0 %v2049, 56
      %v2142 = vpop.permute.xlu0 %2141
      %2143 = vrot.lane.b32.xlu0 %v2050, 56
      %v2144 = vpop.permute.xlu0 %2143
      %2145 = vrot.lane.b32.xlu0 %v2051, 56
      %v2146 = vpop.permute.xlu0 %2145
      %2147 = vrot.lane.b32.xlu0 %v2052, 56
      %v2148 = vpop.permute.xlu0 %2147
      %vm2181 = vcmask 523712
      %2182 = vst.msk [vmem:[#allocation3] sm:$0xff] %vm2181, %v2086
      %2183 = vst.msk [vmem:[#allocation3 + $0x8] sm:$0xff] %vm2181, %v2088
      %2184 = vst.msk [vmem:[#allocation3 + $0x10] sm:$0xff] %vm2181, %v2090
      %2185 = vst.msk [vmem:[#allocation3 + $0x18] sm:$0xff] %vm2181, %v2092
      %2186 = vst.msk [vmem:[#allocation3 + $0x20] sm:$0xff] %vm2181, %v2094
      %2187 = vst.msk [vmem:[#allocation3 + $0x28] sm:$0xff] %vm2181, %v2096
      %2188 = vst.msk [vmem:[#allocation3 + $0x30] sm:$0xff] %vm2181, %v2098
      %2189 = vst.msk [vmem:[#allocation3 + $0x38] sm:$0xff] %vm2181, %v2100
      %2190 = vst.msk [vmem:[#allocation3 + $0x40] sm:$0xff] %vm2181, %v2102
      %2191 = vst.msk [vmem:[#allocation3 + $0x48] sm:$0xff] %vm2181, %v2104
      %2192 = vst.msk [vmem:[#allocation3 + $0x50] sm:$0xff] %vm2181, %v2106
      %2193 = vst.msk [vmem:[#allocation3 + $0x58] sm:$0xff] %vm2181, %v2108
      %2194 = vst.msk [vmem:[#allocation3 + $0x60] sm:$0xff] %vm2181, %v2110
      %2195 = vst.msk [vmem:[#allocation3 + $0x68] sm:$0xff] %vm2181, %v2112
      %2196 = vst.msk [vmem:[#allocation3 + $0x70] sm:$0xff] %vm2181, %v2114
      %2197 = vst.msk [vmem:[#allocation3 + $0x78] sm:$0xff] %vm2181, %v2116
      %2198 = vst.msk [vmem:[#allocation3 + $0x80] sm:$0xff] %vm2181, %v2118
      %2199 = vst.msk [vmem:[#allocation3 + $0x88] sm:$0xff] %vm2181, %v2120
      %2200 = vst.msk [vmem:[#allocation3 + $0x90] sm:$0xff] %vm2181, %v2122
      %2201 = vst.msk [vmem:[#allocation3 + $0x98] sm:$0xff] %vm2181, %v2124
      %2202 = vst.msk [vmem:[#allocation3 + $0xa0] sm:$0xff] %vm2181, %v2126
      %2203 = vst.msk [vmem:[#allocation3 + $0xa8] sm:$0xff] %vm2181, %v2128
      %2204 = vst.msk [vmem:[#allocation3 + $0xb0] sm:$0xff] %vm2181, %v2130
      %2205 = vst.msk [vmem:[#allocation3 + $0xb8] sm:$0xff] %vm2181, %v2132
      %2206 = vst.msk [vmem:[#allocation3 + $0xc0] sm:$0xff] %vm2181, %v2134
      %2207 = vst.msk [vmem:[#allocation3 + $0xc8] sm:$0xff] %vm2181, %v2136
      %2208 = vst.msk [vmem:[#allocation3 + $0xd0] sm:$0xff] %vm2181, %v2138
      %2209 = vst.msk [vmem:[#allocation3 + $0xd8] sm:$0xff] %vm2181, %v2140
      %2210 = vst.msk [vmem:[#allocation3 + $0xe0] sm:$0xff] %vm2181, %v2142
      %2211 = vst.msk [vmem:[#allocation3 + $0xe8] sm:$0xff] %vm2181, %v2144
      %2212 = vst.msk [vmem:[#allocation3 + $0xf0] sm:$0xff] %vm2181, %v2146
      %2213 = vst.msk [vmem:[#allocation3 + $0xf8] sm:$0xff] %vm2181, %v2148
      %v2214 = vld [vmem:[%s1827 + $0x2] sm:$0xff]
      %v2215 = vld [vmem:[%s1827 + $0xa] sm:$0xff]
      %v2216 = vld [vmem:[%s1827 + $0x1a] sm:$0xff]
      %v2217 = vld [vmem:[%s1827 + $0x22] sm:$0xff]
      %v2218 = vld [vmem:[%s1827 + $0x32] sm:$0xff]
      %v2219 = vld [vmem:[%s1827 + $0x3a] sm:$0xff]
      %v2220 = vld [vmem:[%s1827 + $0x4a] sm:$0xff]
      %v2221 = vld [vmem:[%s1827 + $0x52] sm:$0xff]
      %v2222 = vld [vmem:[%s1827 + $0x62] sm:$0xff]
      %v2223 = vld [vmem:[%s1827 + $0x6a] sm:$0xff]
      %v2224 = vld [vmem:[%s1827 + $0x7a] sm:$0xff]
      %v2225 = vld [vmem:[%s1827 + $0x82] sm:$0xff]
      %v2226 = vld [vmem:[%s1827 + $0x92] sm:$0xff]
      %v2227 = vld [vmem:[%s1827 + $0x9a] sm:$0xff]
      %v2228 = vld [vmem:[%s1827 + $0xaa] sm:$0xff]
      %v2229 = vld [vmem:[%s1827 + $0xb2] sm:$0xff]
      %v2230 = vld [vmem:[%s1827 + $0xc2] sm:$0xff]
      %v2231 = vld [vmem:[%s1827 + $0xca] sm:$0xff]
      %v2232 = vld [vmem:[%s1827 + $0xda] sm:$0xff]
      %v2233 = vld [vmem:[%s1827 + $0xe2] sm:$0xff]
      %v2234 = vld [vmem:[%s1827 + $0xf2] sm:$0xff]
      %v2235 = vld [vmem:[%s1827 + $0xfa] sm:$0xff]
      %v2236 = vld [vmem:[%s1827 + $0x10a] sm:$0xff]
      %v2237 = vld [vmem:[%s1827 + $0x112] sm:$0xff]
      %v2238 = vld [vmem:[%s1827 + $0x122] sm:$0xff]
      %v2239 = vld [vmem:[%s1827 + $0x12a] sm:$0xff]
      %v2240 = vld [vmem:[%s1827 + $0x13a] sm:$0xff]
      %v2241 = vld [vmem:[%s1827 + $0x142] sm:$0xff]
      %v2242 = vld [vmem:[%s1827 + $0x152] sm:$0xff]
      %v2243 = vld [vmem:[%s1827 + $0x15a] sm:$0xff]
      %v2244 = vld [vmem:[%s1827 + $0x16a] sm:$0xff]
      %v2245 = vld [vmem:[%s1827 + $0x172] sm:$0xff]
      %2278 = vrot.lane.b32.xlu0 %v2214, 64
      %v2279 = vpop.permute.xlu0 %2278
      %2280 = vrot.lane.b32.xlu0 %v2215, 64
      %v2281 = vpop.permute.xlu0 %2280
      %2282 = vrot.lane.b32.xlu0 %v2216, 64
      %v2283 = vpop.permute.xlu0 %2282
      %2284 = vrot.lane.b32.xlu0 %v2217, 64
      %v2285 = vpop.permute.xlu0 %2284
      %2286 = vrot.lane.b32.xlu0 %v2218, 64
      %v2287 = vpop.permute.xlu0 %2286
      %2288 = vrot.lane.b32.xlu0 %v2219, 64
      %v2289 = vpop.permute.xlu0 %2288
      %2290 = vrot.lane.b32.xlu0 %v2220, 64
      %v2291 = vpop.permute.xlu0 %2290
      %2292 = vrot.lane.b32.xlu0 %v2221, 64
      %v2293 = vpop.permute.xlu0 %2292
      %2294 = vrot.lane.b32.xlu0 %v2222, 64
      %v2295 = vpop.permute.xlu0 %2294
      %2296 = vrot.lane.b32.xlu0 %v2223, 64
      %v2297 = vpop.permute.xlu0 %2296
      %2298 = vrot.lane.b32.xlu0 %v2224, 64
      %v2299 = vpop.permute.xlu0 %2298
      %2300 = vrot.lane.b32.xlu0 %v2225, 64
      %v2301 = vpop.permute.xlu0 %2300
      %2302 = vrot.lane.b32.xlu0 %v2226, 64
      %v2303 = vpop.permute.xlu0 %2302
      %2304 = vrot.lane.b32.xlu0 %v2227, 64
      %v2305 = vpop.permute.xlu0 %2304
      %2306 = vrot.lane.b32.xlu0 %v2228, 64
      %v2307 = vpop.permute.xlu0 %2306
      %2308 = vrot.lane.b32.xlu0 %v2229, 64
      %v2309 = vpop.permute.xlu0 %2308
      %2310 = vrot.lane.b32.xlu0 %v2230, 64
      %v2311 = vpop.permute.xlu0 %2310
      %2312 = vrot.lane.b32.xlu0 %v2231, 64
      %v2313 = vpop.permute.xlu0 %2312
      %2314 = vrot.lane.b32.xlu0 %v2232, 64
      %v2315 = vpop.permute.xlu0 %2314
      %2316 = vrot.lane.b32.xlu0 %v2233, 64
      %v2317 = vpop.permute.xlu0 %2316
      %2318 = vrot.lane.b32.xlu0 %v2234, 64
      %v2319 = vpop.permute.xlu0 %2318
      %2320 = vrot.lane.b32.xlu0 %v2235, 64
      %v2321 = vpop.permute.xlu0 %2320
      %2322 = vrot.lane.b32.xlu0 %v2236, 64
      %v2323 = vpop.permute.xlu0 %2322
      %2324 = vrot.lane.b32.xlu0 %v2237, 64
      %v2325 = vpop.permute.xlu0 %2324
      %2326 = vrot.lane.b32.xlu0 %v2238, 64
      %v2327 = vpop.permute.xlu0 %2326
      %2328 = vrot.lane.b32.xlu0 %v2239, 64
      %v2329 = vpop.permute.xlu0 %2328
      %2330 = vrot.lane.b32.xlu0 %v2240, 64
      %v2331 = vpop.permute.xlu0 %2330
      %2332 = vrot.lane.b32.xlu0 %v2241, 64
      %v2333 = vpop.permute.xlu0 %2332
      %2334 = vrot.lane.b32.xlu0 %v2242, 64
      %v2335 = vpop.permute.xlu0 %2334
      %2336 = vrot.lane.b32.xlu0 %v2243, 64
      %v2337 = vpop.permute.xlu0 %2336
      %2338 = vrot.lane.b32.xlu0 %v2244, 64
      %v2339 = vpop.permute.xlu0 %2338
      %2340 = vrot.lane.b32.xlu0 %v2245, 64
      %v2341 = vpop.permute.xlu0 %2340
      %vm2374 = vcmask 589312
      %2375 = vst.msk [vmem:[#allocation3] sm:$0xff] %vm2374, %v2279
      %2376 = vst.msk [vmem:[#allocation3 + $0x8] sm:$0xff] %vm2374, %v2281
      %2377 = vst.msk [vmem:[#allocation3 + $0x10] sm:$0xff] %vm2374, %v2283
      %2378 = vst.msk [vmem:[#allocation3 + $0x18] sm:$0xff] %vm2374, %v2285
      %2379 = vst.msk [vmem:[#allocation3 + $0x20] sm:$0xff] %vm2374, %v2287
      %2380 = vst.msk [vmem:[#allocation3 + $0x28] sm:$0xff] %vm2374, %v2289
      %2381 = vst.msk [vmem:[#allocation3 + $0x30] sm:$0xff] %vm2374, %v2291
      %2382 = vst.msk [vmem:[#allocation3 + $0x38] sm:$0xff] %vm2374, %v2293
      %2383 = vst.msk [vmem:[#allocation3 + $0x40] sm:$0xff] %vm2374, %v2295
      %2384 = vst.msk [vmem:[#allocation3 + $0x48] sm:$0xff] %vm2374, %v2297
      %2385 = vst.msk [vmem:[#allocation3 + $0x50] sm:$0xff] %vm2374, %v2299
      %2386 = vst.msk [vmem:[#allocation3 + $0x58] sm:$0xff] %vm2374, %v2301
      %2387 = vst.msk [vmem:[#allocation3 + $0x60] sm:$0xff] %vm2374, %v2303
      %2388 = vst.msk [vmem:[#allocation3 + $0x68] sm:$0xff] %vm2374, %v2305
      %2389 = vst.msk [vmem:[#allocation3 + $0x70] sm:$0xff] %vm2374, %v2307
      %2390 = vst.msk [vmem:[#allocation3 + $0x78] sm:$0xff] %vm2374, %v2309
      %2391 = vst.msk [vmem:[#allocation3 + $0x80] sm:$0xff] %vm2374, %v2311
      %2392 = vst.msk [vmem:[#allocation3 + $0x88] sm:$0xff] %vm2374, %v2313
      %2393 = vst.msk [vmem:[#allocation3 + $0x90] sm:$0xff] %vm2374, %v2315
      %2394 = vst.msk [vmem:[#allocation3 + $0x98] sm:$0xff] %vm2374, %v2317
      %2395 = vst.msk [vmem:[#allocation3 + $0xa0] sm:$0xff] %vm2374, %v2319
      %2396 = vst.msk [vmem:[#allocation3 + $0xa8] sm:$0xff] %vm2374, %v2321
      %2397 = vst.msk [vmem:[#allocation3 + $0xb0] sm:$0xff] %vm2374, %v2323
      %2398 = vst.msk [vmem:[#allocation3 + $0xb8] sm:$0xff] %vm2374, %v2325
      %2399 = vst.msk [vmem:[#allocation3 + $0xc0] sm:$0xff] %vm2374, %v2327
      %2400 = vst.msk [vmem:[#allocation3 + $0xc8] sm:$0xff] %vm2374, %v2329
      %2401 = vst.msk [vmem:[#allocation3 + $0xd0] sm:$0xff] %vm2374, %v2331
      %2402 = vst.msk [vmem:[#allocation3 + $0xd8] sm:$0xff] %vm2374, %v2333
      %2403 = vst.msk [vmem:[#allocation3 + $0xe0] sm:$0xff] %vm2374, %v2335
      %2404 = vst.msk [vmem:[#allocation3 + $0xe8] sm:$0xff] %vm2374, %v2337
      %2405 = vst.msk [vmem:[#allocation3 + $0xf0] sm:$0xff] %vm2374, %v2339
      %2406 = vst.msk [vmem:[#allocation3 + $0xf8] sm:$0xff] %vm2374, %v2341
      %v2407 = vld [vmem:[#allocation3] sm:$0xff]
      %v2408 = vld [vmem:[#allocation3 + $0x8] sm:$0xff]
      %v2409 = vld [vmem:[#allocation3 + $0x10] sm:$0xff]
      %v2410 = vld [vmem:[#allocation3 + $0x18] sm:$0xff]
      %v2411 = vld [vmem:[#allocation3 + $0x20] sm:$0xff]
      %v2412 = vld [vmem:[#allocation3 + $0x28] sm:$0xff]
      %v2413 = vld [vmem:[#allocation3 + $0x30] sm:$0xff]
      %v2414 = vld [vmem:[#allocation3 + $0x38] sm:$0xff]
      %v2415 = vld [vmem:[#allocation3 + $0x40] sm:$0xff]
      %v2416 = vld [vmem:[#allocation3 + $0x48] sm:$0xff]
      %v2417 = vld [vmem:[#allocation3 + $0x50] sm:$0xff]
      %v2418 = vld [vmem:[#allocation3 + $0x58] sm:$0xff]
      %v2419 = vld [vmem:[#allocation3 + $0x60] sm:$0xff]
      %v2420 = vld [vmem:[#allocation3 + $0x68] sm:$0xff]
      %v2421 = vld [vmem:[#allocation3 + $0x70] sm:$0xff]
      %v2422 = vld [vmem:[#allocation3 + $0x78] sm:$0xff]
      %v2423 = vld [vmem:[#allocation3 + $0x80] sm:$0xff]
      %v2424 = vld [vmem:[#allocation3 + $0x88] sm:$0xff]
      %v2425 = vld [vmem:[#allocation3 + $0x90] sm:$0xff]
      %v2426 = vld [vmem:[#allocation3 + $0x98] sm:$0xff]
      %v2427 = vld [vmem:[#allocation3 + $0xa0] sm:$0xff]
      %v2428 = vld [vmem:[#allocation3 + $0xa8] sm:$0xff]
      %v2429 = vld [vmem:[#allocation3 + $0xb0] sm:$0xff]
      %v2430 = vld [vmem:[#allocation3 + $0xb8] sm:$0xff]
      %v2431 = vld [vmem:[#allocation3 + $0xc0] sm:$0xff]
      %v2432 = vld [vmem:[#allocation3 + $0xc8] sm:$0xff]
      %v2433 = vld [vmem:[#allocation3 + $0xd0] sm:$0xff]
      %v2434 = vld [vmem:[#allocation3 + $0xd8] sm:$0xff]
      %v2435 = vld [vmem:[#allocation3 + $0xe0] sm:$0xff]
      %v2436 = vld [vmem:[#allocation3 + $0xe8] sm:$0xff]
      %v2437 = vld [vmem:[#allocation3 + $0xf0] sm:$0xff]
      %v2438 = vld [vmem:[#allocation3 + $0xf8] sm:$0xff]
      %v2439 = vld [vmem:[%s3] sm:$0xff]
      %v2440 = vld [vmem:[%s3 + $0x8] sm:$0xff]
      %v2441 = vld [vmem:[%s3 + $0x10] sm:$0xff]
      %v2442 = vld [vmem:[%s3 + $0x18] sm:$0xff]
      %v2443 = vld [vmem:[%s3 + $0x20] sm:$0xff]
      %v2444 = vld [vmem:[%s3 + $0x28] sm:$0xff]
      %v2445 = vld [vmem:[%s3 + $0x30] sm:$0xff]
      %v2446 = vld [vmem:[%s3 + $0x38] sm:$0xff]
      %v2447 = vld [vmem:[%s3 + $0x40] sm:$0xff]
      %v2448 = vld [vmem:[%s4] sm:$0x1]
      %v2450 = vperm.slane %v2448, 0
      %vm2452 = vcmask 588800
      %v2454 = vsel %vm2452, %v2407, 0
      %v2457 = vsel %vm2452, %v2408, 0
      %v2460 = vsel %vm2452, %v2409, 0
      %v2463 = vsel %vm2452, %v2410, 0
      %v2466 = vsel %vm2452, %v2411, 0
      %v2469 = vsel %vm2452, %v2412, 0
      %v2472 = vsel %vm2452, %v2413, 0
      %v2475 = vsel %vm2452, %v2414, 0
      %v2478 = vsel %vm2452, %v2415, 0
      %v2481 = vsel %vm2452, %v2416, 0
      %v2484 = vsel %vm2452, %v2417, 0
      %v2487 = vsel %vm2452, %v2418, 0
      %v2490 = vsel %vm2452, %v2419, 0
      %v2493 = vsel %vm2452, %v2420, 0
      %v2496 = vsel %vm2452, %v2421, 0
      %v2499 = vsel %vm2452, %v2422, 0
      %v2502 = vsel %vm2452, %v2423, 0
      %v2505 = vsel %vm2452, %v2424, 0
      %v2508 = vsel %vm2452, %v2425, 0
      %v2511 = vsel %vm2452, %v2426, 0
      %v2514 = vsel %vm2452, %v2427, 0
      %v2517 = vsel %vm2452, %v2428, 0
      %v2520 = vsel %vm2452, %v2429, 0
      %v2523 = vsel %vm2452, %v2430, 0
      %v2526 = vsel %vm2452, %v2431, 0
      %v2529 = vsel %vm2452, %v2432, 0
      %v2532 = vsel %vm2452, %v2433, 0
      %v2535 = vsel %vm2452, %v2434, 0
      %v2538 = vsel %vm2452, %v2435, 0
      %v2541 = vsel %vm2452, %v2436, 0
      %v2544 = vsel %vm2452, %v2437, 0
      %v2547 = vsel %vm2452, %v2438, 0
      %2549 = vmatpush.msra.mxu0 0.0
      %2550 = vmatpush.msra.mxu0 0.0
      %2551 = vmatpush.msra.mxu0 0.0
      %2552 = vmatpush.msra.mxu0 0.0
      %2553 = vmatpush.msra.mxu0 0.0
      %2554 = vmatpush.msra.mxu0 0.0
      %2555 = vmatpush.msra.mxu0 0.0
      %2556 = vmatpush.msra.mxu0 %v2447
      %2557 = vmatpush.msra.mxu0 %v2446
      %2558 = vmatpush.msra.mxu0 %v2445
      %2559 = vmatpush.msra.mxu0 %v2444
      %2560 = vmatpush.msra.mxu0 %v2443
      %2561 = vmatpush.msra.mxu0 %v2442
      %2562 = vmatpush.msra.mxu0 %v2441
      %2563 = vmatpush.msra.mxu0 %v2440
      %2564 = vmatpush.msra.mxu0 %v2439
      %2565 = vmatmul.f32.gmra.mxu0 %v2454
      %v2566 = vpop.f32.mrf.mxu0
      %v2567 = vadd.f32 %v2450, %v2566
      %2568 = vmatmul.f32.gmra.mxu0 %v2457
      %v2569 = vpop.f32.mrf.mxu0
      %v2570 = vadd.f32 %v2450, %v2569
      %2571 = vmatmul.f32.gmra.mxu0 %v2460
      %v2572 = vpop.f32.mrf.mxu0
      %v2573 = vadd.f32 %v2450, %v2572
      %2574 = vmatmul.f32.gmra.mxu0 %v2463
      %v2575 = vpop.f32.mrf.mxu0
      %v2576 = vadd.f32 %v2450, %v2575
      %2577 = vmatmul.f32.gmra.mxu0 %v2466
      %v2578 = vpop.f32.mrf.mxu0
      %v2579 = vadd.f32 %v2450, %v2578
      %2580 = vmatmul.f32.gmra.mxu0 %v2469
      %v2581 = vpop.f32.mrf.mxu0
      %v2582 = vadd.f32 %v2450, %v2581
      %2583 = vmatmul.f32.gmra.mxu0 %v2472
      %v2584 = vpop.f32.mrf.mxu0
      %v2585 = vadd.f32 %v2450, %v2584
      %2586 = vmatmul.f32.gmra.mxu0 %v2475
      %v2587 = vpop.f32.mrf.mxu0
      %v2588 = vadd.f32 %v2450, %v2587
      %2589 = vmatmul.f32.gmra.mxu0 %v2478
      %v2590 = vpop.f32.mrf.mxu0
      %v2591 = vadd.f32 %v2450, %v2590
      %2592 = vmatmul.f32.gmra.mxu0 %v2481
      %v2593 = vpop.f32.mrf.mxu0
      %v2594 = vadd.f32 %v2450, %v2593
      %2595 = vmatmul.f32.gmra.mxu0 %v2484
      %v2596 = vpop.f32.mrf.mxu0
      %v2597 = vadd.f32 %v2450, %v2596
      %2598 = vmatmul.f32.gmra.mxu0 %v2487
      %v2599 = vpop.f32.mrf.mxu0
      %v2600 = vadd.f32 %v2450, %v2599
      %2601 = vmatmul.f32.gmra.mxu0 %v2490
      %v2602 = vpop.f32.mrf.mxu0
      %v2603 = vadd.f32 %v2450, %v2602
      %2604 = vmatmul.f32.gmra.mxu0 %v2493
      %v2605 = vpop.f32.mrf.mxu0
      %v2606 = vadd.f32 %v2450, %v2605
      %2607 = vmatmul.f32.gmra.mxu0 %v2496
      %v2608 = vpop.f32.mrf.mxu0
      %v2609 = vadd.f32 %v2450, %v2608
      %2610 = vmatmul.f32.gmra.mxu0 %v2499
      %v2611 = vpop.f32.mrf.mxu0
      %v2612 = vadd.f32 %v2450, %v2611
      %2613 = vmatmul.f32.gmra.mxu0 %v2502
      %v2614 = vpop.f32.mrf.mxu0
      %v2615 = vadd.f32 %v2450, %v2614
      %2616 = vmatmul.f32.gmra.mxu0 %v2505
      %v2617 = vpop.f32.mrf.mxu0
      %v2618 = vadd.f32 %v2450, %v2617
      %2619 = vmatmul.f32.gmra.mxu0 %v2508
      %v2620 = vpop.f32.mrf.mxu0
      %v2621 = vadd.f32 %v2450, %v2620
      %2622 = vmatmul.f32.gmra.mxu0 %v2511
      %v2623 = vpop.f32.mrf.mxu0
      %v2624 = vadd.f32 %v2450, %v2623
      %2625 = vmatmul.f32.gmra.mxu0 %v2514
      %v2626 = vpop.f32.mrf.mxu0
      %v2627 = vadd.f32 %v2450, %v2626
      %2628 = vmatmul.f32.gmra.mxu0 %v2517
      %v2629 = vpop.f32.mrf.mxu0
      %v2630 = vadd.f32 %v2450, %v2629
      %2631 = vmatmul.f32.gmra.mxu0 %v2520
      %v2632 = vpop.f32.mrf.mxu0
      %v2633 = vadd.f32 %v2450, %v2632
      %2634 = vmatmul.f32.gmra.mxu0 %v2523
      %v2635 = vpop.f32.mrf.mxu0
      %v2636 = vadd.f32 %v2450, %v2635
      %2637 = vmatmul.f32.gmra.mxu0 %v2526
      %v2638 = vpop.f32.mrf.mxu0
      %v2639 = vadd.f32 %v2450, %v2638
      %2640 = vmatmul.f32.gmra.mxu0 %v2529
      %v2641 = vpop.f32.mrf.mxu0
      %v2642 = vadd.f32 %v2450, %v2641
      %2643 = vmatmul.f32.gmra.mxu0 %v2532
      %v2644 = vpop.f32.mrf.mxu0
      %v2645 = vadd.f32 %v2450, %v2644
      %2646 = vmatmul.f32.gmra.mxu0 %v2535
      %v2647 = vpop.f32.mrf.mxu0
      %v2648 = vadd.f32 %v2450, %v2647
      %2649 = vmatmul.f32.gmra.mxu0 %v2538
      %v2650 = vpop.f32.mrf.mxu0
      %v2651 = vadd.f32 %v2450, %v2650
      %2652 = vmatmul.f32.gmra.mxu0 %v2541
      %v2653 = vpop.f32.mrf.mxu0
      %v2654 = vadd.f32 %v2450, %v2653
      %2655 = vmatmul.f32.gmra.mxu0 %v2544
      %v2656 = vpop.f32.mrf.mxu0
      %v2657 = vadd.f32 %v2450, %v2656
      %2658 = vmatmul.f32.gmra.mxu0 %v2547
      %v2659 = vpop.f32.mrf.mxu0
      %v2660 = vadd.f32 %v2450, %v2659
      %2661 = vdwg.mxu0
      %2662 = vst.msk [vmem:[%s520] sm:$0xff] %vm708, %v2567
      %2663 = vst.msk [vmem:[%s520 + $0x8] sm:$0xff] %vm708, %v2570
      %2664 = vst.msk [vmem:[%s520 + $0x10] sm:$0xff] %vm708, %v2573
      %2665 = vst.msk [vmem:[%s520 + $0x18] sm:$0xff] %vm708, %v2576
      %2666 = vst.msk [vmem:[%s520 + $0x20] sm:$0xff] %vm708, %v2579
      %2667 = vst.msk [vmem:[%s520 + $0x28] sm:$0xff] %vm708, %v2582
      %2668 = vst.msk [vmem:[%s520 + $0x30] sm:$0xff] %vm708, %v2585
      %2669 = vst.msk [vmem:[%s520 + $0x38] sm:$0xff] %vm708, %v2588
      %2670 = vst.msk [vmem:[%s520 + $0x40] sm:$0xff] %vm708, %v2591
      %2671 = vst.msk [vmem:[%s520 + $0x48] sm:$0xff] %vm708, %v2594
      %2672 = vst.msk [vmem:[%s520 + $0x50] sm:$0xff] %vm708, %v2597
      %2673 = vst.msk [vmem:[%s520 + $0x58] sm:$0xff] %vm708, %v2600
      %2674 = vst.msk [vmem:[%s520 + $0x60] sm:$0xff] %vm708, %v2603
      %2675 = vst.msk [vmem:[%s520 + $0x68] sm:$0xff] %vm708, %v2606
      %2676 = vst.msk [vmem:[%s520 + $0x70] sm:$0xff] %vm708, %v2609
      %2677 = vst.msk [vmem:[%s520 + $0x78] sm:$0xff] %vm708, %v2612
      %2678 = vst.msk [vmem:[%s520 + $0x80] sm:$0xff] %vm708, %v2615
      %2679 = vst.msk [vmem:[%s520 + $0x88] sm:$0xff] %vm708, %v2618
      %2680 = vst.msk [vmem:[%s520 + $0x90] sm:$0xff] %vm708, %v2621
      %2681 = vst.msk [vmem:[%s520 + $0x98] sm:$0xff] %vm708, %v2624
      %2682 = vst.msk [vmem:[%s520 + $0xa0] sm:$0xff] %vm708, %v2627
      %2683 = vst.msk [vmem:[%s520 + $0xa8] sm:$0xff] %vm708, %v2630
      %2684 = vst.msk [vmem:[%s520 + $0xb0] sm:$0xff] %vm708, %v2633
      %2685 = vst.msk [vmem:[%s520 + $0xb8] sm:$0xff] %vm708, %v2636
      %2686 = vst.msk [vmem:[%s520 + $0xc0] sm:$0xff] %vm708, %v2639
      %2687 = vst.msk [vmem:[%s520 + $0xc8] sm:$0xff] %vm708, %v2642
      %2688 = vst.msk [vmem:[%s520 + $0xd0] sm:$0xff] %vm708, %v2645
      %2689 = vst.msk [vmem:[%s520 + $0xd8] sm:$0xff] %vm708, %v2648
      %2690 = vst.msk [vmem:[%s520 + $0xe0] sm:$0xff] %vm708, %v2651
      %2691 = vst.msk [vmem:[%s520 + $0xe8] sm:$0xff] %vm708, %v2654
      %2692 = vst.msk [vmem:[%s520 + $0xf0] sm:$0xff] %vm708, %v2657
      %2693 = vst.msk [vmem:[%s520 + $0xf8] sm:$0xff] %vm708, %v2660
      %v2694 = vsel %vm708, %v2567, 0.0
      %v2695 = vsel %vm708, %v2570, 0.0
      %v2696 = vadd.f32 %v2694, %v2695
      %v2697 = vsel %vm708, %v2573, 0.0
      %v2698 = vadd.f32 %v2696, %v2697
      %v2699 = vsel %vm708, %v2576, 0.0
      %v2700 = vadd.f32 %v2698, %v2699
      %v2701 = vsel %vm708, %v2579, 0.0
      %v2702 = vadd.f32 %v2700, %v2701
      %v2703 = vsel %vm708, %v2582, 0.0
      %v2704 = vadd.f32 %v2702, %v2703
      %v2705 = vsel %vm708, %v2585, 0.0
      %v2706 = vadd.f32 %v2704, %v2705
      %v2707 = vsel %vm708, %v2588, 0.0
      %v2708 = vadd.f32 %v2706, %v2707
      %v2709 = vsel %vm708, %v2591, 0.0
      %v2710 = vadd.f32 %v2708, %v2709
      %v2711 = vsel %vm708, %v2594, 0.0
      %v2712 = vadd.f32 %v2710, %v2711
      %v2713 = vsel %vm708, %v2597, 0.0
      %v2714 = vadd.f32 %v2712, %v2713
      %v2715 = vsel %vm708, %v2600, 0.0
      %v2716 = vadd.f32 %v2714, %v2715
      %v2717 = vsel %vm708, %v2603, 0.0
      %v2718 = vadd.f32 %v2716, %v2717
      %v2719 = vsel %vm708, %v2606, 0.0
      %v2720 = vadd.f32 %v2718, %v2719
      %v2721 = vsel %vm708, %v2609, 0.0
      %v2722 = vadd.f32 %v2720, %v2721
      %v2723 = vsel %vm708, %v2612, 0.0
      %v2724 = vadd.f32 %v2722, %v2723
      %v2725 = vsel %vm708, %v2615, 0.0
      %v2726 = vadd.f32 %v2724, %v2725
      %v2727 = vsel %vm708, %v2618, 0.0
      %v2728 = vadd.f32 %v2726, %v2727
      %v2729 = vsel %vm708, %v2621, 0.0
      %v2730 = vadd.f32 %v2728, %v2729
      %v2731 = vsel %vm708, %v2624, 0.0
      %v2732 = vadd.f32 %v2730, %v2731
      %v2733 = vsel %vm708, %v2627, 0.0
      %v2734 = vadd.f32 %v2732, %v2733
      %v2735 = vsel %vm708, %v2630, 0.0
      %v2736 = vadd.f32 %v2734, %v2735
      %v2737 = vsel %vm708, %v2633, 0.0
      %v2738 = vadd.f32 %v2736, %v2737
      %v2739 = vsel %vm708, %v2636, 0.0
      %v2740 = vadd.f32 %v2738, %v2739
      %v2741 = vsel %vm708, %v2639, 0.0
      %v2742 = vadd.f32 %v2740, %v2741
      %v2743 = vsel %vm708, %v2642, 0.0
      %v2744 = vadd.f32 %v2742, %v2743
      %v2745 = vsel %vm708, %v2645, 0.0
      %v2746 = vadd.f32 %v2744, %v2745
      %v2747 = vsel %vm708, %v2648, 0.0
      %v2748 = vadd.f32 %v2746, %v2747
      %v2749 = vsel %vm708, %v2651, 0.0
      %v2750 = vadd.f32 %v2748, %v2749
      %v2751 = vsel %vm708, %v2654, 0.0
      %v2752 = vadd.f32 %v2750, %v2751
      %v2753 = vsel %vm708, %v2657, 0.0
      %v2754 = vadd.f32 %v2752, %v2753
      %v2755 = vsel %vm708, %v2660, 0.0
      %v2756 = vadd.f32 %v2754, %v2755
      %v2757 = vrot.slane %v2756, 4
      %v2758 = vadd.f32 %v2756, %v2757
      %v2759 = vrot.slane %v2758, 2
      %v2760 = vadd.f32 %v2758, %v2759
      %v2761 = vrot.slane %v2760, 1
      %v2762 = vadd.f32 %v2760, %v2761
      %v2763 = vmul.f32 %v2762, 0.00390625
      %v2764 = vsub.f32 %v2567, %v2763
      %v2765 = vsub.f32 %v2570, %v2763
      %v2766 = vsub.f32 %v2573, %v2763
      %v2767 = vsub.f32 %v2576, %v2763
      %v2768 = vsub.f32 %v2579, %v2763
      %v2769 = vsub.f32 %v2582, %v2763
      %v2770 = vsub.f32 %v2585, %v2763
      %v2771 = vsub.f32 %v2588, %v2763
      %v2772 = vsub.f32 %v2591, %v2763
      %v2773 = vsub.f32 %v2594, %v2763
      %v2774 = vsub.f32 %v2597, %v2763
      %v2775 = vsub.f32 %v2600, %v2763
      %v2776 = vsub.f32 %v2603, %v2763
      %v2777 = vsub.f32 %v2606, %v2763
      %v2778 = vsub.f32 %v2609, %v2763
      %v2779 = vsub.f32 %v2612, %v2763
      %v2780 = vsub.f32 %v2615, %v2763
      %v2781 = vsub.f32 %v2618, %v2763
      %v2782 = vsub.f32 %v2621, %v2763
      %v2783 = vsub.f32 %v2624, %v2763
      %v2784 = vsub.f32 %v2627, %v2763
      %v2785 = vsub.f32 %v2630, %v2763
      %v2786 = vsub.f32 %v2633, %v2763
      %v2787 = vsub.f32 %v2636, %v2763
      %v2788 = vsub.f32 %v2639, %v2763
      %v2789 = vsub.f32 %v2642, %v2763
      %v2790 = vsub.f32 %v2645, %v2763
      %v2791 = vsub.f32 %v2648, %v2763
      %v2792 = vsub.f32 %v2651, %v2763
      %v2793 = vsub.f32 %v2654, %v2763
      %v2794 = vsub.f32 %v2657, %v2763
      %v2795 = vsub.f32 %v2660, %v2763
      %v2796 = vmul.f32 %v2764, %v2764
      %v2797 = vmul.f32 %v2765, %v2765
      %v2798 = vmul.f32 %v2766, %v2766
      %v2799 = vmul.f32 %v2767, %v2767
      %v2800 = vmul.f32 %v2768, %v2768
      %v2801 = vmul.f32 %v2769, %v2769
      %v2802 = vmul.f32 %v2770, %v2770
      %v2803 = vmul.f32 %v2771, %v2771
      %v2804 = vmul.f32 %v2772, %v2772
      %v2805 = vmul.f32 %v2773, %v2773
      %v2806 = vmul.f32 %v2774, %v2774
      %v2807 = vmul.f32 %v2775, %v2775
      %v2808 = vmul.f32 %v2776, %v2776
      %v2809 = vmul.f32 %v2777, %v2777
      %v2810 = vmul.f32 %v2778, %v2778
      %v2811 = vmul.f32 %v2779, %v2779
      %v2812 = vmul.f32 %v2780, %v2780
      %v2813 = vmul.f32 %v2781, %v2781
      %v2814 = vmul.f32 %v2782, %v2782
      %v2815 = vmul.f32 %v2783, %v2783
      %v2816 = vmul.f32 %v2784, %v2784
      %v2817 = vmul.f32 %v2785, %v2785
      %v2818 = vmul.f32 %v2786, %v2786
      %v2819 = vmul.f32 %v2787, %v2787
      %v2820 = vmul.f32 %v2788, %v2788
      %v2821 = vmul.f32 %v2789, %v2789
      %v2822 = vmul.f32 %v2790, %v2790
      %v2823 = vmul.f32 %v2791, %v2791
      %v2824 = vmul.f32 %v2792, %v2792
      %v2825 = vmul.f32 %v2793, %v2793
      %v2826 = vmul.f32 %v2794, %v2794
      %v2827 = vmul.f32 %v2795, %v2795
      %v2828 = vsel %vm708, %v2796, 0.0
      %v2829 = vsel %vm708, %v2797, 0.0
      %v2830 = vadd.f32 %v2828, %v2829
      %v2831 = vsel %vm708, %v2798, 0.0
      %v2832 = vadd.f32 %v2830, %v2831
      %v2833 = vsel %vm708, %v2799, 0.0
      %v2834 = vadd.f32 %v2832, %v2833
      %v2835 = vsel %vm708, %v2800, 0.0
      %v2836 = vadd.f32 %v2834, %v2835
      %v2837 = vsel %vm708, %v2801, 0.0
      %v2838 = vadd.f32 %v2836, %v2837
      %v2839 = vsel %vm708, %v2802, 0.0
      %v2840 = vadd.f32 %v2838, %v2839
      %v2841 = vsel %vm708, %v2803, 0.0
      %v2842 = vadd.f32 %v2840, %v2841
      %v2843 = vsel %vm708, %v2804, 0.0
      %v2844 = vadd.f32 %v2842, %v2843
      %v2845 = vsel %vm708, %v2805, 0.0
      %v2846 = vadd.f32 %v2844, %v2845
      %v2847 = vsel %vm708, %v2806, 0.0
      %v2848 = vadd.f32 %v2846, %v2847
      %v2849 = vsel %vm708, %v2807, 0.0
      %v2850 = vadd.f32 %v2848, %v2849
      %v2851 = vsel %vm708, %v2808, 0.0
      %v2852 = vadd.f32 %v2850, %v2851
      %v2853 = vsel %vm708, %v2809, 0.0
      %v2854 = vadd.f32 %v2852, %v2853
      %v2855 = vsel %vm708, %v2810, 0.0
      %v2856 = vadd.f32 %v2854, %v2855
      %v2857 = vsel %vm708, %v2811, 0.0
      %v2858 = vadd.f32 %v2856, %v2857
      %v2859 = vsel %vm708, %v2812, 0.0
      %v2860 = vadd.f32 %v2858, %v2859
      %v2861 = vsel %vm708, %v2813, 0.0
      %v2862 = vadd.f32 %v2860, %v2861
      %v2863 = vsel %vm708, %v2814, 0.0
      %v2864 = vadd.f32 %v2862, %v2863
      %v2865 = vsel %vm708, %v2815, 0.0
      %v2866 = vadd.f32 %v2864, %v2865
      %v2867 = vsel %vm708, %v2816, 0.0
      %v2868 = vadd.f32 %v2866, %v2867
      %v2869 = vsel %vm708, %v2817, 0.0
      %v2870 = vadd.f32 %v2868, %v2869
      %v2871 = vsel %vm708, %v2818, 0.0
      %v2872 = vadd.f32 %v2870, %v2871
      %v2873 = vsel %vm708, %v2819, 0.0
      %v2874 = vadd.f32 %v2872, %v2873
      %v2875 = vsel %vm708, %v2820, 0.0
      %v2876 = vadd.f32 %v2874, %v2875
      %v2877 = vsel %vm708, %v2821, 0.0
      %v2878 = vadd.f32 %v2876, %v2877
      %v2879 = vsel %vm708, %v2822, 0.0
      %v2880 = vadd.f32 %v2878, %v2879
      %v2881 = vsel %vm708, %v2823, 0.0
      %v2882 = vadd.f32 %v2880, %v2881
      %v2883 = vsel %vm708, %v2824, 0.0
      %v2884 = vadd.f32 %v2882, %v2883
      %v2885 = vsel %vm708, %v2825, 0.0
      %v2886 = vadd.f32 %v2884, %v2885
      %v2887 = vsel %vm708, %v2826, 0.0
      %v2888 = vadd.f32 %v2886, %v2887
      %v2889 = vsel %vm708, %v2827, 0.0
      %v2890 = vadd.f32 %v2888, %v2889
      %v2891 = vrot.slane %v2890, 4
      %v2892 = vadd.f32 %v2890, %v2891
      %v2893 = vrot.slane %v2892, 2
      %v2894 = vadd.f32 %v2892, %v2893
      %v2895 = vrot.slane %v2894, 1
      %v2896 = vadd.f32 %v2894, %v2895
      %2897 = vst.msk [vmem:[%s527] sm:$0x1] %vm534, %v2762
      %2898 = vst.msk [vmem:[%s533] sm:$0x1] %vm534, %v2896
      %s2899 = smul.u32 16, %s26
      %p2900 = scmp.lt.s32.totalorder %s25, 1
      %s2901 = scalar_select %p2900, %s25, 1
      %p2902 = scmp.lt.s32.totalorder %s2899, 15
      %s2903 = scalar_select %p2902, %s2899, 15
      %s2904 = smul.addr %s2903, 2
      %s2905 = smul.addr %s2901, 32
      %s2906 = sadd.s32 %s2904, %s2905
      %s2907 = smul.addr %s2906, 8
      %s2908 = scalar_lea.vmem %s7, %s2907
      %p2909 = scmp.lt.s32.totalorder %s25, 1
      %s2910 = scalar_select %p2909, %s25, 1
      %p2911 = scmp.lt.s32.totalorder %s26, 0
      %s2912 = scalar_select %p2911, %s26, 0
      %s2913 = sadd.s32 %s2912, %s2910
      %s2914 = scalar_lea.vmem %s8, %s2913
      %p2915 = scmp.lt.s32.totalorder %s25, 1
      %s2916 = scalar_select %p2915, %s25, 1
      %p2917 = scmp.lt.s32.totalorder %s26, 0
      %s2918 = scalar_select %p2917, %s26, 0
      %s2919 = sadd.s32 %s2918, %s2916
      %s2920 = scalar_lea.vmem %s9, %s2919
      // Predicated region
      $region65: #{double_conv.4} parent=47 // pred_check
        %p2921 = pneg %p237
      $region66: #{double_conv.4} parent=47 // pred_check_branch
        %2923 = sbr.rel (%p2921) target = $region68
      $region67: #{double_conv.4} parent=47 // pred_region
        %s2924 = smul.u32 16, %s26
      $region68: #{double_conv.4} parent=47 // pred_fallthru
        _
      // Predicated region
      $region69: #{double_conv.4} parent=47 // pred_check
        %p2925 = pneg %p265
      $region70: #{double_conv.4} parent=47 // pred_check_branch
        %2927 = sbr.rel (%p2925) target = $region72
      $region71: #{double_conv.4} parent=47 // pred_region
        _
      $region72: #{double_conv.4} parent=47 // pred_fallthru
        _
      // Predicated region
      $region73: #{double_conv.4} parent=47 // pred_check
        %p2928 = pneg %p293
      $region74: #{double_conv.4} parent=47 // pred_check_branch
        %2930 = sbr.rel (%p2928) target = $region76
      $region75: #{double_conv.4} parent=47 // pred_region
        _
      $region76: #{double_conv.4} parent=47 // pred_fallthru
        _
    $region48: #{double_conv.4} parent=5 // pred_fallthru
      _
    %p2931 = scmp.le.s32.totalorder 2, %s16
    // Predicated region
    $region77: #{double_conv.4} parent=5 // pred_check
      %p2932 = pneg %p2931
    $region78: #{double_conv.4} parent=5 // pred_check_branch
      %2934 = sbr.rel (%p2932) target = $region80
    $region79: #{double_conv.4} parent=5 // pred_region
      %s2935 = ssub.s32 %s16, 2
      // Predicated region
      $region81: #{double_conv.4} parent=79 // pred_check
        %p2936 = pneg %p243
      $region82: #{double_conv.4} parent=79 // pred_check_branch
        %2938 = sbr.rel (%p2936) target = $region84
      $region83: #{double_conv.4} parent=79 // pred_region
        %s2939 = smul.u32 16, %s28
        %p2940 = scmp.lt.s32.totalorder %s27, 1
        %s2941 = scalar_select %p2940, %s27, 1
        %p2942 = scmp.lt.s32.totalorder %s2939, 15
        %s2943 = scalar_select %p2942, %s2939, 15
        %s2944 = smul.addr %s2943, 2
        %s2945 = smul.addr %s2941, 32
        %s2946 = sadd.s32 %s2944, %s2945
        %s2947 = smul.addr %s2946, 8
        %s2948 = scalar_lea.vmem %s7, %s2947
      $region84: #{double_conv.4} parent=79 // pred_fallthru
        _
      // Predicated region
      $region85: #{double_conv.4} parent=79 // pred_check
        %p2949 = pneg %p271
      $region86: #{double_conv.4} parent=79 // pred_check_branch
        %2951 = sbr.rel (%p2949) target = $region88
      $region87: #{double_conv.4} parent=79 // pred_region
        %p2952 = scmp.lt.s32.totalorder %s27, 1
        %s2953 = scalar_select %p2952, %s27, 1
        %p2954 = scmp.lt.s32.totalorder %s28, 0
        %s2955 = scalar_select %p2954, %s28, 0
        %s2956 = sadd.s32 %s2955, %s2953
        %s2957 = scalar_lea.vmem %s8, %s2956
      $region88: #{double_conv.4} parent=79 // pred_fallthru
        _
      // Predicated region
      $region89: #{double_conv.4} parent=79 // pred_check
        %p2958 = pneg %p299
      $region90: #{double_conv.4} parent=79 // pred_check_branch
        %2960 = sbr.rel (%p2958) target = $region92
      $region91: #{double_conv.4} parent=79 // pred_region
        %p2961 = scmp.lt.s32.totalorder %s27, 1
        %s2962 = scalar_select %p2961, %s27, 1
        %p2963 = scmp.lt.s32.totalorder %s28, 0
        %s2964 = scalar_select %p2963, %s28, 0
        %s2965 = sadd.s32 %s2964, %s2962
        %s2966 = scalar_lea.vmem %s9, %s2965
      $region92: #{double_conv.4} parent=79 // pred_fallthru
        _
    $region80: #{double_conv.4} parent=5 // pred_fallthru
      _
  $region6: #{double_conv.4} parent=0 // loop_footer
    %s20 = sadd.s32 1, %s16
  $region7: #{double_conv.4} parent=0 // loop_footer_branch
    %15 = sbr.rel target = $region3
  $region8: #{double_conv.4} parent=0 // loop_exit
    _

</llo_original>
